<compile_context>
chip_gen: v5e
topology: v5e:2x2
jax: 0.10.0
libtpu: 0.0.40
codegen_flags: <defaults>
</compile_context>

<pallas_src>
import jax
import jax.numpy as jnp
from jax.experimental import pallas as pl
from jax.experimental.pallas import tpu as pltpu

EPS = 1e-5  # nn.BatchNorm2d default eps


def _round_up(x, m):
    return (x + m - 1) // m * m


def _pick_tile_n(n):
    """Batch tile: up to 512 rows, >=2 tiles when possible (v7x has 2 TensorCores)."""
    if n <= 8:
        return 8
    n_tiles = max(2, -(-n // 512))
    return min(512, _round_up(-(-n // n_tiles), 8))


# ---------------------------------------------------------------------------
# Fused Pallas kernel: conv1(1x1)+BN+ReLU -> conv2(5x5)+BN+ReLU -> Linear
# Grid: (batch tiles,) only; all 25 conv2 taps handled inside one invocation.
# ---------------------------------------------------------------------------
def _inception_aux_kernel(pooled_ref, w1_ref, sh1_ref, w2_ref, sh2_ref,
                          wl_ref, bl_ref, o_ref, y1_ref):
    n_taps, tile_n, _ = pooled_ref.shape
    c1 = w1_ref.shape[1]                                  # 128 conv1 output channels

    # conv1 (1x1 conv == per-tap matmul) + folded-BN shift + ReLU, staged tap-major into y1_ref.
    w1 = w1_ref[...]                                      # bf16 [Cin, 128], loaded once
    sh1 = jnp.broadcast_to(sh1_ref[...], (tile_n, c1))    # hoisted f32 broadcast
    for t in range(n_taps):                               # static unroll: 25 taps
        y1 = jnp.dot(pooled_ref[t], w1, preferred_element_type=jnp.float32)
        y1_ref[:, t * c1:(t + 1) * c1] = jnp.maximum(y1 + sh1, 0.0).astype(y1_ref.dtype)

    # conv2 (5x5 conv on the 5x5 map -> 1x1 output) as ONE K=3200 bf16 MXU matmul, f32 accumulate.
    acc = jnp.dot(y1_ref[...], w2_ref[...], preferred_element_type=jnp.float32)
    y2 = jnp.maximum(acc + sh2_ref[...], 0.0)             # conv2 BN shift + ReLU (f32)

    # TODO(synk): Dropout(p=0.7) is identity in eval mode; training-mode mask not implemented.
    o_ref[...] = (jnp.dot(y2.astype(wl_ref.dtype), wl_ref[...],
                          preferred_element_type=jnp.float32) + bl_ref[...])


# ---------------------------------------------------------------------------
# Forward pass (wrapper: avg-pool + layout, then one pallas_call)
# ---------------------------------------------------------------------------
def inception_aux_forward(x_nchw, p):
    N, C, H, W = x_nchw.shape
    OH = (H - 5) // 3 + 1
    OW = (W - 5) // 3 + 1
    assert OH == 5 and OW == 5, "conv2(5x5) + Linear(768) require a 5x5 pooled map"
    n_taps = OH * OW
    k2 = n_taps * 128                                     # 3200 = conv2 contraction size

    # AvgPool2d(5, stride=3): one XLA reduce_window; only pooled [N,C,5,5] hits HBM.
    pooled = jax.lax.reduce_window(
        x_nchw, 0.0, jax.lax.add, (1, 1, 5, 5), (1, 1, 3, 3), "VALID") * (1.0 / 25.0)
    # -> tap-major layout [25, N, C], bf16 matmul operand (accumulation stays f32 in-kernel).
    pooled = jnp.transpose(pooled, (2, 3, 0, 1)).reshape(n_taps, N, C).astype(jnp.bfloat16)

    # Batch tiling (rows -> sublanes): pad N up to a multiple of the row tile.
    tile_n = _pick_tile_n(N)
    n_pad = _round_up(N, tile_n)
    if n_pad != N:
        pooled = jnp.pad(pooled, ((0, 0), (0, n_pad - N), (0, 0)))

    out_pad = p["wl_k"].shape[1]
    out_ch = p["wl"].shape[0]

    # VMEM budget from actual block bytes (double-buffered streams + resident weights + scratch).
    need = 2 * (n_taps * tile_n * C * 2                       # pooled block (bf16)
                + (C * 128 + k2 * 768 + 768 * out_pad) * 2    # bf16 weights
                + (128 + 768 + out_pad) * 4                   # f32 shifts / bias
                + tile_n * out_pad * 4)                       # f32 output block
    need += tile_n * k2 * 2                                   # y1 staging scratch (bf16)
    vmem_limit = min(max(32 * 1024 * 1024, int(need * 1.25)), 128 * 1024 * 1024)

    grid = (n_pad // tile_n,)
    out = pl.pallas_call(
        _inception_aux_kernel,
        out_shape=jax.ShapeDtypeStruct((n_pad, out_pad), jnp.float32),
        grid_spec=pltpu.PrefetchScalarGridSpec(
            num_scalar_prefetch=0,
            grid=grid,
            in_specs=[
                # pooled taps for this batch tile: the only streaming input.
                pl.BlockSpec((n_taps, tile_n, C), lambda i: (0, i, 0)),
                # Weights / shifts: constant index_maps -> resident in VMEM, DMA'd once.
                pl.BlockSpec((C, 128), lambda i: (0, 0)),        # conv1 W (bf16, BN scale folded)
                pl.BlockSpec((1, 128), lambda i: (0, 0)),        # conv1 shift (f32)
                pl.BlockSpec((k2, 768), lambda i: (0, 0)),       # conv2 W (bf16, tap-major, folded)
                pl.BlockSpec((1, 768), lambda i: (0, 0)),        # conv2 shift (f32)
                pl.BlockSpec((768, out_pad), lambda i: (0, 0)),  # linear W (bf16, lane-padded)
                pl.BlockSpec((1, out_pad), lambda i: (0, 0)),    # linear b (f32, lane-padded)
            ],
            out_specs=pl.BlockSpec((tile_n, out_pad), lambda i: (i, 0)),
            scratch_shapes=[pltpu.VMEM((tile_n, k2), jnp.bfloat16)],  # y1 staging, K-major
        ),
        compiler_params=pltpu.CompilerParams(
            dimension_semantics=("parallel",),
            vmem_limit_bytes=vmem_limit,
        ),
    )(pooled, p["w1_k"], p["shift1"], p["w2_k"], p["shift2"], p["wl_k"], p["bl_k"])

    return out[:N, :out_ch]


# ---------------------------------------------------------------------------
# Deterministic parameter init (PyTorch layouts) + kernel-format views
# ---------------------------------------------------------------------------
def init_params(key, in_channels, out_channels):
    ks = jax.random.split(key, 16)
    p = {}
    # conv1: Conv2d(in_channels, 128, 1) + BN(128)
    p["w1"] = jax.random.normal(ks[0], (128, in_channels, 1, 1), jnp.float32) * 0.1
    p["b1"] = jax.random.normal(ks[1], (128,), jnp.float32) * 0.05
    p["g1"] = 1.0 + 0.1 * jax.random.normal(ks[2], (128,), jnp.float32)
    p["beta1"] = 0.05 * jax.random.normal(ks[3], (128,), jnp.float32)
    p["m1"] = 0.05 * jax.random.normal(ks[4], (128,), jnp.float32)
    p["v1"] = 0.5 + jax.random.uniform(ks[5], (128,), jnp.float32)
    # conv2: Conv2d(128, 768, 5) + BN(768)
    p["w2"] = jax.random.normal(ks[6], (768, 128, 5, 5), jnp.float32) * 0.02
    p["b2"] = jax.random.normal(ks[7], (768,), jnp.float32) * 0.05
    p["g2"] = 1.0 + 0.1 * jax.random.normal(ks[8], (768,), jnp.float32)
    p["beta2"] = 0.05 * jax.random.normal(ks[9], (768,), jnp.float32)
    p["m2"] = 0.05 * jax.random.normal(ks[10], (768,), jnp.float32)
    p["v2"] = 0.5 + jax.random.uniform(ks[11], (768,), jnp.float32)
    # linear: Linear(768, out_channels)
    p["wl"] = jax.random.normal(ks[12], (out_channels, 768), jnp.float32) * 0.05
    p["bl"] = jax.random.normal(ks[13], (out_channels,), jnp.float32) * 0.05

    # --- kernel-format params: fold BN (inference) scales into conv weights, cast to bf16 ---
    scale1 = p["g1"] / jnp.sqrt(p["v1"] + EPS)                            # [128]
    p["w1_k"] = (p["w1"].reshape(128, in_channels).T * scale1).astype(jnp.bfloat16)   # [Cin,128]
    p["shift1"] = ((p["b1"] - p["m1"]) * scale1 + p["beta1"]).reshape(1, 128)          # f32

    scale2 = p["g2"] / jnp.sqrt(p["v2"] + EPS)                            # [768]
    w2_hwio = jnp.transpose(p["w2"], (2, 3, 1, 0))                        # [5,5,128,768] (kh,kw,ci,co)
    p["w2_k"] = (w2_hwio * scale2).reshape(25 * 128, 768).astype(jnp.bfloat16)  # tap-major K=3200
    p["shift2"] = ((p["b2"] - p["m2"]) * scale2 + p["beta2"]).reshape(1, 768)   # f32

    # Linear, output lane-padded to a multiple of 128 columns (sliced back in wrapper).
    out_pad = _round_up(max(out_channels, 1), 128)
    p["wl_k"] = (jnp.zeros((768, out_pad), jnp.float32)
                 .at[:, :out_channels].set(p["wl"].T)).astype(jnp.bfloat16)
    p["bl_k"] = jnp.zeros((1, out_pad), jnp.float32).at[0, :out_channels].set(p["bl"])
    return p


# ---------------------------------------------------------------------------
# Pure-JAX (XLA) reference mirroring the PyTorch module exactly (NCHW, f32)
# ---------------------------------------------------------------------------
def ref_forward(x, p):
    s = jax.lax.reduce_window(x, 0.0, jax.lax.add, (1, 1, 5, 5), (1, 1, 3, 3), "VALID") / 25.0

    def bconv(y, w, b, g, beta, m, v):
        y = jax.lax.conv_general_dilated(
            y, w, (1, 1), "VALID",
            dimension_numbers=("NCHW", "OIHW", "NCHW"),
            precision=jax.lax.Precision.HIGHEST,
        ) + b[None, :, None, None]
        y = (g[None, :, None, None] * (y - m[None, :, None, None])
             / jnp.sqrt(v[None, :, None, None] + EPS) + beta[None, :, None, None])
        return jnp.maximum(y, 0.0)

    s = bconv(s, p["w1"], p["b1"], p["g1"], p["beta1"], p["m1"], p["v1"])
    s = bconv(s, p["w2"], p["b2"], p["g2"], p["beta2"], p["m2"], p["v2"])
    s = s.reshape(s.shape[0], -1)
    return s @ p["wl"].T + p["bl"][None, :]


if __name__ == "__main__":
    key = jax.random.PRNGKey(0)
    kx, kp = jax.random.split(key)

    # 17x17 input -> AvgPool(5, s=3) -> 5x5 map -> conv2(5x5) -> 1x1 -> 768 features
    N, C, H, W = 2, 4, 17, 17
    OUT = 10

    x = jax.random.normal(kx, (N, C, H, W), jnp.float32)
    params = init_params(kp, C, OUT)

    out = inception_aux_forward(x, params)
    out = jax.block_until_ready(out)

    ref = ref_forward(x, params)
    assert out.shape == (N, OUT), out.shape
    err = float(jnp.max(jnp.abs(out - ref)))
    scale = float(jnp.max(jnp.abs(ref))) + 1.0
    assert err < 1e-2 * scale, f"mismatch vs reference: max_abs_err={err}"

    print("KERNEL_OK")
</pallas_src>

<mosaic_0001>
module attributes {stable_mosaic.version = 11 : i64} {
  func.func @_inception_aux_kernel(%arg0: i32, %arg1: memref<25x8x4xbf16, #tpu.memory_space<vmem>>, %arg2: memref<4x128xbf16, #tpu.memory_space<vmem>>, %arg3: memref<1x128xf32, #tpu.memory_space<vmem>>, %arg4: memref<3200x768xbf16, #tpu.memory_space<vmem>>, %arg5: memref<1x768xf32, #tpu.memory_space<vmem>>, %arg6: memref<768x128xbf16, #tpu.memory_space<vmem>>, %arg7: memref<1x128xf32, #tpu.memory_space<vmem>>, %arg8: memref<8x128xf32, #tpu.memory_space<vmem>>, %arg9: memref<8x3200xbf16, #tpu.memory_space<vmem>>) attributes {dimension_semantics = [#tpu.dimension_semantics<parallel>], iteration_bounds = array<i64: 1>, scalar_prefetch = 0 : i64, scratch_operands = 1 : i64, tpu.core_type = #tpu.core_type<tc>, window_params = [{transform_indices = @transform_0, window_bounds = array<i64: 25, 8, 4>}, {pipeline_mode = #tpu.pipeline_mode<synchronous>, transform_indices = @transform_1, window_bounds = array<i64: 4, 128>}, {pipeline_mode = #tpu.pipeline_mode<synchronous>, transform_indices = @transform_2, window_bounds = array<i64: 1, 128>}, {pipeline_mode = #tpu.pipeline_mode<synchronous>, transform_indices = @transform_3, window_bounds = array<i64: 3200, 768>}, {pipeline_mode = #tpu.pipeline_mode<synchronous>, transform_indices = @transform_4, window_bounds = array<i64: 1, 768>}, {pipeline_mode = #tpu.pipeline_mode<synchronous>, transform_indices = @transform_5, window_bounds = array<i64: 768, 128>}, {pipeline_mode = #tpu.pipeline_mode<synchronous>, transform_indices = @transform_6, window_bounds = array<i64: 1, 128>}, {transform_indices = @transform_7, window_bounds = array<i64: 8, 128>}]} {
    %c0 = arith.constant 0 : index
    %c0_0 = arith.constant 0 : index
    %0 = vector.load %arg2[%c0, %c0_0] : memref<4x128xbf16, #tpu.memory_space<vmem>>, vector<4x128xbf16>
    %c0_1 = arith.constant 0 : index
    %c0_2 = arith.constant 0 : index
    %1 = vector.load %arg3[%c0_1, %c0_2] : memref<1x128xf32, #tpu.memory_space<vmem>>, vector<1x128xf32>
    %2 = vector.shape_cast %1 : vector<1x128xf32> to vector<1x128xf32>
    %3 = vector.broadcast %2 : vector<1x128xf32> to vector<8x128xf32>
    %c0_3 = arith.constant 0 : index
    %c0_4 = arith.constant 0 : index
    %c0_5 = arith.constant 0 : index
    %4 = vector.load %arg1[%c0_3, %c0_4, %c0_5] : memref<25x8x4xbf16, #tpu.memory_space<vmem>>, vector<1x8x4xbf16>
    %5 = vector.shape_cast %4 : vector<1x8x4xbf16> to vector<8x4xbf16>
    %cst = arith.constant dense<0.000000e+00> : vector<8x128xf32>
    %6 = tpu.matmul %5, %0, %cst {dimension_numbers = #tpu.dot_dimension_numbers<[1], [0], [0], [1], [0, 0, 1, 1], [], []>} : vector<8x4xbf16>, vector<4x128xbf16>, vector<8x128xf32> -> vector<8x128xf32>
    %7 = arith.addf %6, %3 : vector<8x128xf32>
    %cst_6 = arith.constant 0.000000e+00 : f32
    %8 = vector.broadcast %cst_6 : f32 to vector<8x128xf32>
    %9 = arith.maximumf %7, %8 : vector<8x128xf32>
    %10 = arith.truncf %9 : vector<8x128xf32> to vector<8x128xbf16>
    %c0_7 = arith.constant 0 : index
    %c0_8 = arith.constant 0 : index
    %11 = vector.load %arg9[%c0_7, %c0_8] : memref<8x3200xbf16, #tpu.memory_space<vmem>>, vector<8x128xbf16>
    tpu.vector_store %arg9[%c0_7, %c0_8], %10 {strides = array<i32>} : memref<8x3200xbf16, #tpu.memory_space<vmem>>, vector<8x128xbf16>,
    %c1 = arith.constant 1 : index
    %c0_9 = arith.constant 0 : index
    %c0_10 = arith.constant 0 : index
    %12 = vector.load %arg1[%c1, %c0_9, %c0_10] : memref<25x8x4xbf16, #tpu.memory_space<vmem>>, vector<1x8x4xbf16>
    %13 = vector.shape_cast %12 : vector<1x8x4xbf16> to vector<8x4xbf16>
    %cst_11 = arith.constant dense<0.000000e+00> : vector<8x128xf32>
    %14 = tpu.matmul %13, %0, %cst_11 {dimension_numbers = #tpu.dot_dimension_numbers<[1], [0], [0], [1], [0, 0, 1, 1], [], []>} : vector<8x4xbf16>, vector<4x128xbf16>, vector<8x128xf32> -> vector<8x128xf32>
    %15 = arith.addf %14, %3 : vector<8x128xf32>
    %cst_12 = arith.constant 0.000000e+00 : f32
    %16 = vector.broadcast %cst_12 : f32 to vector<8x128xf32>
    %17 = arith.maximumf %15, %16 : vector<8x128xf32>
    %18 = arith.truncf %17 : vector<8x128xf32> to vector<8x128xbf16>
    %c0_13 = arith.constant 0 : index
    %c128 = arith.constant 128 : index
    %19 = vector.load %arg9[%c0_13, %c128] : memref<8x3200xbf16, #tpu.memory_space<vmem>>, vector<8x128xbf16>
    tpu.vector_store %arg9[%c0_13, %c128], %18 {strides = array<i32>} : memref<8x3200xbf16, #tpu.memory_space<vmem>>, vector<8x128xbf16>,
    %c2 = arith.constant 2 : index
    %c0_14 = arith.constant 0 : index
    %c0_15 = arith.constant 0 : index
    %20 = vector.load %arg1[%c2, %c0_14, %c0_15] : memref<25x8x4xbf16, #tpu.memory_space<vmem>>, vector<1x8x4xbf16>
    %21 = vector.shape_cast %20 : vector<1x8x4xbf16> to vector<8x4xbf16>
    %cst_16 = arith.constant dense<0.000000e+00> : vector<8x128xf32>
    %22 = tpu.matmul %21, %0, %cst_16 {dimension_numbers = #tpu.dot_dimension_numbers<[1], [0], [0], [1], [0, 0, 1, 1], [], []>} : vector<8x4xbf16>, vector<4x128xbf16>, vector<8x128xf32> -> vector<8x128xf32>
    %23 = arith.addf %22, %3 : vector<8x128xf32>
    %cst_17 = arith.constant 0.000000e+00 : f32
    %24 = vector.broadcast %cst_17 : f32 to vector<8x128xf32>
    %25 = arith.maximumf %23, %24 : vector<8x128xf32>
    %26 = arith.truncf %25 : vector<8x128xf32> to vector<8x128xbf16>
    %c0_18 = arith.constant 0 : index
    %c256 = arith.constant 256 : index
    %27 = vector.load %arg9[%c0_18, %c256] : memref<8x3200xbf16, #tpu.memory_space<vmem>>, vector<8x128xbf16>
    tpu.vector_store %arg9[%c0_18, %c256], %26 {strides = array<i32>} : memref<8x3200xbf16, #tpu.memory_space<vmem>>, vector<8x128xbf16>,
    %c3 = arith.constant 3 : index
    %c0_19 = arith.constant 0 : index
    %c0_20 = arith.constant 0 : index
    %28 = vector.load %arg1[%c3, %c0_19, %c0_20] : memref<25x8x4xbf16, #tpu.memory_space<vmem>>, vector<1x8x4xbf16>
    %29 = vector.shape_cast %28 : vector<1x8x4xbf16> to vector<8x4xbf16>
    %cst_21 = arith.constant dense<0.000000e+00> : vector<8x128xf32>
    %30 = tpu.matmul %29, %0, %cst_21 {dimension_numbers = #tpu.dot_dimension_numbers<[1], [0], [0], [1], [0, 0, 1, 1], [], []>} : vector<8x4xbf16>, vector<4x128xbf16>, vector<8x128xf32> -> vector<8x128xf32>
    %31 = arith.addf %30, %3 : vector<8x128xf32>
    %cst_22 = arith.constant 0.000000e+00 : f32
    %32 = vector.broadcast %cst_22 : f32 to vector<8x128xf32>
    %33 = arith.maximumf %31, %32 : vector<8x128xf32>
    %34 = arith.truncf %33 : vector<8x128xf32> to vector<8x128xbf16>
    %c0_23 = arith.constant 0 : index
    %c384 = arith.constant 384 : index
    %35 = vector.load %arg9[%c0_23, %c384] : memref<8x3200xbf16, #tpu.memory_space<vmem>>, vector<8x128xbf16>
    tpu.vector_store %arg9[%c0_23, %c384], %34 {strides = array<i32>} : memref<8x3200xbf16, #tpu.memory_space<vmem>>, vector<8x128xbf16>,
    %c4 = arith.constant 4 : index
    %c0_24 = arith.constant 0 : index
    %c0_25 = arith.constant 0 : index
    %36 = vector.load %arg1[%c4, %c0_24, %c0_25] : memref<25x8x4xbf16, #tpu.memory_space<vmem>>, vector<1x8x4xbf16>
    %37 = vector.shape_cast %36 : vector<1x8x4xbf16> to vector<8x4xbf16>
    %cst_26 = arith.constant dense<0.000000e+00> : vector<8x128xf32>
    %38 = tpu.matmul %37, %0, %cst_26 {dimension_numbers = #tpu.dot_dimension_numbers<[1], [0], [0], [1], [0, 0, 1, 1], [], []>} : vector<8x4xbf16>, vector<4x128xbf16>, vector<8x128xf32> -> vector<8x128xf32>
    %39 = arith.addf %38, %3 : vector<8x128xf32>
    %cst_27 = arith.constant 0.000000e+00 : f32
    %40 = vector.broadcast %cst_27 : f32 to vector<8x128xf32>
    %41 = arith.maximumf %39, %40 : vector<8x128xf32>
    %42 = arith.truncf %41 : vector<8x128xf32> to vector<8x128xbf16>
    %c0_28 = arith.constant 0 : index
    %c512 = arith.constant 512 : index
    %43 = vector.load %arg9[%c0_28, %c512] : memref<8x3200xbf16, #tpu.memory_space<vmem>>, vector<8x128xbf16>
    tpu.vector_store %arg9[%c0_28, %c512], %42 {strides = array<i32>} : memref<8x3200xbf16, #tpu.memory_space<vmem>>, vector<8x128xbf16>,
    %c5 = arith.constant 5 : index
    %c0_29 = arith.constant 0 : index
    %c0_30 = arith.constant 0 : index
    %44 = vector.load %arg1[%c5, %c0_29, %c0_30] : memref<25x8x4xbf16, #tpu.memory_space<vmem>>, vector<1x8x4xbf16>
    %45 = vector.shape_cast %44 : vector<1x8x4xbf16> to vector<8x4xbf16>
    %cst_31 = arith.constant dense<0.000000e+00> : vector<8x128xf32>
    %46 = tpu.matmul %45, %0, %cst_31 {dimension_numbers = #tpu.dot_dimension_numbers<[1], [0], [0], [1], [0, 0, 1, 1], [], []>} : vector<8x4xbf16>, vector<4x128xbf16>, vector<8x128xf32> -> vector<8x128xf32>
    %47 = arith.addf %46, %3 : vector<8x128xf32>
    %cst_32 = arith.constant 0.000000e+00 : f32
    %48 = vector.broadcast %cst_32 : f32 to vector<8x128xf32>
    %49 = arith.maximumf %47, %48 : vector<8x128xf32>
    %50 = arith.truncf %49 : vector<8x128xf32> to vector<8x128xbf16>
    %c0_33 = arith.constant 0 : index
    %c640 = arith.constant 640 : index
    %51 = vector.load %arg9[%c0_33, %c640] : memref<8x3200xbf16, #tpu.memory_space<vmem>>, vector<8x128xbf16>
    tpu.vector_store %arg9[%c0_33, %c640], %50 {strides = array<i32>} : memref<8x3200xbf16, #tpu.memory_space<vmem>>, vector<8x128xbf16>,
    %c6 = arith.constant 6 : index
    %c0_34 = arith.constant 0 : index
    %c0_35 = arith.constant 0 : index
    %52 = vector.load %arg1[%c6, %c0_34, %c0_35] : memref<25x8x4xbf16, #tpu.memory_space<vmem>>, vector<1x8x4xbf16>
    %53 = vector.shape_cast %52 : vector<1x8x4xbf16> to vector<8x4xbf16>
    %cst_36 = arith.constant dense<0.000000e+00> : vector<8x128xf32>
    %54 = tpu.matmul %53, %0, %cst_36 {dimension_numbers = #tpu.dot_dimension_numbers<[1], [0], [0], [1], [0, 0, 1, 1], [], []>} : vector<8x4xbf16>, vector<4x128xbf16>, vector<8x128xf32> -> vector<8x128xf32>
    %55 = arith.addf %54, %3 : vector<8x128xf32>
    %cst_37 = arith.constant 0.000000e+00 : f32
    %56 = vector.broadcast %cst_37 : f32 to vector<8x128xf32>
    %57 = arith.maximumf %55, %56 : vector<8x128xf32>
    %58 = arith.truncf %57 : vector<8x128xf32> to vector<8x128xbf16>
    %c0_38 = arith.constant 0 : index
    %c768 = arith.constant 768 : index
    %59 = vector.load %arg9[%c0_38, %c768] : memref<8x3200xbf16, #tpu.memory_space<vmem>>, vector<8x128xbf16>
    tpu.vector_store %arg9[%c0_38, %c768], %58 {strides = array<i32>} : memref<8x3200xbf16, #tpu.memory_space<vmem>>, vector<8x128xbf16>,
    %c7 = arith.constant 7 : index
    %c0_39 = arith.constant 0 : index
    %c0_40 = arith.constant 0 : index
    %60 = vector.load %arg1[%c7, %c0_39, %c0_40] : memref<25x8x4xbf16, #tpu.memory_space<vmem>>, vector<1x8x4xbf16>
    %61 = vector.shape_cast %60 : vector<1x8x4xbf16> to vector<8x4xbf16>
    %cst_41 = arith.constant dense<0.000000e+00> : vector<8x128xf32>
    %62 = tpu.matmul %61, %0, %cst_41 {dimension_numbers = #tpu.dot_dimension_numbers<[1], [0], [0], [1], [0, 0, 1, 1], [], []>} : vector<8x4xbf16>, vector<4x128xbf16>, vector<8x128xf32> -> vector<8x128xf32>
    %63 = arith.addf %62, %3 : vector<8x128xf32>
    %cst_42 = arith.constant 0.000000e+00 : f32
    %64 = vector.broadcast %cst_42 : f32 to vector<8x128xf32>
    %65 = arith.maximumf %63, %64 : vector<8x128xf32>
    %66 = arith.truncf %65 : vector<8x128xf32> to vector<8x128xbf16>
    %c0_43 = arith.constant 0 : index
    %c896 = arith.constant 896 : index
    %67 = vector.load %arg9[%c0_43, %c896] : memref<8x3200xbf16, #tpu.memory_space<vmem>>, vector<8x128xbf16>
    tpu.vector_store %arg9[%c0_43, %c896], %66 {strides = array<i32>} : memref<8x3200xbf16, #tpu.memory_space<vmem>>, vector<8x128xbf16>,
    %c8 = arith.constant 8 : index
    %c0_44 = arith.constant 0 : index
    %c0_45 = arith.constant 0 : index
    %68 = vector.load %arg1[%c8, %c0_44, %c0_45] : memref<25x8x4xbf16, #tpu.memory_space<vmem>>, vector<1x8x4xbf16>
    %69 = vector.shape_cast %68 : vector<1x8x4xbf16> to vector<8x4xbf16>
    %cst_46 = arith.constant dense<0.000000e+00> : vector<8x128xf32>
    %70 = tpu.matmul %69, %0, %cst_46 {dimension_numbers = #tpu.dot_dimension_numbers<[1], [0], [0], [1], [0, 0, 1, 1], [], []>} : vector<8x4xbf16>, vector<4x128xbf16>, vector<8x128xf32> -> vector<8x128xf32>
    %71 = arith.addf %70, %3 : vector<8x128xf32>
    %cst_47 = arith.constant 0.000000e+00 : f32
    %72 = vector.broadcast %cst_47 : f32 to vector<8x128xf32>
    %73 = arith.maximumf %71, %72 : vector<8x128xf32>
    %74 = arith.truncf %73 : vector<8x128xf32> to vector<8x128xbf16>
    %c0_48 = arith.constant 0 : index
    %c1024 = arith.constant 1024 : index
    %75 = vector.load %arg9[%c0_48, %c1024] : memref<8x3200xbf16, #tpu.memory_space<vmem>>, vector<8x128xbf16>
    tpu.vector_store %arg9[%c0_48, %c1024], %74 {strides = array<i32>} : memref<8x3200xbf16, #tpu.memory_space<vmem>>, vector<8x128xbf16>,
    %c9 = arith.constant 9 : index
    %c0_49 = arith.constant 0 : index
    %c0_50 = arith.constant 0 : index
    %76 = vector.load %arg1[%c9, %c0_49, %c0_50] : memref<25x8x4xbf16, #tpu.memory_space<vmem>>, vector<1x8x4xbf16>
    %77 = vector.shape_cast %76 : vector<1x8x4xbf16> to vector<8x4xbf16>
    %cst_51 = arith.constant dense<0.000000e+00> : vector<8x128xf32>
    %78 = tpu.matmul %77, %0, %cst_51 {dimension_numbers = #tpu.dot_dimension_numbers<[1], [0], [0], [1], [0, 0, 1, 1], [], []>} : vector<8x4xbf16>, vector<4x128xbf16>, vector<8x128xf32> -> vector<8x128xf32>
    %79 = arith.addf %78, %3 : vector<8x128xf32>
    %cst_52 = arith.constant 0.000000e+00 : f32
    %80 = vector.broadcast %cst_52 : f32 to vector<8x128xf32>
    %81 = arith.maximumf %79, %80 : vector<8x128xf32>
    %82 = arith.truncf %81 : vector<8x128xf32> to vector<8x128xbf16>
    %c0_53 = arith.constant 0 : index
    %c1152 = arith.constant 1152 : index
    %83 = vector.load %arg9[%c0_53, %c1152] : memref<8x3200xbf16, #tpu.memory_space<vmem>>, vector<8x128xbf16>
    tpu.vector_store %arg9[%c0_53, %c1152], %82 {strides = array<i32>} : memref<8x3200xbf16, #tpu.memory_space<vmem>>, vector<8x128xbf16>,
    %c10 = arith.constant 10 : index
    %c0_54 = arith.constant 0 : index
    %c0_55 = arith.constant 0 : index
    %84 = vector.load %arg1[%c10, %c0_54, %c0_55] : memref<25x8x4xbf16, #tpu.memory_space<vmem>>, vector<1x8x4xbf16>
    %85 = vector.shape_cast %84 : vector<1x8x4xbf16> to vector<8x4xbf16>
    %cst_56 = arith.constant dense<0.000000e+00> : vector<8x128xf32>
    %86 = tpu.matmul %85, %0, %cst_56 {dimension_numbers = #tpu.dot_dimension_numbers<[1], [0], [0], [1], [0, 0, 1, 1], [], []>} : vector<8x4xbf16>, vector<4x128xbf16>, vector<8x128xf32> -> vector<8x128xf32>
    %87 = arith.addf %86, %3 : vector<8x128xf32>
    %cst_57 = arith.constant 0.000000e+00 : f32
    %88 = vector.broadcast %cst_57 : f32 to vector<8x128xf32>
    %89 = arith.maximumf %87, %88 : vector<8x128xf32>
    %90 = arith.truncf %89 : vector<8x128xf32> to vector<8x128xbf16>
    %c0_58 = arith.constant 0 : index
    %c1280 = arith.constant 1280 : index
    %91 = vector.load %arg9[%c0_58, %c1280] : memref<8x3200xbf16, #tpu.memory_space<vmem>>, vector<8x128xbf16>
    tpu.vector_store %arg9[%c0_58, %c1280], %90 {strides = array<i32>} : memref<8x3200xbf16, #tpu.memory_space<vmem>>, vector<8x128xbf16>,
    %c11 = arith.constant 11 : index
    %c0_59 = arith.constant 0 : index
    %c0_60 = arith.constant 0 : index
    %92 = vector.load %arg1[%c11, %c0_59, %c0_60] : memref<25x8x4xbf16, #tpu.memory_space<vmem>>, vector<1x8x4xbf16>
    %93 = vector.shape_cast %92 : vector<1x8x4xbf16> to vector<8x4xbf16>
    %cst_61 = arith.constant dense<0.000000e+00> : vector<8x128xf32>
    %94 = tpu.matmul %93, %0, %cst_61 {dimension_numbers = #tpu.dot_dimension_numbers<[1], [0], [0], [1], [0, 0, 1, 1], [], []>} : vector<8x4xbf16>, vector<4x128xbf16>, vector<8x128xf32> -> vector<8x128xf32>
    %95 = arith.addf %94, %3 : vector<8x128xf32>
    %cst_62 = arith.constant 0.000000e+00 : f32
    %96 = vector.broadcast %cst_62 : f32 to vector<8x128xf32>
    %97 = arith.maximumf %95, %96 : vector<8x128xf32>
    %98 = arith.truncf %97 : vector<8x128xf32> to vector<8x128xbf16>
    %c0_63 = arith.constant 0 : index
    %c1408 = arith.constant 1408 : index
    %99 = vector.load %arg9[%c0_63, %c1408] : memref<8x3200xbf16, #tpu.memory_space<vmem>>, vector<8x128xbf16>
    tpu.vector_store %arg9[%c0_63, %c1408], %98 {strides = array<i32>} : memref<8x3200xbf16, #tpu.memory_space<vmem>>, vector<8x128xbf16>,
    %c12 = arith.constant 12 : index
    %c0_64 = arith.constant 0 : index
    %c0_65 = arith.constant 0 : index
    %100 = vector.load %arg1[%c12, %c0_64, %c0_65] : memref<25x8x4xbf16, #tpu.memory_space<vmem>>, vector<1x8x4xbf16>
    %101 = vector.shape_cast %100 : vector<1x8x4xbf16> to vector<8x4xbf16>
    %cst_66 = arith.constant dense<0.000000e+00> : vector<8x128xf32>
    %102 = tpu.matmul %101, %0, %cst_66 {dimension_numbers = #tpu.dot_dimension_numbers<[1], [0], [0], [1], [0, 0, 1, 1], [], []>} : vector<8x4xbf16>, vector<4x128xbf16>, vector<8x128xf32> -> vector<8x128xf32>
    %103 = arith.addf %102, %3 : vector<8x128xf32>
    %cst_67 = arith.constant 0.000000e+00 : f32
    %104 = vector.broadcast %cst_67 : f32 to vector<8x128xf32>
    %105 = arith.maximumf %103, %104 : vector<8x128xf32>
    %106 = arith.truncf %105 : vector<8x128xf32> to vector<8x128xbf16>
    %c0_68 = arith.constant 0 : index
    %c1536 = arith.constant 1536 : index
    %107 = vector.load %arg9[%c0_68, %c1536] : memref<8x3200xbf16, #tpu.memory_space<vmem>>, vector<8x128xbf16>
    tpu.vector_store %arg9[%c0_68, %c1536], %106 {strides = array<i32>} : memref<8x3200xbf16, #tpu.memory_space<vmem>>, vector<8x128xbf16>,
    %c13 = arith.constant 13 : index
    %c0_69 = arith.constant 0 : index
    %c0_70 = arith.constant 0 : index
    %108 = vector.load %arg1[%c13, %c0_69, %c0_70] : memref<25x8x4xbf16, #tpu.memory_space<vmem>>, vector<1x8x4xbf16>
    %109 = vector.shape_cast %108 : vector<1x8x4xbf16> to vector<8x4xbf16>
    %cst_71 = arith.constant dense<0.000000e+00> : vector<8x128xf32>
    %110 = tpu.matmul %109, %0, %cst_71 {dimension_numbers = #tpu.dot_dimension_numbers<[1], [0], [0], [1], [0, 0, 1, 1], [], []>} : vector<8x4xbf16>, vector<4x128xbf16>, vector<8x128xf32> -> vector<8x128xf32>
    %111 = arith.addf %110, %3 : vector<8x128xf32>
    %cst_72 = arith.constant 0.000000e+00 : f32
    %112 = vector.broadcast %cst_72 : f32 to vector<8x128xf32>
    %113 = arith.maximumf %111, %112 : vector<8x128xf32>
    %114 = arith.truncf %113 : vector<8x128xf32> to vector<8x128xbf16>
    %c0_73 = arith.constant 0 : index
    %c1664 = arith.constant 1664 : index
    %115 = vector.load %arg9[%c0_73, %c1664] : memref<8x3200xbf16, #tpu.memory_space<vmem>>, vector<8x128xbf16>
    tpu.vector_store %arg9[%c0_73, %c1664], %114 {strides = array<i32>} : memref<8x3200xbf16, #tpu.memory_space<vmem>>, vector<8x128xbf16>,
    %c14 = arith.constant 14 : index
    %c0_74 = arith.constant 0 : index
    %c0_75 = arith.constant 0 : index
    %116 = vector.load %arg1[%c14, %c0_74, %c0_75] : memref<25x8x4xbf16, #tpu.memory_space<vmem>>, vector<1x8x4xbf16>
    %117 = vector.shape_cast %116 : vector<1x8x4xbf16> to vector<8x4xbf16>
    %cst_76 = arith.constant dense<0.000000e+00> : vector<8x128xf32>
    %118 = tpu.matmul %117, %0, %cst_76 {dimension_numbers = #tpu.dot_dimension_numbers<[1], [0], [0], [1], [0, 0, 1, 1], [], []>} : vector<8x4xbf16>, vector<4x128xbf16>, vector<8x128xf32> -> vector<8x128xf32>
    %119 = arith.addf %118, %3 : vector<8x128xf32>
    %cst_77 = arith.constant 0.000000e+00 : f32
    %120 = vector.broadcast %cst_77 : f32 to vector<8x128xf32>
    %121 = arith.maximumf %119, %120 : vector<8x128xf32>
    %122 = arith.truncf %121 : vector<8x128xf32> to vector<8x128xbf16>
    %c0_78 = arith.constant 0 : index
    %c1792 = arith.constant 1792 : index
    %123 = vector.load %arg9[%c0_78, %c1792] : memref<8x3200xbf16, #tpu.memory_space<vmem>>, vector<8x128xbf16>
    tpu.vector_store %arg9[%c0_78, %c1792], %122 {strides = array<i32>} : memref<8x3200xbf16, #tpu.memory_space<vmem>>, vector<8x128xbf16>,
    %c15 = arith.constant 15 : index
    %c0_79 = arith.constant 0 : index
    %c0_80 = arith.constant 0 : index
    %124 = vector.load %arg1[%c15, %c0_79, %c0_80] : memref<25x8x4xbf16, #tpu.memory_space<vmem>>, vector<1x8x4xbf16>
    %125 = vector.shape_cast %124 : vector<1x8x4xbf16> to vector<8x4xbf16>
    %cst_81 = arith.constant dense<0.000000e+00> : vector<8x128xf32>
    %126 = tpu.matmul %125, %0, %cst_81 {dimension_numbers = #tpu.dot_dimension_numbers<[1], [0], [0], [1], [0, 0, 1, 1], [], []>} : vector<8x4xbf16>, vector<4x128xbf16>, vector<8x128xf32> -> vector<8x128xf32>
    %127 = arith.addf %126, %3 : vector<8x128xf32>
    %cst_82 = arith.constant 0.000000e+00 : f32
    %128 = vector.broadcast %cst_82 : f32 to vector<8x128xf32>
    %129 = arith.maximumf %127, %128 : vector<8x128xf32>
    %130 = arith.truncf %129 : vector<8x128xf32> to vector<8x128xbf16>
    %c0_83 = arith.constant 0 : index
    %c1920 = arith.constant 1920 : index
    %131 = vector.load %arg9[%c0_83, %c1920] : memref<8x3200xbf16, #tpu.memory_space<vmem>>, vector<8x128xbf16>
    tpu.vector_store %arg9[%c0_83, %c1920], %130 {strides = array<i32>} : memref<8x3200xbf16, #tpu.memory_space<vmem>>, vector<8x128xbf16>,
    %c16 = arith.constant 16 : index
    %c0_84 = arith.constant 0 : index
    %c0_85 = arith.constant 0 : index
    %132 = vector.load %arg1[%c16, %c0_84, %c0_85] : memref<25x8x4xbf16, #tpu.memory_space<vmem>>, vector<1x8x4xbf16>
    %133 = vector.shape_cast %132 : vector<1x8x4xbf16> to vector<8x4xbf16>
    %cst_86 = arith.constant dense<0.000000e+00> : vector<8x128xf32>
    %134 = tpu.matmul %133, %0, %cst_86 {dimension_numbers = #tpu.dot_dimension_numbers<[1], [0], [0], [1], [0, 0, 1, 1], [], []>} : vector<8x4xbf16>, vector<4x128xbf16>, vector<8x128xf32> -> vector<8x128xf32>
    %135 = arith.addf %134, %3 : vector<8x128xf32>
    %cst_87 = arith.constant 0.000000e+00 : f32
    %136 = vector.broadcast %cst_87 : f32 to vector<8x128xf32>
    %137 = arith.maximumf %135, %136 : vector<8x128xf32>
    %138 = arith.truncf %137 : vector<8x128xf32> to vector<8x128xbf16>
    %c0_88 = arith.constant 0 : index
    %c2048 = arith.constant 2048 : index
    %139 = vector.load %arg9[%c0_88, %c2048] : memref<8x3200xbf16, #tpu.memory_space<vmem>>, vector<8x128xbf16>
    tpu.vector_store %arg9[%c0_88, %c2048], %138 {strides = array<i32>} : memref<8x3200xbf16, #tpu.memory_space<vmem>>, vector<8x128xbf16>,
    %c17 = arith.constant 17 : index
    %c0_89 = arith.constant 0 : index
    %c0_90 = arith.constant 0 : index
    %140 = vector.load %arg1[%c17, %c0_89, %c0_90] : memref<25x8x4xbf16, #tpu.memory_space<vmem>>, vector<1x8x4xbf16>
    %141 = vector.shape_cast %140 : vector<1x8x4xbf16> to vector<8x4xbf16>
    %cst_91 = arith.constant dense<0.000000e+00> : vector<8x128xf32>
    %142 = tpu.matmul %141, %0, %cst_91 {dimension_numbers = #tpu.dot_dimension_numbers<[1], [0], [0], [1], [0, 0, 1, 1], [], []>} : vector<8x4xbf16>, vector<4x128xbf16>, vector<8x128xf32> -> vector<8x128xf32>
    %143 = arith.addf %142, %3 : vector<8x128xf32>
    %cst_92 = arith.constant 0.000000e+00 : f32
    %144 = vector.broadcast %cst_92 : f32 to vector<8x128xf32>
    %145 = arith.maximumf %143, %144 : vector<8x128xf32>
    %146 = arith.truncf %145 : vector<8x128xf32> to vector<8x128xbf16>
    %c0_93 = arith.constant 0 : index
    %c2176 = arith.constant 2176 : index
    %147 = vector.load %arg9[%c0_93, %c2176] : memref<8x3200xbf16, #tpu.memory_space<vmem>>, vector<8x128xbf16>
    tpu.vector_store %arg9[%c0_93, %c2176], %146 {strides = array<i32>} : memref<8x3200xbf16, #tpu.memory_space<vmem>>, vector<8x128xbf16>,
    %c18 = arith.constant 18 : index
    %c0_94 = arith.constant 0 : index
    %c0_95 = arith.constant 0 : index
    %148 = vector.load %arg1[%c18, %c0_94, %c0_95] : memref<25x8x4xbf16, #tpu.memory_space<vmem>>, vector<1x8x4xbf16>
    %149 = vector.shape_cast %148 : vector<1x8x4xbf16> to vector<8x4xbf16>
    %cst_96 = arith.constant dense<0.000000e+00> : vector<8x128xf32>
    %150 = tpu.matmul %149, %0, %cst_96 {dimension_numbers = #tpu.dot_dimension_numbers<[1], [0], [0], [1], [0, 0, 1, 1], [], []>} : vector<8x4xbf16>, vector<4x128xbf16>, vector<8x128xf32> -> vector<8x128xf32>
    %151 = arith.addf %150, %3 : vector<8x128xf32>
    %cst_97 = arith.constant 0.000000e+00 : f32
    %152 = vector.broadcast %cst_97 : f32 to vector<8x128xf32>
    %153 = arith.maximumf %151, %152 : vector<8x128xf32>
    %154 = arith.truncf %153 : vector<8x128xf32> to vector<8x128xbf16>
    %c0_98 = arith.constant 0 : index
    %c2304 = arith.constant 2304 : index
    %155 = vector.load %arg9[%c0_98, %c2304] : memref<8x3200xbf16, #tpu.memory_space<vmem>>, vector<8x128xbf16>
    tpu.vector_store %arg9[%c0_98, %c2304], %154 {strides = array<i32>} : memref<8x3200xbf16, #tpu.memory_space<vmem>>, vector<8x128xbf16>,
    %c19 = arith.constant 19 : index
    %c0_99 = arith.constant 0 : index
    %c0_100 = arith.constant 0 : index
    %156 = vector.load %arg1[%c19, %c0_99, %c0_100] : memref<25x8x4xbf16, #tpu.memory_space<vmem>>, vector<1x8x4xbf16>
    %157 = vector.shape_cast %156 : vector<1x8x4xbf16> to vector<8x4xbf16>
    %cst_101 = arith.constant dense<0.000000e+00> : vector<8x128xf32>
    %158 = tpu.matmul %157, %0, %cst_101 {dimension_numbers = #tpu.dot_dimension_numbers<[1], [0], [0], [1], [0, 0, 1, 1], [], []>} : vector<8x4xbf16>, vector<4x128xbf16>, vector<8x128xf32> -> vector<8x128xf32>
    %159 = arith.addf %158, %3 : vector<8x128xf32>
    %cst_102 = arith.constant 0.000000e+00 : f32
    %160 = vector.broadcast %cst_102 : f32 to vector<8x128xf32>
    %161 = arith.maximumf %159, %160 : vector<8x128xf32>
    %162 = arith.truncf %161 : vector<8x128xf32> to vector<8x128xbf16>
    %c0_103 = arith.constant 0 : index
    %c2432 = arith.constant 2432 : index
    %163 = vector.load %arg9[%c0_103, %c2432] : memref<8x3200xbf16, #tpu.memory_space<vmem>>, vector<8x128xbf16>
    tpu.vector_store %arg9[%c0_103, %c2432], %162 {strides = array<i32>} : memref<8x3200xbf16, #tpu.memory_space<vmem>>, vector<8x128xbf16>,
    %c20 = arith.constant 20 : index
    %c0_104 = arith.constant 0 : index
    %c0_105 = arith.constant 0 : index
    %164 = vector.load %arg1[%c20, %c0_104, %c0_105] : memref<25x8x4xbf16, #tpu.memory_space<vmem>>, vector<1x8x4xbf16>
    %165 = vector.shape_cast %164 : vector<1x8x4xbf16> to vector<8x4xbf16>
    %cst_106 = arith.constant dense<0.000000e+00> : vector<8x128xf32>
    %166 = tpu.matmul %165, %0, %cst_106 {dimension_numbers = #tpu.dot_dimension_numbers<[1], [0], [0], [1], [0, 0, 1, 1], [], []>} : vector<8x4xbf16>, vector<4x128xbf16>, vector<8x128xf32> -> vector<8x128xf32>
    %167 = arith.addf %166, %3 : vector<8x128xf32>
    %cst_107 = arith.constant 0.000000e+00 : f32
    %168 = vector.broadcast %cst_107 : f32 to vector<8x128xf32>
    %169 = arith.maximumf %167, %168 : vector<8x128xf32>
    %170 = arith.truncf %169 : vector<8x128xf32> to vector<8x128xbf16>
    %c0_108 = arith.constant 0 : index
    %c2560 = arith.constant 2560 : index
    %171 = vector.load %arg9[%c0_108, %c2560] : memref<8x3200xbf16, #tpu.memory_space<vmem>>, vector<8x128xbf16>
    tpu.vector_store %arg9[%c0_108, %c2560], %170 {strides = array<i32>} : memref<8x3200xbf16, #tpu.memory_space<vmem>>, vector<8x128xbf16>,
    %c21 = arith.constant 21 : index
    %c0_109 = arith.constant 0 : index
    %c0_110 = arith.constant 0 : index
    %172 = vector.load %arg1[%c21, %c0_109, %c0_110] : memref<25x8x4xbf16, #tpu.memory_space<vmem>>, vector<1x8x4xbf16>
    %173 = vector.shape_cast %172 : vector<1x8x4xbf16> to vector<8x4xbf16>
    %cst_111 = arith.constant dense<0.000000e+00> : vector<8x128xf32>
    %174 = tpu.matmul %173, %0, %cst_111 {dimension_numbers = #tpu.dot_dimension_numbers<[1], [0], [0], [1], [0, 0, 1, 1], [], []>} : vector<8x4xbf16>, vector<4x128xbf16>, vector<8x128xf32> -> vector<8x128xf32>
    %175 = arith.addf %174, %3 : vector<8x128xf32>
    %cst_112 = arith.constant 0.000000e+00 : f32
    %176 = vector.broadcast %cst_112 : f32 to vector<8x128xf32>
    %177 = arith.maximumf %175, %176 : vector<8x128xf32>
    %178 = arith.truncf %177 : vector<8x128xf32> to vector<8x128xbf16>
    %c0_113 = arith.constant 0 : index
    %c2688 = arith.constant 2688 : index
    %179 = vector.load %arg9[%c0_113, %c2688] : memref<8x3200xbf16, #tpu.memory_space<vmem>>, vector<8x128xbf16>
    tpu.vector_store %arg9[%c0_113, %c2688], %178 {strides = array<i32>} : memref<8x3200xbf16, #tpu.memory_space<vmem>>, vector<8x128xbf16>,
    %c22 = arith.constant 22 : index
    %c0_114 = arith.constant 0 : index
    %c0_115 = arith.constant 0 : index
    %180 = vector.load %arg1[%c22, %c0_114, %c0_115] : memref<25x8x4xbf16, #tpu.memory_space<vmem>>, vector<1x8x4xbf16>
    %181 = vector.shape_cast %180 : vector<1x8x4xbf16> to vector<8x4xbf16>
    %cst_116 = arith.constant dense<0.000000e+00> : vector<8x128xf32>
    %182 = tpu.matmul %181, %0, %cst_116 {dimension_numbers = #tpu.dot_dimension_numbers<[1], [0], [0], [1], [0, 0, 1, 1], [], []>} : vector<8x4xbf16>, vector<4x128xbf16>, vector<8x128xf32> -> vector<8x128xf32>
    %183 = arith.addf %182, %3 : vector<8x128xf32>
    %cst_117 = arith.constant 0.000000e+00 : f32
    %184 = vector.broadcast %cst_117 : f32 to vector<8x128xf32>
    %185 = arith.maximumf %183, %184 : vector<8x128xf32>
    %186 = arith.truncf %185 : vector<8x128xf32> to vector<8x128xbf16>
    %c0_118 = arith.constant 0 : index
    %c2816 = arith.constant 2816 : index
    %187 = vector.load %arg9[%c0_118, %c2816] : memref<8x3200xbf16, #tpu.memory_space<vmem>>, vector<8x128xbf16>
    tpu.vector_store %arg9[%c0_118, %c2816], %186 {strides = array<i32>} : memref<8x3200xbf16, #tpu.memory_space<vmem>>, vector<8x128xbf16>,
    %c23 = arith.constant 23 : index
    %c0_119 = arith.constant 0 : index
    %c0_120 = arith.constant 0 : index
    %188 = vector.load %arg1[%c23, %c0_119, %c0_120] : memref<25x8x4xbf16, #tpu.memory_space<vmem>>, vector<1x8x4xbf16>
    %189 = vector.shape_cast %188 : vector<1x8x4xbf16> to vector<8x4xbf16>
    %cst_121 = arith.constant dense<0.000000e+00> : vector<8x128xf32>
    %190 = tpu.matmul %189, %0, %cst_121 {dimension_numbers = #tpu.dot_dimension_numbers<[1], [0], [0], [1], [0, 0, 1, 1], [], []>} : vector<8x4xbf16>, vector<4x128xbf16>, vector<8x128xf32> -> vector<8x128xf32>
    %191 = arith.addf %190, %3 : vector<8x128xf32>
    %cst_122 = arith.constant 0.000000e+00 : f32
    %192 = vector.broadcast %cst_122 : f32 to vector<8x128xf32>
    %193 = arith.maximumf %191, %192 : vector<8x128xf32>
    %194 = arith.truncf %193 : vector<8x128xf32> to vector<8x128xbf16>
    %c0_123 = arith.constant 0 : index
    %c2944 = arith.constant 2944 : index
    %195 = vector.load %arg9[%c0_123, %c2944] : memref<8x3200xbf16, #tpu.memory_space<vmem>>, vector<8x128xbf16>
    tpu.vector_store %arg9[%c0_123, %c2944], %194 {strides = array<i32>} : memref<8x3200xbf16, #tpu.memory_space<vmem>>, vector<8x128xbf16>,
    %c24 = arith.constant 24 : index
    %c0_124 = arith.constant 0 : index
    %c0_125 = arith.constant 0 : index
    %196 = vector.load %arg1[%c24, %c0_124, %c0_125] : memref<25x8x4xbf16, #tpu.memory_space<vmem>>, vector<1x8x4xbf16>
    %197 = vector.shape_cast %196 : vector<1x8x4xbf16> to vector<8x4xbf16>
    %cst_126 = arith.constant dense<0.000000e+00> : vector<8x128xf32>
    %198 = tpu.matmul %197, %0, %cst_126 {dimension_numbers = #tpu.dot_dimension_numbers<[1], [0], [0], [1], [0, 0, 1, 1], [], []>} : vector<8x4xbf16>, vector<4x128xbf16>, vector<8x128xf32> -> vector<8x128xf32>
    %199 = arith.addf %198, %3 : vector<8x128xf32>
    %cst_127 = arith.constant 0.000000e+00 : f32
    %200 = vector.broadcast %cst_127 : f32 to vector<8x128xf32>
    %201 = arith.maximumf %199, %200 : vector<8x128xf32>
    %202 = arith.truncf %201 : vector<8x128xf32> to vector<8x128xbf16>
    %c0_128 = arith.constant 0 : index
    %c3072 = arith.constant 3072 : index
    %203 = vector.load %arg9[%c0_128, %c3072] : memref<8x3200xbf16, #tpu.memory_space<vmem>>, vector<8x128xbf16>
    tpu.vector_store %arg9[%c0_128, %c3072], %202 {strides = array<i32>} : memref<8x3200xbf16, #tpu.memory_space<vmem>>, vector<8x128xbf16>,
    %c0_129 = arith.constant 0 : index
    %c0_130 = arith.constant 0 : index
    %204 = vector.load %arg9[%c0_129, %c0_130] : memref<8x3200xbf16, #tpu.memory_space<vmem>>, vector<8x3200xbf16>
    %c0_131 = arith.constant 0 : index
    %c0_132 = arith.constant 0 : index
    %205 = vector.load %arg4[%c0_131, %c0_132] : memref<3200x768xbf16, #tpu.memory_space<vmem>>, vector<3200x768xbf16>
    %cst_133 = arith.constant dense<0.000000e+00> : vector<8x768xf32>
    %206 = tpu.matmul %204, %205, %cst_133 {dimension_numbers = #tpu.dot_dimension_numbers<[1], [0], [0], [1], [0, 0, 1, 1], [], []>} : vector<8x3200xbf16>, vector<3200x768xbf16>, vector<8x768xf32> -> vector<8x768xf32>
    %c0_134 = arith.constant 0 : index
    %c0_135 = arith.constant 0 : index
    %207 = vector.load %arg5[%c0_134, %c0_135] : memref<1x768xf32, #tpu.memory_space<vmem>>, vector<1x768xf32>
    %208 = vector.broadcast %207 : vector<1x768xf32> to vector<8x768xf32>
    %209 = arith.addf %206, %208 : vector<8x768xf32>
    %cst_136 = arith.constant 0.000000e+00 : f32
    %210 = vector.broadcast %cst_136 : f32 to vector<8x768xf32>
    %211 = arith.maximumf %209, %210 : vector<8x768xf32>
    %212 = arith.truncf %211 : vector<8x768xf32> to vector<8x768xbf16>
    %c0_137 = arith.constant 0 : index
    %c0_138 = arith.constant 0 : index
    %213 = vector.load %arg6[%c0_137, %c0_138] : memref<768x128xbf16, #tpu.memory_space<vmem>>, vector<768x128xbf16>
    %cst_139 = arith.constant dense<0.000000e+00> : vector<8x128xf32>
    %214 = tpu.matmul %212, %213, %cst_139 {dimension_numbers = #tpu.dot_dimension_numbers<[1], [0], [0], [1], [0, 0, 1, 1], [], []>} : vector<8x768xbf16>, vector<768x128xbf16>, vector<8x128xf32> -> vector<8x128xf32>
    %c0_140 = arith.constant 0 : index
    %c0_141 = arith.constant 0 : index
    %215 = vector.load %arg7[%c0_140, %c0_141] : memref<1x128xf32, #tpu.memory_space<vmem>>, vector<1x128xf32>
    %216 = vector.broadcast %215 : vector<1x128xf32> to vector<8x128xf32>
    %217 = arith.addf %214, %216 : vector<8x128xf32>
    %c0_142 = arith.constant 0 : index
    %c0_143 = arith.constant 0 : index
    %218 = vector.load %arg8[%c0_142, %c0_143] : memref<8x128xf32, #tpu.memory_space<vmem>>, vector<8x128xf32>
    tpu.vector_store %arg8[%c0_142, %c0_143], %217 {strides = array<i32>} : memref<8x128xf32, #tpu.memory_space<vmem>>, vector<8x128xf32>,
    return
  }
  func.func @transform_0(%arg0: i32) -> (i32, i32, i32) {
    %c0_i32 = arith.constant 0 : i32
    %c0_i32_0 = arith.constant 0 : i32
    %c0_i32_1 = arith.constant 0 : i32
    return %c0_i32, %arg0, %c0_i32_0 : i32, i32, i32
  }
  func.func @transform_1(%arg0: i32) -> (i32, i32) {
    %c0_i32 = arith.constant 0 : i32
    %c0_i32_0 = arith.constant 0 : i32
    %c0_i32_1 = arith.constant 0 : i32
    return %c0_i32, %c0_i32_0 : i32, i32
  }
  func.func @transform_2(%arg0: i32) -> (i32, i32) {
    %c0_i32 = arith.constant 0 : i32
    %c0_i32_0 = arith.constant 0 : i32
    %c0_i32_1 = arith.constant 0 : i32
    return %c0_i32, %c0_i32_0 : i32, i32
  }
  func.func @transform_3(%arg0: i32) -> (i32, i32) {
    %c0_i32 = arith.constant 0 : i32
    %c0_i32_0 = arith.constant 0 : i32
    %c0_i32_1 = arith.constant 0 : i32
    return %c0_i32, %c0_i32_0 : i32, i32
  }
  func.func @transform_4(%arg0: i32) -> (i32, i32) {
    %c0_i32 = arith.constant 0 : i32
    %c0_i32_0 = arith.constant 0 : i32
    %c0_i32_1 = arith.constant 0 : i32
    return %c0_i32, %c0_i32_0 : i32, i32
  }
  func.func @transform_5(%arg0: i32) -> (i32, i32) {
    %c0_i32 = arith.constant 0 : i32
    %c0_i32_0 = arith.constant 0 : i32
    %c0_i32_1 = arith.constant 0 : i32
    return %c0_i32, %c0_i32_0 : i32, i32
  }
  func.func @transform_6(%arg0: i32) -> (i32, i32) {
    %c0_i32 = arith.constant 0 : i32
    %c0_i32_0 = arith.constant 0 : i32
    %c0_i32_1 = arith.constant 0 : i32
    return %c0_i32, %c0_i32_0 : i32, i32
  }
  func.func @transform_7(%arg0: i32) -> (i32, i32) {
    %c0_i32 = arith.constant 0 : i32
    %c0_i32_0 = arith.constant 0 : i32
    return %arg0, %c0_i32 : i32, i32
  }
}

</mosaic_0001>

<llo_original>
// kernel: tpu_custom_call.1
$region0: #{tpu_custom_call.1}
  #allocation0 [shape = 'u32[]', space=smem, size = 0x4, offset = 0x4, fixed_abs, tag = 'smem constant byte address 0x4 - core index']
  #allocation1 [shape = 'u32[72,128]{1,0:T(1,128)}', space=vmem, size = 0x9000, scoped, tag = 'internal scratch']
  #allocation2 [shape = 'bf16[8,3200]{1,0:T(8,128)(2,1)}', space=vmem, size = 0xc800, scoped, tag = 'scratch operand']
  %s0 = inlined_call_operand.vmem [shape: bf16[25,8,4], index: 0, kind: input, shape index: {}]
  %s1 = inlined_call_operand.hbm [shape: bf16[4,128], index: 1, kind: input, shape index: {}]
  %s2 = inlined_call_operand.hbm [shape: f32[1,128], index: 2, kind: input, shape index: {}]
  %s3 = inlined_call_operand.hbm [shape: bf16[3200,768], index: 3, kind: input, shape index: {}]
  %s4 = inlined_call_operand.hbm [shape: f32[1,768], index: 4, kind: input, shape index: {}]
  %s5 = inlined_call_operand.hbm [shape: bf16[768,128], index: 5, kind: input, shape index: {}]
  %s6 = inlined_call_operand.hbm [shape: f32[1,128], index: 6, kind: input, shape index: {}]
  %s7 = inlined_call_operand.hbm [shape: f32[8,128], index: 7, kind: output, shape index: {}]
  %s8 = sld [smem:[#allocation0]]
  $region62: #{tpu_custom_call.1} parent=0
    _
  %s10 = ssub.s32 1, %s8
  %s11 = scalar_select 0, %s10, %s8
  $region1: #{tpu_custom_call.1} parent=0
    #allocation3 [shape = 'u8[1024]{0}', space=vmem, size = 0x400, scoped, tag = 'input window, operand 1, single buffered']
    #allocation4 [shape = 's32[1]{0}', space=sflag, size = 0x4, scoped, tag = 'scoped memory for tpu_custom_call.1']
    #allocation5 [shape = 's32[1]{0}', space=sflag, size = 0x4, scoped, tag = 'scoped memory for tpu_custom_call.1']
    #allocation6 [shape = 'u8[512]{0}', space=vmem, size = 0x400, scoped, tag = 'input window, operand 2, single buffered']
    #allocation7 [shape = 's32[1]{0}', space=sflag, size = 0x4, scoped, tag = 'scoped memory for tpu_custom_call.1']
    #allocation8 [shape = 'u8[4915200]{0}', space=vmem, size = 0x4b0000, scoped, tag = 'input window, operand 3, single buffered']
    #allocation9 [shape = 'u8[3072]{0}', space=vmem, size = 0xc00, scoped, tag = 'input window, operand 4, single buffered']
    #allocation10 [shape = 's32[1]{0}', space=sflag, size = 0x4, scoped, tag = 'scoped memory for tpu_custom_call.1']
    #allocation11 [shape = 'u8[196608]{0}', space=vmem, size = 0x30000, scoped, tag = 'input window, operand 5, single buffered']
    #allocation12 [shape = 'u8[512]{0}', space=vmem, size = 0x400, scoped, tag = 'input window, operand 6, single buffered']
    #allocation13 [shape = 's32[1]{0}', space=sflag, size = 0x4, scoped, tag = 'scoped memory for tpu_custom_call.1']
    #allocation14 [shape = 'u8[4096]{0}', space=vmem, size = 0x1000, scoped, tag = 'output window, operand 0, single buffered']
    %12 = vsyncpa [#allocation4], 0
    %13 = vsyncpa [#allocation7], 0
    %14 = vsyncpa [#allocation10], 0
    %15 = vsyncpa [#allocation13], 0
    %16 = vsyncpa [#allocation5], 0
    // Predicated region
    $region2: #{tpu_custom_call.1} parent=1 // pred_check
      _
    $region3: #{tpu_custom_call.1} parent=1 // pred_check_branch
      %18 = sbr.rel (0) target = $region5
    $region4: #{tpu_custom_call.1} parent=1 // pred_region
      _
    $region5: #{tpu_custom_call.1} parent=1 // pred_fallthru
      _
    // Predicated region
    $region6: #{tpu_custom_call.1} parent=1 // pred_check
      _
    $region7: #{tpu_custom_call.1} parent=1 // pred_check_branch
      %20 = sbr.rel (0) target = $region9
    $region8: #{tpu_custom_call.1} parent=1 // pred_region
      %22 = vsyncadd [#allocation4], 0
      %s24 = sshll.u32 %s1, 4
      %s25 = int_to_ptr.hbm [resolvable:$true] %s24
      %s26 = sshll.u32 [#allocation3], 4
      %s27 = int_to_ptr.vmem [resolvable:$true] %s26
      %29 = dma.hbm_to_vmem [thread:$0]  %s25, 32, %s27, [#allocation4]
    $region9: #{tpu_custom_call.1} parent=1 // pred_fallthru
      _
    // Predicated region
    $region10: #{tpu_custom_call.1} parent=1 // pred_check
      _
    $region11: #{tpu_custom_call.1} parent=1 // pred_check_branch
      %31 = sbr.rel (0) target = $region13
    $region12: #{tpu_custom_call.1} parent=1 // pred_region
      %33 = vsyncadd [#allocation7], 0
      %s35 = sshll.u32 %s2, 4
      %s36 = int_to_ptr.hbm [resolvable:$true] %s35
      %s37 = sshll.u32 [#allocation6], 4
      %s38 = int_to_ptr.vmem [resolvable:$true] %s37
      %40 = dma.hbm_to_vmem [thread:$0]  %s36, 16, %s38, [#allocation7]
    $region13: #{tpu_custom_call.1} parent=1 // pred_fallthru
      _
    // Predicated region
    $region14: #{tpu_custom_call.1} parent=1 // pred_check
      _
    $region15: #{tpu_custom_call.1} parent=1 // pred_check_branch
      %42 = sbr.rel (0) target = $region17
    $region16: #{tpu_custom_call.1} parent=1 // pred_region
      %44 = vsyncadd [#allocation7], 0
      %s45 = sshll.u32 %s3, 4
      %s46 = int_to_ptr.hbm [resolvable:$true] %s45
      %s47 = sshll.u32 [#allocation8], 4
      %s48 = int_to_ptr.vmem [resolvable:$true] %s47
      %53 = dma.hbm_to_vmem [thread:$0]  %s46, 153600, %s48, [#allocation7], 384, 384, 24
    $region17: #{tpu_custom_call.1} parent=1 // pred_fallthru
      _
    // Predicated region
    $region18: #{tpu_custom_call.1} parent=1 // pred_check
      _
    $region19: #{tpu_custom_call.1} parent=1 // pred_check_branch
      %55 = sbr.rel (0) target = $region21
    $region20: #{tpu_custom_call.1} parent=1 // pred_region
      %57 = vsyncadd [#allocation10], 0
      %s59 = sshll.u32 %s4, 4
      %s60 = int_to_ptr.hbm [resolvable:$true] %s59
      %s61 = sshll.u32 [#allocation9], 4
      %s62 = int_to_ptr.vmem [resolvable:$true] %s61
      %64 = dma.hbm_to_vmem [thread:$0]  %s60, 96, %s62, [#allocation10]
    $region21: #{tpu_custom_call.1} parent=1 // pred_fallthru
      _
    // Predicated region
    $region22: #{tpu_custom_call.1} parent=1 // pred_check
      _
    $region23: #{tpu_custom_call.1} parent=1 // pred_check_branch
      %66 = sbr.rel (0) target = $region25
    $region24: #{tpu_custom_call.1} parent=1 // pred_region
      %68 = vsyncadd [#allocation10], 0
      %s69 = sshll.u32 %s5, 4
      %s70 = int_to_ptr.hbm [resolvable:$true] %s69
      %s71 = sshll.u32 [#allocation11], 4
      %s72 = int_to_ptr.vmem [resolvable:$true] %s71
      %77 = dma.hbm_to_vmem [thread:$0]  %s70, 6144, %s72, [#allocation10], 64, 64, 4
    $region25: #{tpu_custom_call.1} parent=1 // pred_fallthru
      _
    // Predicated region
    $region26: #{tpu_custom_call.1} parent=1 // pred_check
      _
    $region27: #{tpu_custom_call.1} parent=1 // pred_check_branch
      %79 = sbr.rel (0) target = $region29
    $region28: #{tpu_custom_call.1} parent=1 // pred_region
      %81 = vsyncadd [#allocation13], 0
      %s83 = sshll.u32 %s6, 4
      %s84 = int_to_ptr.hbm [resolvable:$true] %s83
      %s85 = sshll.u32 [#allocation12], 4
      %s86 = int_to_ptr.vmem [resolvable:$true] %s85
      %88 = dma.hbm_to_vmem [thread:$0]  %s84, 16, %s86, [#allocation13]
    $region29: #{tpu_custom_call.1} parent=1 // pred_fallthru
      _
    // Predicated region
    $region30: #{tpu_custom_call.1} parent=1 // pred_check
      _
    $region31: #{tpu_custom_call.1} parent=1 // pred_check_branch
      %90 = sbr.rel (0) target = $region33
    $region32: #{tpu_custom_call.1} parent=1 // pred_region
      %92 = dma.done [#allocation4], 32
    $region33: #{tpu_custom_call.1} parent=1 // pred_fallthru
      _
    // Predicated region
    $region34: #{tpu_custom_call.1} parent=1 // pred_check
      _
    $region35: #{tpu_custom_call.1} parent=1 // pred_check_branch
      %94 = sbr.rel (0) target = $region37
    $region36: #{tpu_custom_call.1} parent=1 // pred_region
      %96 = dma.done [#allocation7], 16
    $region37: #{tpu_custom_call.1} parent=1 // pred_fallthru
      _
    // Predicated region
    $region38: #{tpu_custom_call.1} parent=1 // pred_check
      _
    $region39: #{tpu_custom_call.1} parent=1 // pred_check_branch
      %98 = sbr.rel (0) target = $region41
    $region40: #{tpu_custom_call.1} parent=1 // pred_region
      %100 = dma.done [#allocation7], 153600
    $region41: #{tpu_custom_call.1} parent=1 // pred_fallthru
      _
    // Predicated region
    $region42: #{tpu_custom_call.1} parent=1 // pred_check
      _
    $region43: #{tpu_custom_call.1} parent=1 // pred_check_branch
      %102 = sbr.rel (0) target = $region45
    $region44: #{tpu_custom_call.1} parent=1 // pred_region
      %104 = dma.done [#allocation10], 96
    $region45: #{tpu_custom_call.1} parent=1 // pred_fallthru
      _
    // Predicated region
    $region46: #{tpu_custom_call.1} parent=1 // pred_check
      _
    $region47: #{tpu_custom_call.1} parent=1 // pred_check_branch
      %106 = sbr.rel (0) target = $region49
    $region48: #{tpu_custom_call.1} parent=1 // pred_region
      %108 = dma.done [#allocation10], 6144
    $region49: #{tpu_custom_call.1} parent=1 // pred_fallthru
      _
    // Predicated region
    $region50: #{tpu_custom_call.1} parent=1 // pred_check
      _
    $region51: #{tpu_custom_call.1} parent=1 // pred_check_branch
      %110 = sbr.rel (0) target = $region53
    $region52: #{tpu_custom_call.1} parent=1 // pred_region
      %112 = dma.done [#allocation13], 16
    $region53: #{tpu_custom_call.1} parent=1 // pred_fallthru
      _
    %v114 = vld [vmem:[#allocation3] sm:$0x3]
    %v115 = vld [vmem:[#allocation6] sm:$0x1]
    %v117 = vperm.slane %v115, 0
    %v119 = vld [vmem:[%s0] sm:$0xf]
    %vm120 = vcmask 31744
    %v122 = vsel %vm120, %v119, 0
    %vm124 = vcmask 1041408
    %v126 = vsel %vm124, %v114, 0
    %128 = vmatpush.bf16.msra.mxu0 0
    %129 = vmatpush.bf16.msra.mxu0 0
    %130 = vmatpush.bf16.msra.mxu0 0
    %131 = vmatpush.bf16.msra.mxu0 0
    %132 = vmatpush.bf16.msra.mxu0 0
    %133 = vmatpush.bf16.msra.mxu0 0
    %134 = vmatpush.bf16.msra.mxu0 0
    %135 = vmatpush.bf16.msra.mxu0 %v126
    %136 = vmatmul.bf16.gmra.mxu0 %v122
    %v137 = vpop.f32.mrf.mxu0
    %v138 = vadd.f32 %v117, %v137
    %v139 = vpop.f32.mrf.mxu0
    %140 = vdwg.mxu0
    %v141 = vmax.f32 %v138, 0.0
    %v142 = vpack.c.bf16 %v141, %v141
    %143 = vst [vmem:[#allocation2] sm:$0xf] %v142
    %s144 = scalar_lea.vmem %s0, 4
    %v145 = vld [vmem:[%s144] sm:$0xf]
    %v147 = vsel %vm120, %v145, 0
    %149 = vmatpush.bf16.msra.mxu0 0
    %150 = vmatpush.bf16.msra.mxu0 0
    %151 = vmatpush.bf16.msra.mxu0 0
    %152 = vmatpush.bf16.msra.mxu0 0
    %153 = vmatpush.bf16.msra.mxu0 0
    %154 = vmatpush.bf16.msra.mxu0 0
    %155 = vmatpush.bf16.msra.mxu0 0
    %156 = vmatpush.bf16.msra.mxu0 %v126
    %157 = vmatmul.bf16.gmra.mxu0 %v147
    %v158 = vpop.f32.mrf.mxu0
    %v159 = vadd.f32 %v117, %v158
    %v160 = vpop.f32.mrf.mxu0
    %161 = vdwg.mxu0
    %v162 = vmax.f32 %v159, 0.0
    %v163 = vpack.c.bf16 %v162, %v162
    %164 = vst [vmem:[#allocation2 + $0x4] sm:$0xf] %v163
    %s165 = scalar_lea.vmem %s0, 8
    %v166 = vld [vmem:[%s165] sm:$0xf]
    %v168 = vsel %vm120, %v166, 0
    %170 = vmatpush.bf16.msra.mxu0 0
    %171 = vmatpush.bf16.msra.mxu0 0
    %172 = vmatpush.bf16.msra.mxu0 0
    %173 = vmatpush.bf16.msra.mxu0 0
    %174 = vmatpush.bf16.msra.mxu0 0
    %175 = vmatpush.bf16.msra.mxu0 0
    %176 = vmatpush.bf16.msra.mxu0 0
    %177 = vmatpush.bf16.msra.mxu0 %v126
    %178 = vmatmul.bf16.gmra.mxu0 %v168
    %v179 = vpop.f32.mrf.mxu0
    %v180 = vadd.f32 %v117, %v179
    %v181 = vpop.f32.mrf.mxu0
    %182 = vdwg.mxu0
    %v183 = vmax.f32 %v180, 0.0
    %v184 = vpack.c.bf16 %v183, %v183
    %185 = vst [vmem:[#allocation2 + $0x8] sm:$0xf] %v184
    %s186 = scalar_lea.vmem %s0, 12
    %v187 = vld [vmem:[%s186] sm:$0xf]
    %v189 = vsel %vm120, %v187, 0
    %191 = vmatpush.bf16.msra.mxu0 0
    %192 = vmatpush.bf16.msra.mxu0 0
    %193 = vmatpush.bf16.msra.mxu0 0
    %194 = vmatpush.bf16.msra.mxu0 0
    %195 = vmatpush.bf16.msra.mxu0 0
    %196 = vmatpush.bf16.msra.mxu0 0
    %197 = vmatpush.bf16.msra.mxu0 0
    %198 = vmatpush.bf16.msra.mxu0 %v126
    %199 = vmatmul.bf16.gmra.mxu0 %v189
    %v200 = vpop.f32.mrf.mxu0
    %v201 = vadd.f32 %v117, %v200
    %v202 = vpop.f32.mrf.mxu0
    %203 = vdwg.mxu0
    %v204 = vmax.f32 %v201, 0.0
    %v205 = vpack.c.bf16 %v204, %v204
    %206 = vst [vmem:[#allocation2 + $0xc] sm:$0xf] %v205
    %s207 = scalar_lea.vmem %s0, 16
    %v208 = vld [vmem:[%s207] sm:$0xf]
    %v210 = vsel %vm120, %v208, 0
    %212 = vmatpush.bf16.msra.mxu0 0
    %213 = vmatpush.bf16.msra.mxu0 0
    %214 = vmatpush.bf16.msra.mxu0 0
    %215 = vmatpush.bf16.msra.mxu0 0
    %216 = vmatpush.bf16.msra.mxu0 0
    %217 = vmatpush.bf16.msra.mxu0 0
    %218 = vmatpush.bf16.msra.mxu0 0
    %219 = vmatpush.bf16.msra.mxu0 %v126
    %220 = vmatmul.bf16.gmra.mxu0 %v210
    %v221 = vpop.f32.mrf.mxu0
    %v222 = vadd.f32 %v117, %v221
    %v223 = vpop.f32.mrf.mxu0
    %224 = vdwg.mxu0
    %v225 = vmax.f32 %v222, 0.0
    %v226 = vpack.c.bf16 %v225, %v225
    %227 = vst [vmem:[#allocation2 + $0x10] sm:$0xf] %v226
    %s228 = scalar_lea.vmem %s0, 20
    %v229 = vld [vmem:[%s228] sm:$0xf]
    %v231 = vsel %vm120, %v229, 0
    %233 = vmatpush.bf16.msra.mxu0 0
    %234 = vmatpush.bf16.msra.mxu0 0
    %235 = vmatpush.bf16.msra.mxu0 0
    %236 = vmatpush.bf16.msra.mxu0 0
    %237 = vmatpush.bf16.msra.mxu0 0
    %238 = vmatpush.bf16.msra.mxu0 0
    %239 = vmatpush.bf16.msra.mxu0 0
    %240 = vmatpush.bf16.msra.mxu0 %v126
    %241 = vmatmul.bf16.gmra.mxu0 %v231
    %v242 = vpop.f32.mrf.mxu0
    %v243 = vadd.f32 %v117, %v242
    %v244 = vpop.f32.mrf.mxu0
    %245 = vdwg.mxu0
    %v246 = vmax.f32 %v243, 0.0
    %v247 = vpack.c.bf16 %v246, %v246
    %248 = vst [vmem:[#allocation2 + $0x14] sm:$0xf] %v247
    %s249 = scalar_lea.vmem %s0, 24
    %v250 = vld [vmem:[%s249] sm:$0xf]
    %v252 = vsel %vm120, %v250, 0
    %254 = vmatpush.bf16.msra.mxu0 0
    %255 = vmatpush.bf16.msra.mxu0 0
    %256 = vmatpush.bf16.msra.mxu0 0
    %257 = vmatpush.bf16.msra.mxu0 0
    %258 = vmatpush.bf16.msra.mxu0 0
    %259 = vmatpush.bf16.msra.mxu0 0
    %260 = vmatpush.bf16.msra.mxu0 0
    %261 = vmatpush.bf16.msra.mxu0 %v126
    %262 = vmatmul.bf16.gmra.mxu0 %v252
    %v263 = vpop.f32.mrf.mxu0
    %v264 = vadd.f32 %v117, %v263
    %v265 = vpop.f32.mrf.mxu0
    %266 = vdwg.mxu0
    %v267 = vmax.f32 %v264, 0.0
    %v268 = vpack.c.bf16 %v267, %v267
    %269 = vst [vmem:[#allocation2 + $0x18] sm:$0xf] %v268
    %s270 = scalar_lea.vmem %s0, 28
    %v271 = vld [vmem:[%s270] sm:$0xf]
    %v273 = vsel %vm120, %v271, 0
    %275 = vmatpush.bf16.msra.mxu0 0
    %276 = vmatpush.bf16.msra.mxu0 0
    %277 = vmatpush.bf16.msra.mxu0 0
    %278 = vmatpush.bf16.msra.mxu0 0
    %279 = vmatpush.bf16.msra.mxu0 0
    %280 = vmatpush.bf16.msra.mxu0 0
    %281 = vmatpush.bf16.msra.mxu0 0
    %282 = vmatpush.bf16.msra.mxu0 %v126
    %283 = vmatmul.bf16.gmra.mxu0 %v273
    %v284 = vpop.f32.mrf.mxu0
    %v285 = vadd.f32 %v117, %v284
    %v286 = vpop.f32.mrf.mxu0
    %287 = vdwg.mxu0
    %v288 = vmax.f32 %v285, 0.0
    %v289 = vpack.c.bf16 %v288, %v288
    %290 = vst [vmem:[#allocation2 + $0x1c] sm:$0xf] %v289
    %s291 = scalar_lea.vmem %s0, 32
    %v292 = vld [vmem:[%s291] sm:$0xf]
    %v294 = vsel %vm120, %v292, 0
    %296 = vmatpush.bf16.msra.mxu0 0
    %297 = vmatpush.bf16.msra.mxu0 0
    %298 = vmatpush.bf16.msra.mxu0 0
    %299 = vmatpush.bf16.msra.mxu0 0
    %300 = vmatpush.bf16.msra.mxu0 0
    %301 = vmatpush.bf16.msra.mxu0 0
    %302 = vmatpush.bf16.msra.mxu0 0
    %303 = vmatpush.bf16.msra.mxu0 %v126
    %304 = vmatmul.bf16.gmra.mxu0 %v294
    %v305 = vpop.f32.mrf.mxu0
    %v306 = vadd.f32 %v117, %v305
    %v307 = vpop.f32.mrf.mxu0
    %308 = vdwg.mxu0
    %v309 = vmax.f32 %v306, 0.0
    %v310 = vpack.c.bf16 %v309, %v309
    %311 = vst [vmem:[#allocation2 + $0x20] sm:$0xf] %v310
    %s312 = scalar_lea.vmem %s0, 36
    %v313 = vld [vmem:[%s312] sm:$0xf]
    %v315 = vsel %vm120, %v313, 0
    %317 = vmatpush.bf16.msra.mxu0 0
    %318 = vmatpush.bf16.msra.mxu0 0
    %319 = vmatpush.bf16.msra.mxu0 0
    %320 = vmatpush.bf16.msra.mxu0 0
    %321 = vmatpush.bf16.msra.mxu0 0
    %322 = vmatpush.bf16.msra.mxu0 0
    %323 = vmatpush.bf16.msra.mxu0 0
    %324 = vmatpush.bf16.msra.mxu0 %v126
    %325 = vmatmul.bf16.gmra.mxu0 %v315
    %v326 = vpop.f32.mrf.mxu0
    %v327 = vadd.f32 %v117, %v326
    %v328 = vpop.f32.mrf.mxu0
    %329 = vdwg.mxu0
    %v330 = vmax.f32 %v327, 0.0
    %v331 = vpack.c.bf16 %v330, %v330
    %332 = vst [vmem:[#allocation2 + $0x24] sm:$0xf] %v331
    %s333 = scalar_lea.vmem %s0, 40
    %v334 = vld [vmem:[%s333] sm:$0xf]
    %v336 = vsel %vm120, %v334, 0
    %338 = vmatpush.bf16.msra.mxu0 0
    %339 = vmatpush.bf16.msra.mxu0 0
    %340 = vmatpush.bf16.msra.mxu0 0
    %341 = vmatpush.bf16.msra.mxu0 0
    %342 = vmatpush.bf16.msra.mxu0 0
    %343 = vmatpush.bf16.msra.mxu0 0
    %344 = vmatpush.bf16.msra.mxu0 0
    %345 = vmatpush.bf16.msra.mxu0 %v126
    %346 = vmatmul.bf16.gmra.mxu0 %v336
    %v347 = vpop.f32.mrf.mxu0
    %v348 = vadd.f32 %v117, %v347
    %v349 = vpop.f32.mrf.mxu0
    %350 = vdwg.mxu0
    %v351 = vmax.f32 %v348, 0.0
    %v352 = vpack.c.bf16 %v351, %v351
    %353 = vst [vmem:[#allocation2 + $0x28] sm:$0xf] %v352
    %s354 = scalar_lea.vmem %s0, 44
    %v355 = vld [vmem:[%s354] sm:$0xf]
    %v357 = vsel %vm120, %v355, 0
    %359 = vmatpush.bf16.msra.mxu0 0
    %360 = vmatpush.bf16.msra.mxu0 0
    %361 = vmatpush.bf16.msra.mxu0 0
    %362 = vmatpush.bf16.msra.mxu0 0
    %363 = vmatpush.bf16.msra.mxu0 0
    %364 = vmatpush.bf16.msra.mxu0 0
    %365 = vmatpush.bf16.msra.mxu0 0
    %366 = vmatpush.bf16.msra.mxu0 %v126
    %367 = vmatmul.bf16.gmra.mxu0 %v357
    %v368 = vpop.f32.mrf.mxu0
    %v369 = vadd.f32 %v117, %v368
    %v370 = vpop.f32.mrf.mxu0
    %371 = vdwg.mxu0
    %v372 = vmax.f32 %v369, 0.0
    %v373 = vpack.c.bf16 %v372, %v372
    %374 = vst [vmem:[#allocation2 + $0x2c] sm:$0xf] %v373
    %s375 = scalar_lea.vmem %s0, 48
    %v376 = vld [vmem:[%s375] sm:$0xf]
    %v378 = vsel %vm120, %v376, 0
    %380 = vmatpush.bf16.msra.mxu0 0
    %381 = vmatpush.bf16.msra.mxu0 0
    %382 = vmatpush.bf16.msra.mxu0 0
    %383 = vmatpush.bf16.msra.mxu0 0
    %384 = vmatpush.bf16.msra.mxu0 0
    %385 = vmatpush.bf16.msra.mxu0 0
    %386 = vmatpush.bf16.msra.mxu0 0
    %387 = vmatpush.bf16.msra.mxu0 %v126
    %388 = vmatmul.bf16.gmra.mxu0 %v378
    %v389 = vpop.f32.mrf.mxu0
    %v390 = vadd.f32 %v117, %v389
    %v391 = vpop.f32.mrf.mxu0
    %392 = vdwg.mxu0
    %v393 = vmax.f32 %v390, 0.0
    %v394 = vpack.c.bf16 %v393, %v393
    %395 = vst [vmem:[#allocation2 + $0x30] sm:$0xf] %v394
    %s396 = scalar_lea.vmem %s0, 52
    %v397 = vld [vmem:[%s396] sm:$0xf]
    %v399 = vsel %vm120, %v397, 0
    %401 = vmatpush.bf16.msra.mxu0 0
    %402 = vmatpush.bf16.msra.mxu0 0
    %403 = vmatpush.bf16.msra.mxu0 0
    %404 = vmatpush.bf16.msra.mxu0 0
    %405 = vmatpush.bf16.msra.mxu0 0
    %406 = vmatpush.bf16.msra.mxu0 0
    %407 = vmatpush.bf16.msra.mxu0 0
    %408 = vmatpush.bf16.msra.mxu0 %v126
    %409 = vmatmul.bf16.gmra.mxu0 %v399
    %v410 = vpop.f32.mrf.mxu0
    %v411 = vadd.f32 %v117, %v410
    %v412 = vpop.f32.mrf.mxu0
    %413 = vdwg.mxu0
    %v414 = vmax.f32 %v411, 0.0
    %v415 = vpack.c.bf16 %v414, %v414
    %416 = vst [vmem:[#allocation2 + $0x34] sm:$0xf] %v415
    %s417 = scalar_lea.vmem %s0, 56
    %v418 = vld [vmem:[%s417] sm:$0xf]
    %v420 = vsel %vm120, %v418, 0
    %422 = vmatpush.bf16.msra.mxu0 0
    %423 = vmatpush.bf16.msra.mxu0 0
    %424 = vmatpush.bf16.msra.mxu0 0
    %425 = vmatpush.bf16.msra.mxu0 0
    %426 = vmatpush.bf16.msra.mxu0 0
    %427 = vmatpush.bf16.msra.mxu0 0
    %428 = vmatpush.bf16.msra.mxu0 0
    %429 = vmatpush.bf16.msra.mxu0 %v126
    %430 = vmatmul.bf16.gmra.mxu0 %v420
    %v431 = vpop.f32.mrf.mxu0
    %v432 = vadd.f32 %v117, %v431
    %v433 = vpop.f32.mrf.mxu0
    %434 = vdwg.mxu0
    %v435 = vmax.f32 %v432, 0.0
    %v436 = vpack.c.bf16 %v435, %v435
    %437 = vst [vmem:[#allocation2 + $0x38] sm:$0xf] %v436
    %s438 = scalar_lea.vmem %s0, 60
    %v439 = vld [vmem:[%s438] sm:$0xf]
    %v441 = vsel %vm120, %v439, 0
    %443 = vmatpush.bf16.msra.mxu0 0
    %444 = vmatpush.bf16.msra.mxu0 0
    %445 = vmatpush.bf16.msra.mxu0 0
    %446 = vmatpush.bf16.msra.mxu0 0
    %447 = vmatpush.bf16.msra.mxu0 0
    %448 = vmatpush.bf16.msra.mxu0 0
    %449 = vmatpush.bf16.msra.mxu0 0
    %450 = vmatpush.bf16.msra.mxu0 %v126
    %451 = vmatmul.bf16.gmra.mxu0 %v441
    %v452 = vpop.f32.mrf.mxu0
    %v453 = vadd.f32 %v117, %v452
    %v454 = vpop.f32.mrf.mxu0
    %455 = vdwg.mxu0
    %v456 = vmax.f32 %v453, 0.0
    %v457 = vpack.c.bf16 %v456, %v456
    %458 = vst [vmem:[#allocation2 + $0x3c] sm:$0xf] %v457
    %s459 = scalar_lea.vmem %s0, 64
    %v460 = vld [vmem:[%s459] sm:$0xf]
    %v462 = vsel %vm120, %v460, 0
    %464 = vmatpush.bf16.msra.mxu0 0
    %465 = vmatpush.bf16.msra.mxu0 0
    %466 = vmatpush.bf16.msra.mxu0 0
    %467 = vmatpush.bf16.msra.mxu0 0
    %468 = vmatpush.bf16.msra.mxu0 0
    %469 = vmatpush.bf16.msra.mxu0 0
    %470 = vmatpush.bf16.msra.mxu0 0
    %471 = vmatpush.bf16.msra.mxu0 %v126
    %472 = vmatmul.bf16.gmra.mxu0 %v462
    %v473 = vpop.f32.mrf.mxu0
    %v474 = vadd.f32 %v117, %v473
    %v475 = vpop.f32.mrf.mxu0
    %476 = vdwg.mxu0
    %v477 = vmax.f32 %v474, 0.0
    %v478 = vpack.c.bf16 %v477, %v477
    %479 = vst [vmem:[#allocation2 + $0x40] sm:$0xf] %v478
    %s480 = scalar_lea.vmem %s0, 68
    %v481 = vld [vmem:[%s480] sm:$0xf]
    %v483 = vsel %vm120, %v481, 0
    %485 = vmatpush.bf16.msra.mxu0 0
    %486 = vmatpush.bf16.msra.mxu0 0
    %487 = vmatpush.bf16.msra.mxu0 0
    %488 = vmatpush.bf16.msra.mxu0 0
    %489 = vmatpush.bf16.msra.mxu0 0
    %490 = vmatpush.bf16.msra.mxu0 0
    %491 = vmatpush.bf16.msra.mxu0 0
    %492 = vmatpush.bf16.msra.mxu0 %v126
    %493 = vmatmul.bf16.gmra.mxu0 %v483
    %v494 = vpop.f32.mrf.mxu0
    %v495 = vadd.f32 %v117, %v494
    %v496 = vpop.f32.mrf.mxu0
    %497 = vdwg.mxu0
    %v498 = vmax.f32 %v495, 0.0
    %v499 = vpack.c.bf16 %v498, %v498
    %500 = vst [vmem:[#allocation2 + $0x44] sm:$0xf] %v499
    %s501 = scalar_lea.vmem %s0, 72
    %v502 = vld [vmem:[%s501] sm:$0xf]
    %v504 = vsel %vm120, %v502, 0
    %506 = vmatpush.bf16.msra.mxu0 0
    %507 = vmatpush.bf16.msra.mxu0 0
    %508 = vmatpush.bf16.msra.mxu0 0
    %509 = vmatpush.bf16.msra.mxu0 0
    %510 = vmatpush.bf16.msra.mxu0 0
    %511 = vmatpush.bf16.msra.mxu0 0
    %512 = vmatpush.bf16.msra.mxu0 0
    %513 = vmatpush.bf16.msra.mxu0 %v126
    %514 = vmatmul.bf16.gmra.mxu0 %v504
    %v515 = vpop.f32.mrf.mxu0
    %v516 = vadd.f32 %v117, %v515
    %v517 = vpop.f32.mrf.mxu0
    %518 = vdwg.mxu0
    %v519 = vmax.f32 %v516, 0.0
    %v520 = vpack.c.bf16 %v519, %v519
    %521 = vst [vmem:[#allocation2 + $0x48] sm:$0xf] %v520
    %s522 = scalar_lea.vmem %s0, 76
    %v523 = vld [vmem:[%s522] sm:$0xf]
    %v525 = vsel %vm120, %v523, 0
    %527 = vmatpush.bf16.msra.mxu0 0
    %528 = vmatpush.bf16.msra.mxu0 0
    %529 = vmatpush.bf16.msra.mxu0 0
    %530 = vmatpush.bf16.msra.mxu0 0
    %531 = vmatpush.bf16.msra.mxu0 0
    %532 = vmatpush.bf16.msra.mxu0 0
    %533 = vmatpush.bf16.msra.mxu0 0
    %534 = vmatpush.bf16.msra.mxu0 %v126
    %535 = vmatmul.bf16.gmra.mxu0 %v525
    %v536 = vpop.f32.mrf.mxu0
    %v537 = vadd.f32 %v117, %v536
    %v538 = vpop.f32.mrf.mxu0
    %539 = vdwg.mxu0
    %v540 = vmax.f32 %v537, 0.0
    %v541 = vpack.c.bf16 %v540, %v540
    %542 = vst [vmem:[#allocation2 + $0x4c] sm:$0xf] %v541
    %s543 = scalar_lea.vmem %s0, 80
    %v544 = vld [vmem:[%s543] sm:$0xf]
    %v546 = vsel %vm120, %v544, 0
    %548 = vmatpush.bf16.msra.mxu0 0
    %549 = vmatpush.bf16.msra.mxu0 0
    %550 = vmatpush.bf16.msra.mxu0 0
    %551 = vmatpush.bf16.msra.mxu0 0
    %552 = vmatpush.bf16.msra.mxu0 0
    %553 = vmatpush.bf16.msra.mxu0 0
    %554 = vmatpush.bf16.msra.mxu0 0
    %555 = vmatpush.bf16.msra.mxu0 %v126
    %556 = vmatmul.bf16.gmra.mxu0 %v546
    %v557 = vpop.f32.mrf.mxu0
    %v558 = vadd.f32 %v117, %v557
    %v559 = vpop.f32.mrf.mxu0
    %560 = vdwg.mxu0
    %v561 = vmax.f32 %v558, 0.0
    %v562 = vpack.c.bf16 %v561, %v561
    %563 = vst [vmem:[#allocation2 + $0x50] sm:$0xf] %v562
    %s564 = scalar_lea.vmem %s0, 84
    %v565 = vld [vmem:[%s564] sm:$0xf]
    %v567 = vsel %vm120, %v565, 0
    %569 = vmatpush.bf16.msra.mxu0 0
    %570 = vmatpush.bf16.msra.mxu0 0
    %571 = vmatpush.bf16.msra.mxu0 0
    %572 = vmatpush.bf16.msra.mxu0 0
    %573 = vmatpush.bf16.msra.mxu0 0
    %574 = vmatpush.bf16.msra.mxu0 0
    %575 = vmatpush.bf16.msra.mxu0 0
    %576 = vmatpush.bf16.msra.mxu0 %v126
    %577 = vmatmul.bf16.gmra.mxu0 %v567
    %v578 = vpop.f32.mrf.mxu0
    %v579 = vadd.f32 %v117, %v578
    %v580 = vpop.f32.mrf.mxu0
    %581 = vdwg.mxu0
    %v582 = vmax.f32 %v579, 0.0
    %v583 = vpack.c.bf16 %v582, %v582
    %584 = vst [vmem:[#allocation2 + $0x54] sm:$0xf] %v583
    %s585 = scalar_lea.vmem %s0, 88
    %v586 = vld [vmem:[%s585] sm:$0xf]
    %v588 = vsel %vm120, %v586, 0
    %590 = vmatpush.bf16.msra.mxu0 0
    %591 = vmatpush.bf16.msra.mxu0 0
    %592 = vmatpush.bf16.msra.mxu0 0
    %593 = vmatpush.bf16.msra.mxu0 0
    %594 = vmatpush.bf16.msra.mxu0 0
    %595 = vmatpush.bf16.msra.mxu0 0
    %596 = vmatpush.bf16.msra.mxu0 0
    %597 = vmatpush.bf16.msra.mxu0 %v126
    %598 = vmatmul.bf16.gmra.mxu0 %v588
    %v599 = vpop.f32.mrf.mxu0
    %v600 = vadd.f32 %v117, %v599
    %v601 = vpop.f32.mrf.mxu0
    %602 = vdwg.mxu0
    %v603 = vmax.f32 %v600, 0.0
    %v604 = vpack.c.bf16 %v603, %v603
    %605 = vst [vmem:[#allocation2 + $0x58] sm:$0xf] %v604
    %s606 = scalar_lea.vmem %s0, 92
    %v607 = vld [vmem:[%s606] sm:$0xf]
    %v609 = vsel %vm120, %v607, 0
    %611 = vmatpush.bf16.msra.mxu0 0
    %612 = vmatpush.bf16.msra.mxu0 0
    %613 = vmatpush.bf16.msra.mxu0 0
    %614 = vmatpush.bf16.msra.mxu0 0
    %615 = vmatpush.bf16.msra.mxu0 0
    %616 = vmatpush.bf16.msra.mxu0 0
    %617 = vmatpush.bf16.msra.mxu0 0
    %618 = vmatpush.bf16.msra.mxu0 %v126
    %619 = vmatmul.bf16.gmra.mxu0 %v609
    %v620 = vpop.f32.mrf.mxu0
    %v621 = vadd.f32 %v117, %v620
    %v622 = vpop.f32.mrf.mxu0
    %623 = vdwg.mxu0
    %v624 = vmax.f32 %v621, 0.0
    %v625 = vpack.c.bf16 %v624, %v624
    %626 = vst [vmem:[#allocation2 + $0x5c] sm:$0xf] %v625
    %s627 = scalar_lea.vmem %s0, 96
    %v628 = vld [vmem:[%s627] sm:$0xf]
    %v630 = vsel %vm120, %v628, 0
    %632 = vmatpush.bf16.msra.mxu0 0
    %633 = vmatpush.bf16.msra.mxu0 0
    %634 = vmatpush.bf16.msra.mxu0 0
    %635 = vmatpush.bf16.msra.mxu0 0
    %636 = vmatpush.bf16.msra.mxu0 0
    %637 = vmatpush.bf16.msra.mxu0 0
    %638 = vmatpush.bf16.msra.mxu0 0
    %639 = vmatpush.bf16.msra.mxu0 %v126
    %640 = vmatmul.bf16.gmra.mxu0 %v630
    %v641 = vpop.f32.mrf.mxu0
    %v642 = vadd.f32 %v117, %v641
    %v643 = vpop.f32.mrf.mxu0
    %644 = vdwg.mxu0
    %v645 = vmax.f32 %v642, 0.0
    %v646 = vpack.c.bf16 %v645, %v645
    %647 = vst [vmem:[#allocation2 + $0x60] sm:$0xf] %v646
    %v648 = vld [vmem:[#allocation2] sm:$0xff]
    %v649 = vld [vmem:[#allocation2 + $0x8] sm:$0xff]
    %v650 = vld [vmem:[#allocation2 + $0x10] sm:$0xff]
    %v651 = vld [vmem:[#allocation2 + $0x18] sm:$0xff]
    %v652 = vld [vmem:[#allocation2 + $0x20] sm:$0xff]
    %v653 = vld [vmem:[#allocation2 + $0x28] sm:$0xff]
    %v654 = vld [vmem:[#allocation2 + $0x30] sm:$0xff]
    %v655 = vld [vmem:[#allocation2 + $0x38] sm:$0xff]
    %v656 = vld [vmem:[#allocation2 + $0x40] sm:$0xff]
    %v657 = vld [vmem:[#allocation2 + $0x48] sm:$0xff]
    %v658 = vld [vmem:[#allocation2 + $0x50] sm:$0xff]
    %v659 = vld [vmem:[#allocation2 + $0x58] sm:$0xff]
    %v660 = vld [vmem:[#allocation2 + $0x60] sm:$0xf]
    %v661 = vld [vmem:[#allocation8] sm:$0xff]
    %v662 = vld [vmem:[#allocation8 + $0x8] sm:$0xff]
    %v663 = vld [vmem:[#allocation8 + $0x10] sm:$0xff]
    %v664 = vld [vmem:[#allocation8 + $0x18] sm:$0xff]
    %v665 = vld [vmem:[#allocation8 + $0x20] sm:$0xff]
    %v666 = vld [vmem:[#allocation8 + $0x28] sm:$0xff]
    %v667 = vld [vmem:[#allocation8 + $0x30] sm:$0xff]
    %v668 = vld [vmem:[#allocation8 + $0x38] sm:$0xff]
    %v669 = vld [vmem:[#allocation8 + $0x40] sm:$0xff]
    %v670 = vld [vmem:[#allocation8 + $0x48] sm:$0xff]
    %v671 = vld [vmem:[#allocation8 + $0x50] sm:$0xff]
    %v672 = vld [vmem:[#allocation8 + $0x58] sm:$0xff]
    %v673 = vld [vmem:[#allocation8 + $0x60] sm:$0xff]
    %v674 = vld [vmem:[#allocation8 + $0x68] sm:$0xff]
    %v675 = vld [vmem:[#allocation8 + $0x70] sm:$0xff]
    %v676 = vld [vmem:[#allocation8 + $0x78] sm:$0xff]
    %v677 = vld [vmem:[#allocation8 + $0x80] sm:$0xff]
    %v678 = vld [vmem:[#allocation8 + $0x88] sm:$0xff]
    %v679 = vld [vmem:[#allocation8 + $0x90] sm:$0xff]
    %v680 = vld [vmem:[#allocation8 + $0x98] sm:$0xff]
    %v681 = vld [vmem:[#allocation8 + $0xa0] sm:$0xff]
    %v682 = vld [vmem:[#allocation8 + $0xa8] sm:$0xff]
    %v683 = vld [vmem:[#allocation8 + $0xb0] sm:$0xff]
    %v684 = vld [vmem:[#allocation8 + $0xb8] sm:$0xff]
    %v685 = vld [vmem:[#allocation8 + $0xc0] sm:$0xff]
    %v686 = vld [vmem:[#allocation8 + $0xc8] sm:$0xff]
    %v687 = vld [vmem:[#allocation8 + $0xd0] sm:$0xff]
    %v688 = vld [vmem:[#allocation8 + $0xd8] sm:$0xff]
    %v689 = vld [vmem:[#allocation8 + $0xe0] sm:$0xff]
    %v690 = vld [vmem:[#allocation8 + $0xe8] sm:$0xff]
    %v691 = vld [vmem:[#allocation8 + $0xf0] sm:$0xff]
    %v692 = vld [vmem:[#allocation8 + $0xf8] sm:$0xff]
    %v693 = vld [vmem:[#allocation8 + $0x100] sm:$0xff]
    %v694 = vld [vmem:[#allocation8 + $0x108] sm:$0xff]
    %v695 = vld [vmem:[#allocation8 + $0x110] sm:$0xff]
    %v696 = vld [vmem:[#allocation8 + $0x118] sm:$0xff]
    %v697 = vld [vmem:[#allocation8 + $0x120] sm:$0xff]
    %v698 = vld [vmem:[#allocation8 + $0x128] sm:$0xff]
    %v699 = vld [vmem:[#allocation8 + $0x130] sm:$0xff]
    %v700 = vld [vmem:[#allocation8 + $0x138] sm:$0xff]
    %v701 = vld [vmem:[#allocation8 + $0x140] sm:$0xff]
    %v702 = vld [vmem:[#allocation8 + $0x148] sm:$0xff]
    %v703 = vld [vmem:[#allocation8 + $0x150] sm:$0xff]
    %v704 = vld [vmem:[#allocation8 + $0x158] sm:$0xff]
    %v705 = vld [vmem:[#allocation8 + $0x160] sm:$0xff]
    %v706 = vld [vmem:[#allocation8 + $0x168] sm:$0xff]
    %v707 = vld [vmem:[#allocation8 + $0x170] sm:$0xff]
    %v708 = vld [vmem:[#allocation8 + $0x178] sm:$0xff]
    %v709 = vld [vmem:[#allocation8 + $0x180] sm:$0xff]
    %v710 = vld [vmem:[#allocation8 + $0x188] sm:$0xff]
    %v711 = vld [vmem:[#allocation8 + $0x190] sm:$0xff]
    %v712 = vld [vmem:[#allocation8 + $0x198] sm:$0xff]
    %v713 = vld [vmem:[#allocation8 + $0x1a0] sm:$0xff]
    %v714 = vld [vmem:[#allocation8 + $0x1a8] sm:$0xff]
    %v715 = vld [vmem:[#allocation8 + $0x1b0] sm:$0xff]
    %v716 = vld [vmem:[#allocation8 + $0x1b8] sm:$0xff]
    %v717 = vld [vmem:[#allocation8 + $0x1c0] sm:$0xff]
    %v718 = vld [vmem:[#allocation8 + $0x1c8] sm:$0xff]
    %v719 = vld [vmem:[#allocation8 + $0x1d0] sm:$0xff]
    %v720 = vld [vmem:[#allocation8 + $0x1d8] sm:$0xff]
    %v721 = vld [vmem:[#allocation8 + $0x1e0] sm:$0xff]
    %v722 = vld [vmem:[#allocation8 + $0x1e8] sm:$0xff]
    %v723 = vld [vmem:[#allocation8 + $0x1f0] sm:$0xff]
    %v724 = vld [vmem:[#allocation8 + $0x1f8] sm:$0xff]
    %v725 = vld [vmem:[#allocation8 + $0x200] sm:$0xff]
    %v726 = vld [vmem:[#allocation8 + $0x208] sm:$0xff]
    %v727 = vld [vmem:[#allocation8 + $0x210] sm:$0xff]
    %v728 = vld [vmem:[#allocation8 + $0x218] sm:$0xff]
    %v729 = vld [vmem:[#allocation8 + $0x220] sm:$0xff]
    %v730 = vld [vmem:[#allocation8 + $0x228] sm:$0xff]
    %v731 = vld [vmem:[#allocation8 + $0x230] sm:$0xff]
    %v732 = vld [vmem:[#allocation8 + $0x238] sm:$0xff]
    %v733 = vld [vmem:[#allocation8 + $0x240] sm:$0xff]
    %v734 = vld [vmem:[#allocation8 + $0x248] sm:$0xff]
    %v735 = vld [vmem:[#allocation8 + $0x250] sm:$0xff]
    %v736 = vld [vmem:[#allocation8 + $0x258] sm:$0xff]
    %v737 = vld [vmem:[#allocation8 + $0x260] sm:$0xff]
    %v738 = vld [vmem:[#allocation8 + $0x268] sm:$0xff]
    %v739 = vld [vmem:[#allocation8 + $0x270] sm:$0xff]
    %v740 = vld [vmem:[#allocation8 + $0x278] sm:$0xff]
    %v741 = vld [vmem:[#allocation8 + $0x280] sm:$0xff]
    %v742 = vld [vmem:[#allocation8 + $0x288] sm:$0xff]
    %v743 = vld [vmem:[#allocation8 + $0x290] sm:$0xff]
    %v744 = vld [vmem:[#allocation8 + $0x298] sm:$0xff]
    %v745 = vld [vmem:[#allocation8 + $0x2a0] sm:$0xff]
    %v746 = vld [vmem:[#allocation8 + $0x2a8] sm:$0xff]
    %v747 = vld [vmem:[#allocation8 + $0x2b0] sm:$0xff]
    %v748 = vld [vmem:[#allocation8 + $0x2b8] sm:$0xff]
    %v749 = vld [vmem:[#allocation8 + $0x2c0] sm:$0xff]
    %v750 = vld [vmem:[#allocation8 + $0x2c8] sm:$0xff]
    %v751 = vld [vmem:[#allocation8 + $0x2d0] sm:$0xff]
    %v752 = vld [vmem:[#allocation8 + $0x2d8] sm:$0xff]
    %v753 = vld [vmem:[#allocation8 + $0x2e0] sm:$0xff]
    %v754 = vld [vmem:[#allocation8 + $0x2e8] sm:$0xff]
    %v755 = vld [vmem:[#allocation8 + $0x2f0] sm:$0xff]
    %v756 = vld [vmem:[#allocation8 + $0x2f8] sm:$0xff]
    %v757 = vld [vmem:[#allocation8 + $0x300] sm:$0xff]
    %v758 = vld [vmem:[#allocation8 + $0x308] sm:$0xff]
    %v759 = vld [vmem:[#allocation8 + $0x310] sm:$0xff]
    %v760 = vld [vmem:[#allocation8 + $0x318] sm:$0xff]
    %v761 = vld [vmem:[#allocation8 + $0x320] sm:$0xff]
    %v762 = vld [vmem:[#allocation8 + $0x328] sm:$0xff]
    %v763 = vld [vmem:[#allocation8 + $0x330] sm:$0xff]
    %v764 = vld [vmem:[#allocation8 + $0x338] sm:$0xff]
    %v765 = vld [vmem:[#allocation8 + $0x340] sm:$0xff]
    %v766 = vld [vmem:[#allocation8 + $0x348] sm:$0xff]
    %v767 = vld [vmem:[#allocation8 + $0x350] sm:$0xff]
    %v768 = vld [vmem:[#allocation8 + $0x358] sm:$0xff]
    %v769 = vld [vmem:[#allocation8 + $0x360] sm:$0xff]
    %v770 = vld [vmem:[#allocation8 + $0x368] sm:$0xff]
    %v771 = vld [vmem:[#allocation8 + $0x370] sm:$0xff]
    %v772 = vld [vmem:[#allocation8 + $0x378] sm:$0xff]
    %v773 = vld [vmem:[#allocation8 + $0x380] sm:$0xff]
    %v774 = vld [vmem:[#allocation8 + $0x388] sm:$0xff]
    %v775 = vld [vmem:[#allocation8 + $0x390] sm:$0xff]
    %v776 = vld [vmem:[#allocation8 + $0x398] sm:$0xff]
    %v777 = vld [vmem:[#allocation8 + $0x3a0] sm:$0xff]
    %v778 = vld [vmem:[#allocation8 + $0x3a8] sm:$0xff]
    %v779 = vld [vmem:[#allocation8 + $0x3b0] sm:$0xff]
    %v780 = vld [vmem:[#allocation8 + $0x3b8] sm:$0xff]
    %v781 = vld [vmem:[#allocation8 + $0x3c0] sm:$0xff]
    %v782 = vld [vmem:[#allocation8 + $0x3c8] sm:$0xff]
    %v783 = vld [vmem:[#allocation8 + $0x3d0] sm:$0xff]
    %v784 = vld [vmem:[#allocation8 + $0x3d8] sm:$0xff]
    %v785 = vld [vmem:[#allocation8 + $0x3e0] sm:$0xff]
    %v786 = vld [vmem:[#allocation8 + $0x3e8] sm:$0xff]
    %v787 = vld [vmem:[#allocation8 + $0x3f0] sm:$0xff]
    %v788 = vld [vmem:[#allocation8 + $0x3f8] sm:$0xff]
    %v789 = vld [vmem:[#allocation8 + $0x400] sm:$0xff]
    %v790 = vld [vmem:[#allocation8 + $0x408] sm:$0xff]
    %v791 = vld [vmem:[#allocation8 + $0x410] sm:$0xff]
    %v792 = vld [vmem:[#allocation8 + $0x418] sm:$0xff]
    %v793 = vld [vmem:[#allocation8 + $0x420] sm:$0xff]
    %v794 = vld [vmem:[#allocation8 + $0x428] sm:$0xff]
    %v795 = vld [vmem:[#allocation8 + $0x430] sm:$0xff]
    %v796 = vld [vmem:[#allocation8 + $0x438] sm:$0xff]
    %v797 = vld [vmem:[#allocation8 + $0x440] sm:$0xff]
    %v798 = vld [vmem:[#allocation8 + $0x448] sm:$0xff]
    %v799 = vld [vmem:[#allocation8 + $0x450] sm:$0xff]
    %v800 = vld [vmem:[#allocation8 + $0x458] sm:$0xff]
    %v801 = vld [vmem:[#allocation8 + $0x460] sm:$0xff]
    %v802 = vld [vmem:[#allocation8 + $0x468] sm:$0xff]
    %v803 = vld [vmem:[#allocation8 + $0x470] sm:$0xff]
    %v804 = vld [vmem:[#allocation8 + $0x478] sm:$0xff]
    %v805 = vld [vmem:[#allocation8 + $0x480] sm:$0xff]
    %v806 = vld [vmem:[#allocation8 + $0x488] sm:$0xff]
    %v807 = vld [vmem:[#allocation8 + $0x490] sm:$0xff]
    %v808 = vld [vmem:[#allocation8 + $0x498] sm:$0xff]
    %v809 = vld [vmem:[#allocation8 + $0x4a0] sm:$0xff]
    %v810 = vld [vmem:[#allocation8 + $0x4a8] sm:$0xff]
    %v811 = vld [vmem:[#allocation8 + $0x4b0] sm:$0xff]
    %v812 = vld [vmem:[#allocation8 + $0x4b8] sm:$0xff]
    %v813 = vld [vmem:[#allocation8 + $0x4c0] sm:$0xff]
    %v814 = vld [vmem:[#allocation8 + $0x4c8] sm:$0xff]
    %v815 = vld [vmem:[#allocation8 + $0x4d0] sm:$0xff]
    %v816 = vld [vmem:[#allocation8 + $0x4d8] sm:$0xff]
    %v817 = vld [vmem:[#allocation8 + $0x4e0] sm:$0xff]
    %v818 = vld [vmem:[#allocation8 + $0x4e8] sm:$0xff]
    %v819 = vld [vmem:[#allocation8 + $0x4f0] sm:$0xff]
    %v820 = vld [vmem:[#allocation8 + $0x4f8] sm:$0xff]
    %v821 = vld [vmem:[#allocation8 + $0x500] sm:$0xff]
    %v822 = vld [vmem:[#allocation8 + $0x508] sm:$0xff]
    %v823 = vld [vmem:[#allocation8 + $0x510] sm:$0xff]
    %v824 = vld [vmem:[#allocation8 + $0x518] sm:$0xff]
    %v825 = vld [vmem:[#allocation8 + $0x520] sm:$0xff]
    %v826 = vld [vmem:[#allocation8 + $0x528] sm:$0xff]
    %v827 = vld [vmem:[#allocation8 + $0x530] sm:$0xff]
    %v828 = vld [vmem:[#allocation8 + $0x538] sm:$0xff]
    %v829 = vld [vmem:[#allocation8 + $0x540] sm:$0xff]
    %v830 = vld [vmem:[#allocation8 + $0x548] sm:$0xff]
    %v831 = vld [vmem:[#allocation8 + $0x550] sm:$0xff]
    %v832 = vld [vmem:[#allocation8 + $0x558] sm:$0xff]
    %v833 = vld [vmem:[#allocation8 + $0x560] sm:$0xff]
    %v834 = vld [vmem:[#allocation8 + $0x568] sm:$0xff]
    %v835 = vld [vmem:[#allocation8 + $0x570] sm:$0xff]
    %v836 = vld [vmem:[#allocation8 + $0x578] sm:$0xff]
    %v837 = vld [vmem:[#allocation8 + $0x580] sm:$0xff]
    %v838 = vld [vmem:[#allocation8 + $0x588] sm:$0xff]
    %v839 = vld [vmem:[#allocation8 + $0x590] sm:$0xff]
    %v840 = vld [vmem:[#allocation8 + $0x598] sm:$0xff]
    %v841 = vld [vmem:[#allocation8 + $0x5a0] sm:$0xff]
    %v842 = vld [vmem:[#allocation8 + $0x5a8] sm:$0xff]
    %v843 = vld [vmem:[#allocation8 + $0x5b0] sm:$0xff]
    %v844 = vld [vmem:[#allocation8 + $0x5b8] sm:$0xff]
    %v845 = vld [vmem:[#allocation8 + $0x5c0] sm:$0xff]
    %v846 = vld [vmem:[#allocation8 + $0x5c8] sm:$0xff]
    %v847 = vld [vmem:[#allocation8 + $0x5d0] sm:$0xff]
    %v848 = vld [vmem:[#allocation8 + $0x5d8] sm:$0xff]
    %v849 = vld [vmem:[#allocation8 + $0x5e0] sm:$0xff]
    %v850 = vld [vmem:[#allocation8 + $0x5e8] sm:$0xff]
    %v851 = vld [vmem:[#allocation8 + $0x5f0] sm:$0xff]
    %v852 = vld [vmem:[#allocation8 + $0x5f8] sm:$0xff]
    %v853 = vld [vmem:[#allocation8 + $0x600] sm:$0xff]
    %v854 = vld [vmem:[#allocation8 + $0x608] sm:$0xff]
    %v855 = vld [vmem:[#allocation8 + $0x610] sm:$0xff]
    %v856 = vld [vmem:[#allocation8 + $0x618] sm:$0xff]
    %v857 = vld [vmem:[#allocation8 + $0x620] sm:$0xff]
    %v858 = vld [vmem:[#allocation8 + $0x628] sm:$0xff]
    %v859 = vld [vmem:[#allocation8 + $0x630] sm:$0xff]
    %v860 = vld [vmem:[#allocation8 + $0x638] sm:$0xff]
    %v861 = vld [vmem:[#allocation8 + $0x640] sm:$0xff]
    %v862 = vld [vmem:[#allocation8 + $0x648] sm:$0xff]
    %v863 = vld [vmem:[#allocation8 + $0x650] sm:$0xff]
    %v864 = vld [vmem:[#allocation8 + $0x658] sm:$0xff]
    %v865 = vld [vmem:[#allocation8 + $0x660] sm:$0xff]
    %v866 = vld [vmem:[#allocation8 + $0x668] sm:$0xff]
    %v867 = vld [vmem:[#allocation8 + $0x670] sm:$0xff]
    %v868 = vld [vmem:[#allocation8 + $0x678] sm:$0xff]
    %v869 = vld [vmem:[#allocation8 + $0x680] sm:$0xff]
    %v870 = vld [vmem:[#allocation8 + $0x688] sm:$0xff]
    %v871 = vld [vmem:[#allocation8 + $0x690] sm:$0xff]
    %v872 = vld [vmem:[#allocation8 + $0x698] sm:$0xff]
    %v873 = vld [vmem:[#allocation8 + $0x6a0] sm:$0xff]
    %v874 = vld [vmem:[#allocation8 + $0x6a8] sm:$0xff]
    %v875 = vld [vmem:[#allocation8 + $0x6b0] sm:$0xff]
    %v876 = vld [vmem:[#allocation8 + $0x6b8] sm:$0xff]
    %v877 = vld [vmem:[#allocation8 + $0x6c0] sm:$0xff]
    %v878 = vld [vmem:[#allocation8 + $0x6c8] sm:$0xff]
    %v879 = vld [vmem:[#allocation8 + $0x6d0] sm:$0xff]
    %v880 = vld [vmem:[#allocation8 + $0x6d8] sm:$0xff]
    %v881 = vld [vmem:[#allocation8 + $0x6e0] sm:$0xff]
    %v882 = vld [vmem:[#allocation8 + $0x6e8] sm:$0xff]
    %v883 = vld [vmem:[#allocation8 + $0x6f0] sm:$0xff]
    %v884 = vld [vmem:[#allocation8 + $0x6f8] sm:$0xff]
    %v885 = vld [vmem:[#allocation8 + $0x700] sm:$0xff]
    %v886 = vld [vmem:[#allocation8 + $0x708] sm:$0xff]
    %v887 = vld [vmem:[#allocation8 + $0x710] sm:$0xff]
    %v888 = vld [vmem:[#allocation8 + $0x718] sm:$0xff]
    %v889 = vld [vmem:[#allocation8 + $0x720] sm:$0xff]
    %v890 = vld [vmem:[#allocation8 + $0x728] sm:$0xff]
    %v891 = vld [vmem:[#allocation8 + $0x730] sm:$0xff]
    %v892 = vld [vmem:[#allocation8 + $0x738] sm:$0xff]
    %v893 = vld [vmem:[#allocation8 + $0x740] sm:$0xff]
    %v894 = vld [vmem:[#allocation8 + $0x748] sm:$0xff]
    %v895 = vld [vmem:[#allocation8 + $0x750] sm:$0xff]
    %v896 = vld [vmem:[#allocation8 + $0x758] sm:$0xff]
    %v897 = vld [vmem:[#allocation8 + $0x760] sm:$0xff]
    %v898 = vld [vmem:[#allocation8 + $0x768] sm:$0xff]
    %v899 = vld [vmem:[#allocation8 + $0x770] sm:$0xff]
    %v900 = vld [vmem:[#allocation8 + $0x778] sm:$0xff]
    %v901 = vld [vmem:[#allocation8 + $0x780] sm:$0xff]
    %v902 = vld [vmem:[#allocation8 + $0x788] sm:$0xff]
    %v903 = vld [vmem:[#allocation8 + $0x790] sm:$0xff]
    %v904 = vld [vmem:[#allocation8 + $0x798] sm:$0xff]
    %v905 = vld [vmem:[#allocation8 + $0x7a0] sm:$0xff]
    %v906 = vld [vmem:[#allocation8 + $0x7a8] sm:$0xff]
    %v907 = vld [vmem:[#allocation8 + $0x7b0] sm:$0xff]
    %v908 = vld [vmem:[#allocation8 + $0x7b8] sm:$0xff]
    %v909 = vld [vmem:[#allocation8 + $0x7c0] sm:$0xff]
    %v910 = vld [vmem:[#allocation8 + $0x7c8] sm:$0xff]
    %v911 = vld [vmem:[#allocation8 + $0x7d0] sm:$0xff]
    %v912 = vld [vmem:[#allocation8 + $0x7d8] sm:$0xff]
    %v913 = vld [vmem:[#allocation8 + $0x7e0] sm:$0xff]
    %v914 = vld [vmem:[#allocation8 + $0x7e8] sm:$0xff]
    %v915 = vld [vmem:[#allocation8 + $0x7f0] sm:$0xff]
    %v916 = vld [vmem:[#allocation8 + $0x7f8] sm:$0xff]
    %v917 = vld [vmem:[#allocation8 + $0x800] sm:$0xff]
    %v918 = vld [vmem:[#allocation8 + $0x808] sm:$0xff]
    %v919 = vld [vmem:[#allocation8 + $0x810] sm:$0xff]
    %v920 = vld [vmem:[#allocation8 + $0x818] sm:$0xff]
    %v921 = vld [vmem:[#allocation8 + $0x820] sm:$0xff]
    %v922 = vld [vmem:[#allocation8 + $0x828] sm:$0xff]
    %v923 = vld [vmem:[#allocation8 + $0x830] sm:$0xff]
    %v924 = vld [vmem:[#allocation8 + $0x838] sm:$0xff]
    %v925 = vld [vmem:[#allocation8 + $0x840] sm:$0xff]
    %v926 = vld [vmem:[#allocation8 + $0x848] sm:$0xff]
    %v927 = vld [vmem:[#allocation8 + $0x850] sm:$0xff]
    %v928 = vld [vmem:[#allocation8 + $0x858] sm:$0xff]
    %v929 = vld [vmem:[#allocation8 + $0x860] sm:$0xff]
    %v930 = vld [vmem:[#allocation8 + $0x868] sm:$0xff]
    %v931 = vld [vmem:[#allocation8 + $0x870] sm:$0xff]
    %v932 = vld [vmem:[#allocation8 + $0x878] sm:$0xff]
    %v933 = vld [vmem:[#allocation8 + $0x880] sm:$0xff]
    %v934 = vld [vmem:[#allocation8 + $0x888] sm:$0xff]
    %v935 = vld [vmem:[#allocation8 + $0x890] sm:$0xff]
    %v936 = vld [vmem:[#allocation8 + $0x898] sm:$0xff]
    %v937 = vld [vmem:[#allocation8 + $0x8a0] sm:$0xff]
    %v938 = vld [vmem:[#allocation8 + $0x8a8] sm:$0xff]
    %v939 = vld [vmem:[#allocation8 + $0x8b0] sm:$0xff]
    %v940 = vld [vmem:[#allocation8 + $0x8b8] sm:$0xff]
    %v941 = vld [vmem:[#allocation8 + $0x8c0] sm:$0xff]
    %v942 = vld [vmem:[#allocation8 + $0x8c8] sm:$0xff]
    %v943 = vld [vmem:[#allocation8 + $0x8d0] sm:$0xff]
    %v944 = vld [vmem:[#allocation8 + $0x8d8] sm:$0xff]
    %v945 = vld [vmem:[#allocation8 + $0x8e0] sm:$0xff]
    %v946 = vld [vmem:[#allocation8 + $0x8e8] sm:$0xff]
    %v947 = vld [vmem:[#allocation8 + $0x8f0] sm:$0xff]
    %v948 = vld [vmem:[#allocation8 + $0x8f8] sm:$0xff]
    %v949 = vld [vmem:[#allocation8 + $0x900] sm:$0xff]
    %v950 = vld [vmem:[#allocation8 + $0x908] sm:$0xff]
    %v951 = vld [vmem:[#allocation8 + $0x910] sm:$0xff]
    %v952 = vld [vmem:[#allocation8 + $0x918] sm:$0xff]
    %v953 = vld [vmem:[#allocation8 + $0x920] sm:$0xff]
    %v954 = vld [vmem:[#allocation8 + $0x928] sm:$0xff]
    %v955 = vld [vmem:[#allocation8 + $0x930] sm:$0xff]
    %v956 = vld [vmem:[#allocation8 + $0x938] sm:$0xff]
    %v957 = vld [vmem:[#allocation8 + $0x940] sm:$0xff]
    %v958 = vld [vmem:[#allocation8 + $0x948] sm:$0xff]
    %v959 = vld [vmem:[#allocation8 + $0x950] sm:$0xff]
    %v960 = vld [vmem:[#allocation8 + $0x958] sm:$0xff]
    %v961 = vld [vmem:[#allocation8 + $0x960] sm:$0xff]
    %v962 = vld [vmem:[#allocation8 + $0x968] sm:$0xff]
    %v963 = vld [vmem:[#allocation8 + $0x970] sm:$0xff]
    %v964 = vld [vmem:[#allocation8 + $0x978] sm:$0xff]
    %v965 = vld [vmem:[#allocation8 + $0x980] sm:$0xff]
    %v966 = vld [vmem:[#allocation8 + $0x988] sm:$0xff]
    %v967 = vld [vmem:[#allocation8 + $0x990] sm:$0xff]
    %v968 = vld [vmem:[#allocation8 + $0x998] sm:$0xff]
    %v969 = vld [vmem:[#allocation8 + $0x9a0] sm:$0xff]
    %v970 = vld [vmem:[#allocation8 + $0x9a8] sm:$0xff]
    %v971 = vld [vmem:[#allocation8 + $0x9b0] sm:$0xff]
    %v972 = vld [vmem:[#allocation8 + $0x9b8] sm:$0xff]
    %v973 = vld [vmem:[#allocation8 + $0x9c0] sm:$0xff]
    %v974 = vld [vmem:[#allocation8 + $0x9c8] sm:$0xff]
    %v975 = vld [vmem:[#allocation8 + $0x9d0] sm:$0xff]
    %v976 = vld [vmem:[#allocation8 + $0x9d8] sm:$0xff]
    %v977 = vld [vmem:[#allocation8 + $0x9e0] sm:$0xff]
    %v978 = vld [vmem:[#allocation8 + $0x9e8] sm:$0xff]
    %v979 = vld [vmem:[#allocation8 + $0x9f0] sm:$0xff]
    %v980 = vld [vmem:[#allocation8 + $0x9f8] sm:$0xff]
    %v981 = vld [vmem:[#allocation8 + $0xa00] sm:$0xff]
    %v982 = vld [vmem:[#allocation8 + $0xa08] sm:$0xff]
    %v983 = vld [vmem:[#allocation8 + $0xa10] sm:$0xff]
    %v984 = vld [vmem:[#allocation8 + $0xa18] sm:$0xff]
    %v985 = vld [vmem:[#allocation8 + $0xa20] sm:$0xff]
    %v986 = vld [vmem:[#allocation8 + $0xa28] sm:$0xff]
    %v987 = vld [vmem:[#allocation8 + $0xa30] sm:$0xff]
    %v988 = vld [vmem:[#allocation8 + $0xa38] sm:$0xff]
    %v989 = vld [vmem:[#allocation8 + $0xa40] sm:$0xff]
    %v990 = vld [vmem:[#allocation8 + $0xa48] sm:$0xff]
    %v991 = vld [vmem:[#allocation8 + $0xa50] sm:$0xff]
    %v992 = vld [vmem:[#allocation8 + $0xa58] sm:$0xff]
    %v993 = vld [vmem:[#allocation8 + $0xa60] sm:$0xff]
    %v994 = vld [vmem:[#allocation8 + $0xa68] sm:$0xff]
    %v995 = vld [vmem:[#allocation8 + $0xa70] sm:$0xff]
    %v996 = vld [vmem:[#allocation8 + $0xa78] sm:$0xff]
    %v997 = vld [vmem:[#allocation8 + $0xa80] sm:$0xff]
    %v998 = vld [vmem:[#allocation8 + $0xa88] sm:$0xff]
    %v999 = vld [vmem:[#allocation8 + $0xa90] sm:$0xff]
    %v1000 = vld [vmem:[#allocation8 + $0xa98] sm:$0xff]
    %v1001 = vld [vmem:[#allocation8 + $0xaa0] sm:$0xff]
    %v1002 = vld [vmem:[#allocation8 + $0xaa8] sm:$0xff]
    %v1003 = vld [vmem:[#allocation8 + $0xab0] sm:$0xff]
    %v1004 = vld [vmem:[#allocation8 + $0xab8] sm:$0xff]
    %v1005 = vld [vmem:[#allocation8 + $0xac0] sm:$0xff]
    %v1006 = vld [vmem:[#allocation8 + $0xac8] sm:$0xff]
    %v1007 = vld [vmem:[#allocation8 + $0xad0] sm:$0xff]
    %v1008 = vld [vmem:[#allocation8 + $0xad8] sm:$0xff]
    %v1009 = vld [vmem:[#allocation8 + $0xae0] sm:$0xff]
    %v1010 = vld [vmem:[#allocation8 + $0xae8] sm:$0xff]
    %v1011 = vld [vmem:[#allocation8 + $0xaf0] sm:$0xff]
    %v1012 = vld [vmem:[#allocation8 + $0xaf8] sm:$0xff]
    %v1013 = vld [vmem:[#allocation8 + $0xb00] sm:$0xff]
    %v1014 = vld [vmem:[#allocation8 + $0xb08] sm:$0xff]
    %v1015 = vld [vmem:[#allocation8 + $0xb10] sm:$0xff]
    %v1016 = vld [vmem:[#allocation8 + $0xb18] sm:$0xff]
    %v1017 = vld [vmem:[#allocation8 + $0xb20] sm:$0xff]
    %v1018 = vld [vmem:[#allocation8 + $0xb28] sm:$0xff]
    %v1019 = vld [vmem:[#allocation8 + $0xb30] sm:$0xff]
    %v1020 = vld [vmem:[#allocation8 + $0xb38] sm:$0xff]
    %v1021 = vld [vmem:[#allocation8 + $0xb40] sm:$0xff]
    %v1022 = vld [vmem:[#allocation8 + $0xb48] sm:$0xff]
    %v1023 = vld [vmem:[#allocation8 + $0xb50] sm:$0xff]
    %v1024 = vld [vmem:[#allocation8 + $0xb58] sm:$0xff]
    %v1025 = vld [vmem:[#allocation8 + $0xb60] sm:$0xff]
    %v1026 = vld [vmem:[#allocation8 + $0xb68] sm:$0xff]
    %v1027 = vld [vmem:[#allocation8 + $0xb70] sm:$0xff]
    %v1028 = vld [vmem:[#allocation8 + $0xb78] sm:$0xff]
    %v1029 = vld [vmem:[#allocation8 + $0xb80] sm:$0xff]
    %v1030 = vld [vmem:[#allocation8 + $0xb88] sm:$0xff]
    %v1031 = vld [vmem:[#allocation8 + $0xb90] sm:$0xff]
    %v1032 = vld [vmem:[#allocation8 + $0xb98] sm:$0xff]
    %v1033 = vld [vmem:[#allocation8 + $0xba0] sm:$0xff]
    %v1034 = vld [vmem:[#allocation8 + $0xba8] sm:$0xff]
    %v1035 = vld [vmem:[#allocation8 + $0xbb0] sm:$0xff]
    %v1036 = vld [vmem:[#allocation8 + $0xbb8] sm:$0xff]
    %v1037 = vld [vmem:[#allocation8 + $0xbc0] sm:$0xff]
    %v1038 = vld [vmem:[#allocation8 + $0xbc8] sm:$0xff]
    %v1039 = vld [vmem:[#allocation8 + $0xbd0] sm:$0xff]
    %v1040 = vld [vmem:[#allocation8 + $0xbd8] sm:$0xff]
    %v1041 = vld [vmem:[#allocation8 + $0xbe0] sm:$0xff]
    %v1042 = vld [vmem:[#allocation8 + $0xbe8] sm:$0xff]
    %v1043 = vld [vmem:[#allocation8 + $0xbf0] sm:$0xff]
    %v1044 = vld [vmem:[#allocation8 + $0xbf8] sm:$0xff]
    %v1045 = vld [vmem:[#allocation8 + $0xc00] sm:$0xff]
    %v1046 = vld [vmem:[#allocation8 + $0xc08] sm:$0xff]
    %v1047 = vld [vmem:[#allocation8 + $0xc10] sm:$0xff]
    %v1048 = vld [vmem:[#allocation8 + $0xc18] sm:$0xff]
    %v1049 = vld [vmem:[#allocation8 + $0xc20] sm:$0xff]
    %v1050 = vld [vmem:[#allocation8 + $0xc28] sm:$0xff]
    %v1051 = vld [vmem:[#allocation8 + $0xc30] sm:$0xff]
    %v1052 = vld [vmem:[#allocation8 + $0xc38] sm:$0xff]
    %v1053 = vld [vmem:[#allocation8 + $0xc40] sm:$0xff]
    %v1054 = vld [vmem:[#allocation8 + $0xc48] sm:$0xff]
    %v1055 = vld [vmem:[#allocation8 + $0xc50] sm:$0xff]
    %v1056 = vld [vmem:[#allocation8 + $0xc58] sm:$0xff]
    %v1057 = vld [vmem:[#allocation8 + $0xc60] sm:$0xff]
    %v1058 = vld [vmem:[#allocation8 + $0xc68] sm:$0xff]
    %v1059 = vld [vmem:[#allocation8 + $0xc70] sm:$0xff]
    %v1060 = vld [vmem:[#allocation8 + $0xc78] sm:$0xff]
    %v1061 = vld [vmem:[#allocation8 + $0xc80] sm:$0xff]
    %v1062 = vld [vmem:[#allocation8 + $0xc88] sm:$0xff]
    %v1063 = vld [vmem:[#allocation8 + $0xc90] sm:$0xff]
    %v1064 = vld [vmem:[#allocation8 + $0xc98] sm:$0xff]
    %v1065 = vld [vmem:[#allocation8 + $0xca0] sm:$0xff]
    %v1066 = vld [vmem:[#allocation8 + $0xca8] sm:$0xff]
    %v1067 = vld [vmem:[#allocation8 + $0xcb0] sm:$0xff]
    %v1068 = vld [vmem:[#allocation8 + $0xcb8] sm:$0xff]
    %v1069 = vld [vmem:[#allocation8 + $0xcc0] sm:$0xff]
    %v1070 = vld [vmem:[#allocation8 + $0xcc8] sm:$0xff]
    %v1071 = vld [vmem:[#allocation8 + $0xcd0] sm:$0xff]
    %v1072 = vld [vmem:[#allocation8 + $0xcd8] sm:$0xff]
    %v1073 = vld [vmem:[#allocation8 + $0xce0] sm:$0xff]
    %v1074 = vld [vmem:[#allocation8 + $0xce8] sm:$0xff]
    %v1075 = vld [vmem:[#allocation8 + $0xcf0] sm:$0xff]
    %v1076 = vld [vmem:[#allocation8 + $0xcf8] sm:$0xff]
    %v1077 = vld [vmem:[#allocation8 + $0xd00] sm:$0xff]
    %v1078 = vld [vmem:[#allocation8 + $0xd08] sm:$0xff]
    %v1079 = vld [vmem:[#allocation8 + $0xd10] sm:$0xff]
    %v1080 = vld [vmem:[#allocation8 + $0xd18] sm:$0xff]
    %v1081 = vld [vmem:[#allocation8 + $0xd20] sm:$0xff]
    %v1082 = vld [vmem:[#allocation8 + $0xd28] sm:$0xff]
    %v1083 = vld [vmem:[#allocation8 + $0xd30] sm:$0xff]
    %v1084 = vld [vmem:[#allocation8 + $0xd38] sm:$0xff]
    %v1085 = vld [vmem:[#allocation8 + $0xd40] sm:$0xff]
    %v1086 = vld [vmem:[#allocation8 + $0xd48] sm:$0xff]
    %v1087 = vld [vmem:[#allocation8 + $0xd50] sm:$0xff]
    %v1088 = vld [vmem:[#allocation8 + $0xd58] sm:$0xff]
    %v1089 = vld [vmem:[#allocation8 + $0xd60] sm:$0xff]
    %v1090 = vld [vmem:[#allocation8 + $0xd68] sm:$0xff]
    %v1091 = vld [vmem:[#allocation8 + $0xd70] sm:$0xff]
    %v1092 = vld [vmem:[#allocation8 + $0xd78] sm:$0xff]
    %v1093 = vld [vmem:[#allocation8 + $0xd80] sm:$0xff]
    %v1094 = vld [vmem:[#allocation8 + $0xd88] sm:$0xff]
    %v1095 = vld [vmem:[#allocation8 + $0xd90] sm:$0xff]
    %v1096 = vld [vmem:[#allocation8 + $0xd98] sm:$0xff]
    %v1097 = vld [vmem:[#allocation8 + $0xda0] sm:$0xff]
    %v1098 = vld [vmem:[#allocation8 + $0xda8] sm:$0xff]
    %v1099 = vld [vmem:[#allocation8 + $0xdb0] sm:$0xff]
    %v1100 = vld [vmem:[#allocation8 + $0xdb8] sm:$0xff]
    %v1101 = vld [vmem:[#allocation8 + $0xdc0] sm:$0xff]
    %v1102 = vld [vmem:[#allocation8 + $0xdc8] sm:$0xff]
    %v1103 = vld [vmem:[#allocation8 + $0xdd0] sm:$0xff]
    %v1104 = vld [vmem:[#allocation8 + $0xdd8] sm:$0xff]
    %v1105 = vld [vmem:[#allocation8 + $0xde0] sm:$0xff]
    %v1106 = vld [vmem:[#allocation8 + $0xde8] sm:$0xff]
    %v1107 = vld [vmem:[#allocation8 + $0xdf0] sm:$0xff]
    %v1108 = vld [vmem:[#allocation8 + $0xdf8] sm:$0xff]
    %v1109 = vld [vmem:[#allocation8 + $0xe00] sm:$0xff]
    %v1110 = vld [vmem:[#allocation8 + $0xe08] sm:$0xff]
    %v1111 = vld [vmem:[#allocation8 + $0xe10] sm:$0xff]
    %v1112 = vld [vmem:[#allocation8 + $0xe18] sm:$0xff]
    %v1113 = vld [vmem:[#allocation8 + $0xe20] sm:$0xff]
    %v1114 = vld [vmem:[#allocation8 + $0xe28] sm:$0xff]
    %v1115 = vld [vmem:[#allocation8 + $0xe30] sm:$0xff]
    %v1116 = vld [vmem:[#allocation8 + $0xe38] sm:$0xff]
    %v1117 = vld [vmem:[#allocation8 + $0xe40] sm:$0xff]
    %v1118 = vld [vmem:[#allocation8 + $0xe48] sm:$0xff]
    %v1119 = vld [vmem:[#allocation8 + $0xe50] sm:$0xff]
    %v1120 = vld [vmem:[#allocation8 + $0xe58] sm:$0xff]
    %v1121 = vld [vmem:[#allocation8 + $0xe60] sm:$0xff]
    %v1122 = vld [vmem:[#allocation8 + $0xe68] sm:$0xff]
    %v1123 = vld [vmem:[#allocation8 + $0xe70] sm:$0xff]
    %v1124 = vld [vmem:[#allocation8 + $0xe78] sm:$0xff]
    %v1125 = vld [vmem:[#allocation8 + $0xe80] sm:$0xff]
    %v1126 = vld [vmem:[#allocation8 + $0xe88] sm:$0xff]
    %v1127 = vld [vmem:[#allocation8 + $0xe90] sm:$0xff]
    %v1128 = vld [vmem:[#allocation8 + $0xe98] sm:$0xff]
    %v1129 = vld [vmem:[#allocation8 + $0xea0] sm:$0xff]
    %v1130 = vld [vmem:[#allocation8 + $0xea8] sm:$0xff]
    %v1131 = vld [vmem:[#allocation8 + $0xeb0] sm:$0xff]
    %v1132 = vld [vmem:[#allocation8 + $0xeb8] sm:$0xff]
    %v1133 = vld [vmem:[#allocation8 + $0xec0] sm:$0xff]
    %v1134 = vld [vmem:[#allocation8 + $0xec8] sm:$0xff]
    %v1135 = vld [vmem:[#allocation8 + $0xed0] sm:$0xff]
    %v1136 = vld [vmem:[#allocation8 + $0xed8] sm:$0xff]
    %v1137 = vld [vmem:[#allocation8 + $0xee0] sm:$0xff]
    %v1138 = vld [vmem:[#allocation8 + $0xee8] sm:$0xff]
    %v1139 = vld [vmem:[#allocation8 + $0xef0] sm:$0xff]
    %v1140 = vld [vmem:[#allocation8 + $0xef8] sm:$0xff]
    %v1141 = vld [vmem:[#allocation8 + $0xf00] sm:$0xff]
    %v1142 = vld [vmem:[#allocation8 + $0xf08] sm:$0xff]
    %v1143 = vld [vmem:[#allocation8 + $0xf10] sm:$0xff]
    %v1144 = vld [vmem:[#allocation8 + $0xf18] sm:$0xff]
    %v1145 = vld [vmem:[#allocation8 + $0xf20] sm:$0xff]
    %v1146 = vld [vmem:[#allocation8 + $0xf28] sm:$0xff]
    %v1147 = vld [vmem:[#allocation8 + $0xf30] sm:$0xff]
    %v1148 = vld [vmem:[#allocation8 + $0xf38] sm:$0xff]
    %v1149 = vld [vmem:[#allocation8 + $0xf40] sm:$0xff]
    %v1150 = vld [vmem:[#allocation8 + $0xf48] sm:$0xff]
    %v1151 = vld [vmem:[#allocation8 + $0xf50] sm:$0xff]
    %v1152 = vld [vmem:[#allocation8 + $0xf58] sm:$0xff]
    %v1153 = vld [vmem:[#allocation8 + $0xf60] sm:$0xff]
    %v1154 = vld [vmem:[#allocation8 + $0xf68] sm:$0xff]
    %v1155 = vld [vmem:[#allocation8 + $0xf70] sm:$0xff]
    %v1156 = vld [vmem:[#allocation8 + $0xf78] sm:$0xff]
    %v1157 = vld [vmem:[#allocation8 + $0xf80] sm:$0xff]
    %v1158 = vld [vmem:[#allocation8 + $0xf88] sm:$0xff]
    %v1159 = vld [vmem:[#allocation8 + $0xf90] sm:$0xff]
    %v1160 = vld [vmem:[#allocation8 + $0xf98] sm:$0xff]
    %v1161 = vld [vmem:[#allocation8 + $0xfa0] sm:$0xff]
    %v1162 = vld [vmem:[#allocation8 + $0xfa8] sm:$0xff]
    %v1163 = vld [vmem:[#allocation8 + $0xfb0] sm:$0xff]
    %v1164 = vld [vmem:[#allocation8 + $0xfb8] sm:$0xff]
    %v1165 = vld [vmem:[#allocation8 + $0xfc0] sm:$0xff]
    %v1166 = vld [vmem:[#allocation8 + $0xfc8] sm:$0xff]
    %v1167 = vld [vmem:[#allocation8 + $0xfd0] sm:$0xff]
    %v1168 = vld [vmem:[#allocation8 + $0xfd8] sm:$0xff]
    %v1169 = vld [vmem:[#allocation8 + $0xfe0] sm:$0xff]
    %v1170 = vld [vmem:[#allocation8 + $0xfe8] sm:$0xff]
    %v1171 = vld [vmem:[#allocation8 + $0xff0] sm:$0xff]
    %v1172 = vld [vmem:[#allocation8 + $0xff8] sm:$0xff]
    %v1173 = vld [vmem:[#allocation8 + $0x1000] sm:$0xff]
    %v1174 = vld [vmem:[#allocation8 + $0x1008] sm:$0xff]
    %v1175 = vld [vmem:[#allocation8 + $0x1010] sm:$0xff]
    %v1176 = vld [vmem:[#allocation8 + $0x1018] sm:$0xff]
    %v1177 = vld [vmem:[#allocation8 + $0x1020] sm:$0xff]
    %v1178 = vld [vmem:[#allocation8 + $0x1028] sm:$0xff]
    %v1179 = vld [vmem:[#allocation8 + $0x1030] sm:$0xff]
    %v1180 = vld [vmem:[#allocation8 + $0x1038] sm:$0xff]
    %v1181 = vld [vmem:[#allocation8 + $0x1040] sm:$0xff]
    %v1182 = vld [vmem:[#allocation8 + $0x1048] sm:$0xff]
    %v1183 = vld [vmem:[#allocation8 + $0x1050] sm:$0xff]
    %v1184 = vld [vmem:[#allocation8 + $0x1058] sm:$0xff]
    %v1185 = vld [vmem:[#allocation8 + $0x1060] sm:$0xff]
    %v1186 = vld [vmem:[#allocation8 + $0x1068] sm:$0xff]
    %v1187 = vld [vmem:[#allocation8 + $0x1070] sm:$0xff]
    %v1188 = vld [vmem:[#allocation8 + $0x1078] sm:$0xff]
    %v1189 = vld [vmem:[#allocation8 + $0x1080] sm:$0xff]
    %v1190 = vld [vmem:[#allocation8 + $0x1088] sm:$0xff]
    %v1191 = vld [vmem:[#allocation8 + $0x1090] sm:$0xff]
    %v1192 = vld [vmem:[#allocation8 + $0x1098] sm:$0xff]
    %v1193 = vld [vmem:[#allocation8 + $0x10a0] sm:$0xff]
    %v1194 = vld [vmem:[#allocation8 + $0x10a8] sm:$0xff]
    %v1195 = vld [vmem:[#allocation8 + $0x10b0] sm:$0xff]
    %v1196 = vld [vmem:[#allocation8 + $0x10b8] sm:$0xff]
    %v1197 = vld [vmem:[#allocation8 + $0x10c0] sm:$0xff]
    %v1198 = vld [vmem:[#allocation8 + $0x10c8] sm:$0xff]
    %v1199 = vld [vmem:[#allocation8 + $0x10d0] sm:$0xff]
    %v1200 = vld [vmem:[#allocation8 + $0x10d8] sm:$0xff]
    %v1201 = vld [vmem:[#allocation8 + $0x10e0] sm:$0xff]
    %v1202 = vld [vmem:[#allocation8 + $0x10e8] sm:$0xff]
    %v1203 = vld [vmem:[#allocation8 + $0x10f0] sm:$0xff]
    %v1204 = vld [vmem:[#allocation8 + $0x10f8] sm:$0xff]
    %v1205 = vld [vmem:[#allocation8 + $0x1100] sm:$0xff]
    %v1206 = vld [vmem:[#allocation8 + $0x1108] sm:$0xff]
    %v1207 = vld [vmem:[#allocation8 + $0x1110] sm:$0xff]
    %v1208 = vld [vmem:[#allocation8 + $0x1118] sm:$0xff]
    %v1209 = vld [vmem:[#allocation8 + $0x1120] sm:$0xff]
    %v1210 = vld [vmem:[#allocation8 + $0x1128] sm:$0xff]
    %v1211 = vld [vmem:[#allocation8 + $0x1130] sm:$0xff]
    %v1212 = vld [vmem:[#allocation8 + $0x1138] sm:$0xff]
    %v1213 = vld [vmem:[#allocation8 + $0x1140] sm:$0xff]
    %v1214 = vld [vmem:[#allocation8 + $0x1148] sm:$0xff]
    %v1215 = vld [vmem:[#allocation8 + $0x1150] sm:$0xff]
    %v1216 = vld [vmem:[#allocation8 + $0x1158] sm:$0xff]
    %v1217 = vld [vmem:[#allocation8 + $0x1160] sm:$0xff]
    %v1218 = vld [vmem:[#allocation8 + $0x1168] sm:$0xff]
    %v1219 = vld [vmem:[#allocation8 + $0x1170] sm:$0xff]
    %v1220 = vld [vmem:[#allocation8 + $0x1178] sm:$0xff]
    %v1221 = vld [vmem:[#allocation8 + $0x1180] sm:$0xff]
    %v1222 = vld [vmem:[#allocation8 + $0x1188] sm:$0xff]
    %v1223 = vld [vmem:[#allocation8 + $0x1190] sm:$0xff]
    %v1224 = vld [vmem:[#allocation8 + $0x1198] sm:$0xff]
    %v1225 = vld [vmem:[#allocation8 + $0x11a0] sm:$0xff]
    %v1226 = vld [vmem:[#allocation8 + $0x11a8] sm:$0xff]
    %v1227 = vld [vmem:[#allocation8 + $0x11b0] sm:$0xff]
    %v1228 = vld [vmem:[#allocation8 + $0x11b8] sm:$0xff]
    %v1229 = vld [vmem:[#allocation8 + $0x11c0] sm:$0xff]
    %v1230 = vld [vmem:[#allocation8 + $0x11c8] sm:$0xff]
    %v1231 = vld [vmem:[#allocation8 + $0x11d0] sm:$0xff]
    %v1232 = vld [vmem:[#allocation8 + $0x11d8] sm:$0xff]
    %v1233 = vld [vmem:[#allocation8 + $0x11e0] sm:$0xff]
    %v1234 = vld [vmem:[#allocation8 + $0x11e8] sm:$0xff]
    %v1235 = vld [vmem:[#allocation8 + $0x11f0] sm:$0xff]
    %v1236 = vld [vmem:[#allocation8 + $0x11f8] sm:$0xff]
    %v1237 = vld [vmem:[#allocation8 + $0x1200] sm:$0xff]
    %v1238 = vld [vmem:[#allocation8 + $0x1208] sm:$0xff]
    %v1239 = vld [vmem:[#allocation8 + $0x1210] sm:$0xff]
    %v1240 = vld [vmem:[#allocation8 + $0x1218] sm:$0xff]
    %v1241 = vld [vmem:[#allocation8 + $0x1220] sm:$0xff]
    %v1242 = vld [vmem:[#allocation8 + $0x1228] sm:$0xff]
    %v1243 = vld [vmem:[#allocation8 + $0x1230] sm:$0xff]
    %v1244 = vld [vmem:[#allocation8 + $0x1238] sm:$0xff]
    %v1245 = vld [vmem:[#allocation8 + $0x1240] sm:$0xff]
    %v1246 = vld [vmem:[#allocation8 + $0x1248] sm:$0xff]
    %v1247 = vld [vmem:[#allocation8 + $0x1250] sm:$0xff]
    %v1248 = vld [vmem:[#allocation8 + $0x1258] sm:$0xff]
    %v1249 = vld [vmem:[#allocation8 + $0x1260] sm:$0xff]
    %v1250 = vld [vmem:[#allocation8 + $0x1268] sm:$0xff]
    %v1251 = vld [vmem:[#allocation8 + $0x1270] sm:$0xff]
    %v1252 = vld [vmem:[#allocation8 + $0x1278] sm:$0xff]
    %v1253 = vld [vmem:[#allocation8 + $0x1280] sm:$0xff]
    %v1254 = vld [vmem:[#allocation8 + $0x1288] sm:$0xff]
    %v1255 = vld [vmem:[#allocation8 + $0x1290] sm:$0xff]
    %v1256 = vld [vmem:[#allocation8 + $0x1298] sm:$0xff]
    %v1257 = vld [vmem:[#allocation8 + $0x12a0] sm:$0xff]
    %v1258 = vld [vmem:[#allocation8 + $0x12a8] sm:$0xff]
    %v1259 = vld [vmem:[#allocation8 + $0x12b0] sm:$0xff]
    %v1260 = vld [vmem:[#allocation8 + $0x12b8] sm:$0xff]
    %v1261 = vld [vmem:[#allocation8 + $0x12c0] sm:$0xff]
    %v1262 = vld [vmem:[#allocation8 + $0x12c8] sm:$0xff]
    %v1263 = vld [vmem:[#allocation8 + $0x12d0] sm:$0xff]
    %v1264 = vld [vmem:[#allocation8 + $0x12d8] sm:$0xff]
    %v1265 = vld [vmem:[#allocation8 + $0x12e0] sm:$0xff]
    %v1266 = vld [vmem:[#allocation8 + $0x12e8] sm:$0xff]
    %v1267 = vld [vmem:[#allocation8 + $0x12f0] sm:$0xff]
    %v1268 = vld [vmem:[#allocation8 + $0x12f8] sm:$0xff]
    %v1269 = vld [vmem:[#allocation8 + $0x1300] sm:$0xff]
    %v1270 = vld [vmem:[#allocation8 + $0x1308] sm:$0xff]
    %v1271 = vld [vmem:[#allocation8 + $0x1310] sm:$0xff]
    %v1272 = vld [vmem:[#allocation8 + $0x1318] sm:$0xff]
    %v1273 = vld [vmem:[#allocation8 + $0x1320] sm:$0xff]
    %v1274 = vld [vmem:[#allocation8 + $0x1328] sm:$0xff]
    %v1275 = vld [vmem:[#allocation8 + $0x1330] sm:$0xff]
    %v1276 = vld [vmem:[#allocation8 + $0x1338] sm:$0xff]
    %v1277 = vld [vmem:[#allocation8 + $0x1340] sm:$0xff]
    %v1278 = vld [vmem:[#allocation8 + $0x1348] sm:$0xff]
    %v1279 = vld [vmem:[#allocation8 + $0x1350] sm:$0xff]
    %v1280 = vld [vmem:[#allocation8 + $0x1358] sm:$0xff]
    %v1281 = vld [vmem:[#allocation8 + $0x1360] sm:$0xff]
    %v1282 = vld [vmem:[#allocation8 + $0x1368] sm:$0xff]
    %v1283 = vld [vmem:[#allocation8 + $0x1370] sm:$0xff]
    %v1284 = vld [vmem:[#allocation8 + $0x1378] sm:$0xff]
    %v1285 = vld [vmem:[#allocation8 + $0x1380] sm:$0xff]
    %v1286 = vld [vmem:[#allocation8 + $0x1388] sm:$0xff]
    %v1287 = vld [vmem:[#allocation8 + $0x1390] sm:$0xff]
    %v1288 = vld [vmem:[#allocation8 + $0x1398] sm:$0xff]
    %v1289 = vld [vmem:[#allocation8 + $0x13a0] sm:$0xff]
    %v1290 = vld [vmem:[#allocation8 + $0x13a8] sm:$0xff]
    %v1291 = vld [vmem:[#allocation8 + $0x13b0] sm:$0xff]
    %v1292 = vld [vmem:[#allocation8 + $0x13b8] sm:$0xff]
    %v1293 = vld [vmem:[#allocation8 + $0x13c0] sm:$0xff]
    %v1294 = vld [vmem:[#allocation8 + $0x13c8] sm:$0xff]
    %v1295 = vld [vmem:[#allocation8 + $0x13d0] sm:$0xff]
    %v1296 = vld [vmem:[#allocation8 + $0x13d8] sm:$0xff]
    %v1297 = vld [vmem:[#allocation8 + $0x13e0] sm:$0xff]
    %v1298 = vld [vmem:[#allocation8 + $0x13e8] sm:$0xff]
    %v1299 = vld [vmem:[#allocation8 + $0x13f0] sm:$0xff]
    %v1300 = vld [vmem:[#allocation8 + $0x13f8] sm:$0xff]
    %v1301 = vld [vmem:[#allocation8 + $0x1400] sm:$0xff]
    %v1302 = vld [vmem:[#allocation8 + $0x1408] sm:$0xff]
    %v1303 = vld [vmem:[#allocation8 + $0x1410] sm:$0xff]
    %v1304 = vld [vmem:[#allocation8 + $0x1418] sm:$0xff]
    %v1305 = vld [vmem:[#allocation8 + $0x1420] sm:$0xff]
    %v1306 = vld [vmem:[#allocation8 + $0x1428] sm:$0xff]
    %v1307 = vld [vmem:[#allocation8 + $0x1430] sm:$0xff]
    %v1308 = vld [vmem:[#allocation8 + $0x1438] sm:$0xff]
    %v1309 = vld [vmem:[#allocation8 + $0x1440] sm:$0xff]
    %v1310 = vld [vmem:[#allocation8 + $0x1448] sm:$0xff]
    %v1311 = vld [vmem:[#allocation8 + $0x1450] sm:$0xff]
    %v1312 = vld [vmem:[#allocation8 + $0x1458] sm:$0xff]
    %v1313 = vld [vmem:[#allocation8 + $0x1460] sm:$0xff]
    %v1314 = vld [vmem:[#allocation8 + $0x1468] sm:$0xff]
    %v1315 = vld [vmem:[#allocation8 + $0x1470] sm:$0xff]
    %v1316 = vld [vmem:[#allocation8 + $0x1478] sm:$0xff]
    %v1317 = vld [vmem:[#allocation8 + $0x1480] sm:$0xff]
    %v1318 = vld [vmem:[#allocation8 + $0x1488] sm:$0xff]
    %v1319 = vld [vmem:[#allocation8 + $0x1490] sm:$0xff]
    %v1320 = vld [vmem:[#allocation8 + $0x1498] sm:$0xff]
    %v1321 = vld [vmem:[#allocation8 + $0x14a0] sm:$0xff]
    %v1322 = vld [vmem:[#allocation8 + $0x14a8] sm:$0xff]
    %v1323 = vld [vmem:[#allocation8 + $0x14b0] sm:$0xff]
    %v1324 = vld [vmem:[#allocation8 + $0x14b8] sm:$0xff]
    %v1325 = vld [vmem:[#allocation8 + $0x14c0] sm:$0xff]
    %v1326 = vld [vmem:[#allocation8 + $0x14c8] sm:$0xff]
    %v1327 = vld [vmem:[#allocation8 + $0x14d0] sm:$0xff]
    %v1328 = vld [vmem:[#allocation8 + $0x14d8] sm:$0xff]
    %v1329 = vld [vmem:[#allocation8 + $0x14e0] sm:$0xff]
    %v1330 = vld [vmem:[#allocation8 + $0x14e8] sm:$0xff]
    %v1331 = vld [vmem:[#allocation8 + $0x14f0] sm:$0xff]
    %v1332 = vld [vmem:[#allocation8 + $0x14f8] sm:$0xff]
    %v1333 = vld [vmem:[#allocation8 + $0x1500] sm:$0xff]
    %v1334 = vld [vmem:[#allocation8 + $0x1508] sm:$0xff]
    %v1335 = vld [vmem:[#allocation8 + $0x1510] sm:$0xff]
    %v1336 = vld [vmem:[#allocation8 + $0x1518] sm:$0xff]
    %v1337 = vld [vmem:[#allocation8 + $0x1520] sm:$0xff]
    %v1338 = vld [vmem:[#allocation8 + $0x1528] sm:$0xff]
    %v1339 = vld [vmem:[#allocation8 + $0x1530] sm:$0xff]
    %v1340 = vld [vmem:[#allocation8 + $0x1538] sm:$0xff]
    %v1341 = vld [vmem:[#allocation8 + $0x1540] sm:$0xff]
    %v1342 = vld [vmem:[#allocation8 + $0x1548] sm:$0xff]
    %v1343 = vld [vmem:[#allocation8 + $0x1550] sm:$0xff]
    %v1344 = vld [vmem:[#allocation8 + $0x1558] sm:$0xff]
    %v1345 = vld [vmem:[#allocation8 + $0x1560] sm:$0xff]
    %v1346 = vld [vmem:[#allocation8 + $0x1568] sm:$0xff]
    %v1347 = vld [vmem:[#allocation8 + $0x1570] sm:$0xff]
    %v1348 = vld [vmem:[#allocation8 + $0x1578] sm:$0xff]
    %v1349 = vld [vmem:[#allocation8 + $0x1580] sm:$0xff]
    %v1350 = vld [vmem:[#allocation8 + $0x1588] sm:$0xff]
    %v1351 = vld [vmem:[#allocation8 + $0x1590] sm:$0xff]
    %v1352 = vld [vmem:[#allocation8 + $0x1598] sm:$0xff]
    %v1353 = vld [vmem:[#allocation8 + $0x15a0] sm:$0xff]
    %v1354 = vld [vmem:[#allocation8 + $0x15a8] sm:$0xff]
    %v1355 = vld [vmem:[#allocation8 + $0x15b0] sm:$0xff]
    %v1356 = vld [vmem:[#allocation8 + $0x15b8] sm:$0xff]
    %v1357 = vld [vmem:[#allocation8 + $0x15c0] sm:$0xff]
    %v1358 = vld [vmem:[#allocation8 + $0x15c8] sm:$0xff]
    %v1359 = vld [vmem:[#allocation8 + $0x15d0] sm:$0xff]
    %v1360 = vld [vmem:[#allocation8 + $0x15d8] sm:$0xff]
    %v1361 = vld [vmem:[#allocation8 + $0x15e0] sm:$0xff]
    %v1362 = vld [vmem:[#allocation8 + $0x15e8] sm:$0xff]
    %v1363 = vld [vmem:[#allocation8 + $0x15f0] sm:$0xff]
    %v1364 = vld [vmem:[#allocation8 + $0x15f8] sm:$0xff]
    %v1365 = vld [vmem:[#allocation8 + $0x1600] sm:$0xff]
    %v1366 = vld [vmem:[#allocation8 + $0x1608] sm:$0xff]
    %v1367 = vld [vmem:[#allocation8 + $0x1610] sm:$0xff]
    %v1368 = vld [vmem:[#allocation8 + $0x1618] sm:$0xff]
    %v1369 = vld [vmem:[#allocation8 + $0x1620] sm:$0xff]
    %v1370 = vld [vmem:[#allocation8 + $0x1628] sm:$0xff]
    %v1371 = vld [vmem:[#allocation8 + $0x1630] sm:$0xff]
    %v1372 = vld [vmem:[#allocation8 + $0x1638] sm:$0xff]
    %v1373 = vld [vmem:[#allocation8 + $0x1640] sm:$0xff]
    %v1374 = vld [vmem:[#allocation8 + $0x1648] sm:$0xff]
    %v1375 = vld [vmem:[#allocation8 + $0x1650] sm:$0xff]
    %v1376 = vld [vmem:[#allocation8 + $0x1658] sm:$0xff]
    %v1377 = vld [vmem:[#allocation8 + $0x1660] sm:$0xff]
    %v1378 = vld [vmem:[#allocation8 + $0x1668] sm:$0xff]
    %v1379 = vld [vmem:[#allocation8 + $0x1670] sm:$0xff]
    %v1380 = vld [vmem:[#allocation8 + $0x1678] sm:$0xff]
    %v1381 = vld [vmem:[#allocation8 + $0x1680] sm:$0xff]
    %v1382 = vld [vmem:[#allocation8 + $0x1688] sm:$0xff]
    %v1383 = vld [vmem:[#allocation8 + $0x1690] sm:$0xff]
    %v1384 = vld [vmem:[#allocation8 + $0x1698] sm:$0xff]
    %v1385 = vld [vmem:[#allocation8 + $0x16a0] sm:$0xff]
    %v1386 = vld [vmem:[#allocation8 + $0x16a8] sm:$0xff]
    %v1387 = vld [vmem:[#allocation8 + $0x16b0] sm:$0xff]
    %v1388 = vld [vmem:[#allocation8 + $0x16b8] sm:$0xff]
    %v1389 = vld [vmem:[#allocation8 + $0x16c0] sm:$0xff]
    %v1390 = vld [vmem:[#allocation8 + $0x16c8] sm:$0xff]
    %v1391 = vld [vmem:[#allocation8 + $0x16d0] sm:$0xff]
    %v1392 = vld [vmem:[#allocation8 + $0x16d8] sm:$0xff]
    %v1393 = vld [vmem:[#allocation8 + $0x16e0] sm:$0xff]
    %v1394 = vld [vmem:[#allocation8 + $0x16e8] sm:$0xff]
    %v1395 = vld [vmem:[#allocation8 + $0x16f0] sm:$0xff]
    %v1396 = vld [vmem:[#allocation8 + $0x16f8] sm:$0xff]
    %v1397 = vld [vmem:[#allocation8 + $0x1700] sm:$0xff]
    %v1398 = vld [vmem:[#allocation8 + $0x1708] sm:$0xff]
    %v1399 = vld [vmem:[#allocation8 + $0x1710] sm:$0xff]
    %v1400 = vld [vmem:[#allocation8 + $0x1718] sm:$0xff]
    %v1401 = vld [vmem:[#allocation8 + $0x1720] sm:$0xff]
    %v1402 = vld [vmem:[#allocation8 + $0x1728] sm:$0xff]
    %v1403 = vld [vmem:[#allocation8 + $0x1730] sm:$0xff]
    %v1404 = vld [vmem:[#allocation8 + $0x1738] sm:$0xff]
    %v1405 = vld [vmem:[#allocation8 + $0x1740] sm:$0xff]
    %v1406 = vld [vmem:[#allocation8 + $0x1748] sm:$0xff]
    %v1407 = vld [vmem:[#allocation8 + $0x1750] sm:$0xff]
    %v1408 = vld [vmem:[#allocation8 + $0x1758] sm:$0xff]
    %v1409 = vld [vmem:[#allocation8 + $0x1760] sm:$0xff]
    %v1410 = vld [vmem:[#allocation8 + $0x1768] sm:$0xff]
    %v1411 = vld [vmem:[#allocation8 + $0x1770] sm:$0xff]
    %v1412 = vld [vmem:[#allocation8 + $0x1778] sm:$0xff]
    %v1413 = vld [vmem:[#allocation8 + $0x1780] sm:$0xff]
    %v1414 = vld [vmem:[#allocation8 + $0x1788] sm:$0xff]
    %v1415 = vld [vmem:[#allocation8 + $0x1790] sm:$0xff]
    %v1416 = vld [vmem:[#allocation8 + $0x1798] sm:$0xff]
    %v1417 = vld [vmem:[#allocation8 + $0x17a0] sm:$0xff]
    %v1418 = vld [vmem:[#allocation8 + $0x17a8] sm:$0xff]
    %v1419 = vld [vmem:[#allocation8 + $0x17b0] sm:$0xff]
    %v1420 = vld [vmem:[#allocation8 + $0x17b8] sm:$0xff]
    %v1421 = vld [vmem:[#allocation8 + $0x17c0] sm:$0xff]
    %v1422 = vld [vmem:[#allocation8 + $0x17c8] sm:$0xff]
    %v1423 = vld [vmem:[#allocation8 + $0x17d0] sm:$0xff]
    %v1424 = vld [vmem:[#allocation8 + $0x17d8] sm:$0xff]
    %v1425 = vld [vmem:[#allocation8 + $0x17e0] sm:$0xff]
    %v1426 = vld [vmem:[#allocation8 + $0x17e8] sm:$0xff]
    %v1427 = vld [vmem:[#allocation8 + $0x17f0] sm:$0xff]
    %v1428 = vld [vmem:[#allocation8 + $0x17f8] sm:$0xff]
    %v1429 = vld [vmem:[#allocation8 + $0x1800] sm:$0xff]
    %v1430 = vld [vmem:[#allocation8 + $0x1808] sm:$0xff]
    %v1431 = vld [vmem:[#allocation8 + $0x1810] sm:$0xff]
    %v1432 = vld [vmem:[#allocation8 + $0x1818] sm:$0xff]
    %v1433 = vld [vmem:[#allocation8 + $0x1820] sm:$0xff]
    %v1434 = vld [vmem:[#allocation8 + $0x1828] sm:$0xff]
    %v1435 = vld [vmem:[#allocation8 + $0x1830] sm:$0xff]
    %v1436 = vld [vmem:[#allocation8 + $0x1838] sm:$0xff]
    %v1437 = vld [vmem:[#allocation8 + $0x1840] sm:$0xff]
    %v1438 = vld [vmem:[#allocation8 + $0x1848] sm:$0xff]
    %v1439 = vld [vmem:[#allocation8 + $0x1850] sm:$0xff]
    %v1440 = vld [vmem:[#allocation8 + $0x1858] sm:$0xff]
    %v1441 = vld [vmem:[#allocation8 + $0x1860] sm:$0xff]
    %v1442 = vld [vmem:[#allocation8 + $0x1868] sm:$0xff]
    %v1443 = vld [vmem:[#allocation8 + $0x1870] sm:$0xff]
    %v1444 = vld [vmem:[#allocation8 + $0x1878] sm:$0xff]
    %v1445 = vld [vmem:[#allocation8 + $0x1880] sm:$0xff]
    %v1446 = vld [vmem:[#allocation8 + $0x1888] sm:$0xff]
    %v1447 = vld [vmem:[#allocation8 + $0x1890] sm:$0xff]
    %v1448 = vld [vmem:[#allocation8 + $0x1898] sm:$0xff]
    %v1449 = vld [vmem:[#allocation8 + $0x18a0] sm:$0xff]
    %v1450 = vld [vmem:[#allocation8 + $0x18a8] sm:$0xff]
    %v1451 = vld [vmem:[#allocation8 + $0x18b0] sm:$0xff]
    %v1452 = vld [vmem:[#allocation8 + $0x18b8] sm:$0xff]
    %v1453 = vld [vmem:[#allocation8 + $0x18c0] sm:$0xff]
    %v1454 = vld [vmem:[#allocation8 + $0x18c8] sm:$0xff]
    %v1455 = vld [vmem:[#allocation8 + $0x18d0] sm:$0xff]
    %v1456 = vld [vmem:[#allocation8 + $0x18d8] sm:$0xff]
    %v1457 = vld [vmem:[#allocation8 + $0x18e0] sm:$0xff]
    %v1458 = vld [vmem:[#allocation8 + $0x18e8] sm:$0xff]
    %v1459 = vld [vmem:[#allocation8 + $0x18f0] sm:$0xff]
    %v1460 = vld [vmem:[#allocation8 + $0x18f8] sm:$0xff]
    %v1461 = vld [vmem:[#allocation8 + $0x1900] sm:$0xff]
    %v1462 = vld [vmem:[#allocation8 + $0x1908] sm:$0xff]
    %v1463 = vld [vmem:[#allocation8 + $0x1910] sm:$0xff]
    %v1464 = vld [vmem:[#allocation8 + $0x1918] sm:$0xff]
    %v1465 = vld [vmem:[#allocation8 + $0x1920] sm:$0xff]
    %v1466 = vld [vmem:[#allocation8 + $0x1928] sm:$0xff]
    %v1467 = vld [vmem:[#allocation8 + $0x1930] sm:$0xff]
    %v1468 = vld [vmem:[#allocation8 + $0x1938] sm:$0xff]
    %v1469 = vld [vmem:[#allocation8 + $0x1940] sm:$0xff]
    %v1470 = vld [vmem:[#allocation8 + $0x1948] sm:$0xff]
    %v1471 = vld [vmem:[#allocation8 + $0x1950] sm:$0xff]
    %v1472 = vld [vmem:[#allocation8 + $0x1958] sm:$0xff]
    %v1473 = vld [vmem:[#allocation8 + $0x1960] sm:$0xff]
    %v1474 = vld [vmem:[#allocation8 + $0x1968] sm:$0xff]
    %v1475 = vld [vmem:[#allocation8 + $0x1970] sm:$0xff]
    %v1476 = vld [vmem:[#allocation8 + $0x1978] sm:$0xff]
    %v1477 = vld [vmem:[#allocation8 + $0x1980] sm:$0xff]
    %v1478 = vld [vmem:[#allocation8 + $0x1988] sm:$0xff]
    %v1479 = vld [vmem:[#allocation8 + $0x1990] sm:$0xff]
    %v1480 = vld [vmem:[#allocation8 + $0x1998] sm:$0xff]
    %v1481 = vld [vmem:[#allocation8 + $0x19a0] sm:$0xff]
    %v1482 = vld [vmem:[#allocation8 + $0x19a8] sm:$0xff]
    %v1483 = vld [vmem:[#allocation8 + $0x19b0] sm:$0xff]
    %v1484 = vld [vmem:[#allocation8 + $0x19b8] sm:$0xff]
    %v1485 = vld [vmem:[#allocation8 + $0x19c0] sm:$0xff]
    %v1486 = vld [vmem:[#allocation8 + $0x19c8] sm:$0xff]
    %v1487 = vld [vmem:[#allocation8 + $0x19d0] sm:$0xff]
    %v1488 = vld [vmem:[#allocation8 + $0x19d8] sm:$0xff]
    %v1489 = vld [vmem:[#allocation8 + $0x19e0] sm:$0xff]
    %v1490 = vld [vmem:[#allocation8 + $0x19e8] sm:$0xff]
    %v1491 = vld [vmem:[#allocation8 + $0x19f0] sm:$0xff]
    %v1492 = vld [vmem:[#allocation8 + $0x19f8] sm:$0xff]
    %v1493 = vld [vmem:[#allocation8 + $0x1a00] sm:$0xff]
    %v1494 = vld [vmem:[#allocation8 + $0x1a08] sm:$0xff]
    %v1495 = vld [vmem:[#allocation8 + $0x1a10] sm:$0xff]
    %v1496 = vld [vmem:[#allocation8 + $0x1a18] sm:$0xff]
    %v1497 = vld [vmem:[#allocation8 + $0x1a20] sm:$0xff]
    %v1498 = vld [vmem:[#allocation8 + $0x1a28] sm:$0xff]
    %v1499 = vld [vmem:[#allocation8 + $0x1a30] sm:$0xff]
    %v1500 = vld [vmem:[#allocation8 + $0x1a38] sm:$0xff]
    %v1501 = vld [vmem:[#allocation8 + $0x1a40] sm:$0xff]
    %v1502 = vld [vmem:[#allocation8 + $0x1a48] sm:$0xff]
    %v1503 = vld [vmem:[#allocation8 + $0x1a50] sm:$0xff]
    %v1504 = vld [vmem:[#allocation8 + $0x1a58] sm:$0xff]
    %v1505 = vld [vmem:[#allocation8 + $0x1a60] sm:$0xff]
    %v1506 = vld [vmem:[#allocation8 + $0x1a68] sm:$0xff]
    %v1507 = vld [vmem:[#allocation8 + $0x1a70] sm:$0xff]
    %v1508 = vld [vmem:[#allocation8 + $0x1a78] sm:$0xff]
    %v1509 = vld [vmem:[#allocation8 + $0x1a80] sm:$0xff]
    %v1510 = vld [vmem:[#allocation8 + $0x1a88] sm:$0xff]
    %v1511 = vld [vmem:[#allocation8 + $0x1a90] sm:$0xff]
    %v1512 = vld [vmem:[#allocation8 + $0x1a98] sm:$0xff]
    %v1513 = vld [vmem:[#allocation8 + $0x1aa0] sm:$0xff]
    %v1514 = vld [vmem:[#allocation8 + $0x1aa8] sm:$0xff]
    %v1515 = vld [vmem:[#allocation8 + $0x1ab0] sm:$0xff]
    %v1516 = vld [vmem:[#allocation8 + $0x1ab8] sm:$0xff]
    %v1517 = vld [vmem:[#allocation8 + $0x1ac0] sm:$0xff]
    %v1518 = vld [vmem:[#allocation8 + $0x1ac8] sm:$0xff]
    %v1519 = vld [vmem:[#allocation8 + $0x1ad0] sm:$0xff]
    %v1520 = vld [vmem:[#allocation8 + $0x1ad8] sm:$0xff]
    %v1521 = vld [vmem:[#allocation8 + $0x1ae0] sm:$0xff]
    %v1522 = vld [vmem:[#allocation8 + $0x1ae8] sm:$0xff]
    %v1523 = vld [vmem:[#allocation8 + $0x1af0] sm:$0xff]
    %v1524 = vld [vmem:[#allocation8 + $0x1af8] sm:$0xff]
    %v1525 = vld [vmem:[#allocation8 + $0x1b00] sm:$0xff]
    %v1526 = vld [vmem:[#allocation8 + $0x1b08] sm:$0xff]
    %v1527 = vld [vmem:[#allocation8 + $0x1b10] sm:$0xff]
    %v1528 = vld [vmem:[#allocation8 + $0x1b18] sm:$0xff]
    %v1529 = vld [vmem:[#allocation8 + $0x1b20] sm:$0xff]
    %v1530 = vld [vmem:[#allocation8 + $0x1b28] sm:$0xff]
    %v1531 = vld [vmem:[#allocation8 + $0x1b30] sm:$0xff]
    %v1532 = vld [vmem:[#allocation8 + $0x1b38] sm:$0xff]
    %v1533 = vld [vmem:[#allocation8 + $0x1b40] sm:$0xff]
    %v1534 = vld [vmem:[#allocation8 + $0x1b48] sm:$0xff]
    %v1535 = vld [vmem:[#allocation8 + $0x1b50] sm:$0xff]
    %v1536 = vld [vmem:[#allocation8 + $0x1b58] sm:$0xff]
    %v1537 = vld [vmem:[#allocation8 + $0x1b60] sm:$0xff]
    %v1538 = vld [vmem:[#allocation8 + $0x1b68] sm:$0xff]
    %v1539 = vld [vmem:[#allocation8 + $0x1b70] sm:$0xff]
    %v1540 = vld [vmem:[#allocation8 + $0x1b78] sm:$0xff]
    %v1541 = vld [vmem:[#allocation8 + $0x1b80] sm:$0xff]
    %v1542 = vld [vmem:[#allocation8 + $0x1b88] sm:$0xff]
    %v1543 = vld [vmem:[#allocation8 + $0x1b90] sm:$0xff]
    %v1544 = vld [vmem:[#allocation8 + $0x1b98] sm:$0xff]
    %v1545 = vld [vmem:[#allocation8 + $0x1ba0] sm:$0xff]
    %v1546 = vld [vmem:[#allocation8 + $0x1ba8] sm:$0xff]
    %v1547 = vld [vmem:[#allocation8 + $0x1bb0] sm:$0xff]
    %v1548 = vld [vmem:[#allocation8 + $0x1bb8] sm:$0xff]
    %v1549 = vld [vmem:[#allocation8 + $0x1bc0] sm:$0xff]
    %v1550 = vld [vmem:[#allocation8 + $0x1bc8] sm:$0xff]
    %v1551 = vld [vmem:[#allocation8 + $0x1bd0] sm:$0xff]
    %v1552 = vld [vmem:[#allocation8 + $0x1bd8] sm:$0xff]
    %v1553 = vld [vmem:[#allocation8 + $0x1be0] sm:$0xff]
    %v1554 = vld [vmem:[#allocation8 + $0x1be8] sm:$0xff]
    %v1555 = vld [vmem:[#allocation8 + $0x1bf0] sm:$0xff]
    %v1556 = vld [vmem:[#allocation8 + $0x1bf8] sm:$0xff]
    %v1557 = vld [vmem:[#allocation8 + $0x1c00] sm:$0xff]
    %v1558 = vld [vmem:[#allocation8 + $0x1c08] sm:$0xff]
    %v1559 = vld [vmem:[#allocation8 + $0x1c10] sm:$0xff]
    %v1560 = vld [vmem:[#allocation8 + $0x1c18] sm:$0xff]
    %v1561 = vld [vmem:[#allocation8 + $0x1c20] sm:$0xff]
    %v1562 = vld [vmem:[#allocation8 + $0x1c28] sm:$0xff]
    %v1563 = vld [vmem:[#allocation8 + $0x1c30] sm:$0xff]
    %v1564 = vld [vmem:[#allocation8 + $0x1c38] sm:$0xff]
    %v1565 = vld [vmem:[#allocation8 + $0x1c40] sm:$0xff]
    %v1566 = vld [vmem:[#allocation8 + $0x1c48] sm:$0xff]
    %v1567 = vld [vmem:[#allocation8 + $0x1c50] sm:$0xff]
    %v1568 = vld [vmem:[#allocation8 + $0x1c58] sm:$0xff]
    %v1569 = vld [vmem:[#allocation8 + $0x1c60] sm:$0xff]
    %v1570 = vld [vmem:[#allocation8 + $0x1c68] sm:$0xff]
    %v1571 = vld [vmem:[#allocation8 + $0x1c70] sm:$0xff]
    %v1572 = vld [vmem:[#allocation8 + $0x1c78] sm:$0xff]
    %v1573 = vld [vmem:[#allocation8 + $0x1c80] sm:$0xff]
    %v1574 = vld [vmem:[#allocation8 + $0x1c88] sm:$0xff]
    %v1575 = vld [vmem:[#allocation8 + $0x1c90] sm:$0xff]
    %v1576 = vld [vmem:[#allocation8 + $0x1c98] sm:$0xff]
    %v1577 = vld [vmem:[#allocation8 + $0x1ca0] sm:$0xff]
    %v1578 = vld [vmem:[#allocation8 + $0x1ca8] sm:$0xff]
    %v1579 = vld [vmem:[#allocation8 + $0x1cb0] sm:$0xff]
    %v1580 = vld [vmem:[#allocation8 + $0x1cb8] sm:$0xff]
    %v1581 = vld [vmem:[#allocation8 + $0x1cc0] sm:$0xff]
    %v1582 = vld [vmem:[#allocation8 + $0x1cc8] sm:$0xff]
    %v1583 = vld [vmem:[#allocation8 + $0x1cd0] sm:$0xff]
    %v1584 = vld [vmem:[#allocation8 + $0x1cd8] sm:$0xff]
    %v1585 = vld [vmem:[#allocation8 + $0x1ce0] sm:$0xff]
    %v1586 = vld [vmem:[#allocation8 + $0x1ce8] sm:$0xff]
    %v1587 = vld [vmem:[#allocation8 + $0x1cf0] sm:$0xff]
    %v1588 = vld [vmem:[#allocation8 + $0x1cf8] sm:$0xff]
    %v1589 = vld [vmem:[#allocation8 + $0x1d00] sm:$0xff]
    %v1590 = vld [vmem:[#allocation8 + $0x1d08] sm:$0xff]
    %v1591 = vld [vmem:[#allocation8 + $0x1d10] sm:$0xff]
    %v1592 = vld [vmem:[#allocation8 + $0x1d18] sm:$0xff]
    %v1593 = vld [vmem:[#allocation8 + $0x1d20] sm:$0xff]
    %v1594 = vld [vmem:[#allocation8 + $0x1d28] sm:$0xff]
    %v1595 = vld [vmem:[#allocation8 + $0x1d30] sm:$0xff]
    %v1596 = vld [vmem:[#allocation8 + $0x1d38] sm:$0xff]
    %v1597 = vld [vmem:[#allocation8 + $0x1d40] sm:$0xff]
    %v1598 = vld [vmem:[#allocation8 + $0x1d48] sm:$0xff]
    %v1599 = vld [vmem:[#allocation8 + $0x1d50] sm:$0xff]
    %v1600 = vld [vmem:[#allocation8 + $0x1d58] sm:$0xff]
    %v1601 = vld [vmem:[#allocation8 + $0x1d60] sm:$0xff]
    %v1602 = vld [vmem:[#allocation8 + $0x1d68] sm:$0xff]
    %v1603 = vld [vmem:[#allocation8 + $0x1d70] sm:$0xff]
    %v1604 = vld [vmem:[#allocation8 + $0x1d78] sm:$0xff]
    %v1605 = vld [vmem:[#allocation8 + $0x1d80] sm:$0xff]
    %v1606 = vld [vmem:[#allocation8 + $0x1d88] sm:$0xff]
    %v1607 = vld [vmem:[#allocation8 + $0x1d90] sm:$0xff]
    %v1608 = vld [vmem:[#allocation8 + $0x1d98] sm:$0xff]
    %v1609 = vld [vmem:[#allocation8 + $0x1da0] sm:$0xff]
    %v1610 = vld [vmem:[#allocation8 + $0x1da8] sm:$0xff]
    %v1611 = vld [vmem:[#allocation8 + $0x1db0] sm:$0xff]
    %v1612 = vld [vmem:[#allocation8 + $0x1db8] sm:$0xff]
    %v1613 = vld [vmem:[#allocation8 + $0x1dc0] sm:$0xff]
    %v1614 = vld [vmem:[#allocation8 + $0x1dc8] sm:$0xff]
    %v1615 = vld [vmem:[#allocation8 + $0x1dd0] sm:$0xff]
    %v1616 = vld [vmem:[#allocation8 + $0x1dd8] sm:$0xff]
    %v1617 = vld [vmem:[#allocation8 + $0x1de0] sm:$0xff]
    %v1618 = vld [vmem:[#allocation8 + $0x1de8] sm:$0xff]
    %v1619 = vld [vmem:[#allocation8 + $0x1df0] sm:$0xff]
    %v1620 = vld [vmem:[#allocation8 + $0x1df8] sm:$0xff]
    %v1621 = vld [vmem:[#allocation8 + $0x1e00] sm:$0xff]
    %v1622 = vld [vmem:[#allocation8 + $0x1e08] sm:$0xff]
    %v1623 = vld [vmem:[#allocation8 + $0x1e10] sm:$0xff]
    %v1624 = vld [vmem:[#allocation8 + $0x1e18] sm:$0xff]
    %v1625 = vld [vmem:[#allocation8 + $0x1e20] sm:$0xff]
    %v1626 = vld [vmem:[#allocation8 + $0x1e28] sm:$0xff]
    %v1627 = vld [vmem:[#allocation8 + $0x1e30] sm:$0xff]
    %v1628 = vld [vmem:[#allocation8 + $0x1e38] sm:$0xff]
    %v1629 = vld [vmem:[#allocation8 + $0x1e40] sm:$0xff]
    %v1630 = vld [vmem:[#allocation8 + $0x1e48] sm:$0xff]
    %v1631 = vld [vmem:[#allocation8 + $0x1e50] sm:$0xff]
    %v1632 = vld [vmem:[#allocation8 + $0x1e58] sm:$0xff]
    %v1633 = vld [vmem:[#allocation8 + $0x1e60] sm:$0xff]
    %v1634 = vld [vmem:[#allocation8 + $0x1e68] sm:$0xff]
    %v1635 = vld [vmem:[#allocation8 + $0x1e70] sm:$0xff]
    %v1636 = vld [vmem:[#allocation8 + $0x1e78] sm:$0xff]
    %v1637 = vld [vmem:[#allocation8 + $0x1e80] sm:$0xff]
    %v1638 = vld [vmem:[#allocation8 + $0x1e88] sm:$0xff]
    %v1639 = vld [vmem:[#allocation8 + $0x1e90] sm:$0xff]
    %v1640 = vld [vmem:[#allocation8 + $0x1e98] sm:$0xff]
    %v1641 = vld [vmem:[#allocation8 + $0x1ea0] sm:$0xff]
    %v1642 = vld [vmem:[#allocation8 + $0x1ea8] sm:$0xff]
    %v1643 = vld [vmem:[#allocation8 + $0x1eb0] sm:$0xff]
    %v1644 = vld [vmem:[#allocation8 + $0x1eb8] sm:$0xff]
    %v1645 = vld [vmem:[#allocation8 + $0x1ec0] sm:$0xff]
    %v1646 = vld [vmem:[#allocation8 + $0x1ec8] sm:$0xff]
    %v1647 = vld [vmem:[#allocation8 + $0x1ed0] sm:$0xff]
    %v1648 = vld [vmem:[#allocation8 + $0x1ed8] sm:$0xff]
    %v1649 = vld [vmem:[#allocation8 + $0x1ee0] sm:$0xff]
    %v1650 = vld [vmem:[#allocation8 + $0x1ee8] sm:$0xff]
    %v1651 = vld [vmem:[#allocation8 + $0x1ef0] sm:$0xff]
    %v1652 = vld [vmem:[#allocation8 + $0x1ef8] sm:$0xff]
    %v1653 = vld [vmem:[#allocation8 + $0x1f00] sm:$0xff]
    %v1654 = vld [vmem:[#allocation8 + $0x1f08] sm:$0xff]
    %v1655 = vld [vmem:[#allocation8 + $0x1f10] sm:$0xff]
    %v1656 = vld [vmem:[#allocation8 + $0x1f18] sm:$0xff]
    %v1657 = vld [vmem:[#allocation8 + $0x1f20] sm:$0xff]
    %v1658 = vld [vmem:[#allocation8 + $0x1f28] sm:$0xff]
    %v1659 = vld [vmem:[#allocation8 + $0x1f30] sm:$0xff]
    %v1660 = vld [vmem:[#allocation8 + $0x1f38] sm:$0xff]
    %v1661 = vld [vmem:[#allocation8 + $0x1f40] sm:$0xff]
    %v1662 = vld [vmem:[#allocation8 + $0x1f48] sm:$0xff]
    %v1663 = vld [vmem:[#allocation8 + $0x1f50] sm:$0xff]
    %v1664 = vld [vmem:[#allocation8 + $0x1f58] sm:$0xff]
    %v1665 = vld [vmem:[#allocation8 + $0x1f60] sm:$0xff]
    %v1666 = vld [vmem:[#allocation8 + $0x1f68] sm:$0xff]
    %v1667 = vld [vmem:[#allocation8 + $0x1f70] sm:$0xff]
    %v1668 = vld [vmem:[#allocation8 + $0x1f78] sm:$0xff]
    %v1669 = vld [vmem:[#allocation8 + $0x1f80] sm:$0xff]
    %v1670 = vld [vmem:[#allocation8 + $0x1f88] sm:$0xff]
    %v1671 = vld [vmem:[#allocation8 + $0x1f90] sm:$0xff]
    %v1672 = vld [vmem:[#allocation8 + $0x1f98] sm:$0xff]
    %v1673 = vld [vmem:[#allocation8 + $0x1fa0] sm:$0xff]
    %v1674 = vld [vmem:[#allocation8 + $0x1fa8] sm:$0xff]
    %v1675 = vld [vmem:[#allocation8 + $0x1fb0] sm:$0xff]
    %v1676 = vld [vmem:[#allocation8 + $0x1fb8] sm:$0xff]
    %v1677 = vld [vmem:[#allocation8 + $0x1fc0] sm:$0xff]
    %v1678 = vld [vmem:[#allocation8 + $0x1fc8] sm:$0xff]
    %v1679 = vld [vmem:[#allocation8 + $0x1fd0] sm:$0xff]
    %v1680 = vld [vmem:[#allocation8 + $0x1fd8] sm:$0xff]
    %v1681 = vld [vmem:[#allocation8 + $0x1fe0] sm:$0xff]
    %v1682 = vld [vmem:[#allocation8 + $0x1fe8] sm:$0xff]
    %v1683 = vld [vmem:[#allocation8 + $0x1ff0] sm:$0xff]
    %v1684 = vld [vmem:[#allocation8 + $0x1ff8] sm:$0xff]
    %v1685 = vld [vmem:[#allocation8 + $0x2000] sm:$0xff]
    %v1686 = vld [vmem:[#allocation8 + $0x2008] sm:$0xff]
    %v1687 = vld [vmem:[#allocation8 + $0x2010] sm:$0xff]
    %v1688 = vld [vmem:[#allocation8 + $0x2018] sm:$0xff]
    %v1689 = vld [vmem:[#allocation8 + $0x2020] sm:$0xff]
    %v1690 = vld [vmem:[#allocation8 + $0x2028] sm:$0xff]
    %v1691 = vld [vmem:[#allocation8 + $0x2030] sm:$0xff]
    %v1692 = vld [vmem:[#allocation8 + $0x2038] sm:$0xff]
    %v1693 = vld [vmem:[#allocation8 + $0x2040] sm:$0xff]
    %v1694 = vld [vmem:[#allocation8 + $0x2048] sm:$0xff]
    %v1695 = vld [vmem:[#allocation8 + $0x2050] sm:$0xff]
    %v1696 = vld [vmem:[#allocation8 + $0x2058] sm:$0xff]
    %v1697 = vld [vmem:[#allocation8 + $0x2060] sm:$0xff]
    %v1698 = vld [vmem:[#allocation8 + $0x2068] sm:$0xff]
    %v1699 = vld [vmem:[#allocation8 + $0x2070] sm:$0xff]
    %v1700 = vld [vmem:[#allocation8 + $0x2078] sm:$0xff]
    %v1701 = vld [vmem:[#allocation8 + $0x2080] sm:$0xff]
    %v1702 = vld [vmem:[#allocation8 + $0x2088] sm:$0xff]
    %v1703 = vld [vmem:[#allocation8 + $0x2090] sm:$0xff]
    %v1704 = vld [vmem:[#allocation8 + $0x2098] sm:$0xff]
    %v1705 = vld [vmem:[#allocation8 + $0x20a0] sm:$0xff]
    %v1706 = vld [vmem:[#allocation8 + $0x20a8] sm:$0xff]
    %v1707 = vld [vmem:[#allocation8 + $0x20b0] sm:$0xff]
    %v1708 = vld [vmem:[#allocation8 + $0x20b8] sm:$0xff]
    %v1709 = vld [vmem:[#allocation8 + $0x20c0] sm:$0xff]
    %v1710 = vld [vmem:[#allocation8 + $0x20c8] sm:$0xff]
    %v1711 = vld [vmem:[#allocation8 + $0x20d0] sm:$0xff]
    %v1712 = vld [vmem:[#allocation8 + $0x20d8] sm:$0xff]
    %v1713 = vld [vmem:[#allocation8 + $0x20e0] sm:$0xff]
    %v1714 = vld [vmem:[#allocation8 + $0x20e8] sm:$0xff]
    %v1715 = vld [vmem:[#allocation8 + $0x20f0] sm:$0xff]
    %v1716 = vld [vmem:[#allocation8 + $0x20f8] sm:$0xff]
    %v1717 = vld [vmem:[#allocation8 + $0x2100] sm:$0xff]
    %v1718 = vld [vmem:[#allocation8 + $0x2108] sm:$0xff]
    %v1719 = vld [vmem:[#allocation8 + $0x2110] sm:$0xff]
    %v1720 = vld [vmem:[#allocation8 + $0x2118] sm:$0xff]
    %v1721 = vld [vmem:[#allocation8 + $0x2120] sm:$0xff]
    %v1722 = vld [vmem:[#allocation8 + $0x2128] sm:$0xff]
    %v1723 = vld [vmem:[#allocation8 + $0x2130] sm:$0xff]
    %v1724 = vld [vmem:[#allocation8 + $0x2138] sm:$0xff]
    %v1725 = vld [vmem:[#allocation8 + $0x2140] sm:$0xff]
    %v1726 = vld [vmem:[#allocation8 + $0x2148] sm:$0xff]
    %v1727 = vld [vmem:[#allocation8 + $0x2150] sm:$0xff]
    %v1728 = vld [vmem:[#allocation8 + $0x2158] sm:$0xff]
    %v1729 = vld [vmem:[#allocation8 + $0x2160] sm:$0xff]
    %v1730 = vld [vmem:[#allocation8 + $0x2168] sm:$0xff]
    %v1731 = vld [vmem:[#allocation8 + $0x2170] sm:$0xff]
    %v1732 = vld [vmem:[#allocation8 + $0x2178] sm:$0xff]
    %v1733 = vld [vmem:[#allocation8 + $0x2180] sm:$0xff]
    %v1734 = vld [vmem:[#allocation8 + $0x2188] sm:$0xff]
    %v1735 = vld [vmem:[#allocation8 + $0x2190] sm:$0xff]
    %v1736 = vld [vmem:[#allocation8 + $0x2198] sm:$0xff]
    %v1737 = vld [vmem:[#allocation8 + $0x21a0] sm:$0xff]
    %v1738 = vld [vmem:[#allocation8 + $0x21a8] sm:$0xff]
    %v1739 = vld [vmem:[#allocation8 + $0x21b0] sm:$0xff]
    %v1740 = vld [vmem:[#allocation8 + $0x21b8] sm:$0xff]
    %v1741 = vld [vmem:[#allocation8 + $0x21c0] sm:$0xff]
    %v1742 = vld [vmem:[#allocation8 + $0x21c8] sm:$0xff]
    %v1743 = vld [vmem:[#allocation8 + $0x21d0] sm:$0xff]
    %v1744 = vld [vmem:[#allocation8 + $0x21d8] sm:$0xff]
    %v1745 = vld [vmem:[#allocation8 + $0x21e0] sm:$0xff]
    %v1746 = vld [vmem:[#allocation8 + $0x21e8] sm:$0xff]
    %v1747 = vld [vmem:[#allocation8 + $0x21f0] sm:$0xff]
    %v1748 = vld [vmem:[#allocation8 + $0x21f8] sm:$0xff]
    %v1749 = vld [vmem:[#allocation8 + $0x2200] sm:$0xff]
    %v1750 = vld [vmem:[#allocation8 + $0x2208] sm:$0xff]
    %v1751 = vld [vmem:[#allocation8 + $0x2210] sm:$0xff]
    %v1752 = vld [vmem:[#allocation8 + $0x2218] sm:$0xff]
    %v1753 = vld [vmem:[#allocation8 + $0x2220] sm:$0xff]
    %v1754 = vld [vmem:[#allocation8 + $0x2228] sm:$0xff]
    %v1755 = vld [vmem:[#allocation8 + $0x2230] sm:$0xff]
    %v1756 = vld [vmem:[#allocation8 + $0x2238] sm:$0xff]
    %v1757 = vld [vmem:[#allocation8 + $0x2240] sm:$0xff]
    %v1758 = vld [vmem:[#allocation8 + $0x2248] sm:$0xff]
    %v1759 = vld [vmem:[#allocation8 + $0x2250] sm:$0xff]
    %v1760 = vld [vmem:[#allocation8 + $0x2258] sm:$0xff]
    %v1761 = vld [vmem:[#allocation8 + $0x2260] sm:$0xff]
    %v1762 = vld [vmem:[#allocation8 + $0x2268] sm:$0xff]
    %v1763 = vld [vmem:[#allocation8 + $0x2270] sm:$0xff]
    %v1764 = vld [vmem:[#allocation8 + $0x2278] sm:$0xff]
    %v1765 = vld [vmem:[#allocation8 + $0x2280] sm:$0xff]
    %v1766 = vld [vmem:[#allocation8 + $0x2288] sm:$0xff]
    %v1767 = vld [vmem:[#allocation8 + $0x2290] sm:$0xff]
    %v1768 = vld [vmem:[#allocation8 + $0x2298] sm:$0xff]
    %v1769 = vld [vmem:[#allocation8 + $0x22a0] sm:$0xff]
    %v1770 = vld [vmem:[#allocation8 + $0x22a8] sm:$0xff]
    %v1771 = vld [vmem:[#allocation8 + $0x22b0] sm:$0xff]
    %v1772 = vld [vmem:[#allocation8 + $0x22b8] sm:$0xff]
    %v1773 = vld [vmem:[#allocation8 + $0x22c0] sm:$0xff]
    %v1774 = vld [vmem:[#allocation8 + $0x22c8] sm:$0xff]
    %v1775 = vld [vmem:[#allocation8 + $0x22d0] sm:$0xff]
    %v1776 = vld [vmem:[#allocation8 + $0x22d8] sm:$0xff]
    %v1777 = vld [vmem:[#allocation8 + $0x22e0] sm:$0xff]
    %v1778 = vld [vmem:[#allocation8 + $0x22e8] sm:$0xff]
    %v1779 = vld [vmem:[#allocation8 + $0x22f0] sm:$0xff]
    %v1780 = vld [vmem:[#allocation8 + $0x22f8] sm:$0xff]
    %v1781 = vld [vmem:[#allocation8 + $0x2300] sm:$0xff]
    %v1782 = vld [vmem:[#allocation8 + $0x2308] sm:$0xff]
    %v1783 = vld [vmem:[#allocation8 + $0x2310] sm:$0xff]
    %v1784 = vld [vmem:[#allocation8 + $0x2318] sm:$0xff]
    %v1785 = vld [vmem:[#allocation8 + $0x2320] sm:$0xff]
    %v1786 = vld [vmem:[#allocation8 + $0x2328] sm:$0xff]
    %v1787 = vld [vmem:[#allocation8 + $0x2330] sm:$0xff]
    %v1788 = vld [vmem:[#allocation8 + $0x2338] sm:$0xff]
    %v1789 = vld [vmem:[#allocation8 + $0x2340] sm:$0xff]
    %v1790 = vld [vmem:[#allocation8 + $0x2348] sm:$0xff]
    %v1791 = vld [vmem:[#allocation8 + $0x2350] sm:$0xff]
    %v1792 = vld [vmem:[#allocation8 + $0x2358] sm:$0xff]
    %v1793 = vld [vmem:[#allocation8 + $0x2360] sm:$0xff]
    %v1794 = vld [vmem:[#allocation8 + $0x2368] sm:$0xff]
    %v1795 = vld [vmem:[#allocation8 + $0x2370] sm:$0xff]
    %v1796 = vld [vmem:[#allocation8 + $0x2378] sm:$0xff]
    %v1797 = vld [vmem:[#allocation8 + $0x2380] sm:$0xff]
    %v1798 = vld [vmem:[#allocation8 + $0x2388] sm:$0xff]
    %v1799 = vld [vmem:[#allocation8 + $0x2390] sm:$0xff]
    %v1800 = vld [vmem:[#allocation8 + $0x2398] sm:$0xff]
    %v1801 = vld [vmem:[#allocation8 + $0x23a0] sm:$0xff]
    %v1802 = vld [vmem:[#allocation8 + $0x23a8] sm:$0xff]
    %v1803 = vld [vmem:[#allocation8 + $0x23b0] sm:$0xff]
    %v1804 = vld [vmem:[#allocation8 + $0x23b8] sm:$0xff]
    %v1805 = vld [vmem:[#allocation8 + $0x23c0] sm:$0xff]
    %v1806 = vld [vmem:[#allocation8 + $0x23c8] sm:$0xff]
    %v1807 = vld [vmem:[#allocation8 + $0x23d0] sm:$0xff]
    %v1808 = vld [vmem:[#allocation8 + $0x23d8] sm:$0xff]
    %v1809 = vld [vmem:[#allocation8 + $0x23e0] sm:$0xff]
    %v1810 = vld [vmem:[#allocation8 + $0x23e8] sm:$0xff]
    %v1811 = vld [vmem:[#allocation8 + $0x23f0] sm:$0xff]
    %v1812 = vld [vmem:[#allocation8 + $0x23f8] sm:$0xff]
    %v1813 = vld [vmem:[#allocation8 + $0x2400] sm:$0xff]
    %v1814 = vld [vmem:[#allocation8 + $0x2408] sm:$0xff]
    %v1815 = vld [vmem:[#allocation8 + $0x2410] sm:$0xff]
    %v1816 = vld [vmem:[#allocation8 + $0x2418] sm:$0xff]
    %v1817 = vld [vmem:[#allocation8 + $0x2420] sm:$0xff]
    %v1818 = vld [vmem:[#allocation8 + $0x2428] sm:$0xff]
    %v1819 = vld [vmem:[#allocation8 + $0x2430] sm:$0xff]
    %v1820 = vld [vmem:[#allocation8 + $0x2438] sm:$0xff]
    %v1821 = vld [vmem:[#allocation8 + $0x2440] sm:$0xff]
    %v1822 = vld [vmem:[#allocation8 + $0x2448] sm:$0xff]
    %v1823 = vld [vmem:[#allocation8 + $0x2450] sm:$0xff]
    %v1824 = vld [vmem:[#allocation8 + $0x2458] sm:$0xff]
    %v1825 = vld [vmem:[#allocation8 + $0x2460] sm:$0xff]
    %v1826 = vld [vmem:[#allocation8 + $0x2468] sm:$0xff]
    %v1827 = vld [vmem:[#allocation8 + $0x2470] sm:$0xff]
    %v1828 = vld [vmem:[#allocation8 + $0x2478] sm:$0xff]
    %v1829 = vld [vmem:[#allocation8 + $0x2480] sm:$0xff]
    %v1830 = vld [vmem:[#allocation8 + $0x2488] sm:$0xff]
    %v1831 = vld [vmem:[#allocation8 + $0x2490] sm:$0xff]
    %v1832 = vld [vmem:[#allocation8 + $0x2498] sm:$0xff]
    %v1833 = vld [vmem:[#allocation8 + $0x24a0] sm:$0xff]
    %v1834 = vld [vmem:[#allocation8 + $0x24a8] sm:$0xff]
    %v1835 = vld [vmem:[#allocation8 + $0x24b0] sm:$0xff]
    %v1836 = vld [vmem:[#allocation8 + $0x24b8] sm:$0xff]
    %v1837 = vld [vmem:[#allocation8 + $0x24c0] sm:$0xff]
    %v1838 = vld [vmem:[#allocation8 + $0x24c8] sm:$0xff]
    %v1839 = vld [vmem:[#allocation8 + $0x24d0] sm:$0xff]
    %v1840 = vld [vmem:[#allocation8 + $0x24d8] sm:$0xff]
    %v1841 = vld [vmem:[#allocation8 + $0x24e0] sm:$0xff]
    %v1842 = vld [vmem:[#allocation8 + $0x24e8] sm:$0xff]
    %v1843 = vld [vmem:[#allocation8 + $0x24f0] sm:$0xff]
    %v1844 = vld [vmem:[#allocation8 + $0x24f8] sm:$0xff]
    %v1845 = vld [vmem:[#allocation8 + $0x2500] sm:$0xff]
    %v1846 = vld [vmem:[#allocation8 + $0x2508] sm:$0xff]
    %v1847 = vld [vmem:[#allocation8 + $0x2510] sm:$0xff]
    %v1848 = vld [vmem:[#allocation8 + $0x2518] sm:$0xff]
    %v1849 = vld [vmem:[#allocation8 + $0x2520] sm:$0xff]
    %v1850 = vld [vmem:[#allocation8 + $0x2528] sm:$0xff]
    %v1851 = vld [vmem:[#allocation8 + $0x2530] sm:$0xff]
    %v1852 = vld [vmem:[#allocation8 + $0x2538] sm:$0xff]
    %v1853 = vld [vmem:[#allocation8 + $0x2540] sm:$0xff]
    %v1854 = vld [vmem:[#allocation8 + $0x2548] sm:$0xff]
    %v1855 = vld [vmem:[#allocation8 + $0x2550] sm:$0xff]
    %v1856 = vld [vmem:[#allocation8 + $0x2558] sm:$0xff]
    %v1857 = vld [vmem:[#allocation8 + $0x2560] sm:$0xff]
    %v1858 = vld [vmem:[#allocation8 + $0x2568] sm:$0xff]
    %v1859 = vld [vmem:[#allocation8 + $0x2570] sm:$0xff]
    %v1860 = vld [vmem:[#allocation8 + $0x2578] sm:$0xff]
    %v1861 = vld [vmem:[#allocation9] sm:$0x3f]
    %v1863 = vperm.slane %v1861, 0
    %v1864 = vperm.slane %v1861, 1
    %v1865 = vperm.slane %v1861, 2
    %v1866 = vperm.slane %v1861, 3
    %v1867 = vperm.slane %v1861, 4
    %v1868 = vperm.slane %v1861, 5
    %v1888 = vunpack.c.l.b16 %v648
    %v1889 = vunpack.c.h.b16 %v648
    %v1890 = vunpack.c.l.b16 %v649
    %v1891 = vunpack.c.h.b16 %v649
    %v1892 = vunpack.c.l.b16 %v650
    %v1893 = vunpack.c.h.b16 %v650
    %v1894 = vunpack.c.l.b16 %v651
    %v1895 = vunpack.c.h.b16 %v651
    %v1896 = vunpack.c.l.b16 %v652
    %v1897 = vunpack.c.h.b16 %v652
    %v1898 = vunpack.c.l.b16 %v653
    %v1899 = vunpack.c.h.b16 %v653
    %v1900 = vunpack.c.l.b16 %v654
    %v1901 = vunpack.c.h.b16 %v654
    %v1902 = vunpack.c.l.b16 %v655
    %v1903 = vunpack.c.h.b16 %v655
    %v1904 = vunpack.c.l.b16 %v656
    %v1905 = vunpack.c.h.b16 %v656
    %v1906 = vunpack.c.l.b16 %v657
    %v1907 = vunpack.c.h.b16 %v657
    %v1908 = vunpack.c.l.b16 %v658
    %v1909 = vunpack.c.h.b16 %v658
    %v1910 = vunpack.c.l.b16 %v659
    %v1911 = vunpack.c.h.b16 %v659
    %v1912 = vunpack.c.l.b16 %v660
    %v1913 = vpack.c.b16 %v1888, %v1888
    %v1914 = vpack.c.b16 %v1889, %v1889
    %v1915 = vpack.c.b16 %v1890, %v1890
    %v1916 = vpack.c.b16 %v1891, %v1891
    %v1917 = vpack.c.b16 %v1892, %v1892
    %v1918 = vpack.c.b16 %v1893, %v1893
    %v1919 = vpack.c.b16 %v1894, %v1894
    %v1920 = vpack.c.b16 %v1895, %v1895
    %v1921 = vpack.c.b16 %v1896, %v1896
    %v1922 = vpack.c.b16 %v1897, %v1897
    %v1923 = vpack.c.b16 %v1898, %v1898
    %v1924 = vpack.c.b16 %v1899, %v1899
    %v1925 = vpack.c.b16 %v1900, %v1900
    %v1926 = vpack.c.b16 %v1901, %v1901
    %v1927 = vpack.c.b16 %v1902, %v1902
    %v1928 = vpack.c.b16 %v1903, %v1903
    %v1929 = vpack.c.b16 %v1904, %v1904
    %v1930 = vpack.c.b16 %v1905, %v1905
    %v1931 = vpack.c.b16 %v1906, %v1906
    %v1932 = vpack.c.b16 %v1907, %v1907
    %v1933 = vpack.c.b16 %v1908, %v1908
    %v1934 = vpack.c.b16 %v1909, %v1909
    %v1935 = vpack.c.b16 %v1910, %v1910
    %v1936 = vpack.c.b16 %v1911, %v1911
    %v1937 = vpack.c.b16 %v1912, %v1912
    %v3163 = vunpack.c.l.b16 %v661
    %v3164 = vunpack.c.h.b16 %v661
    %v3165 = vunpack.c.l.b16 %v662
    %v3166 = vunpack.c.h.b16 %v662
    %v3167 = vunpack.c.l.b16 %v663
    %v3168 = vunpack.c.h.b16 %v663
    %v3169 = vunpack.c.l.b16 %v664
    %v3170 = vunpack.c.h.b16 %v664
    %v3171 = vunpack.c.l.b16 %v665
    %v3172 = vunpack.c.h.b16 %v665
    %v3173 = vunpack.c.l.b16 %v666
    %v3174 = vunpack.c.h.b16 %v666
    %v3175 = vunpack.c.l.b16 %v667
    %v3176 = vunpack.c.h.b16 %v667
    %v3177 = vunpack.c.l.b16 %v668
    %v3178 = vunpack.c.h.b16 %v668
    %v3179 = vunpack.c.l.b16 %v669
    %v3180 = vunpack.c.h.b16 %v669
    %v3181 = vunpack.c.l.b16 %v670
    %v3182 = vunpack.c.h.b16 %v670
    %v3183 = vunpack.c.l.b16 %v671
    %v3184 = vunpack.c.h.b16 %v671
    %v3185 = vunpack.c.l.b16 %v672
    %v3186 = vunpack.c.h.b16 %v672
    %v3187 = vunpack.c.l.b16 %v673
    %v3188 = vunpack.c.h.b16 %v673
    %v3189 = vunpack.c.l.b16 %v674
    %v3190 = vunpack.c.h.b16 %v674
    %v3191 = vunpack.c.l.b16 %v675
    %v3192 = vunpack.c.h.b16 %v675
    %v3193 = vunpack.c.l.b16 %v676
    %v3194 = vunpack.c.h.b16 %v676
    %v3195 = vunpack.c.l.b16 %v677
    %v3196 = vunpack.c.h.b16 %v677
    %v3197 = vunpack.c.l.b16 %v678
    %v3198 = vunpack.c.h.b16 %v678
    %v3199 = vunpack.c.l.b16 %v679
    %v3200 = vunpack.c.h.b16 %v679
    %v3201 = vunpack.c.l.b16 %v680
    %v3202 = vunpack.c.h.b16 %v680
    %v3203 = vunpack.c.l.b16 %v681
    %v3204 = vunpack.c.h.b16 %v681
    %v3205 = vunpack.c.l.b16 %v682
    %v3206 = vunpack.c.h.b16 %v682
    %v3207 = vunpack.c.l.b16 %v683
    %v3208 = vunpack.c.h.b16 %v683
    %v3209 = vunpack.c.l.b16 %v684
    %v3210 = vunpack.c.h.b16 %v684
    %v3211 = vunpack.c.l.b16 %v685
    %v3212 = vunpack.c.h.b16 %v685
    %v3213 = vunpack.c.l.b16 %v686
    %v3214 = vunpack.c.h.b16 %v686
    %v3215 = vunpack.c.l.b16 %v687
    %v3216 = vunpack.c.h.b16 %v687
    %v3217 = vunpack.c.l.b16 %v688
    %v3218 = vunpack.c.h.b16 %v688
    %v3219 = vunpack.c.l.b16 %v689
    %v3220 = vunpack.c.h.b16 %v689
    %v3221 = vunpack.c.l.b16 %v690
    %v3222 = vunpack.c.h.b16 %v690
    %v3223 = vunpack.c.l.b16 %v691
    %v3224 = vunpack.c.h.b16 %v691
    %v3225 = vunpack.c.l.b16 %v692
    %v3226 = vunpack.c.h.b16 %v692
    %v3227 = vunpack.c.l.b16 %v693
    %v3228 = vunpack.c.h.b16 %v693
    %v3229 = vunpack.c.l.b16 %v694
    %v3230 = vunpack.c.h.b16 %v694
    %v3231 = vunpack.c.l.b16 %v695
    %v3232 = vunpack.c.h.b16 %v695
    %v3233 = vunpack.c.l.b16 %v696
    %v3234 = vunpack.c.h.b16 %v696
    %v3235 = vunpack.c.l.b16 %v697
    %v3236 = vunpack.c.h.b16 %v697
    %v3237 = vunpack.c.l.b16 %v698
    %v3238 = vunpack.c.h.b16 %v698
    %v3239 = vunpack.c.l.b16 %v699
    %v3240 = vunpack.c.h.b16 %v699
    %v3241 = vunpack.c.l.b16 %v700
    %v3242 = vunpack.c.h.b16 %v700
    %v3243 = vunpack.c.l.b16 %v701
    %v3244 = vunpack.c.h.b16 %v701
    %v3245 = vunpack.c.l.b16 %v702
    %v3246 = vunpack.c.h.b16 %v702
    %v3247 = vunpack.c.l.b16 %v703
    %v3248 = vunpack.c.h.b16 %v703
    %v3249 = vunpack.c.l.b16 %v704
    %v3250 = vunpack.c.h.b16 %v704
    %v3251 = vunpack.c.l.b16 %v705
    %v3252 = vunpack.c.h.b16 %v705
    %v3253 = vunpack.c.l.b16 %v706
    %v3254 = vunpack.c.h.b16 %v706
    %v3255 = vunpack.c.l.b16 %v707
    %v3256 = vunpack.c.h.b16 %v707
    %v3257 = vunpack.c.l.b16 %v708
    %v3258 = vunpack.c.h.b16 %v708
    %v3259 = vunpack.c.l.b16 %v709
    %v3260 = vunpack.c.h.b16 %v709
    %v3261 = vunpack.c.l.b16 %v710
    %v3262 = vunpack.c.h.b16 %v710
    %v3263 = vunpack.c.l.b16 %v711
    %v3264 = vunpack.c.h.b16 %v711
    %v3265 = vunpack.c.l.b16 %v712
    %v3266 = vunpack.c.h.b16 %v712
    %v3267 = vunpack.c.l.b16 %v713
    %v3268 = vunpack.c.h.b16 %v713
    %v3269 = vunpack.c.l.b16 %v714
    %v3270 = vunpack.c.h.b16 %v714
    %v3271 = vunpack.c.l.b16 %v715
    %v3272 = vunpack.c.h.b16 %v715
    %v3273 = vunpack.c.l.b16 %v716
    %v3274 = vunpack.c.h.b16 %v716
    %v3275 = vunpack.c.l.b16 %v717
    %v3276 = vunpack.c.h.b16 %v717
    %v3277 = vunpack.c.l.b16 %v718
    %v3278 = vunpack.c.h.b16 %v718
    %v3279 = vunpack.c.l.b16 %v719
    %v3280 = vunpack.c.h.b16 %v719
    %v3281 = vunpack.c.l.b16 %v720
    %v3282 = vunpack.c.h.b16 %v720
    %v3283 = vunpack.c.l.b16 %v721
    %v3284 = vunpack.c.h.b16 %v721
    %v3285 = vunpack.c.l.b16 %v722
    %v3286 = vunpack.c.h.b16 %v722
    %v3287 = vunpack.c.l.b16 %v723
    %v3288 = vunpack.c.h.b16 %v723
    %v3289 = vunpack.c.l.b16 %v724
    %v3290 = vunpack.c.h.b16 %v724
    %v3291 = vunpack.c.l.b16 %v725
    %v3292 = vunpack.c.h.b16 %v725
    %v3293 = vunpack.c.l.b16 %v726
    %v3294 = vunpack.c.h.b16 %v726
    %v3295 = vunpack.c.l.b16 %v727
    %v3296 = vunpack.c.h.b16 %v727
    %v3297 = vunpack.c.l.b16 %v728
    %v3298 = vunpack.c.h.b16 %v728
    %v3299 = vunpack.c.l.b16 %v729
    %v3300 = vunpack.c.h.b16 %v729
    %v3301 = vunpack.c.l.b16 %v730
    %v3302 = vunpack.c.h.b16 %v730
    %v3303 = vunpack.c.l.b16 %v731
    %v3304 = vunpack.c.h.b16 %v731
    %v3305 = vunpack.c.l.b16 %v732
    %v3306 = vunpack.c.h.b16 %v732
    %v3307 = vunpack.c.l.b16 %v733
    %v3308 = vunpack.c.h.b16 %v733
    %v3309 = vunpack.c.l.b16 %v734
    %v3310 = vunpack.c.h.b16 %v734
    %v3311 = vunpack.c.l.b16 %v735
    %v3312 = vunpack.c.h.b16 %v735
    %v3313 = vunpack.c.l.b16 %v736
    %v3314 = vunpack.c.h.b16 %v736
    %v3315 = vunpack.c.l.b16 %v737
    %v3316 = vunpack.c.h.b16 %v737
    %v3317 = vunpack.c.l.b16 %v738
    %v3318 = vunpack.c.h.b16 %v738
    %v3319 = vunpack.c.l.b16 %v739
    %v3320 = vunpack.c.h.b16 %v739
    %v3321 = vunpack.c.l.b16 %v740
    %v3322 = vunpack.c.h.b16 %v740
    %v3323 = vunpack.c.l.b16 %v741
    %v3324 = vunpack.c.h.b16 %v741
    %v3325 = vunpack.c.l.b16 %v742
    %v3326 = vunpack.c.h.b16 %v742
    %v3327 = vunpack.c.l.b16 %v743
    %v3328 = vunpack.c.h.b16 %v743
    %v3329 = vunpack.c.l.b16 %v744
    %v3330 = vunpack.c.h.b16 %v744
    %v3331 = vunpack.c.l.b16 %v745
    %v3332 = vunpack.c.h.b16 %v745
    %v3333 = vunpack.c.l.b16 %v746
    %v3334 = vunpack.c.h.b16 %v746
    %v3335 = vunpack.c.l.b16 %v747
    %v3336 = vunpack.c.h.b16 %v747
    %v3337 = vunpack.c.l.b16 %v748
    %v3338 = vunpack.c.h.b16 %v748
    %v3339 = vunpack.c.l.b16 %v749
    %v3340 = vunpack.c.h.b16 %v749
    %v3341 = vunpack.c.l.b16 %v750
    %v3342 = vunpack.c.h.b16 %v750
    %v3343 = vunpack.c.l.b16 %v751
    %v3344 = vunpack.c.h.b16 %v751
    %v3345 = vunpack.c.l.b16 %v752
    %v3346 = vunpack.c.h.b16 %v752
    %v3347 = vunpack.c.l.b16 %v753
    %v3348 = vunpack.c.h.b16 %v753
    %v3349 = vunpack.c.l.b16 %v754
    %v3350 = vunpack.c.h.b16 %v754
    %v3351 = vunpack.c.l.b16 %v755
    %v3352 = vunpack.c.h.b16 %v755
    %v3353 = vunpack.c.l.b16 %v756
    %v3354 = vunpack.c.h.b16 %v756
    %v3355 = vunpack.c.l.b16 %v757
    %v3356 = vunpack.c.h.b16 %v757
    %v3357 = vunpack.c.l.b16 %v758
    %v3358 = vunpack.c.h.b16 %v758
    %v3359 = vunpack.c.l.b16 %v759
    %v3360 = vunpack.c.h.b16 %v759
    %v3361 = vunpack.c.l.b16 %v760
    %v3362 = vunpack.c.h.b16 %v760
    %v3363 = vunpack.c.l.b16 %v761
    %v3364 = vunpack.c.h.b16 %v761
    %v3365 = vunpack.c.l.b16 %v762
    %v3366 = vunpack.c.h.b16 %v762
    %v3367 = vunpack.c.l.b16 %v763
    %v3368 = vunpack.c.h.b16 %v763
    %v3369 = vunpack.c.l.b16 %v764
    %v3370 = vunpack.c.h.b16 %v764
    %v3371 = vunpack.c.l.b16 %v765
    %v3372 = vunpack.c.h.b16 %v765
    %v3373 = vunpack.c.l.b16 %v766
    %v3374 = vunpack.c.h.b16 %v766
    %v3375 = vunpack.c.l.b16 %v767
    %v3376 = vunpack.c.h.b16 %v767
    %v3377 = vunpack.c.l.b16 %v768
    %v3378 = vunpack.c.h.b16 %v768
    %v3379 = vunpack.c.l.b16 %v769
    %v3380 = vunpack.c.h.b16 %v769
    %v3381 = vunpack.c.l.b16 %v770
    %v3382 = vunpack.c.h.b16 %v770
    %v3383 = vunpack.c.l.b16 %v771
    %v3384 = vunpack.c.h.b16 %v771
    %v3385 = vunpack.c.l.b16 %v772
    %v3386 = vunpack.c.h.b16 %v772
    %v3387 = vunpack.c.l.b16 %v773
    %v3388 = vunpack.c.h.b16 %v773
    %v3389 = vunpack.c.l.b16 %v774
    %v3390 = vunpack.c.h.b16 %v774
    %v3391 = vunpack.c.l.b16 %v775
    %v3392 = vunpack.c.h.b16 %v775
    %v3393 = vunpack.c.l.b16 %v776
    %v3394 = vunpack.c.h.b16 %v776
    %v3395 = vunpack.c.l.b16 %v777
    %v3396 = vunpack.c.h.b16 %v777
    %v3397 = vunpack.c.l.b16 %v778
    %v3398 = vunpack.c.h.b16 %v778
    %v3399 = vunpack.c.l.b16 %v779
    %v3400 = vunpack.c.h.b16 %v779
    %v3401 = vunpack.c.l.b16 %v780
    %v3402 = vunpack.c.h.b16 %v780
    %v3403 = vunpack.c.l.b16 %v781
    %v3404 = vunpack.c.h.b16 %v781
    %v3405 = vunpack.c.l.b16 %v782
    %v3406 = vunpack.c.h.b16 %v782
    %v3407 = vunpack.c.l.b16 %v783
    %v3408 = vunpack.c.h.b16 %v783
    %v3409 = vunpack.c.l.b16 %v784
    %v3410 = vunpack.c.h.b16 %v784
    %v3411 = vunpack.c.l.b16 %v785
    %v3412 = vunpack.c.h.b16 %v785
    %v3413 = vunpack.c.l.b16 %v786
    %v3414 = vunpack.c.h.b16 %v786
    %v3415 = vunpack.c.l.b16 %v787
    %v3416 = vunpack.c.h.b16 %v787
    %v3417 = vunpack.c.l.b16 %v788
    %v3418 = vunpack.c.h.b16 %v788
    %v3419 = vunpack.c.l.b16 %v789
    %v3420 = vunpack.c.h.b16 %v789
    %v3421 = vunpack.c.l.b16 %v790
    %v3422 = vunpack.c.h.b16 %v790
    %v3423 = vunpack.c.l.b16 %v791
    %v3424 = vunpack.c.h.b16 %v791
    %v3425 = vunpack.c.l.b16 %v792
    %v3426 = vunpack.c.h.b16 %v792
    %v3427 = vunpack.c.l.b16 %v793
    %v3428 = vunpack.c.h.b16 %v793
    %v3429 = vunpack.c.l.b16 %v794
    %v3430 = vunpack.c.h.b16 %v794
    %v3431 = vunpack.c.l.b16 %v795
    %v3432 = vunpack.c.h.b16 %v795
    %v3433 = vunpack.c.l.b16 %v796
    %v3434 = vunpack.c.h.b16 %v796
    %v3435 = vunpack.c.l.b16 %v797
    %v3436 = vunpack.c.h.b16 %v797
    %v3437 = vunpack.c.l.b16 %v798
    %v3438 = vunpack.c.h.b16 %v798
    %v3439 = vunpack.c.l.b16 %v799
    %v3440 = vunpack.c.h.b16 %v799
    %v3441 = vunpack.c.l.b16 %v800
    %v3442 = vunpack.c.h.b16 %v800
    %v3443 = vunpack.c.l.b16 %v801
    %v3444 = vunpack.c.h.b16 %v801
    %v3445 = vunpack.c.l.b16 %v802
    %v3446 = vunpack.c.h.b16 %v802
    %v3447 = vunpack.c.l.b16 %v803
    %v3448 = vunpack.c.h.b16 %v803
    %v3449 = vunpack.c.l.b16 %v804
    %v3450 = vunpack.c.h.b16 %v804
    %v3451 = vunpack.c.l.b16 %v805
    %v3452 = vunpack.c.h.b16 %v805
    %v3453 = vunpack.c.l.b16 %v806
    %v3454 = vunpack.c.h.b16 %v806
    %v3455 = vunpack.c.l.b16 %v807
    %v3456 = vunpack.c.h.b16 %v807
    %v3457 = vunpack.c.l.b16 %v808
    %v3458 = vunpack.c.h.b16 %v808
    %v3459 = vunpack.c.l.b16 %v809
    %v3460 = vunpack.c.h.b16 %v809
    %v3461 = vunpack.c.l.b16 %v810
    %v3462 = vunpack.c.h.b16 %v810
    %v3463 = vunpack.c.l.b16 %v811
    %v3464 = vunpack.c.h.b16 %v811
    %v3465 = vunpack.c.l.b16 %v812
    %v3466 = vunpack.c.h.b16 %v812
    %v3467 = vunpack.c.l.b16 %v813
    %v3468 = vunpack.c.h.b16 %v813
    %v3469 = vunpack.c.l.b16 %v814
    %v3470 = vunpack.c.h.b16 %v814
    %v3471 = vunpack.c.l.b16 %v815
    %v3472 = vunpack.c.h.b16 %v815
    %v3473 = vunpack.c.l.b16 %v816
    %v3474 = vunpack.c.h.b16 %v816
    %v3475 = vunpack.c.l.b16 %v817
    %v3476 = vunpack.c.h.b16 %v817
    %v3477 = vunpack.c.l.b16 %v818
    %v3478 = vunpack.c.h.b16 %v818
    %v3479 = vunpack.c.l.b16 %v819
    %v3480 = vunpack.c.h.b16 %v819
    %v3481 = vunpack.c.l.b16 %v820
    %v3482 = vunpack.c.h.b16 %v820
    %v3483 = vunpack.c.l.b16 %v821
    %v3484 = vunpack.c.h.b16 %v821
    %v3485 = vunpack.c.l.b16 %v822
    %v3486 = vunpack.c.h.b16 %v822
    %v3487 = vunpack.c.l.b16 %v823
    %v3488 = vunpack.c.h.b16 %v823
    %v3489 = vunpack.c.l.b16 %v824
    %v3490 = vunpack.c.h.b16 %v824
    %v3491 = vunpack.c.l.b16 %v825
    %v3492 = vunpack.c.h.b16 %v825
    %v3493 = vunpack.c.l.b16 %v826
    %v3494 = vunpack.c.h.b16 %v826
    %v3495 = vunpack.c.l.b16 %v827
    %v3496 = vunpack.c.h.b16 %v827
    %v3497 = vunpack.c.l.b16 %v828
    %v3498 = vunpack.c.h.b16 %v828
    %v3499 = vunpack.c.l.b16 %v829
    %v3500 = vunpack.c.h.b16 %v829
    %v3501 = vunpack.c.l.b16 %v830
    %v3502 = vunpack.c.h.b16 %v830
    %v3503 = vunpack.c.l.b16 %v831
    %v3504 = vunpack.c.h.b16 %v831
    %v3505 = vunpack.c.l.b16 %v832
    %v3506 = vunpack.c.h.b16 %v832
    %v3507 = vunpack.c.l.b16 %v833
    %v3508 = vunpack.c.h.b16 %v833
    %v3509 = vunpack.c.l.b16 %v834
    %v3510 = vunpack.c.h.b16 %v834
    %v3511 = vunpack.c.l.b16 %v835
    %v3512 = vunpack.c.h.b16 %v835
    %v3513 = vunpack.c.l.b16 %v836
    %v3514 = vunpack.c.h.b16 %v836
    %v3515 = vunpack.c.l.b16 %v837
    %v3516 = vunpack.c.h.b16 %v837
    %v3517 = vunpack.c.l.b16 %v838
    %v3518 = vunpack.c.h.b16 %v838
    %v3519 = vunpack.c.l.b16 %v839
    %v3520 = vunpack.c.h.b16 %v839
    %v3521 = vunpack.c.l.b16 %v840
    %v3522 = vunpack.c.h.b16 %v840
    %v3523 = vunpack.c.l.b16 %v841
    %v3524 = vunpack.c.h.b16 %v841
    %v3525 = vunpack.c.l.b16 %v842
    %v3526 = vunpack.c.h.b16 %v842
    %v3527 = vunpack.c.l.b16 %v843
    %v3528 = vunpack.c.h.b16 %v843
    %v3529 = vunpack.c.l.b16 %v844
    %v3530 = vunpack.c.h.b16 %v844
    %v3531 = vunpack.c.l.b16 %v845
    %v3532 = vunpack.c.h.b16 %v845
    %v3533 = vunpack.c.l.b16 %v846
    %v3534 = vunpack.c.h.b16 %v846
    %v3535 = vunpack.c.l.b16 %v847
    %v3536 = vunpack.c.h.b16 %v847
    %v3537 = vunpack.c.l.b16 %v848
    %v3538 = vunpack.c.h.b16 %v848
    %v3539 = vunpack.c.l.b16 %v849
    %v3540 = vunpack.c.h.b16 %v849
    %v3541 = vunpack.c.l.b16 %v850
    %v3542 = vunpack.c.h.b16 %v850
    %v3543 = vunpack.c.l.b16 %v851
    %v3544 = vunpack.c.h.b16 %v851
    %v3545 = vunpack.c.l.b16 %v852
    %v3546 = vunpack.c.h.b16 %v852
    %v3547 = vunpack.c.l.b16 %v853
    %v3548 = vunpack.c.h.b16 %v853
    %v3549 = vunpack.c.l.b16 %v854
    %v3550 = vunpack.c.h.b16 %v854
    %v3551 = vunpack.c.l.b16 %v855
    %v3552 = vunpack.c.h.b16 %v855
    %v3553 = vunpack.c.l.b16 %v856
    %v3554 = vunpack.c.h.b16 %v856
    %v3555 = vunpack.c.l.b16 %v857
    %v3556 = vunpack.c.h.b16 %v857
    %v3557 = vunpack.c.l.b16 %v858
    %v3558 = vunpack.c.h.b16 %v858
    %v3559 = vunpack.c.l.b16 %v859
    %v3560 = vunpack.c.h.b16 %v859
    %v3561 = vunpack.c.l.b16 %v860
    %v3562 = vunpack.c.h.b16 %v860
    %v3563 = vunpack.c.l.b16 %v861
    %v3564 = vunpack.c.h.b16 %v861
    %v3565 = vunpack.c.l.b16 %v862
    %v3566 = vunpack.c.h.b16 %v862
    %v3567 = vunpack.c.l.b16 %v863
    %v3568 = vunpack.c.h.b16 %v863
    %v3569 = vunpack.c.l.b16 %v864
    %v3570 = vunpack.c.h.b16 %v864
    %v3571 = vunpack.c.l.b16 %v865
    %v3572 = vunpack.c.h.b16 %v865
    %v3573 = vunpack.c.l.b16 %v866
    %v3574 = vunpack.c.h.b16 %v866
    %v3575 = vunpack.c.l.b16 %v867
    %v3576 = vunpack.c.h.b16 %v867
    %v3577 = vunpack.c.l.b16 %v868
    %v3578 = vunpack.c.h.b16 %v868
    %v3579 = vunpack.c.l.b16 %v869
    %v3580 = vunpack.c.h.b16 %v869
    %v3581 = vunpack.c.l.b16 %v870
    %v3582 = vunpack.c.h.b16 %v870
    %v3583 = vunpack.c.l.b16 %v871
    %v3584 = vunpack.c.h.b16 %v871
    %v3585 = vunpack.c.l.b16 %v872
    %v3586 = vunpack.c.h.b16 %v872
    %v3587 = vunpack.c.l.b16 %v873
    %v3588 = vunpack.c.h.b16 %v873
    %v3589 = vunpack.c.l.b16 %v874
    %v3590 = vunpack.c.h.b16 %v874
    %v3591 = vunpack.c.l.b16 %v875
    %v3592 = vunpack.c.h.b16 %v875
    %v3593 = vunpack.c.l.b16 %v876
    %v3594 = vunpack.c.h.b16 %v876
    %v3595 = vunpack.c.l.b16 %v877
    %v3596 = vunpack.c.h.b16 %v877
    %v3597 = vunpack.c.l.b16 %v878
    %v3598 = vunpack.c.h.b16 %v878
    %v3599 = vunpack.c.l.b16 %v879
    %v3600 = vunpack.c.h.b16 %v879
    %v3601 = vunpack.c.l.b16 %v880
    %v3602 = vunpack.c.h.b16 %v880
    %v3603 = vunpack.c.l.b16 %v881
    %v3604 = vunpack.c.h.b16 %v881
    %v3605 = vunpack.c.l.b16 %v882
    %v3606 = vunpack.c.h.b16 %v882
    %v3607 = vunpack.c.l.b16 %v883
    %v3608 = vunpack.c.h.b16 %v883
    %v3609 = vunpack.c.l.b16 %v884
    %v3610 = vunpack.c.h.b16 %v884
    %v3611 = vunpack.c.l.b16 %v885
    %v3612 = vunpack.c.h.b16 %v885
    %v3613 = vunpack.c.l.b16 %v886
    %v3614 = vunpack.c.h.b16 %v886
    %v3615 = vunpack.c.l.b16 %v887
    %v3616 = vunpack.c.h.b16 %v887
    %v3617 = vunpack.c.l.b16 %v888
    %v3618 = vunpack.c.h.b16 %v888
    %v3619 = vunpack.c.l.b16 %v889
    %v3620 = vunpack.c.h.b16 %v889
    %v3621 = vunpack.c.l.b16 %v890
    %v3622 = vunpack.c.h.b16 %v890
    %v3623 = vunpack.c.l.b16 %v891
    %v3624 = vunpack.c.h.b16 %v891
    %v3625 = vunpack.c.l.b16 %v892
    %v3626 = vunpack.c.h.b16 %v892
    %v3627 = vunpack.c.l.b16 %v893
    %v3628 = vunpack.c.h.b16 %v893
    %v3629 = vunpack.c.l.b16 %v894
    %v3630 = vunpack.c.h.b16 %v894
    %v3631 = vunpack.c.l.b16 %v895
    %v3632 = vunpack.c.h.b16 %v895
    %v3633 = vunpack.c.l.b16 %v896
    %v3634 = vunpack.c.h.b16 %v896
    %v3635 = vunpack.c.l.b16 %v897
    %v3636 = vunpack.c.h.b16 %v897
    %v3637 = vunpack.c.l.b16 %v898
    %v3638 = vunpack.c.h.b16 %v898
    %v3639 = vunpack.c.l.b16 %v899
    %v3640 = vunpack.c.h.b16 %v899
    %v3641 = vunpack.c.l.b16 %v900
    %v3642 = vunpack.c.h.b16 %v900
    %v3643 = vunpack.c.l.b16 %v901
    %v3644 = vunpack.c.h.b16 %v901
    %v3645 = vunpack.c.l.b16 %v902
    %v3646 = vunpack.c.h.b16 %v902
    %v3647 = vunpack.c.l.b16 %v903
    %v3648 = vunpack.c.h.b16 %v903
    %v3649 = vunpack.c.l.b16 %v904
    %v3650 = vunpack.c.h.b16 %v904
    %v3651 = vunpack.c.l.b16 %v905
    %v3652 = vunpack.c.h.b16 %v905
    %v3653 = vunpack.c.l.b16 %v906
    %v3654 = vunpack.c.h.b16 %v906
    %v3655 = vunpack.c.l.b16 %v907
    %v3656 = vunpack.c.h.b16 %v907
    %v3657 = vunpack.c.l.b16 %v908
    %v3658 = vunpack.c.h.b16 %v908
    %v3659 = vunpack.c.l.b16 %v909
    %v3660 = vunpack.c.h.b16 %v909
    %v3661 = vunpack.c.l.b16 %v910
    %v3662 = vunpack.c.h.b16 %v910
    %v3663 = vunpack.c.l.b16 %v911
    %v3664 = vunpack.c.h.b16 %v911
    %v3665 = vunpack.c.l.b16 %v912
    %v3666 = vunpack.c.h.b16 %v912
    %v3667 = vunpack.c.l.b16 %v913
    %v3668 = vunpack.c.h.b16 %v913
    %v3669 = vunpack.c.l.b16 %v914
    %v3670 = vunpack.c.h.b16 %v914
    %v3671 = vunpack.c.l.b16 %v915
    %v3672 = vunpack.c.h.b16 %v915
    %v3673 = vunpack.c.l.b16 %v916
    %v3674 = vunpack.c.h.b16 %v916
    %v3675 = vunpack.c.l.b16 %v917
    %v3676 = vunpack.c.h.b16 %v917
    %v3677 = vunpack.c.l.b16 %v918
    %v3678 = vunpack.c.h.b16 %v918
    %v3679 = vunpack.c.l.b16 %v919
    %v3680 = vunpack.c.h.b16 %v919
    %v3681 = vunpack.c.l.b16 %v920
    %v3682 = vunpack.c.h.b16 %v920
    %v3683 = vunpack.c.l.b16 %v921
    %v3684 = vunpack.c.h.b16 %v921
    %v3685 = vunpack.c.l.b16 %v922
    %v3686 = vunpack.c.h.b16 %v922
    %v3687 = vunpack.c.l.b16 %v923
    %v3688 = vunpack.c.h.b16 %v923
    %v3689 = vunpack.c.l.b16 %v924
    %v3690 = vunpack.c.h.b16 %v924
    %v3691 = vunpack.c.l.b16 %v925
    %v3692 = vunpack.c.h.b16 %v925
    %v3693 = vunpack.c.l.b16 %v926
    %v3694 = vunpack.c.h.b16 %v926
    %v3695 = vunpack.c.l.b16 %v927
    %v3696 = vunpack.c.h.b16 %v927
    %v3697 = vunpack.c.l.b16 %v928
    %v3698 = vunpack.c.h.b16 %v928
    %v3699 = vunpack.c.l.b16 %v929
    %v3700 = vunpack.c.h.b16 %v929
    %v3701 = vunpack.c.l.b16 %v930
    %v3702 = vunpack.c.h.b16 %v930
    %v3703 = vunpack.c.l.b16 %v931
    %v3704 = vunpack.c.h.b16 %v931
    %v3705 = vunpack.c.l.b16 %v932
    %v3706 = vunpack.c.h.b16 %v932
    %v3707 = vunpack.c.l.b16 %v933
    %v3708 = vunpack.c.h.b16 %v933
    %v3709 = vunpack.c.l.b16 %v934
    %v3710 = vunpack.c.h.b16 %v934
    %v3711 = vunpack.c.l.b16 %v935
    %v3712 = vunpack.c.h.b16 %v935
    %v3713 = vunpack.c.l.b16 %v936
    %v3714 = vunpack.c.h.b16 %v936
    %v3715 = vunpack.c.l.b16 %v937
    %v3716 = vunpack.c.h.b16 %v937
    %v3717 = vunpack.c.l.b16 %v938
    %v3718 = vunpack.c.h.b16 %v938
    %v3719 = vunpack.c.l.b16 %v939
    %v3720 = vunpack.c.h.b16 %v939
    %v3721 = vunpack.c.l.b16 %v940
    %v3722 = vunpack.c.h.b16 %v940
    %v3723 = vunpack.c.l.b16 %v941
    %v3724 = vunpack.c.h.b16 %v941
    %v3725 = vunpack.c.l.b16 %v942
    %v3726 = vunpack.c.h.b16 %v942
    %v3727 = vunpack.c.l.b16 %v943
    %v3728 = vunpack.c.h.b16 %v943
    %v3729 = vunpack.c.l.b16 %v944
    %v3730 = vunpack.c.h.b16 %v944
    %v3731 = vunpack.c.l.b16 %v945
    %v3732 = vunpack.c.h.b16 %v945
    %v3733 = vunpack.c.l.b16 %v946
    %v3734 = vunpack.c.h.b16 %v946
    %v3735 = vunpack.c.l.b16 %v947
    %v3736 = vunpack.c.h.b16 %v947
    %v3737 = vunpack.c.l.b16 %v948
    %v3738 = vunpack.c.h.b16 %v948
    %v3739 = vunpack.c.l.b16 %v949
    %v3740 = vunpack.c.h.b16 %v949
    %v3741 = vunpack.c.l.b16 %v950
    %v3742 = vunpack.c.h.b16 %v950
    %v3743 = vunpack.c.l.b16 %v951
    %v3744 = vunpack.c.h.b16 %v951
    %v3745 = vunpack.c.l.b16 %v952
    %v3746 = vunpack.c.h.b16 %v952
    %v3747 = vunpack.c.l.b16 %v953
    %v3748 = vunpack.c.h.b16 %v953
    %v3749 = vunpack.c.l.b16 %v954
    %v3750 = vunpack.c.h.b16 %v954
    %v3751 = vunpack.c.l.b16 %v955
    %v3752 = vunpack.c.h.b16 %v955
    %v3753 = vunpack.c.l.b16 %v956
    %v3754 = vunpack.c.h.b16 %v956
    %v3755 = vunpack.c.l.b16 %v957
    %v3756 = vunpack.c.h.b16 %v957
    %v3757 = vunpack.c.l.b16 %v958
    %v3758 = vunpack.c.h.b16 %v958
    %v3759 = vunpack.c.l.b16 %v959
    %v3760 = vunpack.c.h.b16 %v959
    %v3761 = vunpack.c.l.b16 %v960
    %v3762 = vunpack.c.h.b16 %v960
    %v3763 = vunpack.c.l.b16 %v961
    %v3764 = vunpack.c.h.b16 %v961
    %v3765 = vunpack.c.l.b16 %v962
    %v3766 = vunpack.c.h.b16 %v962
    %v3767 = vunpack.c.l.b16 %v963
    %v3768 = vunpack.c.h.b16 %v963
    %v3769 = vunpack.c.l.b16 %v964
    %v3770 = vunpack.c.h.b16 %v964
    %v3771 = vunpack.c.l.b16 %v965
    %v3772 = vunpack.c.h.b16 %v965
    %v3773 = vunpack.c.l.b16 %v966
    %v3774 = vunpack.c.h.b16 %v966
    %v3775 = vunpack.c.l.b16 %v967
    %v3776 = vunpack.c.h.b16 %v967
    %v3777 = vunpack.c.l.b16 %v968
    %v3778 = vunpack.c.h.b16 %v968
    %v3779 = vunpack.c.l.b16 %v969
    %v3780 = vunpack.c.h.b16 %v969
    %v3781 = vunpack.c.l.b16 %v970
    %v3782 = vunpack.c.h.b16 %v970
    %v3783 = vunpack.c.l.b16 %v971
    %v3784 = vunpack.c.h.b16 %v971
    %v3785 = vunpack.c.l.b16 %v972
    %v3786 = vunpack.c.h.b16 %v972
    %v3787 = vunpack.c.l.b16 %v973
    %v3788 = vunpack.c.h.b16 %v973
    %v3789 = vunpack.c.l.b16 %v974
    %v3790 = vunpack.c.h.b16 %v974
    %v3791 = vunpack.c.l.b16 %v975
    %v3792 = vunpack.c.h.b16 %v975
    %v3793 = vunpack.c.l.b16 %v976
    %v3794 = vunpack.c.h.b16 %v976
    %v3795 = vunpack.c.l.b16 %v977
    %v3796 = vunpack.c.h.b16 %v977
    %v3797 = vunpack.c.l.b16 %v978
    %v3798 = vunpack.c.h.b16 %v978
    %v3799 = vunpack.c.l.b16 %v979
    %v3800 = vunpack.c.h.b16 %v979
    %v3801 = vunpack.c.l.b16 %v980
    %v3802 = vunpack.c.h.b16 %v980
    %v3803 = vunpack.c.l.b16 %v981
    %v3804 = vunpack.c.h.b16 %v981
    %v3805 = vunpack.c.l.b16 %v982
    %v3806 = vunpack.c.h.b16 %v982
    %v3807 = vunpack.c.l.b16 %v983
    %v3808 = vunpack.c.h.b16 %v983
    %v3809 = vunpack.c.l.b16 %v984
    %v3810 = vunpack.c.h.b16 %v984
    %v3811 = vunpack.c.l.b16 %v985
    %v3812 = vunpack.c.h.b16 %v985
    %v3813 = vunpack.c.l.b16 %v986
    %v3814 = vunpack.c.h.b16 %v986
    %v3815 = vunpack.c.l.b16 %v987
    %v3816 = vunpack.c.h.b16 %v987
    %v3817 = vunpack.c.l.b16 %v988
    %v3818 = vunpack.c.h.b16 %v988
    %v3819 = vunpack.c.l.b16 %v989
    %v3820 = vunpack.c.h.b16 %v989
    %v3821 = vunpack.c.l.b16 %v990
    %v3822 = vunpack.c.h.b16 %v990
    %v3823 = vunpack.c.l.b16 %v991
    %v3824 = vunpack.c.h.b16 %v991
    %v3825 = vunpack.c.l.b16 %v992
    %v3826 = vunpack.c.h.b16 %v992
    %v3827 = vunpack.c.l.b16 %v993
    %v3828 = vunpack.c.h.b16 %v993
    %v3829 = vunpack.c.l.b16 %v994
    %v3830 = vunpack.c.h.b16 %v994
    %v3831 = vunpack.c.l.b16 %v995
    %v3832 = vunpack.c.h.b16 %v995
    %v3833 = vunpack.c.l.b16 %v996
    %v3834 = vunpack.c.h.b16 %v996
    %v3835 = vunpack.c.l.b16 %v997
    %v3836 = vunpack.c.h.b16 %v997
    %v3837 = vunpack.c.l.b16 %v998
    %v3838 = vunpack.c.h.b16 %v998
    %v3839 = vunpack.c.l.b16 %v999
    %v3840 = vunpack.c.h.b16 %v999
    %v3841 = vunpack.c.l.b16 %v1000
    %v3842 = vunpack.c.h.b16 %v1000
    %v3843 = vunpack.c.l.b16 %v1001
    %v3844 = vunpack.c.h.b16 %v1001
    %v3845 = vunpack.c.l.b16 %v1002
    %v3846 = vunpack.c.h.b16 %v1002
    %v3847 = vunpack.c.l.b16 %v1003
    %v3848 = vunpack.c.h.b16 %v1003
    %v3849 = vunpack.c.l.b16 %v1004
    %v3850 = vunpack.c.h.b16 %v1004
    %v3851 = vunpack.c.l.b16 %v1005
    %v3852 = vunpack.c.h.b16 %v1005
    %v3853 = vunpack.c.l.b16 %v1006
    %v3854 = vunpack.c.h.b16 %v1006
    %v3855 = vunpack.c.l.b16 %v1007
    %v3856 = vunpack.c.h.b16 %v1007
    %v3857 = vunpack.c.l.b16 %v1008
    %v3858 = vunpack.c.h.b16 %v1008
    %v3859 = vunpack.c.l.b16 %v1009
    %v3860 = vunpack.c.h.b16 %v1009
    %v3861 = vunpack.c.l.b16 %v1010
    %v3862 = vunpack.c.h.b16 %v1010
    %v3863 = vunpack.c.l.b16 %v1011
    %v3864 = vunpack.c.h.b16 %v1011
    %v3865 = vunpack.c.l.b16 %v1012
    %v3866 = vunpack.c.h.b16 %v1012
    %v3867 = vunpack.c.l.b16 %v1013
    %v3868 = vunpack.c.h.b16 %v1013
    %v3869 = vunpack.c.l.b16 %v1014
    %v3870 = vunpack.c.h.b16 %v1014
    %v3871 = vunpack.c.l.b16 %v1015
    %v3872 = vunpack.c.h.b16 %v1015
    %v3873 = vunpack.c.l.b16 %v1016
    %v3874 = vunpack.c.h.b16 %v1016
    %v3875 = vunpack.c.l.b16 %v1017
    %v3876 = vunpack.c.h.b16 %v1017
    %v3877 = vunpack.c.l.b16 %v1018
    %v3878 = vunpack.c.h.b16 %v1018
    %v3879 = vunpack.c.l.b16 %v1019
    %v3880 = vunpack.c.h.b16 %v1019
    %v3881 = vunpack.c.l.b16 %v1020
    %v3882 = vunpack.c.h.b16 %v1020
    %v3883 = vunpack.c.l.b16 %v1021
    %v3884 = vunpack.c.h.b16 %v1021
    %v3885 = vunpack.c.l.b16 %v1022
    %v3886 = vunpack.c.h.b16 %v1022
    %v3887 = vunpack.c.l.b16 %v1023
    %v3888 = vunpack.c.h.b16 %v1023
    %v3889 = vunpack.c.l.b16 %v1024
    %v3890 = vunpack.c.h.b16 %v1024
    %v3891 = vunpack.c.l.b16 %v1025
    %v3892 = vunpack.c.h.b16 %v1025
    %v3893 = vunpack.c.l.b16 %v1026
    %v3894 = vunpack.c.h.b16 %v1026
    %v3895 = vunpack.c.l.b16 %v1027
    %v3896 = vunpack.c.h.b16 %v1027
    %v3897 = vunpack.c.l.b16 %v1028
    %v3898 = vunpack.c.h.b16 %v1028
    %v3899 = vunpack.c.l.b16 %v1029
    %v3900 = vunpack.c.h.b16 %v1029
    %v3901 = vunpack.c.l.b16 %v1030
    %v3902 = vunpack.c.h.b16 %v1030
    %v3903 = vunpack.c.l.b16 %v1031
    %v3904 = vunpack.c.h.b16 %v1031
    %v3905 = vunpack.c.l.b16 %v1032
    %v3906 = vunpack.c.h.b16 %v1032
    %v3907 = vunpack.c.l.b16 %v1033
    %v3908 = vunpack.c.h.b16 %v1033
    %v3909 = vunpack.c.l.b16 %v1034
    %v3910 = vunpack.c.h.b16 %v1034
    %v3911 = vunpack.c.l.b16 %v1035
    %v3912 = vunpack.c.h.b16 %v1035
    %v3913 = vunpack.c.l.b16 %v1036
    %v3914 = vunpack.c.h.b16 %v1036
    %v3915 = vunpack.c.l.b16 %v1037
    %v3916 = vunpack.c.h.b16 %v1037
    %v3917 = vunpack.c.l.b16 %v1038
    %v3918 = vunpack.c.h.b16 %v1038
    %v3919 = vunpack.c.l.b16 %v1039
    %v3920 = vunpack.c.h.b16 %v1039
    %v3921 = vunpack.c.l.b16 %v1040
    %v3922 = vunpack.c.h.b16 %v1040
    %v3923 = vunpack.c.l.b16 %v1041
    %v3924 = vunpack.c.h.b16 %v1041
    %v3925 = vunpack.c.l.b16 %v1042
    %v3926 = vunpack.c.h.b16 %v1042
    %v3927 = vunpack.c.l.b16 %v1043
    %v3928 = vunpack.c.h.b16 %v1043
    %v3929 = vunpack.c.l.b16 %v1044
    %v3930 = vunpack.c.h.b16 %v1044
    %v3931 = vunpack.c.l.b16 %v1045
    %v3932 = vunpack.c.h.b16 %v1045
    %v3933 = vunpack.c.l.b16 %v1046
    %v3934 = vunpack.c.h.b16 %v1046
    %v3935 = vunpack.c.l.b16 %v1047
    %v3936 = vunpack.c.h.b16 %v1047
    %v3937 = vunpack.c.l.b16 %v1048
    %v3938 = vunpack.c.h.b16 %v1048
    %v3939 = vunpack.c.l.b16 %v1049
    %v3940 = vunpack.c.h.b16 %v1049
    %v3941 = vunpack.c.l.b16 %v1050
    %v3942 = vunpack.c.h.b16 %v1050
    %v3943 = vunpack.c.l.b16 %v1051
    %v3944 = vunpack.c.h.b16 %v1051
    %v3945 = vunpack.c.l.b16 %v1052
    %v3946 = vunpack.c.h.b16 %v1052
    %v3947 = vunpack.c.l.b16 %v1053
    %v3948 = vunpack.c.h.b16 %v1053
    %v3949 = vunpack.c.l.b16 %v1054
    %v3950 = vunpack.c.h.b16 %v1054
    %v3951 = vunpack.c.l.b16 %v1055
    %v3952 = vunpack.c.h.b16 %v1055
    %v3953 = vunpack.c.l.b16 %v1056
    %v3954 = vunpack.c.h.b16 %v1056
    %v3955 = vunpack.c.l.b16 %v1057
    %v3956 = vunpack.c.h.b16 %v1057
    %v3957 = vunpack.c.l.b16 %v1058
    %v3958 = vunpack.c.h.b16 %v1058
    %v3959 = vunpack.c.l.b16 %v1059
    %v3960 = vunpack.c.h.b16 %v1059
    %v3961 = vunpack.c.l.b16 %v1060
    %v3962 = vunpack.c.h.b16 %v1060
    %v3963 = vunpack.c.l.b16 %v1061
    %v3964 = vunpack.c.h.b16 %v1061
    %v3965 = vunpack.c.l.b16 %v1062
    %v3966 = vunpack.c.h.b16 %v1062
    %v3967 = vunpack.c.l.b16 %v1063
    %v3968 = vunpack.c.h.b16 %v1063
    %v3969 = vunpack.c.l.b16 %v1064
    %v3970 = vunpack.c.h.b16 %v1064
    %v3971 = vunpack.c.l.b16 %v1065
    %v3972 = vunpack.c.h.b16 %v1065
    %v3973 = vunpack.c.l.b16 %v1066
    %v3974 = vunpack.c.h.b16 %v1066
    %v3975 = vunpack.c.l.b16 %v1067
    %v3976 = vunpack.c.h.b16 %v1067
    %v3977 = vunpack.c.l.b16 %v1068
    %v3978 = vunpack.c.h.b16 %v1068
    %v3979 = vunpack.c.l.b16 %v1069
    %v3980 = vunpack.c.h.b16 %v1069
    %v3981 = vunpack.c.l.b16 %v1070
    %v3982 = vunpack.c.h.b16 %v1070
    %v3983 = vunpack.c.l.b16 %v1071
    %v3984 = vunpack.c.h.b16 %v1071
    %v3985 = vunpack.c.l.b16 %v1072
    %v3986 = vunpack.c.h.b16 %v1072
    %v3987 = vunpack.c.l.b16 %v1073
    %v3988 = vunpack.c.h.b16 %v1073
    %v3989 = vunpack.c.l.b16 %v1074
    %v3990 = vunpack.c.h.b16 %v1074
    %v3991 = vunpack.c.l.b16 %v1075
    %v3992 = vunpack.c.h.b16 %v1075
    %v3993 = vunpack.c.l.b16 %v1076
    %v3994 = vunpack.c.h.b16 %v1076
    %v3995 = vunpack.c.l.b16 %v1077
    %v3996 = vunpack.c.h.b16 %v1077
    %v3997 = vunpack.c.l.b16 %v1078
    %v3998 = vunpack.c.h.b16 %v1078
    %v3999 = vunpack.c.l.b16 %v1079
    %v4000 = vunpack.c.h.b16 %v1079
    %v4001 = vunpack.c.l.b16 %v1080
    %v4002 = vunpack.c.h.b16 %v1080
    %v4003 = vunpack.c.l.b16 %v1081
    %v4004 = vunpack.c.h.b16 %v1081
    %v4005 = vunpack.c.l.b16 %v1082
    %v4006 = vunpack.c.h.b16 %v1082
    %v4007 = vunpack.c.l.b16 %v1083
    %v4008 = vunpack.c.h.b16 %v1083
    %v4009 = vunpack.c.l.b16 %v1084
    %v4010 = vunpack.c.h.b16 %v1084
    %v4011 = vunpack.c.l.b16 %v1085
    %v4012 = vunpack.c.h.b16 %v1085
    %v4013 = vunpack.c.l.b16 %v1086
    %v4014 = vunpack.c.h.b16 %v1086
    %v4015 = vunpack.c.l.b16 %v1087
    %v4016 = vunpack.c.h.b16 %v1087
    %v4017 = vunpack.c.l.b16 %v1088
    %v4018 = vunpack.c.h.b16 %v1088
    %v4019 = vunpack.c.l.b16 %v1089
    %v4020 = vunpack.c.h.b16 %v1089
    %v4021 = vunpack.c.l.b16 %v1090
    %v4022 = vunpack.c.h.b16 %v1090
    %v4023 = vunpack.c.l.b16 %v1091
    %v4024 = vunpack.c.h.b16 %v1091
    %v4025 = vunpack.c.l.b16 %v1092
    %v4026 = vunpack.c.h.b16 %v1092
    %v4027 = vunpack.c.l.b16 %v1093
    %v4028 = vunpack.c.h.b16 %v1093
    %v4029 = vunpack.c.l.b16 %v1094
    %v4030 = vunpack.c.h.b16 %v1094
    %v4031 = vunpack.c.l.b16 %v1095
    %v4032 = vunpack.c.h.b16 %v1095
    %v4033 = vunpack.c.l.b16 %v1096
    %v4034 = vunpack.c.h.b16 %v1096
    %v4035 = vunpack.c.l.b16 %v1097
    %v4036 = vunpack.c.h.b16 %v1097
    %v4037 = vunpack.c.l.b16 %v1098
    %v4038 = vunpack.c.h.b16 %v1098
    %v4039 = vunpack.c.l.b16 %v1099
    %v4040 = vunpack.c.h.b16 %v1099
    %v4041 = vunpack.c.l.b16 %v1100
    %v4042 = vunpack.c.h.b16 %v1100
    %v4043 = vunpack.c.l.b16 %v1101
    %v4044 = vunpack.c.h.b16 %v1101
    %v4045 = vunpack.c.l.b16 %v1102
    %v4046 = vunpack.c.h.b16 %v1102
    %v4047 = vunpack.c.l.b16 %v1103
    %v4048 = vunpack.c.h.b16 %v1103
    %v4049 = vunpack.c.l.b16 %v1104
    %v4050 = vunpack.c.h.b16 %v1104
    %v4051 = vunpack.c.l.b16 %v1105
    %v4052 = vunpack.c.h.b16 %v1105
    %v4053 = vunpack.c.l.b16 %v1106
    %v4054 = vunpack.c.h.b16 %v1106
    %v4055 = vunpack.c.l.b16 %v1107
    %v4056 = vunpack.c.h.b16 %v1107
    %v4057 = vunpack.c.l.b16 %v1108
    %v4058 = vunpack.c.h.b16 %v1108
    %v4059 = vunpack.c.l.b16 %v1109
    %v4060 = vunpack.c.h.b16 %v1109
    %v4061 = vunpack.c.l.b16 %v1110
    %v4062 = vunpack.c.h.b16 %v1110
    %v4063 = vunpack.c.l.b16 %v1111
    %v4064 = vunpack.c.h.b16 %v1111
    %v4065 = vunpack.c.l.b16 %v1112
    %v4066 = vunpack.c.h.b16 %v1112
    %v4067 = vunpack.c.l.b16 %v1113
    %v4068 = vunpack.c.h.b16 %v1113
    %v4069 = vunpack.c.l.b16 %v1114
    %v4070 = vunpack.c.h.b16 %v1114
    %v4071 = vunpack.c.l.b16 %v1115
    %v4072 = vunpack.c.h.b16 %v1115
    %v4073 = vunpack.c.l.b16 %v1116
    %v4074 = vunpack.c.h.b16 %v1116
    %v4075 = vunpack.c.l.b16 %v1117
    %v4076 = vunpack.c.h.b16 %v1117
    %v4077 = vunpack.c.l.b16 %v1118
    %v4078 = vunpack.c.h.b16 %v1118
    %v4079 = vunpack.c.l.b16 %v1119
    %v4080 = vunpack.c.h.b16 %v1119
    %v4081 = vunpack.c.l.b16 %v1120
    %v4082 = vunpack.c.h.b16 %v1120
    %v4083 = vunpack.c.l.b16 %v1121
    %v4084 = vunpack.c.h.b16 %v1121
    %v4085 = vunpack.c.l.b16 %v1122
    %v4086 = vunpack.c.h.b16 %v1122
    %v4087 = vunpack.c.l.b16 %v1123
    %v4088 = vunpack.c.h.b16 %v1123
    %v4089 = vunpack.c.l.b16 %v1124
    %v4090 = vunpack.c.h.b16 %v1124
    %v4091 = vunpack.c.l.b16 %v1125
    %v4092 = vunpack.c.h.b16 %v1125
    %v4093 = vunpack.c.l.b16 %v1126
    %v4094 = vunpack.c.h.b16 %v1126
    %v4095 = vunpack.c.l.b16 %v1127
    %v4096 = vunpack.c.h.b16 %v1127
    %v4097 = vunpack.c.l.b16 %v1128
    %v4098 = vunpack.c.h.b16 %v1128
    %v4099 = vunpack.c.l.b16 %v1129
    %v4100 = vunpack.c.h.b16 %v1129
    %v4101 = vunpack.c.l.b16 %v1130
    %v4102 = vunpack.c.h.b16 %v1130
    %v4103 = vunpack.c.l.b16 %v1131
    %v4104 = vunpack.c.h.b16 %v1131
    %v4105 = vunpack.c.l.b16 %v1132
    %v4106 = vunpack.c.h.b16 %v1132
    %v4107 = vunpack.c.l.b16 %v1133
    %v4108 = vunpack.c.h.b16 %v1133
    %v4109 = vunpack.c.l.b16 %v1134
    %v4110 = vunpack.c.h.b16 %v1134
    %v4111 = vunpack.c.l.b16 %v1135
    %v4112 = vunpack.c.h.b16 %v1135
    %v4113 = vunpack.c.l.b16 %v1136
    %v4114 = vunpack.c.h.b16 %v1136
    %v4115 = vunpack.c.l.b16 %v1137
    %v4116 = vunpack.c.h.b16 %v1137
    %v4117 = vunpack.c.l.b16 %v1138
    %v4118 = vunpack.c.h.b16 %v1138
    %v4119 = vunpack.c.l.b16 %v1139
    %v4120 = vunpack.c.h.b16 %v1139
    %v4121 = vunpack.c.l.b16 %v1140
    %v4122 = vunpack.c.h.b16 %v1140
    %v4123 = vunpack.c.l.b16 %v1141
    %v4124 = vunpack.c.h.b16 %v1141
    %v4125 = vunpack.c.l.b16 %v1142
    %v4126 = vunpack.c.h.b16 %v1142
    %v4127 = vunpack.c.l.b16 %v1143
    %v4128 = vunpack.c.h.b16 %v1143
    %v4129 = vunpack.c.l.b16 %v1144
    %v4130 = vunpack.c.h.b16 %v1144
    %v4131 = vunpack.c.l.b16 %v1145
    %v4132 = vunpack.c.h.b16 %v1145
    %v4133 = vunpack.c.l.b16 %v1146
    %v4134 = vunpack.c.h.b16 %v1146
    %v4135 = vunpack.c.l.b16 %v1147
    %v4136 = vunpack.c.h.b16 %v1147
    %v4137 = vunpack.c.l.b16 %v1148
    %v4138 = vunpack.c.h.b16 %v1148
    %v4139 = vunpack.c.l.b16 %v1149
    %v4140 = vunpack.c.h.b16 %v1149
    %v4141 = vunpack.c.l.b16 %v1150
    %v4142 = vunpack.c.h.b16 %v1150
    %v4143 = vunpack.c.l.b16 %v1151
    %v4144 = vunpack.c.h.b16 %v1151
    %v4145 = vunpack.c.l.b16 %v1152
    %v4146 = vunpack.c.h.b16 %v1152
    %v4147 = vunpack.c.l.b16 %v1153
    %v4148 = vunpack.c.h.b16 %v1153
    %v4149 = vunpack.c.l.b16 %v1154
    %v4150 = vunpack.c.h.b16 %v1154
    %v4151 = vunpack.c.l.b16 %v1155
    %v4152 = vunpack.c.h.b16 %v1155
    %v4153 = vunpack.c.l.b16 %v1156
    %v4154 = vunpack.c.h.b16 %v1156
    %v4155 = vunpack.c.l.b16 %v1157
    %v4156 = vunpack.c.h.b16 %v1157
    %v4157 = vunpack.c.l.b16 %v1158
    %v4158 = vunpack.c.h.b16 %v1158
    %v4159 = vunpack.c.l.b16 %v1159
    %v4160 = vunpack.c.h.b16 %v1159
    %v4161 = vunpack.c.l.b16 %v1160
    %v4162 = vunpack.c.h.b16 %v1160
    %v4163 = vunpack.c.l.b16 %v1161
    %v4164 = vunpack.c.h.b16 %v1161
    %v4165 = vunpack.c.l.b16 %v1162
    %v4166 = vunpack.c.h.b16 %v1162
    %v4167 = vunpack.c.l.b16 %v1163
    %v4168 = vunpack.c.h.b16 %v1163
    %v4169 = vunpack.c.l.b16 %v1164
    %v4170 = vunpack.c.h.b16 %v1164
    %v4171 = vunpack.c.l.b16 %v1165
    %v4172 = vunpack.c.h.b16 %v1165
    %v4173 = vunpack.c.l.b16 %v1166
    %v4174 = vunpack.c.h.b16 %v1166
    %v4175 = vunpack.c.l.b16 %v1167
    %v4176 = vunpack.c.h.b16 %v1167
    %v4177 = vunpack.c.l.b16 %v1168
    %v4178 = vunpack.c.h.b16 %v1168
    %v4179 = vunpack.c.l.b16 %v1169
    %v4180 = vunpack.c.h.b16 %v1169
    %v4181 = vunpack.c.l.b16 %v1170
    %v4182 = vunpack.c.h.b16 %v1170
    %v4183 = vunpack.c.l.b16 %v1171
    %v4184 = vunpack.c.h.b16 %v1171
    %v4185 = vunpack.c.l.b16 %v1172
    %v4186 = vunpack.c.h.b16 %v1172
    %v4187 = vunpack.c.l.b16 %v1173
    %v4188 = vunpack.c.h.b16 %v1173
    %v4189 = vunpack.c.l.b16 %v1174
    %v4190 = vunpack.c.h.b16 %v1174
    %v4191 = vunpack.c.l.b16 %v1175
    %v4192 = vunpack.c.h.b16 %v1175
    %v4193 = vunpack.c.l.b16 %v1176
    %v4194 = vunpack.c.h.b16 %v1176
    %v4195 = vunpack.c.l.b16 %v1177
    %v4196 = vunpack.c.h.b16 %v1177
    %v4197 = vunpack.c.l.b16 %v1178
    %v4198 = vunpack.c.h.b16 %v1178
    %v4199 = vunpack.c.l.b16 %v1179
    %v4200 = vunpack.c.h.b16 %v1179
    %v4201 = vunpack.c.l.b16 %v1180
    %v4202 = vunpack.c.h.b16 %v1180
    %v4203 = vunpack.c.l.b16 %v1181
    %v4204 = vunpack.c.h.b16 %v1181
    %v4205 = vunpack.c.l.b16 %v1182
    %v4206 = vunpack.c.h.b16 %v1182
    %v4207 = vunpack.c.l.b16 %v1183
    %v4208 = vunpack.c.h.b16 %v1183
    %v4209 = vunpack.c.l.b16 %v1184
    %v4210 = vunpack.c.h.b16 %v1184
    %v4211 = vunpack.c.l.b16 %v1185
    %v4212 = vunpack.c.h.b16 %v1185
    %v4213 = vunpack.c.l.b16 %v1186
    %v4214 = vunpack.c.h.b16 %v1186
    %v4215 = vunpack.c.l.b16 %v1187
    %v4216 = vunpack.c.h.b16 %v1187
    %v4217 = vunpack.c.l.b16 %v1188
    %v4218 = vunpack.c.h.b16 %v1188
    %v4219 = vunpack.c.l.b16 %v1189
    %v4220 = vunpack.c.h.b16 %v1189
    %v4221 = vunpack.c.l.b16 %v1190
    %v4222 = vunpack.c.h.b16 %v1190
    %v4223 = vunpack.c.l.b16 %v1191
    %v4224 = vunpack.c.h.b16 %v1191
    %v4225 = vunpack.c.l.b16 %v1192
    %v4226 = vunpack.c.h.b16 %v1192
    %v4227 = vunpack.c.l.b16 %v1193
    %v4228 = vunpack.c.h.b16 %v1193
    %v4229 = vunpack.c.l.b16 %v1194
    %v4230 = vunpack.c.h.b16 %v1194
    %v4231 = vunpack.c.l.b16 %v1195
    %v4232 = vunpack.c.h.b16 %v1195
    %v4233 = vunpack.c.l.b16 %v1196
    %v4234 = vunpack.c.h.b16 %v1196
    %v4235 = vunpack.c.l.b16 %v1197
    %v4236 = vunpack.c.h.b16 %v1197
    %v4237 = vunpack.c.l.b16 %v1198
    %v4238 = vunpack.c.h.b16 %v1198
    %v4239 = vunpack.c.l.b16 %v1199
    %v4240 = vunpack.c.h.b16 %v1199
    %v4241 = vunpack.c.l.b16 %v1200
    %v4242 = vunpack.c.h.b16 %v1200
    %v4243 = vunpack.c.l.b16 %v1201
    %v4244 = vunpack.c.h.b16 %v1201
    %v4245 = vunpack.c.l.b16 %v1202
    %v4246 = vunpack.c.h.b16 %v1202
    %v4247 = vunpack.c.l.b16 %v1203
    %v4248 = vunpack.c.h.b16 %v1203
    %v4249 = vunpack.c.l.b16 %v1204
    %v4250 = vunpack.c.h.b16 %v1204
    %v4251 = vunpack.c.l.b16 %v1205
    %v4252 = vunpack.c.h.b16 %v1205
    %v4253 = vunpack.c.l.b16 %v1206
    %v4254 = vunpack.c.h.b16 %v1206
    %v4255 = vunpack.c.l.b16 %v1207
    %v4256 = vunpack.c.h.b16 %v1207
    %v4257 = vunpack.c.l.b16 %v1208
    %v4258 = vunpack.c.h.b16 %v1208
    %v4259 = vunpack.c.l.b16 %v1209
    %v4260 = vunpack.c.h.b16 %v1209
    %v4261 = vunpack.c.l.b16 %v1210
    %v4262 = vunpack.c.h.b16 %v1210
    %v4263 = vunpack.c.l.b16 %v1211
    %v4264 = vunpack.c.h.b16 %v1211
    %v4265 = vunpack.c.l.b16 %v1212
    %v4266 = vunpack.c.h.b16 %v1212
    %v4267 = vunpack.c.l.b16 %v1213
    %v4268 = vunpack.c.h.b16 %v1213
    %v4269 = vunpack.c.l.b16 %v1214
    %v4270 = vunpack.c.h.b16 %v1214
    %v4271 = vunpack.c.l.b16 %v1215
    %v4272 = vunpack.c.h.b16 %v1215
    %v4273 = vunpack.c.l.b16 %v1216
    %v4274 = vunpack.c.h.b16 %v1216
    %v4275 = vunpack.c.l.b16 %v1217
    %v4276 = vunpack.c.h.b16 %v1217
    %v4277 = vunpack.c.l.b16 %v1218
    %v4278 = vunpack.c.h.b16 %v1218
    %v4279 = vunpack.c.l.b16 %v1219
    %v4280 = vunpack.c.h.b16 %v1219
    %v4281 = vunpack.c.l.b16 %v1220
    %v4282 = vunpack.c.h.b16 %v1220
    %v4283 = vunpack.c.l.b16 %v1221
    %v4284 = vunpack.c.h.b16 %v1221
    %v4285 = vunpack.c.l.b16 %v1222
    %v4286 = vunpack.c.h.b16 %v1222
    %v4287 = vunpack.c.l.b16 %v1223
    %v4288 = vunpack.c.h.b16 %v1223
    %v4289 = vunpack.c.l.b16 %v1224
    %v4290 = vunpack.c.h.b16 %v1224
    %v4291 = vunpack.c.l.b16 %v1225
    %v4292 = vunpack.c.h.b16 %v1225
    %v4293 = vunpack.c.l.b16 %v1226
    %v4294 = vunpack.c.h.b16 %v1226
    %v4295 = vunpack.c.l.b16 %v1227
    %v4296 = vunpack.c.h.b16 %v1227
    %v4297 = vunpack.c.l.b16 %v1228
    %v4298 = vunpack.c.h.b16 %v1228
    %v4299 = vunpack.c.l.b16 %v1229
    %v4300 = vunpack.c.h.b16 %v1229
    %v4301 = vunpack.c.l.b16 %v1230
    %v4302 = vunpack.c.h.b16 %v1230
    %v4303 = vunpack.c.l.b16 %v1231
    %v4304 = vunpack.c.h.b16 %v1231
    %v4305 = vunpack.c.l.b16 %v1232
    %v4306 = vunpack.c.h.b16 %v1232
    %v4307 = vunpack.c.l.b16 %v1233
    %v4308 = vunpack.c.h.b16 %v1233
    %v4309 = vunpack.c.l.b16 %v1234
    %v4310 = vunpack.c.h.b16 %v1234
    %v4311 = vunpack.c.l.b16 %v1235
    %v4312 = vunpack.c.h.b16 %v1235
    %v4313 = vunpack.c.l.b16 %v1236
    %v4314 = vunpack.c.h.b16 %v1236
    %v4315 = vunpack.c.l.b16 %v1237
    %v4316 = vunpack.c.h.b16 %v1237
    %v4317 = vunpack.c.l.b16 %v1238
    %v4318 = vunpack.c.h.b16 %v1238
    %v4319 = vunpack.c.l.b16 %v1239
    %v4320 = vunpack.c.h.b16 %v1239
    %v4321 = vunpack.c.l.b16 %v1240
    %v4322 = vunpack.c.h.b16 %v1240
    %v4323 = vunpack.c.l.b16 %v1241
    %v4324 = vunpack.c.h.b16 %v1241
    %v4325 = vunpack.c.l.b16 %v1242
    %v4326 = vunpack.c.h.b16 %v1242
    %v4327 = vunpack.c.l.b16 %v1243
    %v4328 = vunpack.c.h.b16 %v1243
    %v4329 = vunpack.c.l.b16 %v1244
    %v4330 = vunpack.c.h.b16 %v1244
    %v4331 = vunpack.c.l.b16 %v1245
    %v4332 = vunpack.c.h.b16 %v1245
    %v4333 = vunpack.c.l.b16 %v1246
    %v4334 = vunpack.c.h.b16 %v1246
    %v4335 = vunpack.c.l.b16 %v1247
    %v4336 = vunpack.c.h.b16 %v1247
    %v4337 = vunpack.c.l.b16 %v1248
    %v4338 = vunpack.c.h.b16 %v1248
    %v4339 = vunpack.c.l.b16 %v1249
    %v4340 = vunpack.c.h.b16 %v1249
    %v4341 = vunpack.c.l.b16 %v1250
    %v4342 = vunpack.c.h.b16 %v1250
    %v4343 = vunpack.c.l.b16 %v1251
    %v4344 = vunpack.c.h.b16 %v1251
    %v4345 = vunpack.c.l.b16 %v1252
    %v4346 = vunpack.c.h.b16 %v1252
    %v4347 = vunpack.c.l.b16 %v1253
    %v4348 = vunpack.c.h.b16 %v1253
    %v4349 = vunpack.c.l.b16 %v1254
    %v4350 = vunpack.c.h.b16 %v1254
    %v4351 = vunpack.c.l.b16 %v1255
    %v4352 = vunpack.c.h.b16 %v1255
    %v4353 = vunpack.c.l.b16 %v1256
    %v4354 = vunpack.c.h.b16 %v1256
    %v4355 = vunpack.c.l.b16 %v1257
    %v4356 = vunpack.c.h.b16 %v1257
    %v4357 = vunpack.c.l.b16 %v1258
    %v4358 = vunpack.c.h.b16 %v1258
    %v4359 = vunpack.c.l.b16 %v1259
    %v4360 = vunpack.c.h.b16 %v1259
    %v4361 = vunpack.c.l.b16 %v1260
    %v4362 = vunpack.c.h.b16 %v1260
    %v4363 = vunpack.c.l.b16 %v1261
    %v4364 = vunpack.c.h.b16 %v1261
    %v4365 = vunpack.c.l.b16 %v1262
    %v4366 = vunpack.c.h.b16 %v1262
    %v4367 = vunpack.c.l.b16 %v1263
    %v4368 = vunpack.c.h.b16 %v1263
    %v4369 = vunpack.c.l.b16 %v1264
    %v4370 = vunpack.c.h.b16 %v1264
    %v4371 = vunpack.c.l.b16 %v1265
    %v4372 = vunpack.c.h.b16 %v1265
    %v4373 = vunpack.c.l.b16 %v1266
    %v4374 = vunpack.c.h.b16 %v1266
    %v4375 = vunpack.c.l.b16 %v1267
    %v4376 = vunpack.c.h.b16 %v1267
    %v4377 = vunpack.c.l.b16 %v1268
    %v4378 = vunpack.c.h.b16 %v1268
    %v4379 = vunpack.c.l.b16 %v1269
    %v4380 = vunpack.c.h.b16 %v1269
    %v4381 = vunpack.c.l.b16 %v1270
    %v4382 = vunpack.c.h.b16 %v1270
    %v4383 = vunpack.c.l.b16 %v1271
    %v4384 = vunpack.c.h.b16 %v1271
    %v4385 = vunpack.c.l.b16 %v1272
    %v4386 = vunpack.c.h.b16 %v1272
    %v4387 = vunpack.c.l.b16 %v1273
    %v4388 = vunpack.c.h.b16 %v1273
    %v4389 = vunpack.c.l.b16 %v1274
    %v4390 = vunpack.c.h.b16 %v1274
    %v4391 = vunpack.c.l.b16 %v1275
    %v4392 = vunpack.c.h.b16 %v1275
    %v4393 = vunpack.c.l.b16 %v1276
    %v4394 = vunpack.c.h.b16 %v1276
    %v4395 = vunpack.c.l.b16 %v1277
    %v4396 = vunpack.c.h.b16 %v1277
    %v4397 = vunpack.c.l.b16 %v1278
    %v4398 = vunpack.c.h.b16 %v1278
    %v4399 = vunpack.c.l.b16 %v1279
    %v4400 = vunpack.c.h.b16 %v1279
    %v4401 = vunpack.c.l.b16 %v1280
    %v4402 = vunpack.c.h.b16 %v1280
    %v4403 = vunpack.c.l.b16 %v1281
    %v4404 = vunpack.c.h.b16 %v1281
    %v4405 = vunpack.c.l.b16 %v1282
    %v4406 = vunpack.c.h.b16 %v1282
    %v4407 = vunpack.c.l.b16 %v1283
    %v4408 = vunpack.c.h.b16 %v1283
    %v4409 = vunpack.c.l.b16 %v1284
    %v4410 = vunpack.c.h.b16 %v1284
    %v4411 = vunpack.c.l.b16 %v1285
    %v4412 = vunpack.c.h.b16 %v1285
    %v4413 = vunpack.c.l.b16 %v1286
    %v4414 = vunpack.c.h.b16 %v1286
    %v4415 = vunpack.c.l.b16 %v1287
    %v4416 = vunpack.c.h.b16 %v1287
    %v4417 = vunpack.c.l.b16 %v1288
    %v4418 = vunpack.c.h.b16 %v1288
    %v4419 = vunpack.c.l.b16 %v1289
    %v4420 = vunpack.c.h.b16 %v1289
    %v4421 = vunpack.c.l.b16 %v1290
    %v4422 = vunpack.c.h.b16 %v1290
    %v4423 = vunpack.c.l.b16 %v1291
    %v4424 = vunpack.c.h.b16 %v1291
    %v4425 = vunpack.c.l.b16 %v1292
    %v4426 = vunpack.c.h.b16 %v1292
    %v4427 = vunpack.c.l.b16 %v1293
    %v4428 = vunpack.c.h.b16 %v1293
    %v4429 = vunpack.c.l.b16 %v1294
    %v4430 = vunpack.c.h.b16 %v1294
    %v4431 = vunpack.c.l.b16 %v1295
    %v4432 = vunpack.c.h.b16 %v1295
    %v4433 = vunpack.c.l.b16 %v1296
    %v4434 = vunpack.c.h.b16 %v1296
    %v4435 = vunpack.c.l.b16 %v1297
    %v4436 = vunpack.c.h.b16 %v1297
    %v4437 = vunpack.c.l.b16 %v1298
    %v4438 = vunpack.c.h.b16 %v1298
    %v4439 = vunpack.c.l.b16 %v1299
    %v4440 = vunpack.c.h.b16 %v1299
    %v4441 = vunpack.c.l.b16 %v1300
    %v4442 = vunpack.c.h.b16 %v1300
    %v4443 = vunpack.c.l.b16 %v1301
    %v4444 = vunpack.c.h.b16 %v1301
    %v4445 = vunpack.c.l.b16 %v1302
    %v4446 = vunpack.c.h.b16 %v1302
    %v4447 = vunpack.c.l.b16 %v1303
    %v4448 = vunpack.c.h.b16 %v1303
    %v4449 = vunpack.c.l.b16 %v1304
    %v4450 = vunpack.c.h.b16 %v1304
    %v4451 = vunpack.c.l.b16 %v1305
    %v4452 = vunpack.c.h.b16 %v1305
    %v4453 = vunpack.c.l.b16 %v1306
    %v4454 = vunpack.c.h.b16 %v1306
    %v4455 = vunpack.c.l.b16 %v1307
    %v4456 = vunpack.c.h.b16 %v1307
    %v4457 = vunpack.c.l.b16 %v1308
    %v4458 = vunpack.c.h.b16 %v1308
    %v4459 = vunpack.c.l.b16 %v1309
    %v4460 = vunpack.c.h.b16 %v1309
    %v4461 = vunpack.c.l.b16 %v1310
    %v4462 = vunpack.c.h.b16 %v1310
    %v4463 = vunpack.c.l.b16 %v1311
    %v4464 = vunpack.c.h.b16 %v1311
    %v4465 = vunpack.c.l.b16 %v1312
    %v4466 = vunpack.c.h.b16 %v1312
    %v4467 = vunpack.c.l.b16 %v1313
    %v4468 = vunpack.c.h.b16 %v1313
    %v4469 = vunpack.c.l.b16 %v1314
    %v4470 = vunpack.c.h.b16 %v1314
    %v4471 = vunpack.c.l.b16 %v1315
    %v4472 = vunpack.c.h.b16 %v1315
    %v4473 = vunpack.c.l.b16 %v1316
    %v4474 = vunpack.c.h.b16 %v1316
    %v4475 = vunpack.c.l.b16 %v1317
    %v4476 = vunpack.c.h.b16 %v1317
    %v4477 = vunpack.c.l.b16 %v1318
    %v4478 = vunpack.c.h.b16 %v1318
    %v4479 = vunpack.c.l.b16 %v1319
    %v4480 = vunpack.c.h.b16 %v1319
    %v4481 = vunpack.c.l.b16 %v1320
    %v4482 = vunpack.c.h.b16 %v1320
    %v4483 = vunpack.c.l.b16 %v1321
    %v4484 = vunpack.c.h.b16 %v1321
    %v4485 = vunpack.c.l.b16 %v1322
    %v4486 = vunpack.c.h.b16 %v1322
    %v4487 = vunpack.c.l.b16 %v1323
    %v4488 = vunpack.c.h.b16 %v1323
    %v4489 = vunpack.c.l.b16 %v1324
    %v4490 = vunpack.c.h.b16 %v1324
    %v4491 = vunpack.c.l.b16 %v1325
    %v4492 = vunpack.c.h.b16 %v1325
    %v4493 = vunpack.c.l.b16 %v1326
    %v4494 = vunpack.c.h.b16 %v1326
    %v4495 = vunpack.c.l.b16 %v1327
    %v4496 = vunpack.c.h.b16 %v1327
    %v4497 = vunpack.c.l.b16 %v1328
    %v4498 = vunpack.c.h.b16 %v1328
    %v4499 = vunpack.c.l.b16 %v1329
    %v4500 = vunpack.c.h.b16 %v1329
    %v4501 = vunpack.c.l.b16 %v1330
    %v4502 = vunpack.c.h.b16 %v1330
    %v4503 = vunpack.c.l.b16 %v1331
    %v4504 = vunpack.c.h.b16 %v1331
    %v4505 = vunpack.c.l.b16 %v1332
    %v4506 = vunpack.c.h.b16 %v1332
    %v4507 = vunpack.c.l.b16 %v1333
    %v4508 = vunpack.c.h.b16 %v1333
    %v4509 = vunpack.c.l.b16 %v1334
    %v4510 = vunpack.c.h.b16 %v1334
    %v4511 = vunpack.c.l.b16 %v1335
    %v4512 = vunpack.c.h.b16 %v1335
    %v4513 = vunpack.c.l.b16 %v1336
    %v4514 = vunpack.c.h.b16 %v1336
    %v4515 = vunpack.c.l.b16 %v1337
    %v4516 = vunpack.c.h.b16 %v1337
    %v4517 = vunpack.c.l.b16 %v1338
    %v4518 = vunpack.c.h.b16 %v1338
    %v4519 = vunpack.c.l.b16 %v1339
    %v4520 = vunpack.c.h.b16 %v1339
    %v4521 = vunpack.c.l.b16 %v1340
    %v4522 = vunpack.c.h.b16 %v1340
    %v4523 = vunpack.c.l.b16 %v1341
    %v4524 = vunpack.c.h.b16 %v1341
    %v4525 = vunpack.c.l.b16 %v1342
    %v4526 = vunpack.c.h.b16 %v1342
    %v4527 = vunpack.c.l.b16 %v1343
    %v4528 = vunpack.c.h.b16 %v1343
    %v4529 = vunpack.c.l.b16 %v1344
    %v4530 = vunpack.c.h.b16 %v1344
    %v4531 = vunpack.c.l.b16 %v1345
    %v4532 = vunpack.c.h.b16 %v1345
    %v4533 = vunpack.c.l.b16 %v1346
    %v4534 = vunpack.c.h.b16 %v1346
    %v4535 = vunpack.c.l.b16 %v1347
    %v4536 = vunpack.c.h.b16 %v1347
    %v4537 = vunpack.c.l.b16 %v1348
    %v4538 = vunpack.c.h.b16 %v1348
    %v4539 = vunpack.c.l.b16 %v1349
    %v4540 = vunpack.c.h.b16 %v1349
    %v4541 = vunpack.c.l.b16 %v1350
    %v4542 = vunpack.c.h.b16 %v1350
    %v4543 = vunpack.c.l.b16 %v1351
    %v4544 = vunpack.c.h.b16 %v1351
    %v4545 = vunpack.c.l.b16 %v1352
    %v4546 = vunpack.c.h.b16 %v1352
    %v4547 = vunpack.c.l.b16 %v1353
    %v4548 = vunpack.c.h.b16 %v1353
    %v4549 = vunpack.c.l.b16 %v1354
    %v4550 = vunpack.c.h.b16 %v1354
    %v4551 = vunpack.c.l.b16 %v1355
    %v4552 = vunpack.c.h.b16 %v1355
    %v4553 = vunpack.c.l.b16 %v1356
    %v4554 = vunpack.c.h.b16 %v1356
    %v4555 = vunpack.c.l.b16 %v1357
    %v4556 = vunpack.c.h.b16 %v1357
    %v4557 = vunpack.c.l.b16 %v1358
    %v4558 = vunpack.c.h.b16 %v1358
    %v4559 = vunpack.c.l.b16 %v1359
    %v4560 = vunpack.c.h.b16 %v1359
    %v4561 = vunpack.c.l.b16 %v1360
    %v4562 = vunpack.c.h.b16 %v1360
    %v4563 = vunpack.c.l.b16 %v1361
    %v4564 = vunpack.c.h.b16 %v1361
    %v4565 = vunpack.c.l.b16 %v1362
    %v4566 = vunpack.c.h.b16 %v1362
    %v4567 = vunpack.c.l.b16 %v1363
    %v4568 = vunpack.c.h.b16 %v1363
    %v4569 = vunpack.c.l.b16 %v1364
    %v4570 = vunpack.c.h.b16 %v1364
    %v4571 = vunpack.c.l.b16 %v1365
    %v4572 = vunpack.c.h.b16 %v1365
    %v4573 = vunpack.c.l.b16 %v1366
    %v4574 = vunpack.c.h.b16 %v1366
    %v4575 = vunpack.c.l.b16 %v1367
    %v4576 = vunpack.c.h.b16 %v1367
    %v4577 = vunpack.c.l.b16 %v1368
    %v4578 = vunpack.c.h.b16 %v1368
    %v4579 = vunpack.c.l.b16 %v1369
    %v4580 = vunpack.c.h.b16 %v1369
    %v4581 = vunpack.c.l.b16 %v1370
    %v4582 = vunpack.c.h.b16 %v1370
    %v4583 = vunpack.c.l.b16 %v1371
    %v4584 = vunpack.c.h.b16 %v1371
    %v4585 = vunpack.c.l.b16 %v1372
    %v4586 = vunpack.c.h.b16 %v1372
    %v4587 = vunpack.c.l.b16 %v1373
    %v4588 = vunpack.c.h.b16 %v1373
    %v4589 = vunpack.c.l.b16 %v1374
    %v4590 = vunpack.c.h.b16 %v1374
    %v4591 = vunpack.c.l.b16 %v1375
    %v4592 = vunpack.c.h.b16 %v1375
    %v4593 = vunpack.c.l.b16 %v1376
    %v4594 = vunpack.c.h.b16 %v1376
    %v4595 = vunpack.c.l.b16 %v1377
    %v4596 = vunpack.c.h.b16 %v1377
    %v4597 = vunpack.c.l.b16 %v1378
    %v4598 = vunpack.c.h.b16 %v1378
    %v4599 = vunpack.c.l.b16 %v1379
    %v4600 = vunpack.c.h.b16 %v1379
    %v4601 = vunpack.c.l.b16 %v1380
    %v4602 = vunpack.c.h.b16 %v1380
    %v4603 = vunpack.c.l.b16 %v1381
    %v4604 = vunpack.c.h.b16 %v1381
    %v4605 = vunpack.c.l.b16 %v1382
    %v4606 = vunpack.c.h.b16 %v1382
    %v4607 = vunpack.c.l.b16 %v1383
    %v4608 = vunpack.c.h.b16 %v1383
    %v4609 = vunpack.c.l.b16 %v1384
    %v4610 = vunpack.c.h.b16 %v1384
    %v4611 = vunpack.c.l.b16 %v1385
    %v4612 = vunpack.c.h.b16 %v1385
    %v4613 = vunpack.c.l.b16 %v1386
    %v4614 = vunpack.c.h.b16 %v1386
    %v4615 = vunpack.c.l.b16 %v1387
    %v4616 = vunpack.c.h.b16 %v1387
    %v4617 = vunpack.c.l.b16 %v1388
    %v4618 = vunpack.c.h.b16 %v1388
    %v4619 = vunpack.c.l.b16 %v1389
    %v4620 = vunpack.c.h.b16 %v1389
    %v4621 = vunpack.c.l.b16 %v1390
    %v4622 = vunpack.c.h.b16 %v1390
    %v4623 = vunpack.c.l.b16 %v1391
    %v4624 = vunpack.c.h.b16 %v1391
    %v4625 = vunpack.c.l.b16 %v1392
    %v4626 = vunpack.c.h.b16 %v1392
    %v4627 = vunpack.c.l.b16 %v1393
    %v4628 = vunpack.c.h.b16 %v1393
    %v4629 = vunpack.c.l.b16 %v1394
    %v4630 = vunpack.c.h.b16 %v1394
    %v4631 = vunpack.c.l.b16 %v1395
    %v4632 = vunpack.c.h.b16 %v1395
    %v4633 = vunpack.c.l.b16 %v1396
    %v4634 = vunpack.c.h.b16 %v1396
    %v4635 = vunpack.c.l.b16 %v1397
    %v4636 = vunpack.c.h.b16 %v1397
    %v4637 = vunpack.c.l.b16 %v1398
    %v4638 = vunpack.c.h.b16 %v1398
    %v4639 = vunpack.c.l.b16 %v1399
    %v4640 = vunpack.c.h.b16 %v1399
    %v4641 = vunpack.c.l.b16 %v1400
    %v4642 = vunpack.c.h.b16 %v1400
    %v4643 = vunpack.c.l.b16 %v1401
    %v4644 = vunpack.c.h.b16 %v1401
    %v4645 = vunpack.c.l.b16 %v1402
    %v4646 = vunpack.c.h.b16 %v1402
    %v4647 = vunpack.c.l.b16 %v1403
    %v4648 = vunpack.c.h.b16 %v1403
    %v4649 = vunpack.c.l.b16 %v1404
    %v4650 = vunpack.c.h.b16 %v1404
    %v4651 = vunpack.c.l.b16 %v1405
    %v4652 = vunpack.c.h.b16 %v1405
    %v4653 = vunpack.c.l.b16 %v1406
    %v4654 = vunpack.c.h.b16 %v1406
    %v4655 = vunpack.c.l.b16 %v1407
    %v4656 = vunpack.c.h.b16 %v1407
    %v4657 = vunpack.c.l.b16 %v1408
    %v4658 = vunpack.c.h.b16 %v1408
    %v4659 = vunpack.c.l.b16 %v1409
    %v4660 = vunpack.c.h.b16 %v1409
    %v4661 = vunpack.c.l.b16 %v1410
    %v4662 = vunpack.c.h.b16 %v1410
    %v4663 = vunpack.c.l.b16 %v1411
    %v4664 = vunpack.c.h.b16 %v1411
    %v4665 = vunpack.c.l.b16 %v1412
    %v4666 = vunpack.c.h.b16 %v1412
    %v4667 = vunpack.c.l.b16 %v1413
    %v4668 = vunpack.c.h.b16 %v1413
    %v4669 = vunpack.c.l.b16 %v1414
    %v4670 = vunpack.c.h.b16 %v1414
    %v4671 = vunpack.c.l.b16 %v1415
    %v4672 = vunpack.c.h.b16 %v1415
    %v4673 = vunpack.c.l.b16 %v1416
    %v4674 = vunpack.c.h.b16 %v1416
    %v4675 = vunpack.c.l.b16 %v1417
    %v4676 = vunpack.c.h.b16 %v1417
    %v4677 = vunpack.c.l.b16 %v1418
    %v4678 = vunpack.c.h.b16 %v1418
    %v4679 = vunpack.c.l.b16 %v1419
    %v4680 = vunpack.c.h.b16 %v1419
    %v4681 = vunpack.c.l.b16 %v1420
    %v4682 = vunpack.c.h.b16 %v1420
    %v4683 = vunpack.c.l.b16 %v1421
    %v4684 = vunpack.c.h.b16 %v1421
    %v4685 = vunpack.c.l.b16 %v1422
    %v4686 = vunpack.c.h.b16 %v1422
    %v4687 = vunpack.c.l.b16 %v1423
    %v4688 = vunpack.c.h.b16 %v1423
    %v4689 = vunpack.c.l.b16 %v1424
    %v4690 = vunpack.c.h.b16 %v1424
    %v4691 = vunpack.c.l.b16 %v1425
    %v4692 = vunpack.c.h.b16 %v1425
    %v4693 = vunpack.c.l.b16 %v1426
    %v4694 = vunpack.c.h.b16 %v1426
    %v4695 = vunpack.c.l.b16 %v1427
    %v4696 = vunpack.c.h.b16 %v1427
    %v4697 = vunpack.c.l.b16 %v1428
    %v4698 = vunpack.c.h.b16 %v1428
    %v4699 = vunpack.c.l.b16 %v1429
    %v4700 = vunpack.c.h.b16 %v1429
    %v4701 = vunpack.c.l.b16 %v1430
    %v4702 = vunpack.c.h.b16 %v1430
    %v4703 = vunpack.c.l.b16 %v1431
    %v4704 = vunpack.c.h.b16 %v1431
    %v4705 = vunpack.c.l.b16 %v1432
    %v4706 = vunpack.c.h.b16 %v1432
    %v4707 = vunpack.c.l.b16 %v1433
    %v4708 = vunpack.c.h.b16 %v1433
    %v4709 = vunpack.c.l.b16 %v1434
    %v4710 = vunpack.c.h.b16 %v1434
    %v4711 = vunpack.c.l.b16 %v1435
    %v4712 = vunpack.c.h.b16 %v1435
    %v4713 = vunpack.c.l.b16 %v1436
    %v4714 = vunpack.c.h.b16 %v1436
    %v4715 = vunpack.c.l.b16 %v1437
    %v4716 = vunpack.c.h.b16 %v1437
    %v4717 = vunpack.c.l.b16 %v1438
    %v4718 = vunpack.c.h.b16 %v1438
    %v4719 = vunpack.c.l.b16 %v1439
    %v4720 = vunpack.c.h.b16 %v1439
    %v4721 = vunpack.c.l.b16 %v1440
    %v4722 = vunpack.c.h.b16 %v1440
    %v4723 = vunpack.c.l.b16 %v1441
    %v4724 = vunpack.c.h.b16 %v1441
    %v4725 = vunpack.c.l.b16 %v1442
    %v4726 = vunpack.c.h.b16 %v1442
    %v4727 = vunpack.c.l.b16 %v1443
    %v4728 = vunpack.c.h.b16 %v1443
    %v4729 = vunpack.c.l.b16 %v1444
    %v4730 = vunpack.c.h.b16 %v1444
    %v4731 = vunpack.c.l.b16 %v1445
    %v4732 = vunpack.c.h.b16 %v1445
    %v4733 = vunpack.c.l.b16 %v1446
    %v4734 = vunpack.c.h.b16 %v1446
    %v4735 = vunpack.c.l.b16 %v1447
    %v4736 = vunpack.c.h.b16 %v1447
    %v4737 = vunpack.c.l.b16 %v1448
    %v4738 = vunpack.c.h.b16 %v1448
    %v4739 = vunpack.c.l.b16 %v1449
    %v4740 = vunpack.c.h.b16 %v1449
    %v4741 = vunpack.c.l.b16 %v1450
    %v4742 = vunpack.c.h.b16 %v1450
    %v4743 = vunpack.c.l.b16 %v1451
    %v4744 = vunpack.c.h.b16 %v1451
    %v4745 = vunpack.c.l.b16 %v1452
    %v4746 = vunpack.c.h.b16 %v1452
    %v4747 = vunpack.c.l.b16 %v1453
    %v4748 = vunpack.c.h.b16 %v1453
    %v4749 = vunpack.c.l.b16 %v1454
    %v4750 = vunpack.c.h.b16 %v1454
    %v4751 = vunpack.c.l.b16 %v1455
    %v4752 = vunpack.c.h.b16 %v1455
    %v4753 = vunpack.c.l.b16 %v1456
    %v4754 = vunpack.c.h.b16 %v1456
    %v4755 = vunpack.c.l.b16 %v1457
    %v4756 = vunpack.c.h.b16 %v1457
    %v4757 = vunpack.c.l.b16 %v1458
    %v4758 = vunpack.c.h.b16 %v1458
    %v4759 = vunpack.c.l.b16 %v1459
    %v4760 = vunpack.c.h.b16 %v1459
    %v4761 = vunpack.c.l.b16 %v1460
    %v4762 = vunpack.c.h.b16 %v1460
    %v4763 = vunpack.c.l.b16 %v1461
    %v4764 = vunpack.c.h.b16 %v1461
    %v4765 = vunpack.c.l.b16 %v1462
    %v4766 = vunpack.c.h.b16 %v1462
    %v4767 = vunpack.c.l.b16 %v1463
    %v4768 = vunpack.c.h.b16 %v1463
    %v4769 = vunpack.c.l.b16 %v1464
    %v4770 = vunpack.c.h.b16 %v1464
    %v4771 = vunpack.c.l.b16 %v1465
    %v4772 = vunpack.c.h.b16 %v1465
    %v4773 = vunpack.c.l.b16 %v1466
    %v4774 = vunpack.c.h.b16 %v1466
    %v4775 = vunpack.c.l.b16 %v1467
    %v4776 = vunpack.c.h.b16 %v1467
    %v4777 = vunpack.c.l.b16 %v1468
    %v4778 = vunpack.c.h.b16 %v1468
    %v4779 = vunpack.c.l.b16 %v1469
    %v4780 = vunpack.c.h.b16 %v1469
    %v4781 = vunpack.c.l.b16 %v1470
    %v4782 = vunpack.c.h.b16 %v1470
    %v4783 = vunpack.c.l.b16 %v1471
    %v4784 = vunpack.c.h.b16 %v1471
    %v4785 = vunpack.c.l.b16 %v1472
    %v4786 = vunpack.c.h.b16 %v1472
    %v4787 = vunpack.c.l.b16 %v1473
    %v4788 = vunpack.c.h.b16 %v1473
    %v4789 = vunpack.c.l.b16 %v1474
    %v4790 = vunpack.c.h.b16 %v1474
    %v4791 = vunpack.c.l.b16 %v1475
    %v4792 = vunpack.c.h.b16 %v1475
    %v4793 = vunpack.c.l.b16 %v1476
    %v4794 = vunpack.c.h.b16 %v1476
    %v4795 = vunpack.c.l.b16 %v1477
    %v4796 = vunpack.c.h.b16 %v1477
    %v4797 = vunpack.c.l.b16 %v1478
    %v4798 = vunpack.c.h.b16 %v1478
    %v4799 = vunpack.c.l.b16 %v1479
    %v4800 = vunpack.c.h.b16 %v1479
    %v4801 = vunpack.c.l.b16 %v1480
    %v4802 = vunpack.c.h.b16 %v1480
    %v4803 = vunpack.c.l.b16 %v1481
    %v4804 = vunpack.c.h.b16 %v1481
    %v4805 = vunpack.c.l.b16 %v1482
    %v4806 = vunpack.c.h.b16 %v1482
    %v4807 = vunpack.c.l.b16 %v1483
    %v4808 = vunpack.c.h.b16 %v1483
    %v4809 = vunpack.c.l.b16 %v1484
    %v4810 = vunpack.c.h.b16 %v1484
    %v4811 = vunpack.c.l.b16 %v1485
    %v4812 = vunpack.c.h.b16 %v1485
    %v4813 = vunpack.c.l.b16 %v1486
    %v4814 = vunpack.c.h.b16 %v1486
    %v4815 = vunpack.c.l.b16 %v1487
    %v4816 = vunpack.c.h.b16 %v1487
    %v4817 = vunpack.c.l.b16 %v1488
    %v4818 = vunpack.c.h.b16 %v1488
    %v4819 = vunpack.c.l.b16 %v1489
    %v4820 = vunpack.c.h.b16 %v1489
    %v4821 = vunpack.c.l.b16 %v1490
    %v4822 = vunpack.c.h.b16 %v1490
    %v4823 = vunpack.c.l.b16 %v1491
    %v4824 = vunpack.c.h.b16 %v1491
    %v4825 = vunpack.c.l.b16 %v1492
    %v4826 = vunpack.c.h.b16 %v1492
    %v4827 = vunpack.c.l.b16 %v1493
    %v4828 = vunpack.c.h.b16 %v1493
    %v4829 = vunpack.c.l.b16 %v1494
    %v4830 = vunpack.c.h.b16 %v1494
    %v4831 = vunpack.c.l.b16 %v1495
    %v4832 = vunpack.c.h.b16 %v1495
    %v4833 = vunpack.c.l.b16 %v1496
    %v4834 = vunpack.c.h.b16 %v1496
    %v4835 = vunpack.c.l.b16 %v1497
    %v4836 = vunpack.c.h.b16 %v1497
    %v4837 = vunpack.c.l.b16 %v1498
    %v4838 = vunpack.c.h.b16 %v1498
    %v4839 = vunpack.c.l.b16 %v1499
    %v4840 = vunpack.c.h.b16 %v1499
    %v4841 = vunpack.c.l.b16 %v1500
    %v4842 = vunpack.c.h.b16 %v1500
    %v4843 = vunpack.c.l.b16 %v1501
    %v4844 = vunpack.c.h.b16 %v1501
    %v4845 = vunpack.c.l.b16 %v1502
    %v4846 = vunpack.c.h.b16 %v1502
    %v4847 = vunpack.c.l.b16 %v1503
    %v4848 = vunpack.c.h.b16 %v1503
    %v4849 = vunpack.c.l.b16 %v1504
    %v4850 = vunpack.c.h.b16 %v1504
    %v4851 = vunpack.c.l.b16 %v1505
    %v4852 = vunpack.c.h.b16 %v1505
    %v4853 = vunpack.c.l.b16 %v1506
    %v4854 = vunpack.c.h.b16 %v1506
    %v4855 = vunpack.c.l.b16 %v1507
    %v4856 = vunpack.c.h.b16 %v1507
    %v4857 = vunpack.c.l.b16 %v1508
    %v4858 = vunpack.c.h.b16 %v1508
    %v4859 = vunpack.c.l.b16 %v1509
    %v4860 = vunpack.c.h.b16 %v1509
    %v4861 = vunpack.c.l.b16 %v1510
    %v4862 = vunpack.c.h.b16 %v1510
    %v4863 = vunpack.c.l.b16 %v1511
    %v4864 = vunpack.c.h.b16 %v1511
    %v4865 = vunpack.c.l.b16 %v1512
    %v4866 = vunpack.c.h.b16 %v1512
    %v4867 = vunpack.c.l.b16 %v1513
    %v4868 = vunpack.c.h.b16 %v1513
    %v4869 = vunpack.c.l.b16 %v1514
    %v4870 = vunpack.c.h.b16 %v1514
    %v4871 = vunpack.c.l.b16 %v1515
    %v4872 = vunpack.c.h.b16 %v1515
    %v4873 = vunpack.c.l.b16 %v1516
    %v4874 = vunpack.c.h.b16 %v1516
    %v4875 = vunpack.c.l.b16 %v1517
    %v4876 = vunpack.c.h.b16 %v1517
    %v4877 = vunpack.c.l.b16 %v1518
    %v4878 = vunpack.c.h.b16 %v1518
    %v4879 = vunpack.c.l.b16 %v1519
    %v4880 = vunpack.c.h.b16 %v1519
    %v4881 = vunpack.c.l.b16 %v1520
    %v4882 = vunpack.c.h.b16 %v1520
    %v4883 = vunpack.c.l.b16 %v1521
    %v4884 = vunpack.c.h.b16 %v1521
    %v4885 = vunpack.c.l.b16 %v1522
    %v4886 = vunpack.c.h.b16 %v1522
    %v4887 = vunpack.c.l.b16 %v1523
    %v4888 = vunpack.c.h.b16 %v1523
    %v4889 = vunpack.c.l.b16 %v1524
    %v4890 = vunpack.c.h.b16 %v1524
    %v4891 = vunpack.c.l.b16 %v1525
    %v4892 = vunpack.c.h.b16 %v1525
    %v4893 = vunpack.c.l.b16 %v1526
    %v4894 = vunpack.c.h.b16 %v1526
    %v4895 = vunpack.c.l.b16 %v1527
    %v4896 = vunpack.c.h.b16 %v1527
    %v4897 = vunpack.c.l.b16 %v1528
    %v4898 = vunpack.c.h.b16 %v1528
    %v4899 = vunpack.c.l.b16 %v1529
    %v4900 = vunpack.c.h.b16 %v1529
    %v4901 = vunpack.c.l.b16 %v1530
    %v4902 = vunpack.c.h.b16 %v1530
    %v4903 = vunpack.c.l.b16 %v1531
    %v4904 = vunpack.c.h.b16 %v1531
    %v4905 = vunpack.c.l.b16 %v1532
    %v4906 = vunpack.c.h.b16 %v1532
    %v4907 = vunpack.c.l.b16 %v1533
    %v4908 = vunpack.c.h.b16 %v1533
    %v4909 = vunpack.c.l.b16 %v1534
    %v4910 = vunpack.c.h.b16 %v1534
    %v4911 = vunpack.c.l.b16 %v1535
    %v4912 = vunpack.c.h.b16 %v1535
    %v4913 = vunpack.c.l.b16 %v1536
    %v4914 = vunpack.c.h.b16 %v1536
    %v4915 = vunpack.c.l.b16 %v1537
    %v4916 = vunpack.c.h.b16 %v1537
    %v4917 = vunpack.c.l.b16 %v1538
    %v4918 = vunpack.c.h.b16 %v1538
    %v4919 = vunpack.c.l.b16 %v1539
    %v4920 = vunpack.c.h.b16 %v1539
    %v4921 = vunpack.c.l.b16 %v1540
    %v4922 = vunpack.c.h.b16 %v1540
    %v4923 = vunpack.c.l.b16 %v1541
    %v4924 = vunpack.c.h.b16 %v1541
    %v4925 = vunpack.c.l.b16 %v1542
    %v4926 = vunpack.c.h.b16 %v1542
    %v4927 = vunpack.c.l.b16 %v1543
    %v4928 = vunpack.c.h.b16 %v1543
    %v4929 = vunpack.c.l.b16 %v1544
    %v4930 = vunpack.c.h.b16 %v1544
    %v4931 = vunpack.c.l.b16 %v1545
    %v4932 = vunpack.c.h.b16 %v1545
    %v4933 = vunpack.c.l.b16 %v1546
    %v4934 = vunpack.c.h.b16 %v1546
    %v4935 = vunpack.c.l.b16 %v1547
    %v4936 = vunpack.c.h.b16 %v1547
    %v4937 = vunpack.c.l.b16 %v1548
    %v4938 = vunpack.c.h.b16 %v1548
    %v4939 = vunpack.c.l.b16 %v1549
    %v4940 = vunpack.c.h.b16 %v1549
    %v4941 = vunpack.c.l.b16 %v1550
    %v4942 = vunpack.c.h.b16 %v1550
    %v4943 = vunpack.c.l.b16 %v1551
    %v4944 = vunpack.c.h.b16 %v1551
    %v4945 = vunpack.c.l.b16 %v1552
    %v4946 = vunpack.c.h.b16 %v1552
    %v4947 = vunpack.c.l.b16 %v1553
    %v4948 = vunpack.c.h.b16 %v1553
    %v4949 = vunpack.c.l.b16 %v1554
    %v4950 = vunpack.c.h.b16 %v1554
    %v4951 = vunpack.c.l.b16 %v1555
    %v4952 = vunpack.c.h.b16 %v1555
    %v4953 = vunpack.c.l.b16 %v1556
    %v4954 = vunpack.c.h.b16 %v1556
    %v4955 = vunpack.c.l.b16 %v1557
    %v4956 = vunpack.c.h.b16 %v1557
    %v4957 = vunpack.c.l.b16 %v1558
    %v4958 = vunpack.c.h.b16 %v1558
    %v4959 = vunpack.c.l.b16 %v1559
    %v4960 = vunpack.c.h.b16 %v1559
    %v4961 = vunpack.c.l.b16 %v1560
    %v4962 = vunpack.c.h.b16 %v1560
    %v4963 = vunpack.c.l.b16 %v1561
    %v4964 = vunpack.c.h.b16 %v1561
    %v4965 = vunpack.c.l.b16 %v1562
    %v4966 = vunpack.c.h.b16 %v1562
    %v4967 = vunpack.c.l.b16 %v1563
    %v4968 = vunpack.c.h.b16 %v1563
    %v4969 = vunpack.c.l.b16 %v1564
    %v4970 = vunpack.c.h.b16 %v1564
    %v4971 = vunpack.c.l.b16 %v1565
    %v4972 = vunpack.c.h.b16 %v1565
    %v4973 = vunpack.c.l.b16 %v1566
    %v4974 = vunpack.c.h.b16 %v1566
    %v4975 = vunpack.c.l.b16 %v1567
    %v4976 = vunpack.c.h.b16 %v1567
    %v4977 = vunpack.c.l.b16 %v1568
    %v4978 = vunpack.c.h.b16 %v1568
    %v4979 = vunpack.c.l.b16 %v1569
    %v4980 = vunpack.c.h.b16 %v1569
    %v4981 = vunpack.c.l.b16 %v1570
    %v4982 = vunpack.c.h.b16 %v1570
    %v4983 = vunpack.c.l.b16 %v1571
    %v4984 = vunpack.c.h.b16 %v1571
    %v4985 = vunpack.c.l.b16 %v1572
    %v4986 = vunpack.c.h.b16 %v1572
    %v4987 = vunpack.c.l.b16 %v1573
    %v4988 = vunpack.c.h.b16 %v1573
    %v4989 = vunpack.c.l.b16 %v1574
    %v4990 = vunpack.c.h.b16 %v1574
    %v4991 = vunpack.c.l.b16 %v1575
    %v4992 = vunpack.c.h.b16 %v1575
    %v4993 = vunpack.c.l.b16 %v1576
    %v4994 = vunpack.c.h.b16 %v1576
    %v4995 = vunpack.c.l.b16 %v1577
    %v4996 = vunpack.c.h.b16 %v1577
    %v4997 = vunpack.c.l.b16 %v1578
    %v4998 = vunpack.c.h.b16 %v1578
    %v4999 = vunpack.c.l.b16 %v1579
    %v5000 = vunpack.c.h.b16 %v1579
    %v5001 = vunpack.c.l.b16 %v1580
    %v5002 = vunpack.c.h.b16 %v1580
    %v5003 = vunpack.c.l.b16 %v1581
    %v5004 = vunpack.c.h.b16 %v1581
    %v5005 = vunpack.c.l.b16 %v1582
    %v5006 = vunpack.c.h.b16 %v1582
    %v5007 = vunpack.c.l.b16 %v1583
    %v5008 = vunpack.c.h.b16 %v1583
    %v5009 = vunpack.c.l.b16 %v1584
    %v5010 = vunpack.c.h.b16 %v1584
    %v5011 = vunpack.c.l.b16 %v1585
    %v5012 = vunpack.c.h.b16 %v1585
    %v5013 = vunpack.c.l.b16 %v1586
    %v5014 = vunpack.c.h.b16 %v1586
    %v5015 = vunpack.c.l.b16 %v1587
    %v5016 = vunpack.c.h.b16 %v1587
    %v5017 = vunpack.c.l.b16 %v1588
    %v5018 = vunpack.c.h.b16 %v1588
    %v5019 = vunpack.c.l.b16 %v1589
    %v5020 = vunpack.c.h.b16 %v1589
    %v5021 = vunpack.c.l.b16 %v1590
    %v5022 = vunpack.c.h.b16 %v1590
    %v5023 = vunpack.c.l.b16 %v1591
    %v5024 = vunpack.c.h.b16 %v1591
    %v5025 = vunpack.c.l.b16 %v1592
    %v5026 = vunpack.c.h.b16 %v1592
    %v5027 = vunpack.c.l.b16 %v1593
    %v5028 = vunpack.c.h.b16 %v1593
    %v5029 = vunpack.c.l.b16 %v1594
    %v5030 = vunpack.c.h.b16 %v1594
    %v5031 = vunpack.c.l.b16 %v1595
    %v5032 = vunpack.c.h.b16 %v1595
    %v5033 = vunpack.c.l.b16 %v1596
    %v5034 = vunpack.c.h.b16 %v1596
    %v5035 = vunpack.c.l.b16 %v1597
    %v5036 = vunpack.c.h.b16 %v1597
    %v5037 = vunpack.c.l.b16 %v1598
    %v5038 = vunpack.c.h.b16 %v1598
    %v5039 = vunpack.c.l.b16 %v1599
    %v5040 = vunpack.c.h.b16 %v1599
    %v5041 = vunpack.c.l.b16 %v1600
    %v5042 = vunpack.c.h.b16 %v1600
    %v5043 = vunpack.c.l.b16 %v1601
    %v5044 = vunpack.c.h.b16 %v1601
    %v5045 = vunpack.c.l.b16 %v1602
    %v5046 = vunpack.c.h.b16 %v1602
    %v5047 = vunpack.c.l.b16 %v1603
    %v5048 = vunpack.c.h.b16 %v1603
    %v5049 = vunpack.c.l.b16 %v1604
    %v5050 = vunpack.c.h.b16 %v1604
    %v5051 = vunpack.c.l.b16 %v1605
    %v5052 = vunpack.c.h.b16 %v1605
    %v5053 = vunpack.c.l.b16 %v1606
    %v5054 = vunpack.c.h.b16 %v1606
    %v5055 = vunpack.c.l.b16 %v1607
    %v5056 = vunpack.c.h.b16 %v1607
    %v5057 = vunpack.c.l.b16 %v1608
    %v5058 = vunpack.c.h.b16 %v1608
    %v5059 = vunpack.c.l.b16 %v1609
    %v5060 = vunpack.c.h.b16 %v1609
    %v5061 = vunpack.c.l.b16 %v1610
    %v5062 = vunpack.c.h.b16 %v1610
    %v5063 = vunpack.c.l.b16 %v1611
    %v5064 = vunpack.c.h.b16 %v1611
    %v5065 = vunpack.c.l.b16 %v1612
    %v5066 = vunpack.c.h.b16 %v1612
    %v5067 = vunpack.c.l.b16 %v1613
    %v5068 = vunpack.c.h.b16 %v1613
    %v5069 = vunpack.c.l.b16 %v1614
    %v5070 = vunpack.c.h.b16 %v1614
    %v5071 = vunpack.c.l.b16 %v1615
    %v5072 = vunpack.c.h.b16 %v1615
    %v5073 = vunpack.c.l.b16 %v1616
    %v5074 = vunpack.c.h.b16 %v1616
    %v5075 = vunpack.c.l.b16 %v1617
    %v5076 = vunpack.c.h.b16 %v1617
    %v5077 = vunpack.c.l.b16 %v1618
    %v5078 = vunpack.c.h.b16 %v1618
    %v5079 = vunpack.c.l.b16 %v1619
    %v5080 = vunpack.c.h.b16 %v1619
    %v5081 = vunpack.c.l.b16 %v1620
    %v5082 = vunpack.c.h.b16 %v1620
    %v5083 = vunpack.c.l.b16 %v1621
    %v5084 = vunpack.c.h.b16 %v1621
    %v5085 = vunpack.c.l.b16 %v1622
    %v5086 = vunpack.c.h.b16 %v1622
    %v5087 = vunpack.c.l.b16 %v1623
    %v5088 = vunpack.c.h.b16 %v1623
    %v5089 = vunpack.c.l.b16 %v1624
    %v5090 = vunpack.c.h.b16 %v1624
    %v5091 = vunpack.c.l.b16 %v1625
    %v5092 = vunpack.c.h.b16 %v1625
    %v5093 = vunpack.c.l.b16 %v1626
    %v5094 = vunpack.c.h.b16 %v1626
    %v5095 = vunpack.c.l.b16 %v1627
    %v5096 = vunpack.c.h.b16 %v1627
    %v5097 = vunpack.c.l.b16 %v1628
    %v5098 = vunpack.c.h.b16 %v1628
    %v5099 = vunpack.c.l.b16 %v1629
    %v5100 = vunpack.c.h.b16 %v1629
    %v5101 = vunpack.c.l.b16 %v1630
    %v5102 = vunpack.c.h.b16 %v1630
    %v5103 = vunpack.c.l.b16 %v1631
    %v5104 = vunpack.c.h.b16 %v1631
    %v5105 = vunpack.c.l.b16 %v1632
    %v5106 = vunpack.c.h.b16 %v1632
    %v5107 = vunpack.c.l.b16 %v1633
    %v5108 = vunpack.c.h.b16 %v1633
    %v5109 = vunpack.c.l.b16 %v1634
    %v5110 = vunpack.c.h.b16 %v1634
    %v5111 = vunpack.c.l.b16 %v1635
    %v5112 = vunpack.c.h.b16 %v1635
    %v5113 = vunpack.c.l.b16 %v1636
    %v5114 = vunpack.c.h.b16 %v1636
    %v5115 = vunpack.c.l.b16 %v1637
    %v5116 = vunpack.c.h.b16 %v1637
    %v5117 = vunpack.c.l.b16 %v1638
    %v5118 = vunpack.c.h.b16 %v1638
    %v5119 = vunpack.c.l.b16 %v1639
    %v5120 = vunpack.c.h.b16 %v1639
    %v5121 = vunpack.c.l.b16 %v1640
    %v5122 = vunpack.c.h.b16 %v1640
    %v5123 = vunpack.c.l.b16 %v1641
    %v5124 = vunpack.c.h.b16 %v1641
    %v5125 = vunpack.c.l.b16 %v1642
    %v5126 = vunpack.c.h.b16 %v1642
    %v5127 = vunpack.c.l.b16 %v1643
    %v5128 = vunpack.c.h.b16 %v1643
    %v5129 = vunpack.c.l.b16 %v1644
    %v5130 = vunpack.c.h.b16 %v1644
    %v5131 = vunpack.c.l.b16 %v1645
    %v5132 = vunpack.c.h.b16 %v1645
    %v5133 = vunpack.c.l.b16 %v1646
    %v5134 = vunpack.c.h.b16 %v1646
    %v5135 = vunpack.c.l.b16 %v1647
    %v5136 = vunpack.c.h.b16 %v1647
    %v5137 = vunpack.c.l.b16 %v1648
    %v5138 = vunpack.c.h.b16 %v1648
    %v5139 = vunpack.c.l.b16 %v1649
    %v5140 = vunpack.c.h.b16 %v1649
    %v5141 = vunpack.c.l.b16 %v1650
    %v5142 = vunpack.c.h.b16 %v1650
    %v5143 = vunpack.c.l.b16 %v1651
    %v5144 = vunpack.c.h.b16 %v1651
    %v5145 = vunpack.c.l.b16 %v1652
    %v5146 = vunpack.c.h.b16 %v1652
    %v5147 = vunpack.c.l.b16 %v1653
    %v5148 = vunpack.c.h.b16 %v1653
    %v5149 = vunpack.c.l.b16 %v1654
    %v5150 = vunpack.c.h.b16 %v1654
    %v5151 = vunpack.c.l.b16 %v1655
    %v5152 = vunpack.c.h.b16 %v1655
    %v5153 = vunpack.c.l.b16 %v1656
    %v5154 = vunpack.c.h.b16 %v1656
    %v5155 = vunpack.c.l.b16 %v1657
    %v5156 = vunpack.c.h.b16 %v1657
    %v5157 = vunpack.c.l.b16 %v1658
    %v5158 = vunpack.c.h.b16 %v1658
    %v5159 = vunpack.c.l.b16 %v1659
    %v5160 = vunpack.c.h.b16 %v1659
    %v5161 = vunpack.c.l.b16 %v1660
    %v5162 = vunpack.c.h.b16 %v1660
    %v5163 = vunpack.c.l.b16 %v1661
    %v5164 = vunpack.c.h.b16 %v1661
    %v5165 = vunpack.c.l.b16 %v1662
    %v5166 = vunpack.c.h.b16 %v1662
    %v5167 = vunpack.c.l.b16 %v1663
    %v5168 = vunpack.c.h.b16 %v1663
    %v5169 = vunpack.c.l.b16 %v1664
    %v5170 = vunpack.c.h.b16 %v1664
    %v5171 = vunpack.c.l.b16 %v1665
    %v5172 = vunpack.c.h.b16 %v1665
    %v5173 = vunpack.c.l.b16 %v1666
    %v5174 = vunpack.c.h.b16 %v1666
    %v5175 = vunpack.c.l.b16 %v1667
    %v5176 = vunpack.c.h.b16 %v1667
    %v5177 = vunpack.c.l.b16 %v1668
    %v5178 = vunpack.c.h.b16 %v1668
    %v5179 = vunpack.c.l.b16 %v1669
    %v5180 = vunpack.c.h.b16 %v1669
    %v5181 = vunpack.c.l.b16 %v1670
    %v5182 = vunpack.c.h.b16 %v1670
    %v5183 = vunpack.c.l.b16 %v1671
    %v5184 = vunpack.c.h.b16 %v1671
    %v5185 = vunpack.c.l.b16 %v1672
    %v5186 = vunpack.c.h.b16 %v1672
    %v5187 = vunpack.c.l.b16 %v1673
    %v5188 = vunpack.c.h.b16 %v1673
    %v5189 = vunpack.c.l.b16 %v1674
    %v5190 = vunpack.c.h.b16 %v1674
    %v5191 = vunpack.c.l.b16 %v1675
    %v5192 = vunpack.c.h.b16 %v1675
    %v5193 = vunpack.c.l.b16 %v1676
    %v5194 = vunpack.c.h.b16 %v1676
    %v5195 = vunpack.c.l.b16 %v1677
    %v5196 = vunpack.c.h.b16 %v1677
    %v5197 = vunpack.c.l.b16 %v1678
    %v5198 = vunpack.c.h.b16 %v1678
    %v5199 = vunpack.c.l.b16 %v1679
    %v5200 = vunpack.c.h.b16 %v1679
    %v5201 = vunpack.c.l.b16 %v1680
    %v5202 = vunpack.c.h.b16 %v1680
    %v5203 = vunpack.c.l.b16 %v1681
    %v5204 = vunpack.c.h.b16 %v1681
    %v5205 = vunpack.c.l.b16 %v1682
    %v5206 = vunpack.c.h.b16 %v1682
    %v5207 = vunpack.c.l.b16 %v1683
    %v5208 = vunpack.c.h.b16 %v1683
    %v5209 = vunpack.c.l.b16 %v1684
    %v5210 = vunpack.c.h.b16 %v1684
    %v5211 = vunpack.c.l.b16 %v1685
    %v5212 = vunpack.c.h.b16 %v1685
    %v5213 = vunpack.c.l.b16 %v1686
    %v5214 = vunpack.c.h.b16 %v1686
    %v5215 = vunpack.c.l.b16 %v1687
    %v5216 = vunpack.c.h.b16 %v1687
    %v5217 = vunpack.c.l.b16 %v1688
    %v5218 = vunpack.c.h.b16 %v1688
    %v5219 = vunpack.c.l.b16 %v1689
    %v5220 = vunpack.c.h.b16 %v1689
    %v5221 = vunpack.c.l.b16 %v1690
    %v5222 = vunpack.c.h.b16 %v1690
    %v5223 = vunpack.c.l.b16 %v1691
    %v5224 = vunpack.c.h.b16 %v1691
    %v5225 = vunpack.c.l.b16 %v1692
    %v5226 = vunpack.c.h.b16 %v1692
    %v5227 = vunpack.c.l.b16 %v1693
    %v5228 = vunpack.c.h.b16 %v1693
    %v5229 = vunpack.c.l.b16 %v1694
    %v5230 = vunpack.c.h.b16 %v1694
    %v5231 = vunpack.c.l.b16 %v1695
    %v5232 = vunpack.c.h.b16 %v1695
    %v5233 = vunpack.c.l.b16 %v1696
    %v5234 = vunpack.c.h.b16 %v1696
    %v5235 = vunpack.c.l.b16 %v1697
    %v5236 = vunpack.c.h.b16 %v1697
    %v5237 = vunpack.c.l.b16 %v1698
    %v5238 = vunpack.c.h.b16 %v1698
    %v5239 = vunpack.c.l.b16 %v1699
    %v5240 = vunpack.c.h.b16 %v1699
    %v5241 = vunpack.c.l.b16 %v1700
    %v5242 = vunpack.c.h.b16 %v1700
    %v5243 = vunpack.c.l.b16 %v1701
    %v5244 = vunpack.c.h.b16 %v1701
    %v5245 = vunpack.c.l.b16 %v1702
    %v5246 = vunpack.c.h.b16 %v1702
    %v5247 = vunpack.c.l.b16 %v1703
    %v5248 = vunpack.c.h.b16 %v1703
    %v5249 = vunpack.c.l.b16 %v1704
    %v5250 = vunpack.c.h.b16 %v1704
    %v5251 = vunpack.c.l.b16 %v1705
    %v5252 = vunpack.c.h.b16 %v1705
    %v5253 = vunpack.c.l.b16 %v1706
    %v5254 = vunpack.c.h.b16 %v1706
    %v5255 = vunpack.c.l.b16 %v1707
    %v5256 = vunpack.c.h.b16 %v1707
    %v5257 = vunpack.c.l.b16 %v1708
    %v5258 = vunpack.c.h.b16 %v1708
    %v5259 = vunpack.c.l.b16 %v1709
    %v5260 = vunpack.c.h.b16 %v1709
    %v5261 = vunpack.c.l.b16 %v1710
    %v5262 = vunpack.c.h.b16 %v1710
    %v5263 = vunpack.c.l.b16 %v1711
    %v5264 = vunpack.c.h.b16 %v1711
    %v5265 = vunpack.c.l.b16 %v1712
    %v5266 = vunpack.c.h.b16 %v1712
    %v5267 = vunpack.c.l.b16 %v1713
    %v5268 = vunpack.c.h.b16 %v1713
    %v5269 = vunpack.c.l.b16 %v1714
    %v5270 = vunpack.c.h.b16 %v1714
    %v5271 = vunpack.c.l.b16 %v1715
    %v5272 = vunpack.c.h.b16 %v1715
    %v5273 = vunpack.c.l.b16 %v1716
    %v5274 = vunpack.c.h.b16 %v1716
    %v5275 = vunpack.c.l.b16 %v1717
    %v5276 = vunpack.c.h.b16 %v1717
    %v5277 = vunpack.c.l.b16 %v1718
    %v5278 = vunpack.c.h.b16 %v1718
    %v5279 = vunpack.c.l.b16 %v1719
    %v5280 = vunpack.c.h.b16 %v1719
    %v5281 = vunpack.c.l.b16 %v1720
    %v5282 = vunpack.c.h.b16 %v1720
    %v5283 = vunpack.c.l.b16 %v1721
    %v5284 = vunpack.c.h.b16 %v1721
    %v5285 = vunpack.c.l.b16 %v1722
    %v5286 = vunpack.c.h.b16 %v1722
    %v5287 = vunpack.c.l.b16 %v1723
    %v5288 = vunpack.c.h.b16 %v1723
    %v5289 = vunpack.c.l.b16 %v1724
    %v5290 = vunpack.c.h.b16 %v1724
    %v5291 = vunpack.c.l.b16 %v1725
    %v5292 = vunpack.c.h.b16 %v1725
    %v5293 = vunpack.c.l.b16 %v1726
    %v5294 = vunpack.c.h.b16 %v1726
    %v5295 = vunpack.c.l.b16 %v1727
    %v5296 = vunpack.c.h.b16 %v1727
    %v5297 = vunpack.c.l.b16 %v1728
    %v5298 = vunpack.c.h.b16 %v1728
    %v5299 = vunpack.c.l.b16 %v1729
    %v5300 = vunpack.c.h.b16 %v1729
    %v5301 = vunpack.c.l.b16 %v1730
    %v5302 = vunpack.c.h.b16 %v1730
    %v5303 = vunpack.c.l.b16 %v1731
    %v5304 = vunpack.c.h.b16 %v1731
    %v5305 = vunpack.c.l.b16 %v1732
    %v5306 = vunpack.c.h.b16 %v1732
    %v5307 = vunpack.c.l.b16 %v1733
    %v5308 = vunpack.c.h.b16 %v1733
    %v5309 = vunpack.c.l.b16 %v1734
    %v5310 = vunpack.c.h.b16 %v1734
    %v5311 = vunpack.c.l.b16 %v1735
    %v5312 = vunpack.c.h.b16 %v1735
    %v5313 = vunpack.c.l.b16 %v1736
    %v5314 = vunpack.c.h.b16 %v1736
    %v5315 = vunpack.c.l.b16 %v1737
    %v5316 = vunpack.c.h.b16 %v1737
    %v5317 = vunpack.c.l.b16 %v1738
    %v5318 = vunpack.c.h.b16 %v1738
    %v5319 = vunpack.c.l.b16 %v1739
    %v5320 = vunpack.c.h.b16 %v1739
    %v5321 = vunpack.c.l.b16 %v1740
    %v5322 = vunpack.c.h.b16 %v1740
    %v5323 = vunpack.c.l.b16 %v1741
    %v5324 = vunpack.c.h.b16 %v1741
    %v5325 = vunpack.c.l.b16 %v1742
    %v5326 = vunpack.c.h.b16 %v1742
    %v5327 = vunpack.c.l.b16 %v1743
    %v5328 = vunpack.c.h.b16 %v1743
    %v5329 = vunpack.c.l.b16 %v1744
    %v5330 = vunpack.c.h.b16 %v1744
    %v5331 = vunpack.c.l.b16 %v1745
    %v5332 = vunpack.c.h.b16 %v1745
    %v5333 = vunpack.c.l.b16 %v1746
    %v5334 = vunpack.c.h.b16 %v1746
    %v5335 = vunpack.c.l.b16 %v1747
    %v5336 = vunpack.c.h.b16 %v1747
    %v5337 = vunpack.c.l.b16 %v1748
    %v5338 = vunpack.c.h.b16 %v1748
    %v5339 = vunpack.c.l.b16 %v1749
    %v5340 = vunpack.c.h.b16 %v1749
    %v5341 = vunpack.c.l.b16 %v1750
    %v5342 = vunpack.c.h.b16 %v1750
    %v5343 = vunpack.c.l.b16 %v1751
    %v5344 = vunpack.c.h.b16 %v1751
    %v5345 = vunpack.c.l.b16 %v1752
    %v5346 = vunpack.c.h.b16 %v1752
    %v5347 = vunpack.c.l.b16 %v1753
    %v5348 = vunpack.c.h.b16 %v1753
    %v5349 = vunpack.c.l.b16 %v1754
    %v5350 = vunpack.c.h.b16 %v1754
    %v5351 = vunpack.c.l.b16 %v1755
    %v5352 = vunpack.c.h.b16 %v1755
    %v5353 = vunpack.c.l.b16 %v1756
    %v5354 = vunpack.c.h.b16 %v1756
    %v5355 = vunpack.c.l.b16 %v1757
    %v5356 = vunpack.c.h.b16 %v1757
    %v5357 = vunpack.c.l.b16 %v1758
    %v5358 = vunpack.c.h.b16 %v1758
    %v5359 = vunpack.c.l.b16 %v1759
    %v5360 = vunpack.c.h.b16 %v1759
    %v5361 = vunpack.c.l.b16 %v1760
    %v5362 = vunpack.c.h.b16 %v1760
    %v5363 = vunpack.c.l.b16 %v1761
    %v5364 = vunpack.c.h.b16 %v1761
    %v5365 = vunpack.c.l.b16 %v1762
    %v5366 = vunpack.c.h.b16 %v1762
    %v5367 = vunpack.c.l.b16 %v1763
    %v5368 = vunpack.c.h.b16 %v1763
    %v5369 = vunpack.c.l.b16 %v1764
    %v5370 = vunpack.c.h.b16 %v1764
    %v5371 = vunpack.c.l.b16 %v1765
    %v5372 = vunpack.c.h.b16 %v1765
    %v5373 = vunpack.c.l.b16 %v1766
    %v5374 = vunpack.c.h.b16 %v1766
    %v5375 = vunpack.c.l.b16 %v1767
    %v5376 = vunpack.c.h.b16 %v1767
    %v5377 = vunpack.c.l.b16 %v1768
    %v5378 = vunpack.c.h.b16 %v1768
    %v5379 = vunpack.c.l.b16 %v1769
    %v5380 = vunpack.c.h.b16 %v1769
    %v5381 = vunpack.c.l.b16 %v1770
    %v5382 = vunpack.c.h.b16 %v1770
    %v5383 = vunpack.c.l.b16 %v1771
    %v5384 = vunpack.c.h.b16 %v1771
    %v5385 = vunpack.c.l.b16 %v1772
    %v5386 = vunpack.c.h.b16 %v1772
    %v5387 = vunpack.c.l.b16 %v1773
    %v5388 = vunpack.c.h.b16 %v1773
    %v5389 = vunpack.c.l.b16 %v1774
    %v5390 = vunpack.c.h.b16 %v1774
    %v5391 = vunpack.c.l.b16 %v1775
    %v5392 = vunpack.c.h.b16 %v1775
    %v5393 = vunpack.c.l.b16 %v1776
    %v5394 = vunpack.c.h.b16 %v1776
    %v5395 = vunpack.c.l.b16 %v1777
    %v5396 = vunpack.c.h.b16 %v1777
    %v5397 = vunpack.c.l.b16 %v1778
    %v5398 = vunpack.c.h.b16 %v1778
    %v5399 = vunpack.c.l.b16 %v1779
    %v5400 = vunpack.c.h.b16 %v1779
    %v5401 = vunpack.c.l.b16 %v1780
    %v5402 = vunpack.c.h.b16 %v1780
    %v5403 = vunpack.c.l.b16 %v1781
    %v5404 = vunpack.c.h.b16 %v1781
    %v5405 = vunpack.c.l.b16 %v1782
    %v5406 = vunpack.c.h.b16 %v1782
    %v5407 = vunpack.c.l.b16 %v1783
    %v5408 = vunpack.c.h.b16 %v1783
    %v5409 = vunpack.c.l.b16 %v1784
    %v5410 = vunpack.c.h.b16 %v1784
    %v5411 = vunpack.c.l.b16 %v1785
    %v5412 = vunpack.c.h.b16 %v1785
    %v5413 = vunpack.c.l.b16 %v1786
    %v5414 = vunpack.c.h.b16 %v1786
    %v5415 = vunpack.c.l.b16 %v1787
    %v5416 = vunpack.c.h.b16 %v1787
    %v5417 = vunpack.c.l.b16 %v1788
    %v5418 = vunpack.c.h.b16 %v1788
    %v5419 = vunpack.c.l.b16 %v1789
    %v5420 = vunpack.c.h.b16 %v1789
    %v5421 = vunpack.c.l.b16 %v1790
    %v5422 = vunpack.c.h.b16 %v1790
    %v5423 = vunpack.c.l.b16 %v1791
    %v5424 = vunpack.c.h.b16 %v1791
    %v5425 = vunpack.c.l.b16 %v1792
    %v5426 = vunpack.c.h.b16 %v1792
    %v5427 = vunpack.c.l.b16 %v1793
    %v5428 = vunpack.c.h.b16 %v1793
    %v5429 = vunpack.c.l.b16 %v1794
    %v5430 = vunpack.c.h.b16 %v1794
    %v5431 = vunpack.c.l.b16 %v1795
    %v5432 = vunpack.c.h.b16 %v1795
    %v5433 = vunpack.c.l.b16 %v1796
    %v5434 = vunpack.c.h.b16 %v1796
    %v5435 = vunpack.c.l.b16 %v1797
    %v5436 = vunpack.c.h.b16 %v1797
    %v5437 = vunpack.c.l.b16 %v1798
    %v5438 = vunpack.c.h.b16 %v1798
    %v5439 = vunpack.c.l.b16 %v1799
    %v5440 = vunpack.c.h.b16 %v1799
    %v5441 = vunpack.c.l.b16 %v1800
    %v5442 = vunpack.c.h.b16 %v1800
    %v5443 = vunpack.c.l.b16 %v1801
    %v5444 = vunpack.c.h.b16 %v1801
    %v5445 = vunpack.c.l.b16 %v1802
    %v5446 = vunpack.c.h.b16 %v1802
    %v5447 = vunpack.c.l.b16 %v1803
    %v5448 = vunpack.c.h.b16 %v1803
    %v5449 = vunpack.c.l.b16 %v1804
    %v5450 = vunpack.c.h.b16 %v1804
    %v5451 = vunpack.c.l.b16 %v1805
    %v5452 = vunpack.c.h.b16 %v1805
    %v5453 = vunpack.c.l.b16 %v1806
    %v5454 = vunpack.c.h.b16 %v1806
    %v5455 = vunpack.c.l.b16 %v1807
    %v5456 = vunpack.c.h.b16 %v1807
    %v5457 = vunpack.c.l.b16 %v1808
    %v5458 = vunpack.c.h.b16 %v1808
    %v5459 = vunpack.c.l.b16 %v1809
    %v5460 = vunpack.c.h.b16 %v1809
    %v5461 = vunpack.c.l.b16 %v1810
    %v5462 = vunpack.c.h.b16 %v1810
    %v5463 = vunpack.c.l.b16 %v1811
    %v5464 = vunpack.c.h.b16 %v1811
    %v5465 = vunpack.c.l.b16 %v1812
    %v5466 = vunpack.c.h.b16 %v1812
    %v5467 = vunpack.c.l.b16 %v1813
    %v5468 = vunpack.c.h.b16 %v1813
    %v5469 = vunpack.c.l.b16 %v1814
    %v5470 = vunpack.c.h.b16 %v1814
    %v5471 = vunpack.c.l.b16 %v1815
    %v5472 = vunpack.c.h.b16 %v1815
    %v5473 = vunpack.c.l.b16 %v1816
    %v5474 = vunpack.c.h.b16 %v1816
    %v5475 = vunpack.c.l.b16 %v1817
    %v5476 = vunpack.c.h.b16 %v1817
    %v5477 = vunpack.c.l.b16 %v1818
    %v5478 = vunpack.c.h.b16 %v1818
    %v5479 = vunpack.c.l.b16 %v1819
    %v5480 = vunpack.c.h.b16 %v1819
    %v5481 = vunpack.c.l.b16 %v1820
    %v5482 = vunpack.c.h.b16 %v1820
    %v5483 = vunpack.c.l.b16 %v1821
    %v5484 = vunpack.c.h.b16 %v1821
    %v5485 = vunpack.c.l.b16 %v1822
    %v5486 = vunpack.c.h.b16 %v1822
    %v5487 = vunpack.c.l.b16 %v1823
    %v5488 = vunpack.c.h.b16 %v1823
    %v5489 = vunpack.c.l.b16 %v1824
    %v5490 = vunpack.c.h.b16 %v1824
    %v5491 = vunpack.c.l.b16 %v1825
    %v5492 = vunpack.c.h.b16 %v1825
    %v5493 = vunpack.c.l.b16 %v1826
    %v5494 = vunpack.c.h.b16 %v1826
    %v5495 = vunpack.c.l.b16 %v1827
    %v5496 = vunpack.c.h.b16 %v1827
    %v5497 = vunpack.c.l.b16 %v1828
    %v5498 = vunpack.c.h.b16 %v1828
    %v5499 = vunpack.c.l.b16 %v1829
    %v5500 = vunpack.c.h.b16 %v1829
    %v5501 = vunpack.c.l.b16 %v1830
    %v5502 = vunpack.c.h.b16 %v1830
    %v5503 = vunpack.c.l.b16 %v1831
    %v5504 = vunpack.c.h.b16 %v1831
    %v5505 = vunpack.c.l.b16 %v1832
    %v5506 = vunpack.c.h.b16 %v1832
    %v5507 = vunpack.c.l.b16 %v1833
    %v5508 = vunpack.c.h.b16 %v1833
    %v5509 = vunpack.c.l.b16 %v1834
    %v5510 = vunpack.c.h.b16 %v1834
    %v5511 = vunpack.c.l.b16 %v1835
    %v5512 = vunpack.c.h.b16 %v1835
    %v5513 = vunpack.c.l.b16 %v1836
    %v5514 = vunpack.c.h.b16 %v1836
    %v5515 = vunpack.c.l.b16 %v1837
    %v5516 = vunpack.c.h.b16 %v1837
    %v5517 = vunpack.c.l.b16 %v1838
    %v5518 = vunpack.c.h.b16 %v1838
    %v5519 = vunpack.c.l.b16 %v1839
    %v5520 = vunpack.c.h.b16 %v1839
    %v5521 = vunpack.c.l.b16 %v1840
    %v5522 = vunpack.c.h.b16 %v1840
    %v5523 = vunpack.c.l.b16 %v1841
    %v5524 = vunpack.c.h.b16 %v1841
    %v5525 = vunpack.c.l.b16 %v1842
    %v5526 = vunpack.c.h.b16 %v1842
    %v5527 = vunpack.c.l.b16 %v1843
    %v5528 = vunpack.c.h.b16 %v1843
    %v5529 = vunpack.c.l.b16 %v1844
    %v5530 = vunpack.c.h.b16 %v1844
    %v5531 = vunpack.c.l.b16 %v1845
    %v5532 = vunpack.c.h.b16 %v1845
    %v5533 = vunpack.c.l.b16 %v1846
    %v5534 = vunpack.c.h.b16 %v1846
    %v5535 = vunpack.c.l.b16 %v1847
    %v5536 = vunpack.c.h.b16 %v1847
    %v5537 = vunpack.c.l.b16 %v1848
    %v5538 = vunpack.c.h.b16 %v1848
    %v5539 = vunpack.c.l.b16 %v1849
    %v5540 = vunpack.c.h.b16 %v1849
    %v5541 = vunpack.c.l.b16 %v1850
    %v5542 = vunpack.c.h.b16 %v1850
    %v5543 = vunpack.c.l.b16 %v1851
    %v5544 = vunpack.c.h.b16 %v1851
    %v5545 = vunpack.c.l.b16 %v1852
    %v5546 = vunpack.c.h.b16 %v1852
    %v5547 = vunpack.c.l.b16 %v1853
    %v5548 = vunpack.c.h.b16 %v1853
    %v5549 = vunpack.c.l.b16 %v1854
    %v5550 = vunpack.c.h.b16 %v1854
    %v5551 = vunpack.c.l.b16 %v1855
    %v5552 = vunpack.c.h.b16 %v1855
    %v5553 = vunpack.c.l.b16 %v1856
    %v5554 = vunpack.c.h.b16 %v1856
    %v5555 = vunpack.c.l.b16 %v1857
    %v5556 = vunpack.c.h.b16 %v1857
    %v5557 = vunpack.c.l.b16 %v1858
    %v5558 = vunpack.c.h.b16 %v1858
    %v5559 = vunpack.c.l.b16 %v1859
    %v5560 = vunpack.c.h.b16 %v1859
    %v5561 = vunpack.c.l.b16 %v1860
    %v5562 = vunpack.c.h.b16 %v1860
    %v5563 = vpack.c.b16 %v3169, %v3163
    %v5564 = vpack.c.b16 %v3170, %v3164
    %v5565 = vpack.c.b16 %v3171, %v3165
    %v5566 = vpack.c.b16 %v3172, %v3166
    %v5567 = vpack.c.b16 %v3173, %v3167
    %v5568 = vpack.c.b16 %v3174, %v3168
    %v5569 = vpack.c.b16 %v3181, %v3175
    %v5570 = vpack.c.b16 %v3182, %v3176
    %v5571 = vpack.c.b16 %v3183, %v3177
    %v5572 = vpack.c.b16 %v3184, %v3178
    %v5573 = vpack.c.b16 %v3185, %v3179
    %v5574 = vpack.c.b16 %v3186, %v3180
    %v5575 = vpack.c.b16 %v3193, %v3187
    %v5576 = vpack.c.b16 %v3194, %v3188
    %v5577 = vpack.c.b16 %v3195, %v3189
    %v5578 = vpack.c.b16 %v3196, %v3190
    %v5579 = vpack.c.b16 %v3197, %v3191
    %v5580 = vpack.c.b16 %v3198, %v3192
    %v5581 = vpack.c.b16 %v3205, %v3199
    %v5582 = vpack.c.b16 %v3206, %v3200
    %v5583 = vpack.c.b16 %v3207, %v3201
    %v5584 = vpack.c.b16 %v3208, %v3202
    %v5585 = vpack.c.b16 %v3209, %v3203
    %v5586 = vpack.c.b16 %v3210, %v3204
    %v5587 = vpack.c.b16 %v3217, %v3211
    %v5588 = vpack.c.b16 %v3218, %v3212
    %v5589 = vpack.c.b16 %v3219, %v3213
    %v5590 = vpack.c.b16 %v3220, %v3214
    %v5591 = vpack.c.b16 %v3221, %v3215
    %v5592 = vpack.c.b16 %v3222, %v3216
    %v5593 = vpack.c.b16 %v3229, %v3223
    %v5594 = vpack.c.b16 %v3230, %v3224
    %v5595 = vpack.c.b16 %v3231, %v3225
    %v5596 = vpack.c.b16 %v3232, %v3226
    %v5597 = vpack.c.b16 %v3233, %v3227
    %v5598 = vpack.c.b16 %v3234, %v3228
    %v5599 = vpack.c.b16 %v3241, %v3235
    %v5600 = vpack.c.b16 %v3242, %v3236
    %v5601 = vpack.c.b16 %v3243, %v3237
    %v5602 = vpack.c.b16 %v3244, %v3238
    %v5603 = vpack.c.b16 %v3245, %v3239
    %v5604 = vpack.c.b16 %v3246, %v3240
    %v5605 = vpack.c.b16 %v3253, %v3247
    %v5606 = vpack.c.b16 %v3254, %v3248
    %v5607 = vpack.c.b16 %v3255, %v3249
    %v5608 = vpack.c.b16 %v3256, %v3250
    %v5609 = vpack.c.b16 %v3257, %v3251
    %v5610 = vpack.c.b16 %v3258, %v3252
    %v5611 = vpack.c.b16 %v3265, %v3259
    %v5612 = vpack.c.b16 %v3266, %v3260
    %v5613 = vpack.c.b16 %v3267, %v3261
    %v5614 = vpack.c.b16 %v3268, %v3262
    %v5615 = vpack.c.b16 %v3269, %v3263
    %v5616 = vpack.c.b16 %v3270, %v3264
    %v5617 = vpack.c.b16 %v3277, %v3271
    %v5618 = vpack.c.b16 %v3278, %v3272
    %v5619 = vpack.c.b16 %v3279, %v3273
    %v5620 = vpack.c.b16 %v3280, %v3274
    %v5621 = vpack.c.b16 %v3281, %v3275
    %v5622 = vpack.c.b16 %v3282, %v3276
    %v5623 = vpack.c.b16 %v3289, %v3283
    %v5624 = vpack.c.b16 %v3290, %v3284
    %v5625 = vpack.c.b16 %v3291, %v3285
    %v5626 = vpack.c.b16 %v3292, %v3286
    %v5627 = vpack.c.b16 %v3293, %v3287
    %v5628 = vpack.c.b16 %v3294, %v3288
    %v5629 = vpack.c.b16 %v3301, %v3295
    %v5630 = vpack.c.b16 %v3302, %v3296
    %v5631 = vpack.c.b16 %v3303, %v3297
    %v5632 = vpack.c.b16 %v3304, %v3298
    %v5633 = vpack.c.b16 %v3305, %v3299
    %v5634 = vpack.c.b16 %v3306, %v3300
    %v5635 = vpack.c.b16 %v3313, %v3307
    %v5636 = vpack.c.b16 %v3314, %v3308
    %v5637 = vpack.c.b16 %v3315, %v3309
    %v5638 = vpack.c.b16 %v3316, %v3310
    %v5639 = vpack.c.b16 %v3317, %v3311
    %v5640 = vpack.c.b16 %v3318, %v3312
    %v5641 = vpack.c.b16 %v3325, %v3319
    %v5642 = vpack.c.b16 %v3326, %v3320
    %v5643 = vpack.c.b16 %v3327, %v3321
    %v5644 = vpack.c.b16 %v3328, %v3322
    %v5645 = vpack.c.b16 %v3329, %v3323
    %v5646 = vpack.c.b16 %v3330, %v3324
    %v5647 = vpack.c.b16 %v3337, %v3331
    %v5648 = vpack.c.b16 %v3338, %v3332
    %v5649 = vpack.c.b16 %v3339, %v3333
    %v5650 = vpack.c.b16 %v3340, %v3334
    %v5651 = vpack.c.b16 %v3341, %v3335
    %v5652 = vpack.c.b16 %v3342, %v3336
    %v5653 = vpack.c.b16 %v3349, %v3343
    %v5654 = vpack.c.b16 %v3350, %v3344
    %v5655 = vpack.c.b16 %v3351, %v3345
    %v5656 = vpack.c.b16 %v3352, %v3346
    %v5657 = vpack.c.b16 %v3353, %v3347
    %v5658 = vpack.c.b16 %v3354, %v3348
    %v5659 = vpack.c.b16 %v3361, %v3355
    %v5660 = vpack.c.b16 %v3362, %v3356
    %v5661 = vpack.c.b16 %v3363, %v3357
    %v5662 = vpack.c.b16 %v3364, %v3358
    %v5663 = vpack.c.b16 %v3365, %v3359
    %v5664 = vpack.c.b16 %v3366, %v3360
    %v5665 = vpack.c.b16 %v3373, %v3367
    %v5666 = vpack.c.b16 %v3374, %v3368
    %v5667 = vpack.c.b16 %v3375, %v3369
    %v5668 = vpack.c.b16 %v3376, %v3370
    %v5669 = vpack.c.b16 %v3377, %v3371
    %v5670 = vpack.c.b16 %v3378, %v3372
    %v5671 = vpack.c.b16 %v3385, %v3379
    %v5672 = vpack.c.b16 %v3386, %v3380
    %v5673 = vpack.c.b16 %v3387, %v3381
    %v5674 = vpack.c.b16 %v3388, %v3382
    %v5675 = vpack.c.b16 %v3389, %v3383
    %v5676 = vpack.c.b16 %v3390, %v3384
    %v5677 = vpack.c.b16 %v3397, %v3391
    %v5678 = vpack.c.b16 %v3398, %v3392
    %v5679 = vpack.c.b16 %v3399, %v3393
    %v5680 = vpack.c.b16 %v3400, %v3394
    %v5681 = vpack.c.b16 %v3401, %v3395
    %v5682 = vpack.c.b16 %v3402, %v3396
    %v5683 = vpack.c.b16 %v3409, %v3403
    %v5684 = vpack.c.b16 %v3410, %v3404
    %v5685 = vpack.c.b16 %v3411, %v3405
    %v5686 = vpack.c.b16 %v3412, %v3406
    %v5687 = vpack.c.b16 %v3413, %v3407
    %v5688 = vpack.c.b16 %v3414, %v3408
    %v5689 = vpack.c.b16 %v3421, %v3415
    %v5690 = vpack.c.b16 %v3422, %v3416
    %v5691 = vpack.c.b16 %v3423, %v3417
    %v5692 = vpack.c.b16 %v3424, %v3418
    %v5693 = vpack.c.b16 %v3425, %v3419
    %v5694 = vpack.c.b16 %v3426, %v3420
    %v5695 = vpack.c.b16 %v3433, %v3427
    %v5696 = vpack.c.b16 %v3434, %v3428
    %v5697 = vpack.c.b16 %v3435, %v3429
    %v5698 = vpack.c.b16 %v3436, %v3430
    %v5699 = vpack.c.b16 %v3437, %v3431
    %v5700 = vpack.c.b16 %v3438, %v3432
    %v5701 = vpack.c.b16 %v3445, %v3439
    %v5702 = vpack.c.b16 %v3446, %v3440
    %v5703 = vpack.c.b16 %v3447, %v3441
    %v5704 = vpack.c.b16 %v3448, %v3442
    %v5705 = vpack.c.b16 %v3449, %v3443
    %v5706 = vpack.c.b16 %v3450, %v3444
    %v5707 = vpack.c.b16 %v3457, %v3451
    %v5708 = vpack.c.b16 %v3458, %v3452
    %v5709 = vpack.c.b16 %v3459, %v3453
    %v5710 = vpack.c.b16 %v3460, %v3454
    %v5711 = vpack.c.b16 %v3461, %v3455
    %v5712 = vpack.c.b16 %v3462, %v3456
    %v5713 = vpack.c.b16 %v3469, %v3463
    %v5714 = vpack.c.b16 %v3470, %v3464
    %v5715 = vpack.c.b16 %v3471, %v3465
    %v5716 = vpack.c.b16 %v3472, %v3466
    %v5717 = vpack.c.b16 %v3473, %v3467
    %v5718 = vpack.c.b16 %v3474, %v3468
    %v5719 = vpack.c.b16 %v3481, %v3475
    %v5720 = vpack.c.b16 %v3482, %v3476
    %v5721 = vpack.c.b16 %v3483, %v3477
    %v5722 = vpack.c.b16 %v3484, %v3478
    %v5723 = vpack.c.b16 %v3485, %v3479
    %v5724 = vpack.c.b16 %v3486, %v3480
    %v5725 = vpack.c.b16 %v3493, %v3487
    %v5726 = vpack.c.b16 %v3494, %v3488
    %v5727 = vpack.c.b16 %v3495, %v3489
    %v5728 = vpack.c.b16 %v3496, %v3490
    %v5729 = vpack.c.b16 %v3497, %v3491
    %v5730 = vpack.c.b16 %v3498, %v3492
    %v5731 = vpack.c.b16 %v3505, %v3499
    %v5732 = vpack.c.b16 %v3506, %v3500
    %v5733 = vpack.c.b16 %v3507, %v3501
    %v5734 = vpack.c.b16 %v3508, %v3502
    %v5735 = vpack.c.b16 %v3509, %v3503
    %v5736 = vpack.c.b16 %v3510, %v3504
    %v5737 = vpack.c.b16 %v3517, %v3511
    %v5738 = vpack.c.b16 %v3518, %v3512
    %v5739 = vpack.c.b16 %v3519, %v3513
    %v5740 = vpack.c.b16 %v3520, %v3514
    %v5741 = vpack.c.b16 %v3521, %v3515
    %v5742 = vpack.c.b16 %v3522, %v3516
    %v5743 = vpack.c.b16 %v3529, %v3523
    %v5744 = vpack.c.b16 %v3530, %v3524
    %v5745 = vpack.c.b16 %v3531, %v3525
    %v5746 = vpack.c.b16 %v3532, %v3526
    %v5747 = vpack.c.b16 %v3533, %v3527
    %v5748 = vpack.c.b16 %v3534, %v3528
    %v5749 = vpack.c.b16 %v3541, %v3535
    %v5750 = vpack.c.b16 %v3542, %v3536
    %v5751 = vpack.c.b16 %v3543, %v3537
    %v5752 = vpack.c.b16 %v3544, %v3538
    %v5753 = vpack.c.b16 %v3545, %v3539
    %v5754 = vpack.c.b16 %v3546, %v3540
    %v5755 = vpack.c.b16 %v3553, %v3547
    %v5756 = vpack.c.b16 %v3554, %v3548
    %v5757 = vpack.c.b16 %v3555, %v3549
    %v5758 = vpack.c.b16 %v3556, %v3550
    %v5759 = vpack.c.b16 %v3557, %v3551
    %v5760 = vpack.c.b16 %v3558, %v3552
    %v5761 = vpack.c.b16 %v3565, %v3559
    %v5762 = vpack.c.b16 %v3566, %v3560
    %v5763 = vpack.c.b16 %v3567, %v3561
    %v5764 = vpack.c.b16 %v3568, %v3562
    %v5765 = vpack.c.b16 %v3569, %v3563
    %v5766 = vpack.c.b16 %v3570, %v3564
    %v5767 = vpack.c.b16 %v3577, %v3571
    %v5768 = vpack.c.b16 %v3578, %v3572
    %v5769 = vpack.c.b16 %v3579, %v3573
    %v5770 = vpack.c.b16 %v3580, %v3574
    %v5771 = vpack.c.b16 %v3581, %v3575
    %v5772 = vpack.c.b16 %v3582, %v3576
    %v5773 = vpack.c.b16 %v3589, %v3583
    %v5774 = vpack.c.b16 %v3590, %v3584
    %v5775 = vpack.c.b16 %v3591, %v3585
    %v5776 = vpack.c.b16 %v3592, %v3586
    %v5777 = vpack.c.b16 %v3593, %v3587
    %v5778 = vpack.c.b16 %v3594, %v3588
    %v5779 = vpack.c.b16 %v3601, %v3595
    %v5780 = vpack.c.b16 %v3602, %v3596
    %v5781 = vpack.c.b16 %v3603, %v3597
    %v5782 = vpack.c.b16 %v3604, %v3598
    %v5783 = vpack.c.b16 %v3605, %v3599
    %v5784 = vpack.c.b16 %v3606, %v3600
    %v5785 = vpack.c.b16 %v3613, %v3607
    %v5786 = vpack.c.b16 %v3614, %v3608
    %v5787 = vpack.c.b16 %v3615, %v3609
    %v5788 = vpack.c.b16 %v3616, %v3610
    %v5789 = vpack.c.b16 %v3617, %v3611
    %v5790 = vpack.c.b16 %v3618, %v3612
    %v5791 = vpack.c.b16 %v3625, %v3619
    %v5792 = vpack.c.b16 %v3626, %v3620
    %v5793 = vpack.c.b16 %v3627, %v3621
    %v5794 = vpack.c.b16 %v3628, %v3622
    %v5795 = vpack.c.b16 %v3629, %v3623
    %v5796 = vpack.c.b16 %v3630, %v3624
    %v5797 = vpack.c.b16 %v3637, %v3631
    %v5798 = vpack.c.b16 %v3638, %v3632
    %v5799 = vpack.c.b16 %v3639, %v3633
    %v5800 = vpack.c.b16 %v3640, %v3634
    %v5801 = vpack.c.b16 %v3641, %v3635
    %v5802 = vpack.c.b16 %v3642, %v3636
    %v5803 = vpack.c.b16 %v3649, %v3643
    %v5804 = vpack.c.b16 %v3650, %v3644
    %v5805 = vpack.c.b16 %v3651, %v3645
    %v5806 = vpack.c.b16 %v3652, %v3646
    %v5807 = vpack.c.b16 %v3653, %v3647
    %v5808 = vpack.c.b16 %v3654, %v3648
    %v5809 = vpack.c.b16 %v3661, %v3655
    %v5810 = vpack.c.b16 %v3662, %v3656
    %v5811 = vpack.c.b16 %v3663, %v3657
    %v5812 = vpack.c.b16 %v3664, %v3658
    %v5813 = vpack.c.b16 %v3665, %v3659
    %v5814 = vpack.c.b16 %v3666, %v3660
    %v5815 = vpack.c.b16 %v3673, %v3667
    %v5816 = vpack.c.b16 %v3674, %v3668
    %v5817 = vpack.c.b16 %v3675, %v3669
    %v5818 = vpack.c.b16 %v3676, %v3670
    %v5819 = vpack.c.b16 %v3677, %v3671
    %v5820 = vpack.c.b16 %v3678, %v3672
    %v5821 = vpack.c.b16 %v3685, %v3679
    %v5822 = vpack.c.b16 %v3686, %v3680
    %v5823 = vpack.c.b16 %v3687, %v3681
    %v5824 = vpack.c.b16 %v3688, %v3682
    %v5825 = vpack.c.b16 %v3689, %v3683
    %v5826 = vpack.c.b16 %v3690, %v3684
    %v5827 = vpack.c.b16 %v3697, %v3691
    %v5828 = vpack.c.b16 %v3698, %v3692
    %v5829 = vpack.c.b16 %v3699, %v3693
    %v5830 = vpack.c.b16 %v3700, %v3694
    %v5831 = vpack.c.b16 %v3701, %v3695
    %v5832 = vpack.c.b16 %v3702, %v3696
    %v5833 = vpack.c.b16 %v3709, %v3703
    %v5834 = vpack.c.b16 %v3710, %v3704
    %v5835 = vpack.c.b16 %v3711, %v3705
    %v5836 = vpack.c.b16 %v3712, %v3706
    %v5837 = vpack.c.b16 %v3713, %v3707
    %v5838 = vpack.c.b16 %v3714, %v3708
    %v5839 = vpack.c.b16 %v3721, %v3715
    %v5840 = vpack.c.b16 %v3722, %v3716
    %v5841 = vpack.c.b16 %v3723, %v3717
    %v5842 = vpack.c.b16 %v3724, %v3718
    %v5843 = vpack.c.b16 %v3725, %v3719
    %v5844 = vpack.c.b16 %v3726, %v3720
    %v5845 = vpack.c.b16 %v3733, %v3727
    %v5846 = vpack.c.b16 %v3734, %v3728
    %v5847 = vpack.c.b16 %v3735, %v3729
    %v5848 = vpack.c.b16 %v3736, %v3730
    %v5849 = vpack.c.b16 %v3737, %v3731
    %v5850 = vpack.c.b16 %v3738, %v3732
    %v5851 = vpack.c.b16 %v3745, %v3739
    %v5852 = vpack.c.b16 %v3746, %v3740
    %v5853 = vpack.c.b16 %v3747, %v3741
    %v5854 = vpack.c.b16 %v3748, %v3742
    %v5855 = vpack.c.b16 %v3749, %v3743
    %v5856 = vpack.c.b16 %v3750, %v3744
    %v5857 = vpack.c.b16 %v3757, %v3751
    %v5858 = vpack.c.b16 %v3758, %v3752
    %v5859 = vpack.c.b16 %v3759, %v3753
    %v5860 = vpack.c.b16 %v3760, %v3754
    %v5861 = vpack.c.b16 %v3761, %v3755
    %v5862 = vpack.c.b16 %v3762, %v3756
    %v5863 = vpack.c.b16 %v3769, %v3763
    %v5864 = vpack.c.b16 %v3770, %v3764
    %v5865 = vpack.c.b16 %v3771, %v3765
    %v5866 = vpack.c.b16 %v3772, %v3766
    %v5867 = vpack.c.b16 %v3773, %v3767
    %v5868 = vpack.c.b16 %v3774, %v3768
    %v5869 = vpack.c.b16 %v3781, %v3775
    %v5870 = vpack.c.b16 %v3782, %v3776
    %v5871 = vpack.c.b16 %v3783, %v3777
    %v5872 = vpack.c.b16 %v3784, %v3778
    %v5873 = vpack.c.b16 %v3785, %v3779
    %v5874 = vpack.c.b16 %v3786, %v3780
    %v5875 = vpack.c.b16 %v3793, %v3787
    %v5876 = vpack.c.b16 %v3794, %v3788
    %v5877 = vpack.c.b16 %v3795, %v3789
    %v5878 = vpack.c.b16 %v3796, %v3790
    %v5879 = vpack.c.b16 %v3797, %v3791
    %v5880 = vpack.c.b16 %v3798, %v3792
    %v5881 = vpack.c.b16 %v3805, %v3799
    %v5882 = vpack.c.b16 %v3806, %v3800
    %v5883 = vpack.c.b16 %v3807, %v3801
    %v5884 = vpack.c.b16 %v3808, %v3802
    %v5885 = vpack.c.b16 %v3809, %v3803
    %v5886 = vpack.c.b16 %v3810, %v3804
    %v5887 = vpack.c.b16 %v3817, %v3811
    %v5888 = vpack.c.b16 %v3818, %v3812
    %v5889 = vpack.c.b16 %v3819, %v3813
    %v5890 = vpack.c.b16 %v3820, %v3814
    %v5891 = vpack.c.b16 %v3821, %v3815
    %v5892 = vpack.c.b16 %v3822, %v3816
    %v5893 = vpack.c.b16 %v3829, %v3823
    %v5894 = vpack.c.b16 %v3830, %v3824
    %v5895 = vpack.c.b16 %v3831, %v3825
    %v5896 = vpack.c.b16 %v3832, %v3826
    %v5897 = vpack.c.b16 %v3833, %v3827
    %v5898 = vpack.c.b16 %v3834, %v3828
    %v5899 = vpack.c.b16 %v3841, %v3835
    %v5900 = vpack.c.b16 %v3842, %v3836
    %v5901 = vpack.c.b16 %v3843, %v3837
    %v5902 = vpack.c.b16 %v3844, %v3838
    %v5903 = vpack.c.b16 %v3845, %v3839
    %v5904 = vpack.c.b16 %v3846, %v3840
    %v5905 = vpack.c.b16 %v3853, %v3847
    %v5906 = vpack.c.b16 %v3854, %v3848
    %v5907 = vpack.c.b16 %v3855, %v3849
    %v5908 = vpack.c.b16 %v3856, %v3850
    %v5909 = vpack.c.b16 %v3857, %v3851
    %v5910 = vpack.c.b16 %v3858, %v3852
    %v5911 = vpack.c.b16 %v3865, %v3859
    %v5912 = vpack.c.b16 %v3866, %v3860
    %v5913 = vpack.c.b16 %v3867, %v3861
    %v5914 = vpack.c.b16 %v3868, %v3862
    %v5915 = vpack.c.b16 %v3869, %v3863
    %v5916 = vpack.c.b16 %v3870, %v3864
    %v5917 = vpack.c.b16 %v3877, %v3871
    %v5918 = vpack.c.b16 %v3878, %v3872
    %v5919 = vpack.c.b16 %v3879, %v3873
    %v5920 = vpack.c.b16 %v3880, %v3874
    %v5921 = vpack.c.b16 %v3881, %v3875
    %v5922 = vpack.c.b16 %v3882, %v3876
    %v5923 = vpack.c.b16 %v3889, %v3883
    %v5924 = vpack.c.b16 %v3890, %v3884
    %v5925 = vpack.c.b16 %v3891, %v3885
    %v5926 = vpack.c.b16 %v3892, %v3886
    %v5927 = vpack.c.b16 %v3893, %v3887
    %v5928 = vpack.c.b16 %v3894, %v3888
    %v5929 = vpack.c.b16 %v3901, %v3895
    %v5930 = vpack.c.b16 %v3902, %v3896
    %v5931 = vpack.c.b16 %v3903, %v3897
    %v5932 = vpack.c.b16 %v3904, %v3898
    %v5933 = vpack.c.b16 %v3905, %v3899
    %v5934 = vpack.c.b16 %v3906, %v3900
    %v5935 = vpack.c.b16 %v3913, %v3907
    %v5936 = vpack.c.b16 %v3914, %v3908
    %v5937 = vpack.c.b16 %v3915, %v3909
    %v5938 = vpack.c.b16 %v3916, %v3910
    %v5939 = vpack.c.b16 %v3917, %v3911
    %v5940 = vpack.c.b16 %v3918, %v3912
    %v5941 = vpack.c.b16 %v3925, %v3919
    %v5942 = vpack.c.b16 %v3926, %v3920
    %v5943 = vpack.c.b16 %v3927, %v3921
    %v5944 = vpack.c.b16 %v3928, %v3922
    %v5945 = vpack.c.b16 %v3929, %v3923
    %v5946 = vpack.c.b16 %v3930, %v3924
    %v5947 = vpack.c.b16 %v3937, %v3931
    %v5948 = vpack.c.b16 %v3938, %v3932
    %v5949 = vpack.c.b16 %v3939, %v3933
    %v5950 = vpack.c.b16 %v3940, %v3934
    %v5951 = vpack.c.b16 %v3941, %v3935
    %v5952 = vpack.c.b16 %v3942, %v3936
    %v5953 = vpack.c.b16 %v3949, %v3943
    %v5954 = vpack.c.b16 %v3950, %v3944
    %v5955 = vpack.c.b16 %v3951, %v3945
    %v5956 = vpack.c.b16 %v3952, %v3946
    %v5957 = vpack.c.b16 %v3953, %v3947
    %v5958 = vpack.c.b16 %v3954, %v3948
    %v5959 = vpack.c.b16 %v3961, %v3955
    %v5960 = vpack.c.b16 %v3962, %v3956
    %v5961 = vpack.c.b16 %v3963, %v3957
    %v5962 = vpack.c.b16 %v3964, %v3958
    %v5963 = vpack.c.b16 %v3965, %v3959
    %v5964 = vpack.c.b16 %v3966, %v3960
    %v5965 = vpack.c.b16 %v3973, %v3967
    %v5966 = vpack.c.b16 %v3974, %v3968
    %v5967 = vpack.c.b16 %v3975, %v3969
    %v5968 = vpack.c.b16 %v3976, %v3970
    %v5969 = vpack.c.b16 %v3977, %v3971
    %v5970 = vpack.c.b16 %v3978, %v3972
    %v5971 = vpack.c.b16 %v3985, %v3979
    %v5972 = vpack.c.b16 %v3986, %v3980
    %v5973 = vpack.c.b16 %v3987, %v3981
    %v5974 = vpack.c.b16 %v3988, %v3982
    %v5975 = vpack.c.b16 %v3989, %v3983
    %v5976 = vpack.c.b16 %v3990, %v3984
    %v5977 = vpack.c.b16 %v3997, %v3991
    %v5978 = vpack.c.b16 %v3998, %v3992
    %v5979 = vpack.c.b16 %v3999, %v3993
    %v5980 = vpack.c.b16 %v4000, %v3994
    %v5981 = vpack.c.b16 %v4001, %v3995
    %v5982 = vpack.c.b16 %v4002, %v3996
    %v5983 = vpack.c.b16 %v4009, %v4003
    %v5984 = vpack.c.b16 %v4010, %v4004
    %v5985 = vpack.c.b16 %v4011, %v4005
    %v5986 = vpack.c.b16 %v4012, %v4006
    %v5987 = vpack.c.b16 %v4013, %v4007
    %v5988 = vpack.c.b16 %v4014, %v4008
    %v5989 = vpack.c.b16 %v4021, %v4015
    %v5990 = vpack.c.b16 %v4022, %v4016
    %v5991 = vpack.c.b16 %v4023, %v4017
    %v5992 = vpack.c.b16 %v4024, %v4018
    %v5993 = vpack.c.b16 %v4025, %v4019
    %v5994 = vpack.c.b16 %v4026, %v4020
    %v5995 = vpack.c.b16 %v4033, %v4027
    %v5996 = vpack.c.b16 %v4034, %v4028
    %v5997 = vpack.c.b16 %v4035, %v4029
    %v5998 = vpack.c.b16 %v4036, %v4030
    %v5999 = vpack.c.b16 %v4037, %v4031
    %v6000 = vpack.c.b16 %v4038, %v4032
    %v6001 = vpack.c.b16 %v4045, %v4039
    %v6002 = vpack.c.b16 %v4046, %v4040
    %v6003 = vpack.c.b16 %v4047, %v4041
    %v6004 = vpack.c.b16 %v4048, %v4042
    %v6005 = vpack.c.b16 %v4049, %v4043
    %v6006 = vpack.c.b16 %v4050, %v4044
    %v6007 = vpack.c.b16 %v4057, %v4051
    %v6008 = vpack.c.b16 %v4058, %v4052
    %v6009 = vpack.c.b16 %v4059, %v4053
    %v6010 = vpack.c.b16 %v4060, %v4054
    %v6011 = vpack.c.b16 %v4061, %v4055
    %v6012 = vpack.c.b16 %v4062, %v4056
    %v6013 = vpack.c.b16 %v4069, %v4063
    %v6014 = vpack.c.b16 %v4070, %v4064
    %v6015 = vpack.c.b16 %v4071, %v4065
    %v6016 = vpack.c.b16 %v4072, %v4066
    %v6017 = vpack.c.b16 %v4073, %v4067
    %v6018 = vpack.c.b16 %v4074, %v4068
    %v6019 = vpack.c.b16 %v4081, %v4075
    %v6020 = vpack.c.b16 %v4082, %v4076
    %v6021 = vpack.c.b16 %v4083, %v4077
    %v6022 = vpack.c.b16 %v4084, %v4078
    %v6023 = vpack.c.b16 %v4085, %v4079
    %v6024 = vpack.c.b16 %v4086, %v4080
    %v6025 = vpack.c.b16 %v4093, %v4087
    %v6026 = vpack.c.b16 %v4094, %v4088
    %v6027 = vpack.c.b16 %v4095, %v4089
    %v6028 = vpack.c.b16 %v4096, %v4090
    %v6029 = vpack.c.b16 %v4097, %v4091
    %v6030 = vpack.c.b16 %v4098, %v4092
    %v6031 = vpack.c.b16 %v4105, %v4099
    %v6032 = vpack.c.b16 %v4106, %v4100
    %v6033 = vpack.c.b16 %v4107, %v4101
    %v6034 = vpack.c.b16 %v4108, %v4102
    %v6035 = vpack.c.b16 %v4109, %v4103
    %v6036 = vpack.c.b16 %v4110, %v4104
    %v6037 = vpack.c.b16 %v4117, %v4111
    %v6038 = vpack.c.b16 %v4118, %v4112
    %v6039 = vpack.c.b16 %v4119, %v4113
    %v6040 = vpack.c.b16 %v4120, %v4114
    %v6041 = vpack.c.b16 %v4121, %v4115
    %v6042 = vpack.c.b16 %v4122, %v4116
    %v6043 = vpack.c.b16 %v4129, %v4123
    %v6044 = vpack.c.b16 %v4130, %v4124
    %v6045 = vpack.c.b16 %v4131, %v4125
    %v6046 = vpack.c.b16 %v4132, %v4126
    %v6047 = vpack.c.b16 %v4133, %v4127
    %v6048 = vpack.c.b16 %v4134, %v4128
    %v6049 = vpack.c.b16 %v4141, %v4135
    %v6050 = vpack.c.b16 %v4142, %v4136
    %v6051 = vpack.c.b16 %v4143, %v4137
    %v6052 = vpack.c.b16 %v4144, %v4138
    %v6053 = vpack.c.b16 %v4145, %v4139
    %v6054 = vpack.c.b16 %v4146, %v4140
    %v6055 = vpack.c.b16 %v4153, %v4147
    %v6056 = vpack.c.b16 %v4154, %v4148
    %v6057 = vpack.c.b16 %v4155, %v4149
    %v6058 = vpack.c.b16 %v4156, %v4150
    %v6059 = vpack.c.b16 %v4157, %v4151
    %v6060 = vpack.c.b16 %v4158, %v4152
    %v6061 = vpack.c.b16 %v4165, %v4159
    %v6062 = vpack.c.b16 %v4166, %v4160
    %v6063 = vpack.c.b16 %v4167, %v4161
    %v6064 = vpack.c.b16 %v4168, %v4162
    %v6065 = vpack.c.b16 %v4169, %v4163
    %v6066 = vpack.c.b16 %v4170, %v4164
    %v6067 = vpack.c.b16 %v4177, %v4171
    %v6068 = vpack.c.b16 %v4178, %v4172
    %v6069 = vpack.c.b16 %v4179, %v4173
    %v6070 = vpack.c.b16 %v4180, %v4174
    %v6071 = vpack.c.b16 %v4181, %v4175
    %v6072 = vpack.c.b16 %v4182, %v4176
    %v6073 = vpack.c.b16 %v4189, %v4183
    %v6074 = vpack.c.b16 %v4190, %v4184
    %v6075 = vpack.c.b16 %v4191, %v4185
    %v6076 = vpack.c.b16 %v4192, %v4186
    %v6077 = vpack.c.b16 %v4193, %v4187
    %v6078 = vpack.c.b16 %v4194, %v4188
    %v6079 = vpack.c.b16 %v4201, %v4195
    %v6080 = vpack.c.b16 %v4202, %v4196
    %v6081 = vpack.c.b16 %v4203, %v4197
    %v6082 = vpack.c.b16 %v4204, %v4198
    %v6083 = vpack.c.b16 %v4205, %v4199
    %v6084 = vpack.c.b16 %v4206, %v4200
    %v6085 = vpack.c.b16 %v4213, %v4207
    %v6086 = vpack.c.b16 %v4214, %v4208
    %v6087 = vpack.c.b16 %v4215, %v4209
    %v6088 = vpack.c.b16 %v4216, %v4210
    %v6089 = vpack.c.b16 %v4217, %v4211
    %v6090 = vpack.c.b16 %v4218, %v4212
    %v6091 = vpack.c.b16 %v4225, %v4219
    %v6092 = vpack.c.b16 %v4226, %v4220
    %v6093 = vpack.c.b16 %v4227, %v4221
    %v6094 = vpack.c.b16 %v4228, %v4222
    %v6095 = vpack.c.b16 %v4229, %v4223
    %v6096 = vpack.c.b16 %v4230, %v4224
    %v6097 = vpack.c.b16 %v4237, %v4231
    %v6098 = vpack.c.b16 %v4238, %v4232
    %v6099 = vpack.c.b16 %v4239, %v4233
    %v6100 = vpack.c.b16 %v4240, %v4234
    %v6101 = vpack.c.b16 %v4241, %v4235
    %v6102 = vpack.c.b16 %v4242, %v4236
    %v6103 = vpack.c.b16 %v4249, %v4243
    %v6104 = vpack.c.b16 %v4250, %v4244
    %v6105 = vpack.c.b16 %v4251, %v4245
    %v6106 = vpack.c.b16 %v4252, %v4246
    %v6107 = vpack.c.b16 %v4253, %v4247
    %v6108 = vpack.c.b16 %v4254, %v4248
    %v6109 = vpack.c.b16 %v4261, %v4255
    %v6110 = vpack.c.b16 %v4262, %v4256
    %v6111 = vpack.c.b16 %v4263, %v4257
    %v6112 = vpack.c.b16 %v4264, %v4258
    %v6113 = vpack.c.b16 %v4265, %v4259
    %v6114 = vpack.c.b16 %v4266, %v4260
    %v6115 = vpack.c.b16 %v4273, %v4267
    %v6116 = vpack.c.b16 %v4274, %v4268
    %v6117 = vpack.c.b16 %v4275, %v4269
    %v6118 = vpack.c.b16 %v4276, %v4270
    %v6119 = vpack.c.b16 %v4277, %v4271
    %v6120 = vpack.c.b16 %v4278, %v4272
    %v6121 = vpack.c.b16 %v4285, %v4279
    %v6122 = vpack.c.b16 %v4286, %v4280
    %v6123 = vpack.c.b16 %v4287, %v4281
    %v6124 = vpack.c.b16 %v4288, %v4282
    %v6125 = vpack.c.b16 %v4289, %v4283
    %v6126 = vpack.c.b16 %v4290, %v4284
    %v6127 = vpack.c.b16 %v4297, %v4291
    %v6128 = vpack.c.b16 %v4298, %v4292
    %v6129 = vpack.c.b16 %v4299, %v4293
    %v6130 = vpack.c.b16 %v4300, %v4294
    %v6131 = vpack.c.b16 %v4301, %v4295
    %v6132 = vpack.c.b16 %v4302, %v4296
    %v6133 = vpack.c.b16 %v4309, %v4303
    %v6134 = vpack.c.b16 %v4310, %v4304
    %v6135 = vpack.c.b16 %v4311, %v4305
    %v6136 = vpack.c.b16 %v4312, %v4306
    %v6137 = vpack.c.b16 %v4313, %v4307
    %v6138 = vpack.c.b16 %v4314, %v4308
    %v6139 = vpack.c.b16 %v4321, %v4315
    %v6140 = vpack.c.b16 %v4322, %v4316
    %v6141 = vpack.c.b16 %v4323, %v4317
    %v6142 = vpack.c.b16 %v4324, %v4318
    %v6143 = vpack.c.b16 %v4325, %v4319
    %v6144 = vpack.c.b16 %v4326, %v4320
    %v6145 = vpack.c.b16 %v4333, %v4327
    %v6146 = vpack.c.b16 %v4334, %v4328
    %v6147 = vpack.c.b16 %v4335, %v4329
    %v6148 = vpack.c.b16 %v4336, %v4330
    %v6149 = vpack.c.b16 %v4337, %v4331
    %v6150 = vpack.c.b16 %v4338, %v4332
    %v6151 = vpack.c.b16 %v4345, %v4339
    %v6152 = vpack.c.b16 %v4346, %v4340
    %v6153 = vpack.c.b16 %v4347, %v4341
    %v6154 = vpack.c.b16 %v4348, %v4342
    %v6155 = vpack.c.b16 %v4349, %v4343
    %v6156 = vpack.c.b16 %v4350, %v4344
    %v6157 = vpack.c.b16 %v4357, %v4351
    %v6158 = vpack.c.b16 %v4358, %v4352
    %v6159 = vpack.c.b16 %v4359, %v4353
    %v6160 = vpack.c.b16 %v4360, %v4354
    %v6161 = vpack.c.b16 %v4361, %v4355
    %v6162 = vpack.c.b16 %v4362, %v4356
    %v6163 = vpack.c.b16 %v4369, %v4363
    %v6164 = vpack.c.b16 %v4370, %v4364
    %v6165 = vpack.c.b16 %v4371, %v4365
    %v6166 = vpack.c.b16 %v4372, %v4366
    %v6167 = vpack.c.b16 %v4373, %v4367
    %v6168 = vpack.c.b16 %v4374, %v4368
    %v6169 = vpack.c.b16 %v4381, %v4375
    %v6170 = vpack.c.b16 %v4382, %v4376
    %v6171 = vpack.c.b16 %v4383, %v4377
    %v6172 = vpack.c.b16 %v4384, %v4378
    %v6173 = vpack.c.b16 %v4385, %v4379
    %v6174 = vpack.c.b16 %v4386, %v4380
    %v6175 = vpack.c.b16 %v4393, %v4387
    %v6176 = vpack.c.b16 %v4394, %v4388
    %v6177 = vpack.c.b16 %v4395, %v4389
    %v6178 = vpack.c.b16 %v4396, %v4390
    %v6179 = vpack.c.b16 %v4397, %v4391
    %v6180 = vpack.c.b16 %v4398, %v4392
    %v6181 = vpack.c.b16 %v4405, %v4399
    %v6182 = vpack.c.b16 %v4406, %v4400
    %v6183 = vpack.c.b16 %v4407, %v4401
    %v6184 = vpack.c.b16 %v4408, %v4402
    %v6185 = vpack.c.b16 %v4409, %v4403
    %v6186 = vpack.c.b16 %v4410, %v4404
    %v6187 = vpack.c.b16 %v4417, %v4411
    %v6188 = vpack.c.b16 %v4418, %v4412
    %v6189 = vpack.c.b16 %v4419, %v4413
    %v6190 = vpack.c.b16 %v4420, %v4414
    %v6191 = vpack.c.b16 %v4421, %v4415
    %v6192 = vpack.c.b16 %v4422, %v4416
    %v6193 = vpack.c.b16 %v4429, %v4423
    %v6194 = vpack.c.b16 %v4430, %v4424
    %v6195 = vpack.c.b16 %v4431, %v4425
    %v6196 = vpack.c.b16 %v4432, %v4426
    %v6197 = vpack.c.b16 %v4433, %v4427
    %v6198 = vpack.c.b16 %v4434, %v4428
    %v6199 = vpack.c.b16 %v4441, %v4435
    %v6200 = vpack.c.b16 %v4442, %v4436
    %v6201 = vpack.c.b16 %v4443, %v4437
    %v6202 = vpack.c.b16 %v4444, %v4438
    %v6203 = vpack.c.b16 %v4445, %v4439
    %v6204 = vpack.c.b16 %v4446, %v4440
    %v6205 = vpack.c.b16 %v4453, %v4447
    %v6206 = vpack.c.b16 %v4454, %v4448
    %v6207 = vpack.c.b16 %v4455, %v4449
    %v6208 = vpack.c.b16 %v4456, %v4450
    %v6209 = vpack.c.b16 %v4457, %v4451
    %v6210 = vpack.c.b16 %v4458, %v4452
    %v6211 = vpack.c.b16 %v4465, %v4459
    %v6212 = vpack.c.b16 %v4466, %v4460
    %v6213 = vpack.c.b16 %v4467, %v4461
    %v6214 = vpack.c.b16 %v4468, %v4462
    %v6215 = vpack.c.b16 %v4469, %v4463
    %v6216 = vpack.c.b16 %v4470, %v4464
    %v6217 = vpack.c.b16 %v4477, %v4471
    %v6218 = vpack.c.b16 %v4478, %v4472
    %v6219 = vpack.c.b16 %v4479, %v4473
    %v6220 = vpack.c.b16 %v4480, %v4474
    %v6221 = vpack.c.b16 %v4481, %v4475
    %v6222 = vpack.c.b16 %v4482, %v4476
    %v6223 = vpack.c.b16 %v4489, %v4483
    %v6224 = vpack.c.b16 %v4490, %v4484
    %v6225 = vpack.c.b16 %v4491, %v4485
    %v6226 = vpack.c.b16 %v4492, %v4486
    %v6227 = vpack.c.b16 %v4493, %v4487
    %v6228 = vpack.c.b16 %v4494, %v4488
    %v6229 = vpack.c.b16 %v4501, %v4495
    %v6230 = vpack.c.b16 %v4502, %v4496
    %v6231 = vpack.c.b16 %v4503, %v4497
    %v6232 = vpack.c.b16 %v4504, %v4498
    %v6233 = vpack.c.b16 %v4505, %v4499
    %v6234 = vpack.c.b16 %v4506, %v4500
    %v6235 = vpack.c.b16 %v4513, %v4507
    %v6236 = vpack.c.b16 %v4514, %v4508
    %v6237 = vpack.c.b16 %v4515, %v4509
    %v6238 = vpack.c.b16 %v4516, %v4510
    %v6239 = vpack.c.b16 %v4517, %v4511
    %v6240 = vpack.c.b16 %v4518, %v4512
    %v6241 = vpack.c.b16 %v4525, %v4519
    %v6242 = vpack.c.b16 %v4526, %v4520
    %v6243 = vpack.c.b16 %v4527, %v4521
    %v6244 = vpack.c.b16 %v4528, %v4522
    %v6245 = vpack.c.b16 %v4529, %v4523
    %v6246 = vpack.c.b16 %v4530, %v4524
    %v6247 = vpack.c.b16 %v4537, %v4531
    %v6248 = vpack.c.b16 %v4538, %v4532
    %v6249 = vpack.c.b16 %v4539, %v4533
    %v6250 = vpack.c.b16 %v4540, %v4534
    %v6251 = vpack.c.b16 %v4541, %v4535
    %v6252 = vpack.c.b16 %v4542, %v4536
    %v6253 = vpack.c.b16 %v4549, %v4543
    %v6254 = vpack.c.b16 %v4550, %v4544
    %v6255 = vpack.c.b16 %v4551, %v4545
    %v6256 = vpack.c.b16 %v4552, %v4546
    %v6257 = vpack.c.b16 %v4553, %v4547
    %v6258 = vpack.c.b16 %v4554, %v4548
    %v6259 = vpack.c.b16 %v4561, %v4555
    %v6260 = vpack.c.b16 %v4562, %v4556
    %v6261 = vpack.c.b16 %v4563, %v4557
    %v6262 = vpack.c.b16 %v4564, %v4558
    %v6263 = vpack.c.b16 %v4565, %v4559
    %v6264 = vpack.c.b16 %v4566, %v4560
    %v6265 = vpack.c.b16 %v4573, %v4567
    %v6266 = vpack.c.b16 %v4574, %v4568
    %v6267 = vpack.c.b16 %v4575, %v4569
    %v6268 = vpack.c.b16 %v4576, %v4570
    %v6269 = vpack.c.b16 %v4577, %v4571
    %v6270 = vpack.c.b16 %v4578, %v4572
    %v6271 = vpack.c.b16 %v4585, %v4579
    %v6272 = vpack.c.b16 %v4586, %v4580
    %v6273 = vpack.c.b16 %v4587, %v4581
    %v6274 = vpack.c.b16 %v4588, %v4582
    %v6275 = vpack.c.b16 %v4589, %v4583
    %v6276 = vpack.c.b16 %v4590, %v4584
    %v6277 = vpack.c.b16 %v4597, %v4591
    %v6278 = vpack.c.b16 %v4598, %v4592
    %v6279 = vpack.c.b16 %v4599, %v4593
    %v6280 = vpack.c.b16 %v4600, %v4594
    %v6281 = vpack.c.b16 %v4601, %v4595
    %v6282 = vpack.c.b16 %v4602, %v4596
    %v6283 = vpack.c.b16 %v4609, %v4603
    %v6284 = vpack.c.b16 %v4610, %v4604
    %v6285 = vpack.c.b16 %v4611, %v4605
    %v6286 = vpack.c.b16 %v4612, %v4606
    %v6287 = vpack.c.b16 %v4613, %v4607
    %v6288 = vpack.c.b16 %v4614, %v4608
    %v6289 = vpack.c.b16 %v4621, %v4615
    %v6290 = vpack.c.b16 %v4622, %v4616
    %v6291 = vpack.c.b16 %v4623, %v4617
    %v6292 = vpack.c.b16 %v4624, %v4618
    %v6293 = vpack.c.b16 %v4625, %v4619
    %v6294 = vpack.c.b16 %v4626, %v4620
    %v6295 = vpack.c.b16 %v4633, %v4627
    %v6296 = vpack.c.b16 %v4634, %v4628
    %v6297 = vpack.c.b16 %v4635, %v4629
    %v6298 = vpack.c.b16 %v4636, %v4630
    %v6299 = vpack.c.b16 %v4637, %v4631
    %v6300 = vpack.c.b16 %v4638, %v4632
    %v6301 = vpack.c.b16 %v4645, %v4639
    %v6302 = vpack.c.b16 %v4646, %v4640
    %v6303 = vpack.c.b16 %v4647, %v4641
    %v6304 = vpack.c.b16 %v4648, %v4642
    %v6305 = vpack.c.b16 %v4649, %v4643
    %v6306 = vpack.c.b16 %v4650, %v4644
    %v6307 = vpack.c.b16 %v4657, %v4651
    %v6308 = vpack.c.b16 %v4658, %v4652
    %v6309 = vpack.c.b16 %v4659, %v4653
    %v6310 = vpack.c.b16 %v4660, %v4654
    %v6311 = vpack.c.b16 %v4661, %v4655
    %v6312 = vpack.c.b16 %v4662, %v4656
    %v6313 = vpack.c.b16 %v4669, %v4663
    %v6314 = vpack.c.b16 %v4670, %v4664
    %v6315 = vpack.c.b16 %v4671, %v4665
    %v6316 = vpack.c.b16 %v4672, %v4666
    %v6317 = vpack.c.b16 %v4673, %v4667
    %v6318 = vpack.c.b16 %v4674, %v4668
    %v6319 = vpack.c.b16 %v4681, %v4675
    %v6320 = vpack.c.b16 %v4682, %v4676
    %v6321 = vpack.c.b16 %v4683, %v4677
    %v6322 = vpack.c.b16 %v4684, %v4678
    %v6323 = vpack.c.b16 %v4685, %v4679
    %v6324 = vpack.c.b16 %v4686, %v4680
    %v6325 = vpack.c.b16 %v4693, %v4687
    %v6326 = vpack.c.b16 %v4694, %v4688
    %v6327 = vpack.c.b16 %v4695, %v4689
    %v6328 = vpack.c.b16 %v4696, %v4690
    %v6329 = vpack.c.b16 %v4697, %v4691
    %v6330 = vpack.c.b16 %v4698, %v4692
    %v6331 = vpack.c.b16 %v4705, %v4699
    %v6332 = vpack.c.b16 %v4706, %v4700
    %v6333 = vpack.c.b16 %v4707, %v4701
    %v6334 = vpack.c.b16 %v4708, %v4702
    %v6335 = vpack.c.b16 %v4709, %v4703
    %v6336 = vpack.c.b16 %v4710, %v4704
    %v6337 = vpack.c.b16 %v4717, %v4711
    %v6338 = vpack.c.b16 %v4718, %v4712
    %v6339 = vpack.c.b16 %v4719, %v4713
    %v6340 = vpack.c.b16 %v4720, %v4714
    %v6341 = vpack.c.b16 %v4721, %v4715
    %v6342 = vpack.c.b16 %v4722, %v4716
    %v6343 = vpack.c.b16 %v4729, %v4723
    %v6344 = vpack.c.b16 %v4730, %v4724
    %v6345 = vpack.c.b16 %v4731, %v4725
    %v6346 = vpack.c.b16 %v4732, %v4726
    %v6347 = vpack.c.b16 %v4733, %v4727
    %v6348 = vpack.c.b16 %v4734, %v4728
    %v6349 = vpack.c.b16 %v4741, %v4735
    %v6350 = vpack.c.b16 %v4742, %v4736
    %v6351 = vpack.c.b16 %v4743, %v4737
    %v6352 = vpack.c.b16 %v4744, %v4738
    %v6353 = vpack.c.b16 %v4745, %v4739
    %v6354 = vpack.c.b16 %v4746, %v4740
    %v6355 = vpack.c.b16 %v4753, %v4747
    %v6356 = vpack.c.b16 %v4754, %v4748
    %v6357 = vpack.c.b16 %v4755, %v4749
    %v6358 = vpack.c.b16 %v4756, %v4750
    %v6359 = vpack.c.b16 %v4757, %v4751
    %v6360 = vpack.c.b16 %v4758, %v4752
    %v6361 = vpack.c.b16 %v4765, %v4759
    %v6362 = vpack.c.b16 %v4766, %v4760
    %v6363 = vpack.c.b16 %v4767, %v4761
    %v6364 = vpack.c.b16 %v4768, %v4762
    %v6365 = vpack.c.b16 %v4769, %v4763
    %v6366 = vpack.c.b16 %v4770, %v4764
    %v6367 = vpack.c.b16 %v4777, %v4771
    %v6368 = vpack.c.b16 %v4778, %v4772
    %v6369 = vpack.c.b16 %v4779, %v4773
    %v6370 = vpack.c.b16 %v4780, %v4774
    %v6371 = vpack.c.b16 %v4781, %v4775
    %v6372 = vpack.c.b16 %v4782, %v4776
    %v6373 = vpack.c.b16 %v4789, %v4783
    %v6374 = vpack.c.b16 %v4790, %v4784
    %v6375 = vpack.c.b16 %v4791, %v4785
    %v6376 = vpack.c.b16 %v4792, %v4786
    %v6377 = vpack.c.b16 %v4793, %v4787
    %v6378 = vpack.c.b16 %v4794, %v4788
    %v6379 = vpack.c.b16 %v4801, %v4795
    %v6380 = vpack.c.b16 %v4802, %v4796
    %v6381 = vpack.c.b16 %v4803, %v4797
    %v6382 = vpack.c.b16 %v4804, %v4798
    %v6383 = vpack.c.b16 %v4805, %v4799
    %v6384 = vpack.c.b16 %v4806, %v4800
    %v6385 = vpack.c.b16 %v4813, %v4807
    %v6386 = vpack.c.b16 %v4814, %v4808
    %v6387 = vpack.c.b16 %v4815, %v4809
    %v6388 = vpack.c.b16 %v4816, %v4810
    %v6389 = vpack.c.b16 %v4817, %v4811
    %v6390 = vpack.c.b16 %v4818, %v4812
    %v6391 = vpack.c.b16 %v4825, %v4819
    %v6392 = vpack.c.b16 %v4826, %v4820
    %v6393 = vpack.c.b16 %v4827, %v4821
    %v6394 = vpack.c.b16 %v4828, %v4822
    %v6395 = vpack.c.b16 %v4829, %v4823
    %v6396 = vpack.c.b16 %v4830, %v4824
    %v6397 = vpack.c.b16 %v4837, %v4831
    %v6398 = vpack.c.b16 %v4838, %v4832
    %v6399 = vpack.c.b16 %v4839, %v4833
    %v6400 = vpack.c.b16 %v4840, %v4834
    %v6401 = vpack.c.b16 %v4841, %v4835
    %v6402 = vpack.c.b16 %v4842, %v4836
    %v6403 = vpack.c.b16 %v4849, %v4843
    %v6404 = vpack.c.b16 %v4850, %v4844
    %v6405 = vpack.c.b16 %v4851, %v4845
    %v6406 = vpack.c.b16 %v4852, %v4846
    %v6407 = vpack.c.b16 %v4853, %v4847
    %v6408 = vpack.c.b16 %v4854, %v4848
    %v6409 = vpack.c.b16 %v4861, %v4855
    %v6410 = vpack.c.b16 %v4862, %v4856
    %v6411 = vpack.c.b16 %v4863, %v4857
    %v6412 = vpack.c.b16 %v4864, %v4858
    %v6413 = vpack.c.b16 %v4865, %v4859
    %v6414 = vpack.c.b16 %v4866, %v4860
    %v6415 = vpack.c.b16 %v4873, %v4867
    %v6416 = vpack.c.b16 %v4874, %v4868
    %v6417 = vpack.c.b16 %v4875, %v4869
    %v6418 = vpack.c.b16 %v4876, %v4870
    %v6419 = vpack.c.b16 %v4877, %v4871
    %v6420 = vpack.c.b16 %v4878, %v4872
    %v6421 = vpack.c.b16 %v4885, %v4879
    %v6422 = vpack.c.b16 %v4886, %v4880
    %v6423 = vpack.c.b16 %v4887, %v4881
    %v6424 = vpack.c.b16 %v4888, %v4882
    %v6425 = vpack.c.b16 %v4889, %v4883
    %v6426 = vpack.c.b16 %v4890, %v4884
    %v6427 = vpack.c.b16 %v4897, %v4891
    %v6428 = vpack.c.b16 %v4898, %v4892
    %v6429 = vpack.c.b16 %v4899, %v4893
    %v6430 = vpack.c.b16 %v4900, %v4894
    %v6431 = vpack.c.b16 %v4901, %v4895
    %v6432 = vpack.c.b16 %v4902, %v4896
    %v6433 = vpack.c.b16 %v4909, %v4903
    %v6434 = vpack.c.b16 %v4910, %v4904
    %v6435 = vpack.c.b16 %v4911, %v4905
    %v6436 = vpack.c.b16 %v4912, %v4906
    %v6437 = vpack.c.b16 %v4913, %v4907
    %v6438 = vpack.c.b16 %v4914, %v4908
    %v6439 = vpack.c.b16 %v4921, %v4915
    %v6440 = vpack.c.b16 %v4922, %v4916
    %v6441 = vpack.c.b16 %v4923, %v4917
    %v6442 = vpack.c.b16 %v4924, %v4918
    %v6443 = vpack.c.b16 %v4925, %v4919
    %v6444 = vpack.c.b16 %v4926, %v4920
    %v6445 = vpack.c.b16 %v4933, %v4927
    %v6446 = vpack.c.b16 %v4934, %v4928
    %v6447 = vpack.c.b16 %v4935, %v4929
    %v6448 = vpack.c.b16 %v4936, %v4930
    %v6449 = vpack.c.b16 %v4937, %v4931
    %v6450 = vpack.c.b16 %v4938, %v4932
    %v6451 = vpack.c.b16 %v4945, %v4939
    %v6452 = vpack.c.b16 %v4946, %v4940
    %v6453 = vpack.c.b16 %v4947, %v4941
    %v6454 = vpack.c.b16 %v4948, %v4942
    %v6455 = vpack.c.b16 %v4949, %v4943
    %v6456 = vpack.c.b16 %v4950, %v4944
    %v6457 = vpack.c.b16 %v4957, %v4951
    %v6458 = vpack.c.b16 %v4958, %v4952
    %v6459 = vpack.c.b16 %v4959, %v4953
    %v6460 = vpack.c.b16 %v4960, %v4954
    %v6461 = vpack.c.b16 %v4961, %v4955
    %v6462 = vpack.c.b16 %v4962, %v4956
    %v6463 = vpack.c.b16 %v4969, %v4963
    %v6464 = vpack.c.b16 %v4970, %v4964
    %v6465 = vpack.c.b16 %v4971, %v4965
    %v6466 = vpack.c.b16 %v4972, %v4966
    %v6467 = vpack.c.b16 %v4973, %v4967
    %v6468 = vpack.c.b16 %v4974, %v4968
    %v6469 = vpack.c.b16 %v4981, %v4975
    %v6470 = vpack.c.b16 %v4982, %v4976
    %v6471 = vpack.c.b16 %v4983, %v4977
    %v6472 = vpack.c.b16 %v4984, %v4978
    %v6473 = vpack.c.b16 %v4985, %v4979
    %v6474 = vpack.c.b16 %v4986, %v4980
    %v6475 = vpack.c.b16 %v4993, %v4987
    %v6476 = vpack.c.b16 %v4994, %v4988
    %v6477 = vpack.c.b16 %v4995, %v4989
    %v6478 = vpack.c.b16 %v4996, %v4990
    %v6479 = vpack.c.b16 %v4997, %v4991
    %v6480 = vpack.c.b16 %v4998, %v4992
    %v6481 = vpack.c.b16 %v5005, %v4999
    %v6482 = vpack.c.b16 %v5006, %v5000
    %v6483 = vpack.c.b16 %v5007, %v5001
    %v6484 = vpack.c.b16 %v5008, %v5002
    %v6485 = vpack.c.b16 %v5009, %v5003
    %v6486 = vpack.c.b16 %v5010, %v5004
    %v6487 = vpack.c.b16 %v5017, %v5011
    %v6488 = vpack.c.b16 %v5018, %v5012
    %v6489 = vpack.c.b16 %v5019, %v5013
    %v6490 = vpack.c.b16 %v5020, %v5014
    %v6491 = vpack.c.b16 %v5021, %v5015
    %v6492 = vpack.c.b16 %v5022, %v5016
    %v6493 = vpack.c.b16 %v5029, %v5023
    %v6494 = vpack.c.b16 %v5030, %v5024
    %v6495 = vpack.c.b16 %v5031, %v5025
    %v6496 = vpack.c.b16 %v5032, %v5026
    %v6497 = vpack.c.b16 %v5033, %v5027
    %v6498 = vpack.c.b16 %v5034, %v5028
    %v6499 = vpack.c.b16 %v5041, %v5035
    %v6500 = vpack.c.b16 %v5042, %v5036
    %v6501 = vpack.c.b16 %v5043, %v5037
    %v6502 = vpack.c.b16 %v5044, %v5038
    %v6503 = vpack.c.b16 %v5045, %v5039
    %v6504 = vpack.c.b16 %v5046, %v5040
    %v6505 = vpack.c.b16 %v5053, %v5047
    %v6506 = vpack.c.b16 %v5054, %v5048
    %v6507 = vpack.c.b16 %v5055, %v5049
    %v6508 = vpack.c.b16 %v5056, %v5050
    %v6509 = vpack.c.b16 %v5057, %v5051
    %v6510 = vpack.c.b16 %v5058, %v5052
    %v6511 = vpack.c.b16 %v5065, %v5059
    %v6512 = vpack.c.b16 %v5066, %v5060
    %v6513 = vpack.c.b16 %v5067, %v5061
    %v6514 = vpack.c.b16 %v5068, %v5062
    %v6515 = vpack.c.b16 %v5069, %v5063
    %v6516 = vpack.c.b16 %v5070, %v5064
    %v6517 = vpack.c.b16 %v5077, %v5071
    %v6518 = vpack.c.b16 %v5078, %v5072
    %v6519 = vpack.c.b16 %v5079, %v5073
    %v6520 = vpack.c.b16 %v5080, %v5074
    %v6521 = vpack.c.b16 %v5081, %v5075
    %v6522 = vpack.c.b16 %v5082, %v5076
    %v6523 = vpack.c.b16 %v5089, %v5083
    %v6524 = vpack.c.b16 %v5090, %v5084
    %v6525 = vpack.c.b16 %v5091, %v5085
    %v6526 = vpack.c.b16 %v5092, %v5086
    %v6527 = vpack.c.b16 %v5093, %v5087
    %v6528 = vpack.c.b16 %v5094, %v5088
    %v6529 = vpack.c.b16 %v5101, %v5095
    %v6530 = vpack.c.b16 %v5102, %v5096
    %v6531 = vpack.c.b16 %v5103, %v5097
    %v6532 = vpack.c.b16 %v5104, %v5098
    %v6533 = vpack.c.b16 %v5105, %v5099
    %v6534 = vpack.c.b16 %v5106, %v5100
    %v6535 = vpack.c.b16 %v5113, %v5107
    %v6536 = vpack.c.b16 %v5114, %v5108
    %v6537 = vpack.c.b16 %v5115, %v5109
    %v6538 = vpack.c.b16 %v5116, %v5110
    %v6539 = vpack.c.b16 %v5117, %v5111
    %v6540 = vpack.c.b16 %v5118, %v5112
    %v6541 = vpack.c.b16 %v5125, %v5119
    %v6542 = vpack.c.b16 %v5126, %v5120
    %v6543 = vpack.c.b16 %v5127, %v5121
    %v6544 = vpack.c.b16 %v5128, %v5122
    %v6545 = vpack.c.b16 %v5129, %v5123
    %v6546 = vpack.c.b16 %v5130, %v5124
    %v6547 = vpack.c.b16 %v5137, %v5131
    %v6548 = vpack.c.b16 %v5138, %v5132
    %v6549 = vpack.c.b16 %v5139, %v5133
    %v6550 = vpack.c.b16 %v5140, %v5134
    %v6551 = vpack.c.b16 %v5141, %v5135
    %v6552 = vpack.c.b16 %v5142, %v5136
    %v6553 = vpack.c.b16 %v5149, %v5143
    %v6554 = vpack.c.b16 %v5150, %v5144
    %v6555 = vpack.c.b16 %v5151, %v5145
    %v6556 = vpack.c.b16 %v5152, %v5146
    %v6557 = vpack.c.b16 %v5153, %v5147
    %v6558 = vpack.c.b16 %v5154, %v5148
    %v6559 = vpack.c.b16 %v5161, %v5155
    %v6560 = vpack.c.b16 %v5162, %v5156
    %v6561 = vpack.c.b16 %v5163, %v5157
    %v6562 = vpack.c.b16 %v5164, %v5158
    %v6563 = vpack.c.b16 %v5165, %v5159
    %v6564 = vpack.c.b16 %v5166, %v5160
    %v6565 = vpack.c.b16 %v5173, %v5167
    %v6566 = vpack.c.b16 %v5174, %v5168
    %v6567 = vpack.c.b16 %v5175, %v5169
    %v6568 = vpack.c.b16 %v5176, %v5170
    %v6569 = vpack.c.b16 %v5177, %v5171
    %v6570 = vpack.c.b16 %v5178, %v5172
    %v6571 = vpack.c.b16 %v5185, %v5179
    %v6572 = vpack.c.b16 %v5186, %v5180
    %v6573 = vpack.c.b16 %v5187, %v5181
    %v6574 = vpack.c.b16 %v5188, %v5182
    %v6575 = vpack.c.b16 %v5189, %v5183
    %v6576 = vpack.c.b16 %v5190, %v5184
    %v6577 = vpack.c.b16 %v5197, %v5191
    %v6578 = vpack.c.b16 %v5198, %v5192
    %v6579 = vpack.c.b16 %v5199, %v5193
    %v6580 = vpack.c.b16 %v5200, %v5194
    %v6581 = vpack.c.b16 %v5201, %v5195
    %v6582 = vpack.c.b16 %v5202, %v5196
    %v6583 = vpack.c.b16 %v5209, %v5203
    %v6584 = vpack.c.b16 %v5210, %v5204
    %v6585 = vpack.c.b16 %v5211, %v5205
    %v6586 = vpack.c.b16 %v5212, %v5206
    %v6587 = vpack.c.b16 %v5213, %v5207
    %v6588 = vpack.c.b16 %v5214, %v5208
    %v6589 = vpack.c.b16 %v5221, %v5215
    %v6590 = vpack.c.b16 %v5222, %v5216
    %v6591 = vpack.c.b16 %v5223, %v5217
    %v6592 = vpack.c.b16 %v5224, %v5218
    %v6593 = vpack.c.b16 %v5225, %v5219
    %v6594 = vpack.c.b16 %v5226, %v5220
    %v6595 = vpack.c.b16 %v5233, %v5227
    %v6596 = vpack.c.b16 %v5234, %v5228
    %v6597 = vpack.c.b16 %v5235, %v5229
    %v6598 = vpack.c.b16 %v5236, %v5230
    %v6599 = vpack.c.b16 %v5237, %v5231
    %v6600 = vpack.c.b16 %v5238, %v5232
    %v6601 = vpack.c.b16 %v5245, %v5239
    %v6602 = vpack.c.b16 %v5246, %v5240
    %v6603 = vpack.c.b16 %v5247, %v5241
    %v6604 = vpack.c.b16 %v5248, %v5242
    %v6605 = vpack.c.b16 %v5249, %v5243
    %v6606 = vpack.c.b16 %v5250, %v5244
    %v6607 = vpack.c.b16 %v5257, %v5251
    %v6608 = vpack.c.b16 %v5258, %v5252
    %v6609 = vpack.c.b16 %v5259, %v5253
    %v6610 = vpack.c.b16 %v5260, %v5254
    %v6611 = vpack.c.b16 %v5261, %v5255
    %v6612 = vpack.c.b16 %v5262, %v5256
    %v6613 = vpack.c.b16 %v5269, %v5263
    %v6614 = vpack.c.b16 %v5270, %v5264
    %v6615 = vpack.c.b16 %v5271, %v5265
    %v6616 = vpack.c.b16 %v5272, %v5266
    %v6617 = vpack.c.b16 %v5273, %v5267
    %v6618 = vpack.c.b16 %v5274, %v5268
    %v6619 = vpack.c.b16 %v5281, %v5275
    %v6620 = vpack.c.b16 %v5282, %v5276
    %v6621 = vpack.c.b16 %v5283, %v5277
    %v6622 = vpack.c.b16 %v5284, %v5278
    %v6623 = vpack.c.b16 %v5285, %v5279
    %v6624 = vpack.c.b16 %v5286, %v5280
    %v6625 = vpack.c.b16 %v5293, %v5287
    %v6626 = vpack.c.b16 %v5294, %v5288
    %v6627 = vpack.c.b16 %v5295, %v5289
    %v6628 = vpack.c.b16 %v5296, %v5290
    %v6629 = vpack.c.b16 %v5297, %v5291
    %v6630 = vpack.c.b16 %v5298, %v5292
    %v6631 = vpack.c.b16 %v5305, %v5299
    %v6632 = vpack.c.b16 %v5306, %v5300
    %v6633 = vpack.c.b16 %v5307, %v5301
    %v6634 = vpack.c.b16 %v5308, %v5302
    %v6635 = vpack.c.b16 %v5309, %v5303
    %v6636 = vpack.c.b16 %v5310, %v5304
    %v6637 = vpack.c.b16 %v5317, %v5311
    %v6638 = vpack.c.b16 %v5318, %v5312
    %v6639 = vpack.c.b16 %v5319, %v5313
    %v6640 = vpack.c.b16 %v5320, %v5314
    %v6641 = vpack.c.b16 %v5321, %v5315
    %v6642 = vpack.c.b16 %v5322, %v5316
    %v6643 = vpack.c.b16 %v5329, %v5323
    %v6644 = vpack.c.b16 %v5330, %v5324
    %v6645 = vpack.c.b16 %v5331, %v5325
    %v6646 = vpack.c.b16 %v5332, %v5326
    %v6647 = vpack.c.b16 %v5333, %v5327
    %v6648 = vpack.c.b16 %v5334, %v5328
    %v6649 = vpack.c.b16 %v5341, %v5335
    %v6650 = vpack.c.b16 %v5342, %v5336
    %v6651 = vpack.c.b16 %v5343, %v5337
    %v6652 = vpack.c.b16 %v5344, %v5338
    %v6653 = vpack.c.b16 %v5345, %v5339
    %v6654 = vpack.c.b16 %v5346, %v5340
    %v6655 = vpack.c.b16 %v5353, %v5347
    %v6656 = vpack.c.b16 %v5354, %v5348
    %v6657 = vpack.c.b16 %v5355, %v5349
    %v6658 = vpack.c.b16 %v5356, %v5350
    %v6659 = vpack.c.b16 %v5357, %v5351
    %v6660 = vpack.c.b16 %v5358, %v5352
    %v6661 = vpack.c.b16 %v5365, %v5359
    %v6662 = vpack.c.b16 %v5366, %v5360
    %v6663 = vpack.c.b16 %v5367, %v5361
    %v6664 = vpack.c.b16 %v5368, %v5362
    %v6665 = vpack.c.b16 %v5369, %v5363
    %v6666 = vpack.c.b16 %v5370, %v5364
    %v6667 = vpack.c.b16 %v5377, %v5371
    %v6668 = vpack.c.b16 %v5378, %v5372
    %v6669 = vpack.c.b16 %v5379, %v5373
    %v6670 = vpack.c.b16 %v5380, %v5374
    %v6671 = vpack.c.b16 %v5381, %v5375
    %v6672 = vpack.c.b16 %v5382, %v5376
    %v6673 = vpack.c.b16 %v5389, %v5383
    %v6674 = vpack.c.b16 %v5390, %v5384
    %v6675 = vpack.c.b16 %v5391, %v5385
    %v6676 = vpack.c.b16 %v5392, %v5386
    %v6677 = vpack.c.b16 %v5393, %v5387
    %v6678 = vpack.c.b16 %v5394, %v5388
    %v6679 = vpack.c.b16 %v5401, %v5395
    %v6680 = vpack.c.b16 %v5402, %v5396
    %v6681 = vpack.c.b16 %v5403, %v5397
    %v6682 = vpack.c.b16 %v5404, %v5398
    %v6683 = vpack.c.b16 %v5405, %v5399
    %v6684 = vpack.c.b16 %v5406, %v5400
    %v6685 = vpack.c.b16 %v5413, %v5407
    %v6686 = vpack.c.b16 %v5414, %v5408
    %v6687 = vpack.c.b16 %v5415, %v5409
    %v6688 = vpack.c.b16 %v5416, %v5410
    %v6689 = vpack.c.b16 %v5417, %v5411
    %v6690 = vpack.c.b16 %v5418, %v5412
    %v6691 = vpack.c.b16 %v5425, %v5419
    %v6692 = vpack.c.b16 %v5426, %v5420
    %v6693 = vpack.c.b16 %v5427, %v5421
    %v6694 = vpack.c.b16 %v5428, %v5422
    %v6695 = vpack.c.b16 %v5429, %v5423
    %v6696 = vpack.c.b16 %v5430, %v5424
    %v6697 = vpack.c.b16 %v5437, %v5431
    %v6698 = vpack.c.b16 %v5438, %v5432
    %v6699 = vpack.c.b16 %v5439, %v5433
    %v6700 = vpack.c.b16 %v5440, %v5434
    %v6701 = vpack.c.b16 %v5441, %v5435
    %v6702 = vpack.c.b16 %v5442, %v5436
    %v6703 = vpack.c.b16 %v5449, %v5443
    %v6704 = vpack.c.b16 %v5450, %v5444
    %v6705 = vpack.c.b16 %v5451, %v5445
    %v6706 = vpack.c.b16 %v5452, %v5446
    %v6707 = vpack.c.b16 %v5453, %v5447
    %v6708 = vpack.c.b16 %v5454, %v5448
    %v6709 = vpack.c.b16 %v5461, %v5455
    %v6710 = vpack.c.b16 %v5462, %v5456
    %v6711 = vpack.c.b16 %v5463, %v5457
    %v6712 = vpack.c.b16 %v5464, %v5458
    %v6713 = vpack.c.b16 %v5465, %v5459
    %v6714 = vpack.c.b16 %v5466, %v5460
    %v6715 = vpack.c.b16 %v5473, %v5467
    %v6716 = vpack.c.b16 %v5474, %v5468
    %v6717 = vpack.c.b16 %v5475, %v5469
    %v6718 = vpack.c.b16 %v5476, %v5470
    %v6719 = vpack.c.b16 %v5477, %v5471
    %v6720 = vpack.c.b16 %v5478, %v5472
    %v6721 = vpack.c.b16 %v5485, %v5479
    %v6722 = vpack.c.b16 %v5486, %v5480
    %v6723 = vpack.c.b16 %v5487, %v5481
    %v6724 = vpack.c.b16 %v5488, %v5482
    %v6725 = vpack.c.b16 %v5489, %v5483
    %v6726 = vpack.c.b16 %v5490, %v5484
    %v6727 = vpack.c.b16 %v5497, %v5491
    %v6728 = vpack.c.b16 %v5498, %v5492
    %v6729 = vpack.c.b16 %v5499, %v5493
    %v6730 = vpack.c.b16 %v5500, %v5494
    %v6731 = vpack.c.b16 %v5501, %v5495
    %v6732 = vpack.c.b16 %v5502, %v5496
    %v6733 = vpack.c.b16 %v5509, %v5503
    %v6734 = vpack.c.b16 %v5510, %v5504
    %v6735 = vpack.c.b16 %v5511, %v5505
    %v6736 = vpack.c.b16 %v5512, %v5506
    %v6737 = vpack.c.b16 %v5513, %v5507
    %v6738 = vpack.c.b16 %v5514, %v5508
    %v6739 = vpack.c.b16 %v5521, %v5515
    %v6740 = vpack.c.b16 %v5522, %v5516
    %v6741 = vpack.c.b16 %v5523, %v5517
    %v6742 = vpack.c.b16 %v5524, %v5518
    %v6743 = vpack.c.b16 %v5525, %v5519
    %v6744 = vpack.c.b16 %v5526, %v5520
    %v6745 = vpack.c.b16 %v5533, %v5527
    %v6746 = vpack.c.b16 %v5534, %v5528
    %v6747 = vpack.c.b16 %v5535, %v5529
    %v6748 = vpack.c.b16 %v5536, %v5530
    %v6749 = vpack.c.b16 %v5537, %v5531
    %v6750 = vpack.c.b16 %v5538, %v5532
    %v6751 = vpack.c.b16 %v5545, %v5539
    %v6752 = vpack.c.b16 %v5546, %v5540
    %v6753 = vpack.c.b16 %v5547, %v5541
    %v6754 = vpack.c.b16 %v5548, %v5542
    %v6755 = vpack.c.b16 %v5549, %v5543
    %v6756 = vpack.c.b16 %v5550, %v5544
    %v6757 = vpack.c.b16 %v5557, %v5551
    %v6758 = vpack.c.b16 %v5558, %v5552
    %v6759 = vpack.c.b16 %v5559, %v5553
    %v6760 = vpack.c.b16 %v5560, %v5554
    %v6761 = vpack.c.b16 %v5561, %v5555
    %v6762 = vpack.c.b16 %v5562, %v5556
    %7963 = vmatpush.bf16.msra.mxu0 %v5605
    %7964 = vmatpush.bf16.msra.mxu0 %v5599
    %7965 = vmatpush.bf16.msra.mxu0 %v5593
    %7966 = vmatpush.bf16.msra.mxu0 %v5587
    %7967 = vmatpush.bf16.msra.mxu0 %v5581
    %7968 = vmatpush.bf16.msra.mxu0 %v5575
    %7969 = vmatpush.bf16.msra.mxu0 %v5569
    %7970 = vmatpush.bf16.msra.mxu0 %v5563
    %7971 = vmatmul.bf16.gmra.mxu0 %v1913
    %v7972 = vpop.f32.mrf.mxu0
    %v7973 = vadd.f32 %v1863, %v7972
    %v7974 = vpop.f32.mrf.mxu0
    %7975 = vdwg.mxu0
    %7976 = vmatpush.bf16.msra.mxu0 %v5653
    %7977 = vmatpush.bf16.msra.mxu0 %v5647
    %7978 = vmatpush.bf16.msra.mxu0 %v5641
    %7979 = vmatpush.bf16.msra.mxu0 %v5635
    %7980 = vmatpush.bf16.msra.mxu0 %v5629
    %7981 = vmatpush.bf16.msra.mxu0 %v5623
    %7982 = vmatpush.bf16.msra.mxu0 %v5617
    %7983 = vmatpush.bf16.msra.mxu0 %v5611
    %7984 = vmatmul.bf16.gmra.mxu0 %v1914
    %v7985 = vpop.f32.mrf.mxu0
    %v7986 = vadd.f32 %v7973, %v7985
    %v7987 = vpop.f32.mrf.mxu0
    %7988 = vdwg.mxu0
    %7989 = vmatpush.bf16.msra.mxu0 %v5701
    %7990 = vmatpush.bf16.msra.mxu0 %v5695
    %7991 = vmatpush.bf16.msra.mxu0 %v5689
    %7992 = vmatpush.bf16.msra.mxu0 %v5683
    %7993 = vmatpush.bf16.msra.mxu0 %v5677
    %7994 = vmatpush.bf16.msra.mxu0 %v5671
    %7995 = vmatpush.bf16.msra.mxu0 %v5665
    %7996 = vmatpush.bf16.msra.mxu0 %v5659
    %7997 = vmatmul.bf16.gmra.mxu0 %v1915
    %v7998 = vpop.f32.mrf.mxu0
    %v7999 = vadd.f32 %v7986, %v7998
    %v8000 = vpop.f32.mrf.mxu0
    %8001 = vdwg.mxu0
    %8002 = vmatpush.bf16.msra.mxu0 %v5749
    %8003 = vmatpush.bf16.msra.mxu0 %v5743
    %8004 = vmatpush.bf16.msra.mxu0 %v5737
    %8005 = vmatpush.bf16.msra.mxu0 %v5731
    %8006 = vmatpush.bf16.msra.mxu0 %v5725
    %8007 = vmatpush.bf16.msra.mxu0 %v5719
    %8008 = vmatpush.bf16.msra.mxu0 %v5713
    %8009 = vmatpush.bf16.msra.mxu0 %v5707
    %8010 = vmatmul.bf16.gmra.mxu0 %v1916
    %v8011 = vpop.f32.mrf.mxu0
    %v8012 = vadd.f32 %v7999, %v8011
    %v8013 = vpop.f32.mrf.mxu0
    %8014 = vdwg.mxu0
    %8015 = vmatpush.bf16.msra.mxu0 %v5797
    %8016 = vmatpush.bf16.msra.mxu0 %v5791
    %8017 = vmatpush.bf16.msra.mxu0 %v5785
    %8018 = vmatpush.bf16.msra.mxu0 %v5779
    %8019 = vmatpush.bf16.msra.mxu0 %v5773
    %8020 = vmatpush.bf16.msra.mxu0 %v5767
    %8021 = vmatpush.bf16.msra.mxu0 %v5761
    %8022 = vmatpush.bf16.msra.mxu0 %v5755
    %8023 = vmatmul.bf16.gmra.mxu0 %v1917
    %v8024 = vpop.f32.mrf.mxu0
    %v8025 = vadd.f32 %v8012, %v8024
    %v8026 = vpop.f32.mrf.mxu0
    %8027 = vdwg.mxu0
    %8028 = vmatpush.bf16.msra.mxu0 %v5845
    %8029 = vmatpush.bf16.msra.mxu0 %v5839
    %8030 = vmatpush.bf16.msra.mxu0 %v5833
    %8031 = vmatpush.bf16.msra.mxu0 %v5827
    %8032 = vmatpush.bf16.msra.mxu0 %v5821
    %8033 = vmatpush.bf16.msra.mxu0 %v5815
    %8034 = vmatpush.bf16.msra.mxu0 %v5809
    %8035 = vmatpush.bf16.msra.mxu0 %v5803
    %8036 = vmatmul.bf16.gmra.mxu0 %v1918
    %v8037 = vpop.f32.mrf.mxu0
    %v8038 = vadd.f32 %v8025, %v8037
    %v8039 = vpop.f32.mrf.mxu0
    %8040 = vdwg.mxu0
    %8041 = vmatpush.bf16.msra.mxu0 %v5893
    %8042 = vmatpush.bf16.msra.mxu0 %v5887
    %8043 = vmatpush.bf16.msra.mxu0 %v5881
    %8044 = vmatpush.bf16.msra.mxu0 %v5875
    %8045 = vmatpush.bf16.msra.mxu0 %v5869
    %8046 = vmatpush.bf16.msra.mxu0 %v5863
    %8047 = vmatpush.bf16.msra.mxu0 %v5857
    %8048 = vmatpush.bf16.msra.mxu0 %v5851
    %8049 = vmatmul.bf16.gmra.mxu0 %v1919
    %v8050 = vpop.f32.mrf.mxu0
    %v8051 = vadd.f32 %v8038, %v8050
    %v8052 = vpop.f32.mrf.mxu0
    %8053 = vdwg.mxu0
    %8054 = vmatpush.bf16.msra.mxu0 %v5941
    %8055 = vmatpush.bf16.msra.mxu0 %v5935
    %8056 = vmatpush.bf16.msra.mxu0 %v5929
    %8057 = vmatpush.bf16.msra.mxu0 %v5923
    %8058 = vmatpush.bf16.msra.mxu0 %v5917
    %8059 = vmatpush.bf16.msra.mxu0 %v5911
    %8060 = vmatpush.bf16.msra.mxu0 %v5905
    %8061 = vmatpush.bf16.msra.mxu0 %v5899
    %8062 = vmatmul.bf16.gmra.mxu0 %v1920
    %v8063 = vpop.f32.mrf.mxu0
    %v8064 = vadd.f32 %v8051, %v8063
    %v8065 = vpop.f32.mrf.mxu0
    %8066 = vdwg.mxu0
    %8067 = vmatpush.bf16.msra.mxu0 %v5989
    %8068 = vmatpush.bf16.msra.mxu0 %v5983
    %8069 = vmatpush.bf16.msra.mxu0 %v5977
    %8070 = vmatpush.bf16.msra.mxu0 %v5971
    %8071 = vmatpush.bf16.msra.mxu0 %v5965
    %8072 = vmatpush.bf16.msra.mxu0 %v5959
    %8073 = vmatpush.bf16.msra.mxu0 %v5953
    %8074 = vmatpush.bf16.msra.mxu0 %v5947
    %8075 = vmatmul.bf16.gmra.mxu0 %v1921
    %v8076 = vpop.f32.mrf.mxu0
    %v8077 = vadd.f32 %v8064, %v8076
    %v8078 = vpop.f32.mrf.mxu0
    %8079 = vdwg.mxu0
    %8080 = vmatpush.bf16.msra.mxu0 %v6037
    %8081 = vmatpush.bf16.msra.mxu0 %v6031
    %8082 = vmatpush.bf16.msra.mxu0 %v6025
    %8083 = vmatpush.bf16.msra.mxu0 %v6019
    %8084 = vmatpush.bf16.msra.mxu0 %v6013
    %8085 = vmatpush.bf16.msra.mxu0 %v6007
    %8086 = vmatpush.bf16.msra.mxu0 %v6001
    %8087 = vmatpush.bf16.msra.mxu0 %v5995
    %8088 = vmatmul.bf16.gmra.mxu0 %v1922
    %v8089 = vpop.f32.mrf.mxu0
    %v8090 = vadd.f32 %v8077, %v8089
    %v8091 = vpop.f32.mrf.mxu0
    %8092 = vdwg.mxu0
    %8093 = vmatpush.bf16.msra.mxu0 %v6085
    %8094 = vmatpush.bf16.msra.mxu0 %v6079
    %8095 = vmatpush.bf16.msra.mxu0 %v6073
    %8096 = vmatpush.bf16.msra.mxu0 %v6067
    %8097 = vmatpush.bf16.msra.mxu0 %v6061
    %8098 = vmatpush.bf16.msra.mxu0 %v6055
    %8099 = vmatpush.bf16.msra.mxu0 %v6049
    %8100 = vmatpush.bf16.msra.mxu0 %v6043
    %8101 = vmatmul.bf16.gmra.mxu0 %v1923
    %v8102 = vpop.f32.mrf.mxu0
    %v8103 = vadd.f32 %v8090, %v8102
    %v8104 = vpop.f32.mrf.mxu0
    %8105 = vdwg.mxu0
    %8106 = vmatpush.bf16.msra.mxu0 %v6133
    %8107 = vmatpush.bf16.msra.mxu0 %v6127
    %8108 = vmatpush.bf16.msra.mxu0 %v6121
    %8109 = vmatpush.bf16.msra.mxu0 %v6115
    %8110 = vmatpush.bf16.msra.mxu0 %v6109
    %8111 = vmatpush.bf16.msra.mxu0 %v6103
    %8112 = vmatpush.bf16.msra.mxu0 %v6097
    %8113 = vmatpush.bf16.msra.mxu0 %v6091
    %8114 = vmatmul.bf16.gmra.mxu0 %v1924
    %v8115 = vpop.f32.mrf.mxu0
    %v8116 = vadd.f32 %v8103, %v8115
    %v8117 = vpop.f32.mrf.mxu0
    %8118 = vdwg.mxu0
    %8119 = vmatpush.bf16.msra.mxu0 %v6181
    %8120 = vmatpush.bf16.msra.mxu0 %v6175
    %8121 = vmatpush.bf16.msra.mxu0 %v6169
    %8122 = vmatpush.bf16.msra.mxu0 %v6163
    %8123 = vmatpush.bf16.msra.mxu0 %v6157
    %8124 = vmatpush.bf16.msra.mxu0 %v6151
    %8125 = vmatpush.bf16.msra.mxu0 %v6145
    %8126 = vmatpush.bf16.msra.mxu0 %v6139
    %8127 = vmatmul.bf16.gmra.mxu0 %v1925
    %v8128 = vpop.f32.mrf.mxu0
    %v8129 = vadd.f32 %v8116, %v8128
    %v8130 = vpop.f32.mrf.mxu0
    %8131 = vdwg.mxu0
    %8132 = vmatpush.bf16.msra.mxu0 %v6229
    %8133 = vmatpush.bf16.msra.mxu0 %v6223
    %8134 = vmatpush.bf16.msra.mxu0 %v6217
    %8135 = vmatpush.bf16.msra.mxu0 %v6211
    %8136 = vmatpush.bf16.msra.mxu0 %v6205
    %8137 = vmatpush.bf16.msra.mxu0 %v6199
    %8138 = vmatpush.bf16.msra.mxu0 %v6193
    %8139 = vmatpush.bf16.msra.mxu0 %v6187
    %8140 = vmatmul.bf16.gmra.mxu0 %v1926
    %v8141 = vpop.f32.mrf.mxu0
    %v8142 = vadd.f32 %v8129, %v8141
    %v8143 = vpop.f32.mrf.mxu0
    %8144 = vdwg.mxu0
    %8145 = vmatpush.bf16.msra.mxu0 %v6277
    %8146 = vmatpush.bf16.msra.mxu0 %v6271
    %8147 = vmatpush.bf16.msra.mxu0 %v6265
    %8148 = vmatpush.bf16.msra.mxu0 %v6259
    %8149 = vmatpush.bf16.msra.mxu0 %v6253
    %8150 = vmatpush.bf16.msra.mxu0 %v6247
    %8151 = vmatpush.bf16.msra.mxu0 %v6241
    %8152 = vmatpush.bf16.msra.mxu0 %v6235
    %8153 = vmatmul.bf16.gmra.mxu0 %v1927
    %v8154 = vpop.f32.mrf.mxu0
    %v8155 = vadd.f32 %v8142, %v8154
    %v8156 = vpop.f32.mrf.mxu0
    %8157 = vdwg.mxu0
    %8158 = vmatpush.bf16.msra.mxu0 %v6325
    %8159 = vmatpush.bf16.msra.mxu0 %v6319
    %8160 = vmatpush.bf16.msra.mxu0 %v6313
    %8161 = vmatpush.bf16.msra.mxu0 %v6307
    %8162 = vmatpush.bf16.msra.mxu0 %v6301
    %8163 = vmatpush.bf16.msra.mxu0 %v6295
    %8164 = vmatpush.bf16.msra.mxu0 %v6289
    %8165 = vmatpush.bf16.msra.mxu0 %v6283
    %8166 = vmatmul.bf16.gmra.mxu0 %v1928
    %v8167 = vpop.f32.mrf.mxu0
    %v8168 = vadd.f32 %v8155, %v8167
    %v8169 = vpop.f32.mrf.mxu0
    %8170 = vdwg.mxu0
    %8171 = vmatpush.bf16.msra.mxu0 %v6373
    %8172 = vmatpush.bf16.msra.mxu0 %v6367
    %8173 = vmatpush.bf16.msra.mxu0 %v6361
    %8174 = vmatpush.bf16.msra.mxu0 %v6355
    %8175 = vmatpush.bf16.msra.mxu0 %v6349
    %8176 = vmatpush.bf16.msra.mxu0 %v6343
    %8177 = vmatpush.bf16.msra.mxu0 %v6337
    %8178 = vmatpush.bf16.msra.mxu0 %v6331
    %8179 = vmatmul.bf16.gmra.mxu0 %v1929
    %v8180 = vpop.f32.mrf.mxu0
    %v8181 = vadd.f32 %v8168, %v8180
    %v8182 = vpop.f32.mrf.mxu0
    %8183 = vdwg.mxu0
    %8184 = vmatpush.bf16.msra.mxu0 %v6421
    %8185 = vmatpush.bf16.msra.mxu0 %v6415
    %8186 = vmatpush.bf16.msra.mxu0 %v6409
    %8187 = vmatpush.bf16.msra.mxu0 %v6403
    %8188 = vmatpush.bf16.msra.mxu0 %v6397
    %8189 = vmatpush.bf16.msra.mxu0 %v6391
    %8190 = vmatpush.bf16.msra.mxu0 %v6385
    %8191 = vmatpush.bf16.msra.mxu0 %v6379
    %8192 = vmatmul.bf16.gmra.mxu0 %v1930
    %v8193 = vpop.f32.mrf.mxu0
    %v8194 = vadd.f32 %v8181, %v8193
    %v8195 = vpop.f32.mrf.mxu0
    %8196 = vdwg.mxu0
    %8197 = vmatpush.bf16.msra.mxu0 %v6469
    %8198 = vmatpush.bf16.msra.mxu0 %v6463
    %8199 = vmatpush.bf16.msra.mxu0 %v6457
    %8200 = vmatpush.bf16.msra.mxu0 %v6451
    %8201 = vmatpush.bf16.msra.mxu0 %v6445
    %8202 = vmatpush.bf16.msra.mxu0 %v6439
    %8203 = vmatpush.bf16.msra.mxu0 %v6433
    %8204 = vmatpush.bf16.msra.mxu0 %v6427
    %8205 = vmatmul.bf16.gmra.mxu0 %v1931
    %v8206 = vpop.f32.mrf.mxu0
    %v8207 = vadd.f32 %v8194, %v8206
    %v8208 = vpop.f32.mrf.mxu0
    %8209 = vdwg.mxu0
    %8210 = vmatpush.bf16.msra.mxu0 %v6517
    %8211 = vmatpush.bf16.msra.mxu0 %v6511
    %8212 = vmatpush.bf16.msra.mxu0 %v6505
    %8213 = vmatpush.bf16.msra.mxu0 %v6499
    %8214 = vmatpush.bf16.msra.mxu0 %v6493
    %8215 = vmatpush.bf16.msra.mxu0 %v6487
    %8216 = vmatpush.bf16.msra.mxu0 %v6481
    %8217 = vmatpush.bf16.msra.mxu0 %v6475
    %8218 = vmatmul.bf16.gmra.mxu0 %v1932
    %v8219 = vpop.f32.mrf.mxu0
    %v8220 = vadd.f32 %v8207, %v8219
    %v8221 = vpop.f32.mrf.mxu0
    %8222 = vdwg.mxu0
    %8223 = vmatpush.bf16.msra.mxu0 %v6565
    %8224 = vmatpush.bf16.msra.mxu0 %v6559
    %8225 = vmatpush.bf16.msra.mxu0 %v6553
    %8226 = vmatpush.bf16.msra.mxu0 %v6547
    %8227 = vmatpush.bf16.msra.mxu0 %v6541
    %8228 = vmatpush.bf16.msra.mxu0 %v6535
    %8229 = vmatpush.bf16.msra.mxu0 %v6529
    %8230 = vmatpush.bf16.msra.mxu0 %v6523
    %8231 = vmatmul.bf16.gmra.mxu0 %v1933
    %v8232 = vpop.f32.mrf.mxu0
    %v8233 = vadd.f32 %v8220, %v8232
    %v8234 = vpop.f32.mrf.mxu0
    %8235 = vdwg.mxu0
    %8236 = vmatpush.bf16.msra.mxu0 %v6613
    %8237 = vmatpush.bf16.msra.mxu0 %v6607
    %8238 = vmatpush.bf16.msra.mxu0 %v6601
    %8239 = vmatpush.bf16.msra.mxu0 %v6595
    %8240 = vmatpush.bf16.msra.mxu0 %v6589
    %8241 = vmatpush.bf16.msra.mxu0 %v6583
    %8242 = vmatpush.bf16.msra.mxu0 %v6577
    %8243 = vmatpush.bf16.msra.mxu0 %v6571
    %8244 = vmatmul.bf16.gmra.mxu0 %v1934
    %v8245 = vpop.f32.mrf.mxu0
    %v8246 = vadd.f32 %v8233, %v8245
    %v8247 = vpop.f32.mrf.mxu0
    %8248 = vdwg.mxu0
    %8249 = vmatpush.bf16.msra.mxu0 %v6661
    %8250 = vmatpush.bf16.msra.mxu0 %v6655
    %8251 = vmatpush.bf16.msra.mxu0 %v6649
    %8252 = vmatpush.bf16.msra.mxu0 %v6643
    %8253 = vmatpush.bf16.msra.mxu0 %v6637
    %8254 = vmatpush.bf16.msra.mxu0 %v6631
    %8255 = vmatpush.bf16.msra.mxu0 %v6625
    %8256 = vmatpush.bf16.msra.mxu0 %v6619
    %8257 = vmatmul.bf16.gmra.mxu0 %v1935
    %v8258 = vpop.f32.mrf.mxu0
    %v8259 = vadd.f32 %v8246, %v8258
    %v8260 = vpop.f32.mrf.mxu0
    %8261 = vdwg.mxu0
    %8262 = vmatpush.bf16.msra.mxu0 %v6709
    %8263 = vmatpush.bf16.msra.mxu0 %v6703
    %8264 = vmatpush.bf16.msra.mxu0 %v6697
    %8265 = vmatpush.bf16.msra.mxu0 %v6691
    %8266 = vmatpush.bf16.msra.mxu0 %v6685
    %8267 = vmatpush.bf16.msra.mxu0 %v6679
    %8268 = vmatpush.bf16.msra.mxu0 %v6673
    %8269 = vmatpush.bf16.msra.mxu0 %v6667
    %8270 = vmatmul.bf16.gmra.mxu0 %v1936
    %v8271 = vpop.f32.mrf.mxu0
    %v8272 = vadd.f32 %v8259, %v8271
    %v8273 = vpop.f32.mrf.mxu0
    %8274 = vdwg.mxu0
    %8275 = vmatpush.bf16.msra.mxu0 %v6757
    %8276 = vmatpush.bf16.msra.mxu0 %v6751
    %8277 = vmatpush.bf16.msra.mxu0 %v6745
    %8278 = vmatpush.bf16.msra.mxu0 %v6739
    %8279 = vmatpush.bf16.msra.mxu0 %v6733
    %8280 = vmatpush.bf16.msra.mxu0 %v6727
    %8281 = vmatpush.bf16.msra.mxu0 %v6721
    %8282 = vmatpush.bf16.msra.mxu0 %v6715
    %8283 = vmatmul.bf16.gmra.mxu0 %v1937
    %v8284 = vpop.f32.mrf.mxu0
    %v8285 = vadd.f32 %v8272, %v8284
    %v8286 = vpop.f32.mrf.mxu0
    %8287 = vdwg.mxu0
    %8288 = vmatpush.bf16.msra.mxu0 %v5606
    %8289 = vmatpush.bf16.msra.mxu0 %v5600
    %8290 = vmatpush.bf16.msra.mxu0 %v5594
    %8291 = vmatpush.bf16.msra.mxu0 %v5588
    %8292 = vmatpush.bf16.msra.mxu0 %v5582
    %8293 = vmatpush.bf16.msra.mxu0 %v5576
    %8294 = vmatpush.bf16.msra.mxu0 %v5570
    %8295 = vmatpush.bf16.msra.mxu0 %v5564
    %8296 = vmatmul.bf16.gmra.mxu0 %v1913
    %v8297 = vpop.f32.mrf.mxu0
    %v8298 = vadd.f32 %v1864, %v8297
    %v8299 = vpop.f32.mrf.mxu0
    %8300 = vdwg.mxu0
    %8301 = vmatpush.bf16.msra.mxu0 %v5654
    %8302 = vmatpush.bf16.msra.mxu0 %v5648
    %8303 = vmatpush.bf16.msra.mxu0 %v5642
    %8304 = vmatpush.bf16.msra.mxu0 %v5636
    %8305 = vmatpush.bf16.msra.mxu0 %v5630
    %8306 = vmatpush.bf16.msra.mxu0 %v5624
    %8307 = vmatpush.bf16.msra.mxu0 %v5618
    %8308 = vmatpush.bf16.msra.mxu0 %v5612
    %8309 = vmatmul.bf16.gmra.mxu0 %v1914
    %v8310 = vpop.f32.mrf.mxu0
    %v8311 = vadd.f32 %v8298, %v8310
    %v8312 = vpop.f32.mrf.mxu0
    %8313 = vdwg.mxu0
    %8314 = vmatpush.bf16.msra.mxu0 %v5702
    %8315 = vmatpush.bf16.msra.mxu0 %v5696
    %8316 = vmatpush.bf16.msra.mxu0 %v5690
    %8317 = vmatpush.bf16.msra.mxu0 %v5684
    %8318 = vmatpush.bf16.msra.mxu0 %v5678
    %8319 = vmatpush.bf16.msra.mxu0 %v5672
    %8320 = vmatpush.bf16.msra.mxu0 %v5666
    %8321 = vmatpush.bf16.msra.mxu0 %v5660
    %8322 = vmatmul.bf16.gmra.mxu0 %v1915
    %v8323 = vpop.f32.mrf.mxu0
    %v8324 = vadd.f32 %v8311, %v8323
    %v8325 = vpop.f32.mrf.mxu0
    %8326 = vdwg.mxu0
    %8327 = vmatpush.bf16.msra.mxu0 %v5750
    %8328 = vmatpush.bf16.msra.mxu0 %v5744
    %8329 = vmatpush.bf16.msra.mxu0 %v5738
    %8330 = vmatpush.bf16.msra.mxu0 %v5732
    %8331 = vmatpush.bf16.msra.mxu0 %v5726
    %8332 = vmatpush.bf16.msra.mxu0 %v5720
    %8333 = vmatpush.bf16.msra.mxu0 %v5714
    %8334 = vmatpush.bf16.msra.mxu0 %v5708
    %8335 = vmatmul.bf16.gmra.mxu0 %v1916
    %v8336 = vpop.f32.mrf.mxu0
    %v8337 = vadd.f32 %v8324, %v8336
    %v8338 = vpop.f32.mrf.mxu0
    %8339 = vdwg.mxu0
    %8340 = vmatpush.bf16.msra.mxu0 %v5798
    %8341 = vmatpush.bf16.msra.mxu0 %v5792
    %8342 = vmatpush.bf16.msra.mxu0 %v5786
    %8343 = vmatpush.bf16.msra.mxu0 %v5780
    %8344 = vmatpush.bf16.msra.mxu0 %v5774
    %8345 = vmatpush.bf16.msra.mxu0 %v5768
    %8346 = vmatpush.bf16.msra.mxu0 %v5762
    %8347 = vmatpush.bf16.msra.mxu0 %v5756
    %8348 = vmatmul.bf16.gmra.mxu0 %v1917
    %v8349 = vpop.f32.mrf.mxu0
    %v8350 = vadd.f32 %v8337, %v8349
    %v8351 = vpop.f32.mrf.mxu0
    %8352 = vdwg.mxu0
    %8353 = vmatpush.bf16.msra.mxu0 %v5846
    %8354 = vmatpush.bf16.msra.mxu0 %v5840
    %8355 = vmatpush.bf16.msra.mxu0 %v5834
    %8356 = vmatpush.bf16.msra.mxu0 %v5828
    %8357 = vmatpush.bf16.msra.mxu0 %v5822
    %8358 = vmatpush.bf16.msra.mxu0 %v5816
    %8359 = vmatpush.bf16.msra.mxu0 %v5810
    %8360 = vmatpush.bf16.msra.mxu0 %v5804
    %8361 = vmatmul.bf16.gmra.mxu0 %v1918
    %v8362 = vpop.f32.mrf.mxu0
    %v8363 = vadd.f32 %v8350, %v8362
    %v8364 = vpop.f32.mrf.mxu0
    %8365 = vdwg.mxu0
    %8366 = vmatpush.bf16.msra.mxu0 %v5894
    %8367 = vmatpush.bf16.msra.mxu0 %v5888
    %8368 = vmatpush.bf16.msra.mxu0 %v5882
    %8369 = vmatpush.bf16.msra.mxu0 %v5876
    %8370 = vmatpush.bf16.msra.mxu0 %v5870
    %8371 = vmatpush.bf16.msra.mxu0 %v5864
    %8372 = vmatpush.bf16.msra.mxu0 %v5858
    %8373 = vmatpush.bf16.msra.mxu0 %v5852
    %8374 = vmatmul.bf16.gmra.mxu0 %v1919
    %v8375 = vpop.f32.mrf.mxu0
    %v8376 = vadd.f32 %v8363, %v8375
    %v8377 = vpop.f32.mrf.mxu0
    %8378 = vdwg.mxu0
    %8379 = vmatpush.bf16.msra.mxu0 %v5942
    %8380 = vmatpush.bf16.msra.mxu0 %v5936
    %8381 = vmatpush.bf16.msra.mxu0 %v5930
    %8382 = vmatpush.bf16.msra.mxu0 %v5924
    %8383 = vmatpush.bf16.msra.mxu0 %v5918
    %8384 = vmatpush.bf16.msra.mxu0 %v5912
    %8385 = vmatpush.bf16.msra.mxu0 %v5906
    %8386 = vmatpush.bf16.msra.mxu0 %v5900
    %8387 = vmatmul.bf16.gmra.mxu0 %v1920
    %v8388 = vpop.f32.mrf.mxu0
    %v8389 = vadd.f32 %v8376, %v8388
    %v8390 = vpop.f32.mrf.mxu0
    %8391 = vdwg.mxu0
    %8392 = vmatpush.bf16.msra.mxu0 %v5990
    %8393 = vmatpush.bf16.msra.mxu0 %v5984
    %8394 = vmatpush.bf16.msra.mxu0 %v5978
    %8395 = vmatpush.bf16.msra.mxu0 %v5972
    %8396 = vmatpush.bf16.msra.mxu0 %v5966
    %8397 = vmatpush.bf16.msra.mxu0 %v5960
    %8398 = vmatpush.bf16.msra.mxu0 %v5954
    %8399 = vmatpush.bf16.msra.mxu0 %v5948
    %8400 = vmatmul.bf16.gmra.mxu0 %v1921
    %v8401 = vpop.f32.mrf.mxu0
    %v8402 = vadd.f32 %v8389, %v8401
    %v8403 = vpop.f32.mrf.mxu0
    %8404 = vdwg.mxu0
    %8405 = vmatpush.bf16.msra.mxu0 %v6038
    %8406 = vmatpush.bf16.msra.mxu0 %v6032
    %8407 = vmatpush.bf16.msra.mxu0 %v6026
    %8408 = vmatpush.bf16.msra.mxu0 %v6020
    %8409 = vmatpush.bf16.msra.mxu0 %v6014
    %8410 = vmatpush.bf16.msra.mxu0 %v6008
    %8411 = vmatpush.bf16.msra.mxu0 %v6002
    %8412 = vmatpush.bf16.msra.mxu0 %v5996
    %8413 = vmatmul.bf16.gmra.mxu0 %v1922
    %v8414 = vpop.f32.mrf.mxu0
    %v8415 = vadd.f32 %v8402, %v8414
    %v8416 = vpop.f32.mrf.mxu0
    %8417 = vdwg.mxu0
    %8418 = vmatpush.bf16.msra.mxu0 %v6086
    %8419 = vmatpush.bf16.msra.mxu0 %v6080
    %8420 = vmatpush.bf16.msra.mxu0 %v6074
    %8421 = vmatpush.bf16.msra.mxu0 %v6068
    %8422 = vmatpush.bf16.msra.mxu0 %v6062
    %8423 = vmatpush.bf16.msra.mxu0 %v6056
    %8424 = vmatpush.bf16.msra.mxu0 %v6050
    %8425 = vmatpush.bf16.msra.mxu0 %v6044
    %8426 = vmatmul.bf16.gmra.mxu0 %v1923
    %v8427 = vpop.f32.mrf.mxu0
    %v8428 = vadd.f32 %v8415, %v8427
    %v8429 = vpop.f32.mrf.mxu0
    %8430 = vdwg.mxu0
    %8431 = vmatpush.bf16.msra.mxu0 %v6134
    %8432 = vmatpush.bf16.msra.mxu0 %v6128
    %8433 = vmatpush.bf16.msra.mxu0 %v6122
    %8434 = vmatpush.bf16.msra.mxu0 %v6116
    %8435 = vmatpush.bf16.msra.mxu0 %v6110
    %8436 = vmatpush.bf16.msra.mxu0 %v6104
    %8437 = vmatpush.bf16.msra.mxu0 %v6098
    %8438 = vmatpush.bf16.msra.mxu0 %v6092
    %8439 = vmatmul.bf16.gmra.mxu0 %v1924
    %v8440 = vpop.f32.mrf.mxu0
    %v8441 = vadd.f32 %v8428, %v8440
    %v8442 = vpop.f32.mrf.mxu0
    %8443 = vdwg.mxu0
    %8444 = vmatpush.bf16.msra.mxu0 %v6182
    %8445 = vmatpush.bf16.msra.mxu0 %v6176
    %8446 = vmatpush.bf16.msra.mxu0 %v6170
    %8447 = vmatpush.bf16.msra.mxu0 %v6164
    %8448 = vmatpush.bf16.msra.mxu0 %v6158
    %8449 = vmatpush.bf16.msra.mxu0 %v6152
    %8450 = vmatpush.bf16.msra.mxu0 %v6146
    %8451 = vmatpush.bf16.msra.mxu0 %v6140
    %8452 = vmatmul.bf16.gmra.mxu0 %v1925
    %v8453 = vpop.f32.mrf.mxu0
    %v8454 = vadd.f32 %v8441, %v8453
    %v8455 = vpop.f32.mrf.mxu0
    %8456 = vdwg.mxu0
    %8457 = vmatpush.bf16.msra.mxu0 %v6230
    %8458 = vmatpush.bf16.msra.mxu0 %v6224
    %8459 = vmatpush.bf16.msra.mxu0 %v6218
    %8460 = vmatpush.bf16.msra.mxu0 %v6212
    %8461 = vmatpush.bf16.msra.mxu0 %v6206
    %8462 = vmatpush.bf16.msra.mxu0 %v6200
    %8463 = vmatpush.bf16.msra.mxu0 %v6194
    %8464 = vmatpush.bf16.msra.mxu0 %v6188
    %8465 = vmatmul.bf16.gmra.mxu0 %v1926
    %v8466 = vpop.f32.mrf.mxu0
    %v8467 = vadd.f32 %v8454, %v8466
    %v8468 = vpop.f32.mrf.mxu0
    %8469 = vdwg.mxu0
    %8470 = vmatpush.bf16.msra.mxu0 %v6278
    %8471 = vmatpush.bf16.msra.mxu0 %v6272
    %8472 = vmatpush.bf16.msra.mxu0 %v6266
    %8473 = vmatpush.bf16.msra.mxu0 %v6260
    %8474 = vmatpush.bf16.msra.mxu0 %v6254
    %8475 = vmatpush.bf16.msra.mxu0 %v6248
    %8476 = vmatpush.bf16.msra.mxu0 %v6242
    %8477 = vmatpush.bf16.msra.mxu0 %v6236
    %8478 = vmatmul.bf16.gmra.mxu0 %v1927
    %v8479 = vpop.f32.mrf.mxu0
    %v8480 = vadd.f32 %v8467, %v8479
    %v8481 = vpop.f32.mrf.mxu0
    %8482 = vdwg.mxu0
    %8483 = vmatpush.bf16.msra.mxu0 %v6326
    %8484 = vmatpush.bf16.msra.mxu0 %v6320
    %8485 = vmatpush.bf16.msra.mxu0 %v6314
    %8486 = vmatpush.bf16.msra.mxu0 %v6308
    %8487 = vmatpush.bf16.msra.mxu0 %v6302
    %8488 = vmatpush.bf16.msra.mxu0 %v6296
    %8489 = vmatpush.bf16.msra.mxu0 %v6290
    %8490 = vmatpush.bf16.msra.mxu0 %v6284
    %8491 = vmatmul.bf16.gmra.mxu0 %v1928
    %v8492 = vpop.f32.mrf.mxu0
    %v8493 = vadd.f32 %v8480, %v8492
    %v8494 = vpop.f32.mrf.mxu0
    %8495 = vdwg.mxu0
    %8496 = vmatpush.bf16.msra.mxu0 %v6374
    %8497 = vmatpush.bf16.msra.mxu0 %v6368
    %8498 = vmatpush.bf16.msra.mxu0 %v6362
    %8499 = vmatpush.bf16.msra.mxu0 %v6356
    %8500 = vmatpush.bf16.msra.mxu0 %v6350
    %8501 = vmatpush.bf16.msra.mxu0 %v6344
    %8502 = vmatpush.bf16.msra.mxu0 %v6338
    %8503 = vmatpush.bf16.msra.mxu0 %v6332
    %8504 = vmatmul.bf16.gmra.mxu0 %v1929
    %v8505 = vpop.f32.mrf.mxu0
    %v8506 = vadd.f32 %v8493, %v8505
    %v8507 = vpop.f32.mrf.mxu0
    %8508 = vdwg.mxu0
    %8509 = vmatpush.bf16.msra.mxu0 %v6422
    %8510 = vmatpush.bf16.msra.mxu0 %v6416
    %8511 = vmatpush.bf16.msra.mxu0 %v6410
    %8512 = vmatpush.bf16.msra.mxu0 %v6404
    %8513 = vmatpush.bf16.msra.mxu0 %v6398
    %8514 = vmatpush.bf16.msra.mxu0 %v6392
    %8515 = vmatpush.bf16.msra.mxu0 %v6386
    %8516 = vmatpush.bf16.msra.mxu0 %v6380
    %8517 = vmatmul.bf16.gmra.mxu0 %v1930
    %v8518 = vpop.f32.mrf.mxu0
    %v8519 = vadd.f32 %v8506, %v8518
    %v8520 = vpop.f32.mrf.mxu0
    %8521 = vdwg.mxu0
    %8522 = vmatpush.bf16.msra.mxu0 %v6470
    %8523 = vmatpush.bf16.msra.mxu0 %v6464
    %8524 = vmatpush.bf16.msra.mxu0 %v6458
    %8525 = vmatpush.bf16.msra.mxu0 %v6452
    %8526 = vmatpush.bf16.msra.mxu0 %v6446
    %8527 = vmatpush.bf16.msra.mxu0 %v6440
    %8528 = vmatpush.bf16.msra.mxu0 %v6434
    %8529 = vmatpush.bf16.msra.mxu0 %v6428
    %8530 = vmatmul.bf16.gmra.mxu0 %v1931
    %v8531 = vpop.f32.mrf.mxu0
    %v8532 = vadd.f32 %v8519, %v8531
    %v8533 = vpop.f32.mrf.mxu0
    %8534 = vdwg.mxu0
    %8535 = vmatpush.bf16.msra.mxu0 %v6518
    %8536 = vmatpush.bf16.msra.mxu0 %v6512
    %8537 = vmatpush.bf16.msra.mxu0 %v6506
    %8538 = vmatpush.bf16.msra.mxu0 %v6500
    %8539 = vmatpush.bf16.msra.mxu0 %v6494
    %8540 = vmatpush.bf16.msra.mxu0 %v6488
    %8541 = vmatpush.bf16.msra.mxu0 %v6482
    %8542 = vmatpush.bf16.msra.mxu0 %v6476
    %8543 = vmatmul.bf16.gmra.mxu0 %v1932
    %v8544 = vpop.f32.mrf.mxu0
    %v8545 = vadd.f32 %v8532, %v8544
    %v8546 = vpop.f32.mrf.mxu0
    %8547 = vdwg.mxu0
    %8548 = vmatpush.bf16.msra.mxu0 %v6566
    %8549 = vmatpush.bf16.msra.mxu0 %v6560
    %8550 = vmatpush.bf16.msra.mxu0 %v6554
    %8551 = vmatpush.bf16.msra.mxu0 %v6548
    %8552 = vmatpush.bf16.msra.mxu0 %v6542
    %8553 = vmatpush.bf16.msra.mxu0 %v6536
    %8554 = vmatpush.bf16.msra.mxu0 %v6530
    %8555 = vmatpush.bf16.msra.mxu0 %v6524
    %8556 = vmatmul.bf16.gmra.mxu0 %v1933
    %v8557 = vpop.f32.mrf.mxu0
    %v8558 = vadd.f32 %v8545, %v8557
    %v8559 = vpop.f32.mrf.mxu0
    %8560 = vdwg.mxu0
    %8561 = vmatpush.bf16.msra.mxu0 %v6614
    %8562 = vmatpush.bf16.msra.mxu0 %v6608
    %8563 = vmatpush.bf16.msra.mxu0 %v6602
    %8564 = vmatpush.bf16.msra.mxu0 %v6596
    %8565 = vmatpush.bf16.msra.mxu0 %v6590
    %8566 = vmatpush.bf16.msra.mxu0 %v6584
    %8567 = vmatpush.bf16.msra.mxu0 %v6578
    %8568 = vmatpush.bf16.msra.mxu0 %v6572
    %8569 = vmatmul.bf16.gmra.mxu0 %v1934
    %v8570 = vpop.f32.mrf.mxu0
    %v8571 = vadd.f32 %v8558, %v8570
    %v8572 = vpop.f32.mrf.mxu0
    %8573 = vdwg.mxu0
    %8574 = vmatpush.bf16.msra.mxu0 %v6662
    %8575 = vmatpush.bf16.msra.mxu0 %v6656
    %8576 = vmatpush.bf16.msra.mxu0 %v6650
    %8577 = vmatpush.bf16.msra.mxu0 %v6644
    %8578 = vmatpush.bf16.msra.mxu0 %v6638
    %8579 = vmatpush.bf16.msra.mxu0 %v6632
    %8580 = vmatpush.bf16.msra.mxu0 %v6626
    %8581 = vmatpush.bf16.msra.mxu0 %v6620
    %8582 = vmatmul.bf16.gmra.mxu0 %v1935
    %v8583 = vpop.f32.mrf.mxu0
    %v8584 = vadd.f32 %v8571, %v8583
    %v8585 = vpop.f32.mrf.mxu0
    %8586 = vdwg.mxu0
    %8587 = vmatpush.bf16.msra.mxu0 %v6710
    %8588 = vmatpush.bf16.msra.mxu0 %v6704
    %8589 = vmatpush.bf16.msra.mxu0 %v6698
    %8590 = vmatpush.bf16.msra.mxu0 %v6692
    %8591 = vmatpush.bf16.msra.mxu0 %v6686
    %8592 = vmatpush.bf16.msra.mxu0 %v6680
    %8593 = vmatpush.bf16.msra.mxu0 %v6674
    %8594 = vmatpush.bf16.msra.mxu0 %v6668
    %8595 = vmatmul.bf16.gmra.mxu0 %v1936
    %v8596 = vpop.f32.mrf.mxu0
    %v8597 = vadd.f32 %v8584, %v8596
    %v8598 = vpop.f32.mrf.mxu0
    %8599 = vdwg.mxu0
    %8600 = vmatpush.bf16.msra.mxu0 %v6758
    %8601 = vmatpush.bf16.msra.mxu0 %v6752
    %8602 = vmatpush.bf16.msra.mxu0 %v6746
    %8603 = vmatpush.bf16.msra.mxu0 %v6740
    %8604 = vmatpush.bf16.msra.mxu0 %v6734
    %8605 = vmatpush.bf16.msra.mxu0 %v6728
    %8606 = vmatpush.bf16.msra.mxu0 %v6722
    %8607 = vmatpush.bf16.msra.mxu0 %v6716
    %8608 = vmatmul.bf16.gmra.mxu0 %v1937
    %v8609 = vpop.f32.mrf.mxu0
    %v8610 = vadd.f32 %v8597, %v8609
    %v8611 = vpop.f32.mrf.mxu0
    %8612 = vdwg.mxu0
    %8613 = vmatpush.bf16.msra.mxu0 %v5607
    %8614 = vmatpush.bf16.msra.mxu0 %v5601
    %8615 = vmatpush.bf16.msra.mxu0 %v5595
    %8616 = vmatpush.bf16.msra.mxu0 %v5589
    %8617 = vmatpush.bf16.msra.mxu0 %v5583
    %8618 = vmatpush.bf16.msra.mxu0 %v5577
    %8619 = vmatpush.bf16.msra.mxu0 %v5571
    %8620 = vmatpush.bf16.msra.mxu0 %v5565
    %8621 = vmatmul.bf16.gmra.mxu0 %v1913
    %v8622 = vpop.f32.mrf.mxu0
    %v8623 = vadd.f32 %v1865, %v8622
    %v8624 = vpop.f32.mrf.mxu0
    %8625 = vdwg.mxu0
    %8626 = vmatpush.bf16.msra.mxu0 %v5655
    %8627 = vmatpush.bf16.msra.mxu0 %v5649
    %8628 = vmatpush.bf16.msra.mxu0 %v5643
    %8629 = vmatpush.bf16.msra.mxu0 %v5637
    %8630 = vmatpush.bf16.msra.mxu0 %v5631
    %8631 = vmatpush.bf16.msra.mxu0 %v5625
    %8632 = vmatpush.bf16.msra.mxu0 %v5619
    %8633 = vmatpush.bf16.msra.mxu0 %v5613
    %8634 = vmatmul.bf16.gmra.mxu0 %v1914
    %v8635 = vpop.f32.mrf.mxu0
    %v8636 = vadd.f32 %v8623, %v8635
    %v8637 = vpop.f32.mrf.mxu0
    %8638 = vdwg.mxu0
    %8639 = vmatpush.bf16.msra.mxu0 %v5703
    %8640 = vmatpush.bf16.msra.mxu0 %v5697
    %8641 = vmatpush.bf16.msra.mxu0 %v5691
    %8642 = vmatpush.bf16.msra.mxu0 %v5685
    %8643 = vmatpush.bf16.msra.mxu0 %v5679
    %8644 = vmatpush.bf16.msra.mxu0 %v5673
    %8645 = vmatpush.bf16.msra.mxu0 %v5667
    %8646 = vmatpush.bf16.msra.mxu0 %v5661
    %8647 = vmatmul.bf16.gmra.mxu0 %v1915
    %v8648 = vpop.f32.mrf.mxu0
    %v8649 = vadd.f32 %v8636, %v8648
    %v8650 = vpop.f32.mrf.mxu0
    %8651 = vdwg.mxu0
    %8652 = vmatpush.bf16.msra.mxu0 %v5751
    %8653 = vmatpush.bf16.msra.mxu0 %v5745
    %8654 = vmatpush.bf16.msra.mxu0 %v5739
    %8655 = vmatpush.bf16.msra.mxu0 %v5733
    %8656 = vmatpush.bf16.msra.mxu0 %v5727
    %8657 = vmatpush.bf16.msra.mxu0 %v5721
    %8658 = vmatpush.bf16.msra.mxu0 %v5715
    %8659 = vmatpush.bf16.msra.mxu0 %v5709
    %8660 = vmatmul.bf16.gmra.mxu0 %v1916
    %v8661 = vpop.f32.mrf.mxu0
    %v8662 = vadd.f32 %v8649, %v8661
    %v8663 = vpop.f32.mrf.mxu0
    %8664 = vdwg.mxu0
    %8665 = vmatpush.bf16.msra.mxu0 %v5799
    %8666 = vmatpush.bf16.msra.mxu0 %v5793
    %8667 = vmatpush.bf16.msra.mxu0 %v5787
    %8668 = vmatpush.bf16.msra.mxu0 %v5781
    %8669 = vmatpush.bf16.msra.mxu0 %v5775
    %8670 = vmatpush.bf16.msra.mxu0 %v5769
    %8671 = vmatpush.bf16.msra.mxu0 %v5763
    %8672 = vmatpush.bf16.msra.mxu0 %v5757
    %8673 = vmatmul.bf16.gmra.mxu0 %v1917
    %v8674 = vpop.f32.mrf.mxu0
    %v8675 = vadd.f32 %v8662, %v8674
    %v8676 = vpop.f32.mrf.mxu0
    %8677 = vdwg.mxu0
    %8678 = vmatpush.bf16.msra.mxu0 %v5847
    %8679 = vmatpush.bf16.msra.mxu0 %v5841
    %8680 = vmatpush.bf16.msra.mxu0 %v5835
    %8681 = vmatpush.bf16.msra.mxu0 %v5829
    %8682 = vmatpush.bf16.msra.mxu0 %v5823
    %8683 = vmatpush.bf16.msra.mxu0 %v5817
    %8684 = vmatpush.bf16.msra.mxu0 %v5811
    %8685 = vmatpush.bf16.msra.mxu0 %v5805
    %8686 = vmatmul.bf16.gmra.mxu0 %v1918
    %v8687 = vpop.f32.mrf.mxu0
    %v8688 = vadd.f32 %v8675, %v8687
    %v8689 = vpop.f32.mrf.mxu0
    %8690 = vdwg.mxu0
    %8691 = vmatpush.bf16.msra.mxu0 %v5895
    %8692 = vmatpush.bf16.msra.mxu0 %v5889
    %8693 = vmatpush.bf16.msra.mxu0 %v5883
    %8694 = vmatpush.bf16.msra.mxu0 %v5877
    %8695 = vmatpush.bf16.msra.mxu0 %v5871
    %8696 = vmatpush.bf16.msra.mxu0 %v5865
    %8697 = vmatpush.bf16.msra.mxu0 %v5859
    %8698 = vmatpush.bf16.msra.mxu0 %v5853
    %8699 = vmatmul.bf16.gmra.mxu0 %v1919
    %v8700 = vpop.f32.mrf.mxu0
    %v8701 = vadd.f32 %v8688, %v8700
    %v8702 = vpop.f32.mrf.mxu0
    %8703 = vdwg.mxu0
    %8704 = vmatpush.bf16.msra.mxu0 %v5943
    %8705 = vmatpush.bf16.msra.mxu0 %v5937
    %8706 = vmatpush.bf16.msra.mxu0 %v5931
    %8707 = vmatpush.bf16.msra.mxu0 %v5925
    %8708 = vmatpush.bf16.msra.mxu0 %v5919
    %8709 = vmatpush.bf16.msra.mxu0 %v5913
    %8710 = vmatpush.bf16.msra.mxu0 %v5907
    %8711 = vmatpush.bf16.msra.mxu0 %v5901
    %8712 = vmatmul.bf16.gmra.mxu0 %v1920
    %v8713 = vpop.f32.mrf.mxu0
    %v8714 = vadd.f32 %v8701, %v8713
    %v8715 = vpop.f32.mrf.mxu0
    %8716 = vdwg.mxu0
    %8717 = vmatpush.bf16.msra.mxu0 %v5991
    %8718 = vmatpush.bf16.msra.mxu0 %v5985
    %8719 = vmatpush.bf16.msra.mxu0 %v5979
    %8720 = vmatpush.bf16.msra.mxu0 %v5973
    %8721 = vmatpush.bf16.msra.mxu0 %v5967
    %8722 = vmatpush.bf16.msra.mxu0 %v5961
    %8723 = vmatpush.bf16.msra.mxu0 %v5955
    %8724 = vmatpush.bf16.msra.mxu0 %v5949
    %8725 = vmatmul.bf16.gmra.mxu0 %v1921
    %v8726 = vpop.f32.mrf.mxu0
    %v8727 = vadd.f32 %v8714, %v8726
    %v8728 = vpop.f32.mrf.mxu0
    %8729 = vdwg.mxu0
    %8730 = vmatpush.bf16.msra.mxu0 %v6039
    %8731 = vmatpush.bf16.msra.mxu0 %v6033
    %8732 = vmatpush.bf16.msra.mxu0 %v6027
    %8733 = vmatpush.bf16.msra.mxu0 %v6021
    %8734 = vmatpush.bf16.msra.mxu0 %v6015
    %8735 = vmatpush.bf16.msra.mxu0 %v6009
    %8736 = vmatpush.bf16.msra.mxu0 %v6003
    %8737 = vmatpush.bf16.msra.mxu0 %v5997
    %8738 = vmatmul.bf16.gmra.mxu0 %v1922
    %v8739 = vpop.f32.mrf.mxu0
    %v8740 = vadd.f32 %v8727, %v8739
    %v8741 = vpop.f32.mrf.mxu0
    %8742 = vdwg.mxu0
    %8743 = vmatpush.bf16.msra.mxu0 %v6087
    %8744 = vmatpush.bf16.msra.mxu0 %v6081
    %8745 = vmatpush.bf16.msra.mxu0 %v6075
    %8746 = vmatpush.bf16.msra.mxu0 %v6069
    %8747 = vmatpush.bf16.msra.mxu0 %v6063
    %8748 = vmatpush.bf16.msra.mxu0 %v6057
    %8749 = vmatpush.bf16.msra.mxu0 %v6051
    %8750 = vmatpush.bf16.msra.mxu0 %v6045
    %8751 = vmatmul.bf16.gmra.mxu0 %v1923
    %v8752 = vpop.f32.mrf.mxu0
    %v8753 = vadd.f32 %v8740, %v8752
    %v8754 = vpop.f32.mrf.mxu0
    %8755 = vdwg.mxu0
    %8756 = vmatpush.bf16.msra.mxu0 %v6135
    %8757 = vmatpush.bf16.msra.mxu0 %v6129
    %8758 = vmatpush.bf16.msra.mxu0 %v6123
    %8759 = vmatpush.bf16.msra.mxu0 %v6117
    %8760 = vmatpush.bf16.msra.mxu0 %v6111
    %8761 = vmatpush.bf16.msra.mxu0 %v6105
    %8762 = vmatpush.bf16.msra.mxu0 %v6099
    %8763 = vmatpush.bf16.msra.mxu0 %v6093
    %8764 = vmatmul.bf16.gmra.mxu0 %v1924
    %v8765 = vpop.f32.mrf.mxu0
    %v8766 = vadd.f32 %v8753, %v8765
    %v8767 = vpop.f32.mrf.mxu0
    %8768 = vdwg.mxu0
    %8769 = vmatpush.bf16.msra.mxu0 %v6183
    %8770 = vmatpush.bf16.msra.mxu0 %v6177
    %8771 = vmatpush.bf16.msra.mxu0 %v6171
    %8772 = vmatpush.bf16.msra.mxu0 %v6165
    %8773 = vmatpush.bf16.msra.mxu0 %v6159
    %8774 = vmatpush.bf16.msra.mxu0 %v6153
    %8775 = vmatpush.bf16.msra.mxu0 %v6147
    %8776 = vmatpush.bf16.msra.mxu0 %v6141
    %8777 = vmatmul.bf16.gmra.mxu0 %v1925
    %v8778 = vpop.f32.mrf.mxu0
    %v8779 = vadd.f32 %v8766, %v8778
    %v8780 = vpop.f32.mrf.mxu0
    %8781 = vdwg.mxu0
    %8782 = vmatpush.bf16.msra.mxu0 %v6231
    %8783 = vmatpush.bf16.msra.mxu0 %v6225
    %8784 = vmatpush.bf16.msra.mxu0 %v6219
    %8785 = vmatpush.bf16.msra.mxu0 %v6213
    %8786 = vmatpush.bf16.msra.mxu0 %v6207
    %8787 = vmatpush.bf16.msra.mxu0 %v6201
    %8788 = vmatpush.bf16.msra.mxu0 %v6195
    %8789 = vmatpush.bf16.msra.mxu0 %v6189
    %8790 = vmatmul.bf16.gmra.mxu0 %v1926
    %v8791 = vpop.f32.mrf.mxu0
    %v8792 = vadd.f32 %v8779, %v8791
    %v8793 = vpop.f32.mrf.mxu0
    %8794 = vdwg.mxu0
    %8795 = vmatpush.bf16.msra.mxu0 %v6279
    %8796 = vmatpush.bf16.msra.mxu0 %v6273
    %8797 = vmatpush.bf16.msra.mxu0 %v6267
    %8798 = vmatpush.bf16.msra.mxu0 %v6261
    %8799 = vmatpush.bf16.msra.mxu0 %v6255
    %8800 = vmatpush.bf16.msra.mxu0 %v6249
    %8801 = vmatpush.bf16.msra.mxu0 %v6243
    %8802 = vmatpush.bf16.msra.mxu0 %v6237
    %8803 = vmatmul.bf16.gmra.mxu0 %v1927
    %v8804 = vpop.f32.mrf.mxu0
    %v8805 = vadd.f32 %v8792, %v8804
    %v8806 = vpop.f32.mrf.mxu0
    %8807 = vdwg.mxu0
    %8808 = vmatpush.bf16.msra.mxu0 %v6327
    %8809 = vmatpush.bf16.msra.mxu0 %v6321
    %8810 = vmatpush.bf16.msra.mxu0 %v6315
    %8811 = vmatpush.bf16.msra.mxu0 %v6309
    %8812 = vmatpush.bf16.msra.mxu0 %v6303
    %8813 = vmatpush.bf16.msra.mxu0 %v6297
    %8814 = vmatpush.bf16.msra.mxu0 %v6291
    %8815 = vmatpush.bf16.msra.mxu0 %v6285
    %8816 = vmatmul.bf16.gmra.mxu0 %v1928
    %v8817 = vpop.f32.mrf.mxu0
    %v8818 = vadd.f32 %v8805, %v8817
    %v8819 = vpop.f32.mrf.mxu0
    %8820 = vdwg.mxu0
    %8821 = vmatpush.bf16.msra.mxu0 %v6375
    %8822 = vmatpush.bf16.msra.mxu0 %v6369
    %8823 = vmatpush.bf16.msra.mxu0 %v6363
    %8824 = vmatpush.bf16.msra.mxu0 %v6357
    %8825 = vmatpush.bf16.msra.mxu0 %v6351
    %8826 = vmatpush.bf16.msra.mxu0 %v6345
    %8827 = vmatpush.bf16.msra.mxu0 %v6339
    %8828 = vmatpush.bf16.msra.mxu0 %v6333
    %8829 = vmatmul.bf16.gmra.mxu0 %v1929
    %v8830 = vpop.f32.mrf.mxu0
    %v8831 = vadd.f32 %v8818, %v8830
    %v8832 = vpop.f32.mrf.mxu0
    %8833 = vdwg.mxu0
    %8834 = vmatpush.bf16.msra.mxu0 %v6423
    %8835 = vmatpush.bf16.msra.mxu0 %v6417
    %8836 = vmatpush.bf16.msra.mxu0 %v6411
    %8837 = vmatpush.bf16.msra.mxu0 %v6405
    %8838 = vmatpush.bf16.msra.mxu0 %v6399
    %8839 = vmatpush.bf16.msra.mxu0 %v6393
    %8840 = vmatpush.bf16.msra.mxu0 %v6387
    %8841 = vmatpush.bf16.msra.mxu0 %v6381
    %8842 = vmatmul.bf16.gmra.mxu0 %v1930
    %v8843 = vpop.f32.mrf.mxu0
    %v8844 = vadd.f32 %v8831, %v8843
    %v8845 = vpop.f32.mrf.mxu0
    %8846 = vdwg.mxu0
    %8847 = vmatpush.bf16.msra.mxu0 %v6471
    %8848 = vmatpush.bf16.msra.mxu0 %v6465
    %8849 = vmatpush.bf16.msra.mxu0 %v6459
    %8850 = vmatpush.bf16.msra.mxu0 %v6453
    %8851 = vmatpush.bf16.msra.mxu0 %v6447
    %8852 = vmatpush.bf16.msra.mxu0 %v6441
    %8853 = vmatpush.bf16.msra.mxu0 %v6435
    %8854 = vmatpush.bf16.msra.mxu0 %v6429
    %8855 = vmatmul.bf16.gmra.mxu0 %v1931
    %v8856 = vpop.f32.mrf.mxu0
    %v8857 = vadd.f32 %v8844, %v8856
    %v8858 = vpop.f32.mrf.mxu0
    %8859 = vdwg.mxu0
    %8860 = vmatpush.bf16.msra.mxu0 %v6519
    %8861 = vmatpush.bf16.msra.mxu0 %v6513
    %8862 = vmatpush.bf16.msra.mxu0 %v6507
    %8863 = vmatpush.bf16.msra.mxu0 %v6501
    %8864 = vmatpush.bf16.msra.mxu0 %v6495
    %8865 = vmatpush.bf16.msra.mxu0 %v6489
    %8866 = vmatpush.bf16.msra.mxu0 %v6483
    %8867 = vmatpush.bf16.msra.mxu0 %v6477
    %8868 = vmatmul.bf16.gmra.mxu0 %v1932
    %v8869 = vpop.f32.mrf.mxu0
    %v8870 = vadd.f32 %v8857, %v8869
    %v8871 = vpop.f32.mrf.mxu0
    %8872 = vdwg.mxu0
    %8873 = vmatpush.bf16.msra.mxu0 %v6567
    %8874 = vmatpush.bf16.msra.mxu0 %v6561
    %8875 = vmatpush.bf16.msra.mxu0 %v6555
    %8876 = vmatpush.bf16.msra.mxu0 %v6549
    %8877 = vmatpush.bf16.msra.mxu0 %v6543
    %8878 = vmatpush.bf16.msra.mxu0 %v6537
    %8879 = vmatpush.bf16.msra.mxu0 %v6531
    %8880 = vmatpush.bf16.msra.mxu0 %v6525
    %8881 = vmatmul.bf16.gmra.mxu0 %v1933
    %v8882 = vpop.f32.mrf.mxu0
    %v8883 = vadd.f32 %v8870, %v8882
    %v8884 = vpop.f32.mrf.mxu0
    %8885 = vdwg.mxu0
    %8886 = vmatpush.bf16.msra.mxu0 %v6615
    %8887 = vmatpush.bf16.msra.mxu0 %v6609
    %8888 = vmatpush.bf16.msra.mxu0 %v6603
    %8889 = vmatpush.bf16.msra.mxu0 %v6597
    %8890 = vmatpush.bf16.msra.mxu0 %v6591
    %8891 = vmatpush.bf16.msra.mxu0 %v6585
    %8892 = vmatpush.bf16.msra.mxu0 %v6579
    %8893 = vmatpush.bf16.msra.mxu0 %v6573
    %8894 = vmatmul.bf16.gmra.mxu0 %v1934
    %v8895 = vpop.f32.mrf.mxu0
    %v8896 = vadd.f32 %v8883, %v8895
    %v8897 = vpop.f32.mrf.mxu0
    %8898 = vdwg.mxu0
    %8899 = vmatpush.bf16.msra.mxu0 %v6663
    %8900 = vmatpush.bf16.msra.mxu0 %v6657
    %8901 = vmatpush.bf16.msra.mxu0 %v6651
    %8902 = vmatpush.bf16.msra.mxu0 %v6645
    %8903 = vmatpush.bf16.msra.mxu0 %v6639
    %8904 = vmatpush.bf16.msra.mxu0 %v6633
    %8905 = vmatpush.bf16.msra.mxu0 %v6627
    %8906 = vmatpush.bf16.msra.mxu0 %v6621
    %8907 = vmatmul.bf16.gmra.mxu0 %v1935
    %v8908 = vpop.f32.mrf.mxu0
    %v8909 = vadd.f32 %v8896, %v8908
    %v8910 = vpop.f32.mrf.mxu0
    %8911 = vdwg.mxu0
    %8912 = vmatpush.bf16.msra.mxu0 %v6711
    %8913 = vmatpush.bf16.msra.mxu0 %v6705
    %8914 = vmatpush.bf16.msra.mxu0 %v6699
    %8915 = vmatpush.bf16.msra.mxu0 %v6693
    %8916 = vmatpush.bf16.msra.mxu0 %v6687
    %8917 = vmatpush.bf16.msra.mxu0 %v6681
    %8918 = vmatpush.bf16.msra.mxu0 %v6675
    %8919 = vmatpush.bf16.msra.mxu0 %v6669
    %8920 = vmatmul.bf16.gmra.mxu0 %v1936
    %v8921 = vpop.f32.mrf.mxu0
    %v8922 = vadd.f32 %v8909, %v8921
    %v8923 = vpop.f32.mrf.mxu0
    %8924 = vdwg.mxu0
    %8925 = vmatpush.bf16.msra.mxu0 %v6759
    %8926 = vmatpush.bf16.msra.mxu0 %v6753
    %8927 = vmatpush.bf16.msra.mxu0 %v6747
    %8928 = vmatpush.bf16.msra.mxu0 %v6741
    %8929 = vmatpush.bf16.msra.mxu0 %v6735
    %8930 = vmatpush.bf16.msra.mxu0 %v6729
    %8931 = vmatpush.bf16.msra.mxu0 %v6723
    %8932 = vmatpush.bf16.msra.mxu0 %v6717
    %8933 = vmatmul.bf16.gmra.mxu0 %v1937
    %v8934 = vpop.f32.mrf.mxu0
    %v8935 = vadd.f32 %v8922, %v8934
    %v8936 = vpop.f32.mrf.mxu0
    %8937 = vdwg.mxu0
    %8938 = vmatpush.bf16.msra.mxu0 %v5608
    %8939 = vmatpush.bf16.msra.mxu0 %v5602
    %8940 = vmatpush.bf16.msra.mxu0 %v5596
    %8941 = vmatpush.bf16.msra.mxu0 %v5590
    %8942 = vmatpush.bf16.msra.mxu0 %v5584
    %8943 = vmatpush.bf16.msra.mxu0 %v5578
    %8944 = vmatpush.bf16.msra.mxu0 %v5572
    %8945 = vmatpush.bf16.msra.mxu0 %v5566
    %8946 = vmatmul.bf16.gmra.mxu0 %v1913
    %v8947 = vpop.f32.mrf.mxu0
    %v8948 = vadd.f32 %v1866, %v8947
    %v8949 = vpop.f32.mrf.mxu0
    %8950 = vdwg.mxu0
    %8951 = vmatpush.bf16.msra.mxu0 %v5656
    %8952 = vmatpush.bf16.msra.mxu0 %v5650
    %8953 = vmatpush.bf16.msra.mxu0 %v5644
    %8954 = vmatpush.bf16.msra.mxu0 %v5638
    %8955 = vmatpush.bf16.msra.mxu0 %v5632
    %8956 = vmatpush.bf16.msra.mxu0 %v5626
    %8957 = vmatpush.bf16.msra.mxu0 %v5620
    %8958 = vmatpush.bf16.msra.mxu0 %v5614
    %8959 = vmatmul.bf16.gmra.mxu0 %v1914
    %v8960 = vpop.f32.mrf.mxu0
    %v8961 = vadd.f32 %v8948, %v8960
    %v8962 = vpop.f32.mrf.mxu0
    %8963 = vdwg.mxu0
    %8964 = vmatpush.bf16.msra.mxu0 %v5704
    %8965 = vmatpush.bf16.msra.mxu0 %v5698
    %8966 = vmatpush.bf16.msra.mxu0 %v5692
    %8967 = vmatpush.bf16.msra.mxu0 %v5686
    %8968 = vmatpush.bf16.msra.mxu0 %v5680
    %8969 = vmatpush.bf16.msra.mxu0 %v5674
    %8970 = vmatpush.bf16.msra.mxu0 %v5668
    %8971 = vmatpush.bf16.msra.mxu0 %v5662
    %8972 = vmatmul.bf16.gmra.mxu0 %v1915
    %v8973 = vpop.f32.mrf.mxu0
    %v8974 = vadd.f32 %v8961, %v8973
    %v8975 = vpop.f32.mrf.mxu0
    %8976 = vdwg.mxu0
    %8977 = vmatpush.bf16.msra.mxu0 %v5752
    %8978 = vmatpush.bf16.msra.mxu0 %v5746
    %8979 = vmatpush.bf16.msra.mxu0 %v5740
    %8980 = vmatpush.bf16.msra.mxu0 %v5734
    %8981 = vmatpush.bf16.msra.mxu0 %v5728
    %8982 = vmatpush.bf16.msra.mxu0 %v5722
    %8983 = vmatpush.bf16.msra.mxu0 %v5716
    %8984 = vmatpush.bf16.msra.mxu0 %v5710
    %8985 = vmatmul.bf16.gmra.mxu0 %v1916
    %v8986 = vpop.f32.mrf.mxu0
    %v8987 = vadd.f32 %v8974, %v8986
    %v8988 = vpop.f32.mrf.mxu0
    %8989 = vdwg.mxu0
    %8990 = vmatpush.bf16.msra.mxu0 %v5800
    %8991 = vmatpush.bf16.msra.mxu0 %v5794
    %8992 = vmatpush.bf16.msra.mxu0 %v5788
    %8993 = vmatpush.bf16.msra.mxu0 %v5782
    %8994 = vmatpush.bf16.msra.mxu0 %v5776
    %8995 = vmatpush.bf16.msra.mxu0 %v5770
    %8996 = vmatpush.bf16.msra.mxu0 %v5764
    %8997 = vmatpush.bf16.msra.mxu0 %v5758
    %8998 = vmatmul.bf16.gmra.mxu0 %v1917
    %v8999 = vpop.f32.mrf.mxu0
    %v9000 = vadd.f32 %v8987, %v8999
    %v9001 = vpop.f32.mrf.mxu0
    %9002 = vdwg.mxu0
    %9003 = vmatpush.bf16.msra.mxu0 %v5848
    %9004 = vmatpush.bf16.msra.mxu0 %v5842
    %9005 = vmatpush.bf16.msra.mxu0 %v5836
    %9006 = vmatpush.bf16.msra.mxu0 %v5830
    %9007 = vmatpush.bf16.msra.mxu0 %v5824
    %9008 = vmatpush.bf16.msra.mxu0 %v5818
    %9009 = vmatpush.bf16.msra.mxu0 %v5812
    %9010 = vmatpush.bf16.msra.mxu0 %v5806
    %9011 = vmatmul.bf16.gmra.mxu0 %v1918
    %v9012 = vpop.f32.mrf.mxu0
    %v9013 = vadd.f32 %v9000, %v9012
    %v9014 = vpop.f32.mrf.mxu0
    %9015 = vdwg.mxu0
    %9016 = vmatpush.bf16.msra.mxu0 %v5896
    %9017 = vmatpush.bf16.msra.mxu0 %v5890
    %9018 = vmatpush.bf16.msra.mxu0 %v5884
    %9019 = vmatpush.bf16.msra.mxu0 %v5878
    %9020 = vmatpush.bf16.msra.mxu0 %v5872
    %9021 = vmatpush.bf16.msra.mxu0 %v5866
    %9022 = vmatpush.bf16.msra.mxu0 %v5860
    %9023 = vmatpush.bf16.msra.mxu0 %v5854
    %9024 = vmatmul.bf16.gmra.mxu0 %v1919
    %v9025 = vpop.f32.mrf.mxu0
    %v9026 = vadd.f32 %v9013, %v9025
    %v9027 = vpop.f32.mrf.mxu0
    %9028 = vdwg.mxu0
    %9029 = vmatpush.bf16.msra.mxu0 %v5944
    %9030 = vmatpush.bf16.msra.mxu0 %v5938
    %9031 = vmatpush.bf16.msra.mxu0 %v5932
    %9032 = vmatpush.bf16.msra.mxu0 %v5926
    %9033 = vmatpush.bf16.msra.mxu0 %v5920
    %9034 = vmatpush.bf16.msra.mxu0 %v5914
    %9035 = vmatpush.bf16.msra.mxu0 %v5908
    %9036 = vmatpush.bf16.msra.mxu0 %v5902
    %9037 = vmatmul.bf16.gmra.mxu0 %v1920
    %v9038 = vpop.f32.mrf.mxu0
    %v9039 = vadd.f32 %v9026, %v9038
    %v9040 = vpop.f32.mrf.mxu0
    %9041 = vdwg.mxu0
    %9042 = vmatpush.bf16.msra.mxu0 %v5992
    %9043 = vmatpush.bf16.msra.mxu0 %v5986
    %9044 = vmatpush.bf16.msra.mxu0 %v5980
    %9045 = vmatpush.bf16.msra.mxu0 %v5974
    %9046 = vmatpush.bf16.msra.mxu0 %v5968
    %9047 = vmatpush.bf16.msra.mxu0 %v5962
    %9048 = vmatpush.bf16.msra.mxu0 %v5956
    %9049 = vmatpush.bf16.msra.mxu0 %v5950
    %9050 = vmatmul.bf16.gmra.mxu0 %v1921
    %v9051 = vpop.f32.mrf.mxu0
    %v9052 = vadd.f32 %v9039, %v9051
    %v9053 = vpop.f32.mrf.mxu0
    %9054 = vdwg.mxu0
    %9055 = vmatpush.bf16.msra.mxu0 %v6040
    %9056 = vmatpush.bf16.msra.mxu0 %v6034
    %9057 = vmatpush.bf16.msra.mxu0 %v6028
    %9058 = vmatpush.bf16.msra.mxu0 %v6022
    %9059 = vmatpush.bf16.msra.mxu0 %v6016
    %9060 = vmatpush.bf16.msra.mxu0 %v6010
    %9061 = vmatpush.bf16.msra.mxu0 %v6004
    %9062 = vmatpush.bf16.msra.mxu0 %v5998
    %9063 = vmatmul.bf16.gmra.mxu0 %v1922
    %v9064 = vpop.f32.mrf.mxu0
    %v9065 = vadd.f32 %v9052, %v9064
    %v9066 = vpop.f32.mrf.mxu0
    %9067 = vdwg.mxu0
    %9068 = vmatpush.bf16.msra.mxu0 %v6088
    %9069 = vmatpush.bf16.msra.mxu0 %v6082
    %9070 = vmatpush.bf16.msra.mxu0 %v6076
    %9071 = vmatpush.bf16.msra.mxu0 %v6070
    %9072 = vmatpush.bf16.msra.mxu0 %v6064
    %9073 = vmatpush.bf16.msra.mxu0 %v6058
    %9074 = vmatpush.bf16.msra.mxu0 %v6052
    %9075 = vmatpush.bf16.msra.mxu0 %v6046
    %9076 = vmatmul.bf16.gmra.mxu0 %v1923
    %v9077 = vpop.f32.mrf.mxu0
    %v9078 = vadd.f32 %v9065, %v9077
    %v9079 = vpop.f32.mrf.mxu0
    %9080 = vdwg.mxu0
    %9081 = vmatpush.bf16.msra.mxu0 %v6136
    %9082 = vmatpush.bf16.msra.mxu0 %v6130
    %9083 = vmatpush.bf16.msra.mxu0 %v6124
    %9084 = vmatpush.bf16.msra.mxu0 %v6118
    %9085 = vmatpush.bf16.msra.mxu0 %v6112
    %9086 = vmatpush.bf16.msra.mxu0 %v6106
    %9087 = vmatpush.bf16.msra.mxu0 %v6100
    %9088 = vmatpush.bf16.msra.mxu0 %v6094
    %9089 = vmatmul.bf16.gmra.mxu0 %v1924
    %v9090 = vpop.f32.mrf.mxu0
    %v9091 = vadd.f32 %v9078, %v9090
    %v9092 = vpop.f32.mrf.mxu0
    %9093 = vdwg.mxu0
    %9094 = vmatpush.bf16.msra.mxu0 %v6184
    %9095 = vmatpush.bf16.msra.mxu0 %v6178
    %9096 = vmatpush.bf16.msra.mxu0 %v6172
    %9097 = vmatpush.bf16.msra.mxu0 %v6166
    %9098 = vmatpush.bf16.msra.mxu0 %v6160
    %9099 = vmatpush.bf16.msra.mxu0 %v6154
    %9100 = vmatpush.bf16.msra.mxu0 %v6148
    %9101 = vmatpush.bf16.msra.mxu0 %v6142
    %9102 = vmatmul.bf16.gmra.mxu0 %v1925
    %v9103 = vpop.f32.mrf.mxu0
    %v9104 = vadd.f32 %v9091, %v9103
    %v9105 = vpop.f32.mrf.mxu0
    %9106 = vdwg.mxu0
    %9107 = vmatpush.bf16.msra.mxu0 %v6232
    %9108 = vmatpush.bf16.msra.mxu0 %v6226
    %9109 = vmatpush.bf16.msra.mxu0 %v6220
    %9110 = vmatpush.bf16.msra.mxu0 %v6214
    %9111 = vmatpush.bf16.msra.mxu0 %v6208
    %9112 = vmatpush.bf16.msra.mxu0 %v6202
    %9113 = vmatpush.bf16.msra.mxu0 %v6196
    %9114 = vmatpush.bf16.msra.mxu0 %v6190
    %9115 = vmatmul.bf16.gmra.mxu0 %v1926
    %v9116 = vpop.f32.mrf.mxu0
    %v9117 = vadd.f32 %v9104, %v9116
    %v9118 = vpop.f32.mrf.mxu0
    %9119 = vdwg.mxu0
    %9120 = vmatpush.bf16.msra.mxu0 %v6280
    %9121 = vmatpush.bf16.msra.mxu0 %v6274
    %9122 = vmatpush.bf16.msra.mxu0 %v6268
    %9123 = vmatpush.bf16.msra.mxu0 %v6262
    %9124 = vmatpush.bf16.msra.mxu0 %v6256
    %9125 = vmatpush.bf16.msra.mxu0 %v6250
    %9126 = vmatpush.bf16.msra.mxu0 %v6244
    %9127 = vmatpush.bf16.msra.mxu0 %v6238
    %9128 = vmatmul.bf16.gmra.mxu0 %v1927
    %v9129 = vpop.f32.mrf.mxu0
    %v9130 = vadd.f32 %v9117, %v9129
    %v9131 = vpop.f32.mrf.mxu0
    %9132 = vdwg.mxu0
    %9133 = vmatpush.bf16.msra.mxu0 %v6328
    %9134 = vmatpush.bf16.msra.mxu0 %v6322
    %9135 = vmatpush.bf16.msra.mxu0 %v6316
    %9136 = vmatpush.bf16.msra.mxu0 %v6310
    %9137 = vmatpush.bf16.msra.mxu0 %v6304
    %9138 = vmatpush.bf16.msra.mxu0 %v6298
    %9139 = vmatpush.bf16.msra.mxu0 %v6292
    %9140 = vmatpush.bf16.msra.mxu0 %v6286
    %9141 = vmatmul.bf16.gmra.mxu0 %v1928
    %v9142 = vpop.f32.mrf.mxu0
    %v9143 = vadd.f32 %v9130, %v9142
    %v9144 = vpop.f32.mrf.mxu0
    %9145 = vdwg.mxu0
    %9146 = vmatpush.bf16.msra.mxu0 %v6376
    %9147 = vmatpush.bf16.msra.mxu0 %v6370
    %9148 = vmatpush.bf16.msra.mxu0 %v6364
    %9149 = vmatpush.bf16.msra.mxu0 %v6358
    %9150 = vmatpush.bf16.msra.mxu0 %v6352
    %9151 = vmatpush.bf16.msra.mxu0 %v6346
    %9152 = vmatpush.bf16.msra.mxu0 %v6340
    %9153 = vmatpush.bf16.msra.mxu0 %v6334
    %9154 = vmatmul.bf16.gmra.mxu0 %v1929
    %v9155 = vpop.f32.mrf.mxu0
    %v9156 = vadd.f32 %v9143, %v9155
    %v9157 = vpop.f32.mrf.mxu0
    %9158 = vdwg.mxu0
    %9159 = vmatpush.bf16.msra.mxu0 %v6424
    %9160 = vmatpush.bf16.msra.mxu0 %v6418
    %9161 = vmatpush.bf16.msra.mxu0 %v6412
    %9162 = vmatpush.bf16.msra.mxu0 %v6406
    %9163 = vmatpush.bf16.msra.mxu0 %v6400
    %9164 = vmatpush.bf16.msra.mxu0 %v6394
    %9165 = vmatpush.bf16.msra.mxu0 %v6388
    %9166 = vmatpush.bf16.msra.mxu0 %v6382
    %9167 = vmatmul.bf16.gmra.mxu0 %v1930
    %v9168 = vpop.f32.mrf.mxu0
    %v9169 = vadd.f32 %v9156, %v9168
    %v9170 = vpop.f32.mrf.mxu0
    %9171 = vdwg.mxu0
    %9172 = vmatpush.bf16.msra.mxu0 %v6472
    %9173 = vmatpush.bf16.msra.mxu0 %v6466
    %9174 = vmatpush.bf16.msra.mxu0 %v6460
    %9175 = vmatpush.bf16.msra.mxu0 %v6454
    %9176 = vmatpush.bf16.msra.mxu0 %v6448
    %9177 = vmatpush.bf16.msra.mxu0 %v6442
    %9178 = vmatpush.bf16.msra.mxu0 %v6436
    %9179 = vmatpush.bf16.msra.mxu0 %v6430
    %9180 = vmatmul.bf16.gmra.mxu0 %v1931
    %v9181 = vpop.f32.mrf.mxu0
    %v9182 = vadd.f32 %v9169, %v9181
    %v9183 = vpop.f32.mrf.mxu0
    %9184 = vdwg.mxu0
    %9185 = vmatpush.bf16.msra.mxu0 %v6520
    %9186 = vmatpush.bf16.msra.mxu0 %v6514
    %9187 = vmatpush.bf16.msra.mxu0 %v6508
    %9188 = vmatpush.bf16.msra.mxu0 %v6502
    %9189 = vmatpush.bf16.msra.mxu0 %v6496
    %9190 = vmatpush.bf16.msra.mxu0 %v6490
    %9191 = vmatpush.bf16.msra.mxu0 %v6484
    %9192 = vmatpush.bf16.msra.mxu0 %v6478
    %9193 = vmatmul.bf16.gmra.mxu0 %v1932
    %v9194 = vpop.f32.mrf.mxu0
    %v9195 = vadd.f32 %v9182, %v9194
    %v9196 = vpop.f32.mrf.mxu0
    %9197 = vdwg.mxu0
    %9198 = vmatpush.bf16.msra.mxu0 %v6568
    %9199 = vmatpush.bf16.msra.mxu0 %v6562
    %9200 = vmatpush.bf16.msra.mxu0 %v6556
    %9201 = vmatpush.bf16.msra.mxu0 %v6550
    %9202 = vmatpush.bf16.msra.mxu0 %v6544
    %9203 = vmatpush.bf16.msra.mxu0 %v6538
    %9204 = vmatpush.bf16.msra.mxu0 %v6532
    %9205 = vmatpush.bf16.msra.mxu0 %v6526
    %9206 = vmatmul.bf16.gmra.mxu0 %v1933
    %v9207 = vpop.f32.mrf.mxu0
    %v9208 = vadd.f32 %v9195, %v9207
    %v9209 = vpop.f32.mrf.mxu0
    %9210 = vdwg.mxu0
    %9211 = vmatpush.bf16.msra.mxu0 %v6616
    %9212 = vmatpush.bf16.msra.mxu0 %v6610
    %9213 = vmatpush.bf16.msra.mxu0 %v6604
    %9214 = vmatpush.bf16.msra.mxu0 %v6598
    %9215 = vmatpush.bf16.msra.mxu0 %v6592
    %9216 = vmatpush.bf16.msra.mxu0 %v6586
    %9217 = vmatpush.bf16.msra.mxu0 %v6580
    %9218 = vmatpush.bf16.msra.mxu0 %v6574
    %9219 = vmatmul.bf16.gmra.mxu0 %v1934
    %v9220 = vpop.f32.mrf.mxu0
    %v9221 = vadd.f32 %v9208, %v9220
    %v9222 = vpop.f32.mrf.mxu0
    %9223 = vdwg.mxu0
    %9224 = vmatpush.bf16.msra.mxu0 %v6664
    %9225 = vmatpush.bf16.msra.mxu0 %v6658
    %9226 = vmatpush.bf16.msra.mxu0 %v6652
    %9227 = vmatpush.bf16.msra.mxu0 %v6646
    %9228 = vmatpush.bf16.msra.mxu0 %v6640
    %9229 = vmatpush.bf16.msra.mxu0 %v6634
    %9230 = vmatpush.bf16.msra.mxu0 %v6628
    %9231 = vmatpush.bf16.msra.mxu0 %v6622
    %9232 = vmatmul.bf16.gmra.mxu0 %v1935
    %v9233 = vpop.f32.mrf.mxu0
    %v9234 = vadd.f32 %v9221, %v9233
    %v9235 = vpop.f32.mrf.mxu0
    %9236 = vdwg.mxu0
    %9237 = vmatpush.bf16.msra.mxu0 %v6712
    %9238 = vmatpush.bf16.msra.mxu0 %v6706
    %9239 = vmatpush.bf16.msra.mxu0 %v6700
    %9240 = vmatpush.bf16.msra.mxu0 %v6694
    %9241 = vmatpush.bf16.msra.mxu0 %v6688
    %9242 = vmatpush.bf16.msra.mxu0 %v6682
    %9243 = vmatpush.bf16.msra.mxu0 %v6676
    %9244 = vmatpush.bf16.msra.mxu0 %v6670
    %9245 = vmatmul.bf16.gmra.mxu0 %v1936
    %v9246 = vpop.f32.mrf.mxu0
    %v9247 = vadd.f32 %v9234, %v9246
    %v9248 = vpop.f32.mrf.mxu0
    %9249 = vdwg.mxu0
    %9250 = vmatpush.bf16.msra.mxu0 %v6760
    %9251 = vmatpush.bf16.msra.mxu0 %v6754
    %9252 = vmatpush.bf16.msra.mxu0 %v6748
    %9253 = vmatpush.bf16.msra.mxu0 %v6742
    %9254 = vmatpush.bf16.msra.mxu0 %v6736
    %9255 = vmatpush.bf16.msra.mxu0 %v6730
    %9256 = vmatpush.bf16.msra.mxu0 %v6724
    %9257 = vmatpush.bf16.msra.mxu0 %v6718
    %9258 = vmatmul.bf16.gmra.mxu0 %v1937
    %v9259 = vpop.f32.mrf.mxu0
    %v9260 = vadd.f32 %v9247, %v9259
    %v9261 = vpop.f32.mrf.mxu0
    %9262 = vdwg.mxu0
    %9263 = vmatpush.bf16.msra.mxu0 %v5609
    %9264 = vmatpush.bf16.msra.mxu0 %v5603
    %9265 = vmatpush.bf16.msra.mxu0 %v5597
    %9266 = vmatpush.bf16.msra.mxu0 %v5591
    %9267 = vmatpush.bf16.msra.mxu0 %v5585
    %9268 = vmatpush.bf16.msra.mxu0 %v5579
    %9269 = vmatpush.bf16.msra.mxu0 %v5573
    %9270 = vmatpush.bf16.msra.mxu0 %v5567
    %9271 = vmatmul.bf16.gmra.mxu0 %v1913
    %v9272 = vpop.f32.mrf.mxu0
    %v9273 = vadd.f32 %v1867, %v9272
    %v9274 = vpop.f32.mrf.mxu0
    %9275 = vdwg.mxu0
    %9276 = vmatpush.bf16.msra.mxu0 %v5657
    %9277 = vmatpush.bf16.msra.mxu0 %v5651
    %9278 = vmatpush.bf16.msra.mxu0 %v5645
    %9279 = vmatpush.bf16.msra.mxu0 %v5639
    %9280 = vmatpush.bf16.msra.mxu0 %v5633
    %9281 = vmatpush.bf16.msra.mxu0 %v5627
    %9282 = vmatpush.bf16.msra.mxu0 %v5621
    %9283 = vmatpush.bf16.msra.mxu0 %v5615
    %9284 = vmatmul.bf16.gmra.mxu0 %v1914
    %v9285 = vpop.f32.mrf.mxu0
    %v9286 = vadd.f32 %v9273, %v9285
    %v9287 = vpop.f32.mrf.mxu0
    %9288 = vdwg.mxu0
    %9289 = vmatpush.bf16.msra.mxu0 %v5705
    %9290 = vmatpush.bf16.msra.mxu0 %v5699
    %9291 = vmatpush.bf16.msra.mxu0 %v5693
    %9292 = vmatpush.bf16.msra.mxu0 %v5687
    %9293 = vmatpush.bf16.msra.mxu0 %v5681
    %9294 = vmatpush.bf16.msra.mxu0 %v5675
    %9295 = vmatpush.bf16.msra.mxu0 %v5669
    %9296 = vmatpush.bf16.msra.mxu0 %v5663
    %9297 = vmatmul.bf16.gmra.mxu0 %v1915
    %v9298 = vpop.f32.mrf.mxu0
    %v9299 = vadd.f32 %v9286, %v9298
    %v9300 = vpop.f32.mrf.mxu0
    %9301 = vdwg.mxu0
    %9302 = vmatpush.bf16.msra.mxu0 %v5753
    %9303 = vmatpush.bf16.msra.mxu0 %v5747
    %9304 = vmatpush.bf16.msra.mxu0 %v5741
    %9305 = vmatpush.bf16.msra.mxu0 %v5735
    %9306 = vmatpush.bf16.msra.mxu0 %v5729
    %9307 = vmatpush.bf16.msra.mxu0 %v5723
    %9308 = vmatpush.bf16.msra.mxu0 %v5717
    %9309 = vmatpush.bf16.msra.mxu0 %v5711
    %9310 = vmatmul.bf16.gmra.mxu0 %v1916
    %v9311 = vpop.f32.mrf.mxu0
    %v9312 = vadd.f32 %v9299, %v9311
    %v9313 = vpop.f32.mrf.mxu0
    %9314 = vdwg.mxu0
    %9315 = vmatpush.bf16.msra.mxu0 %v5801
    %9316 = vmatpush.bf16.msra.mxu0 %v5795
    %9317 = vmatpush.bf16.msra.mxu0 %v5789
    %9318 = vmatpush.bf16.msra.mxu0 %v5783
    %9319 = vmatpush.bf16.msra.mxu0 %v5777
    %9320 = vmatpush.bf16.msra.mxu0 %v5771
    %9321 = vmatpush.bf16.msra.mxu0 %v5765
    %9322 = vmatpush.bf16.msra.mxu0 %v5759
    %9323 = vmatmul.bf16.gmra.mxu0 %v1917
    %v9324 = vpop.f32.mrf.mxu0
    %v9325 = vadd.f32 %v9312, %v9324
    %v9326 = vpop.f32.mrf.mxu0
    %9327 = vdwg.mxu0
    %9328 = vmatpush.bf16.msra.mxu0 %v5849
    %9329 = vmatpush.bf16.msra.mxu0 %v5843
    %9330 = vmatpush.bf16.msra.mxu0 %v5837
    %9331 = vmatpush.bf16.msra.mxu0 %v5831
    %9332 = vmatpush.bf16.msra.mxu0 %v5825
    %9333 = vmatpush.bf16.msra.mxu0 %v5819
    %9334 = vmatpush.bf16.msra.mxu0 %v5813
    %9335 = vmatpush.bf16.msra.mxu0 %v5807
    %9336 = vmatmul.bf16.gmra.mxu0 %v1918
    %v9337 = vpop.f32.mrf.mxu0
    %v9338 = vadd.f32 %v9325, %v9337
    %v9339 = vpop.f32.mrf.mxu0
    %9340 = vdwg.mxu0
    %9341 = vmatpush.bf16.msra.mxu0 %v5897
    %9342 = vmatpush.bf16.msra.mxu0 %v5891
    %9343 = vmatpush.bf16.msra.mxu0 %v5885
    %9344 = vmatpush.bf16.msra.mxu0 %v5879
    %9345 = vmatpush.bf16.msra.mxu0 %v5873
    %9346 = vmatpush.bf16.msra.mxu0 %v5867
    %9347 = vmatpush.bf16.msra.mxu0 %v5861
    %9348 = vmatpush.bf16.msra.mxu0 %v5855
    %9349 = vmatmul.bf16.gmra.mxu0 %v1919
    %v9350 = vpop.f32.mrf.mxu0
    %v9351 = vadd.f32 %v9338, %v9350
    %v9352 = vpop.f32.mrf.mxu0
    %9353 = vdwg.mxu0
    %9354 = vmatpush.bf16.msra.mxu0 %v5945
    %9355 = vmatpush.bf16.msra.mxu0 %v5939
    %9356 = vmatpush.bf16.msra.mxu0 %v5933
    %9357 = vmatpush.bf16.msra.mxu0 %v5927
    %9358 = vmatpush.bf16.msra.mxu0 %v5921
    %9359 = vmatpush.bf16.msra.mxu0 %v5915
    %9360 = vmatpush.bf16.msra.mxu0 %v5909
    %9361 = vmatpush.bf16.msra.mxu0 %v5903
    %9362 = vmatmul.bf16.gmra.mxu0 %v1920
    %v9363 = vpop.f32.mrf.mxu0
    %v9364 = vadd.f32 %v9351, %v9363
    %v9365 = vpop.f32.mrf.mxu0
    %9366 = vdwg.mxu0
    %9367 = vmatpush.bf16.msra.mxu0 %v5993
    %9368 = vmatpush.bf16.msra.mxu0 %v5987
    %9369 = vmatpush.bf16.msra.mxu0 %v5981
    %9370 = vmatpush.bf16.msra.mxu0 %v5975
    %9371 = vmatpush.bf16.msra.mxu0 %v5969
    %9372 = vmatpush.bf16.msra.mxu0 %v5963
    %9373 = vmatpush.bf16.msra.mxu0 %v5957
    %9374 = vmatpush.bf16.msra.mxu0 %v5951
    %9375 = vmatmul.bf16.gmra.mxu0 %v1921
    %v9376 = vpop.f32.mrf.mxu0
    %v9377 = vadd.f32 %v9364, %v9376
    %v9378 = vpop.f32.mrf.mxu0
    %9379 = vdwg.mxu0
    %9380 = vmatpush.bf16.msra.mxu0 %v6041
    %9381 = vmatpush.bf16.msra.mxu0 %v6035
    %9382 = vmatpush.bf16.msra.mxu0 %v6029
    %9383 = vmatpush.bf16.msra.mxu0 %v6023
    %9384 = vmatpush.bf16.msra.mxu0 %v6017
    %9385 = vmatpush.bf16.msra.mxu0 %v6011
    %9386 = vmatpush.bf16.msra.mxu0 %v6005
    %9387 = vmatpush.bf16.msra.mxu0 %v5999
    %9388 = vmatmul.bf16.gmra.mxu0 %v1922
    %v9389 = vpop.f32.mrf.mxu0
    %v9390 = vadd.f32 %v9377, %v9389
    %v9391 = vpop.f32.mrf.mxu0
    %9392 = vdwg.mxu0
    %9393 = vmatpush.bf16.msra.mxu0 %v6089
    %9394 = vmatpush.bf16.msra.mxu0 %v6083
    %9395 = vmatpush.bf16.msra.mxu0 %v6077
    %9396 = vmatpush.bf16.msra.mxu0 %v6071
    %9397 = vmatpush.bf16.msra.mxu0 %v6065
    %9398 = vmatpush.bf16.msra.mxu0 %v6059
    %9399 = vmatpush.bf16.msra.mxu0 %v6053
    %9400 = vmatpush.bf16.msra.mxu0 %v6047
    %9401 = vmatmul.bf16.gmra.mxu0 %v1923
    %v9402 = vpop.f32.mrf.mxu0
    %v9403 = vadd.f32 %v9390, %v9402
    %v9404 = vpop.f32.mrf.mxu0
    %9405 = vdwg.mxu0
    %9406 = vmatpush.bf16.msra.mxu0 %v6137
    %9407 = vmatpush.bf16.msra.mxu0 %v6131
    %9408 = vmatpush.bf16.msra.mxu0 %v6125
    %9409 = vmatpush.bf16.msra.mxu0 %v6119
    %9410 = vmatpush.bf16.msra.mxu0 %v6113
    %9411 = vmatpush.bf16.msra.mxu0 %v6107
    %9412 = vmatpush.bf16.msra.mxu0 %v6101
    %9413 = vmatpush.bf16.msra.mxu0 %v6095
    %9414 = vmatmul.bf16.gmra.mxu0 %v1924
    %v9415 = vpop.f32.mrf.mxu0
    %v9416 = vadd.f32 %v9403, %v9415
    %v9417 = vpop.f32.mrf.mxu0
    %9418 = vdwg.mxu0
    %9419 = vmatpush.bf16.msra.mxu0 %v6185
    %9420 = vmatpush.bf16.msra.mxu0 %v6179
    %9421 = vmatpush.bf16.msra.mxu0 %v6173
    %9422 = vmatpush.bf16.msra.mxu0 %v6167
    %9423 = vmatpush.bf16.msra.mxu0 %v6161
    %9424 = vmatpush.bf16.msra.mxu0 %v6155
    %9425 = vmatpush.bf16.msra.mxu0 %v6149
    %9426 = vmatpush.bf16.msra.mxu0 %v6143
    %9427 = vmatmul.bf16.gmra.mxu0 %v1925
    %v9428 = vpop.f32.mrf.mxu0
    %v9429 = vadd.f32 %v9416, %v9428
    %v9430 = vpop.f32.mrf.mxu0
    %9431 = vdwg.mxu0
    %9432 = vmatpush.bf16.msra.mxu0 %v6233
    %9433 = vmatpush.bf16.msra.mxu0 %v6227
    %9434 = vmatpush.bf16.msra.mxu0 %v6221
    %9435 = vmatpush.bf16.msra.mxu0 %v6215
    %9436 = vmatpush.bf16.msra.mxu0 %v6209
    %9437 = vmatpush.bf16.msra.mxu0 %v6203
    %9438 = vmatpush.bf16.msra.mxu0 %v6197
    %9439 = vmatpush.bf16.msra.mxu0 %v6191
    %9440 = vmatmul.bf16.gmra.mxu0 %v1926
    %v9441 = vpop.f32.mrf.mxu0
    %v9442 = vadd.f32 %v9429, %v9441
    %v9443 = vpop.f32.mrf.mxu0
    %9444 = vdwg.mxu0
    %9445 = vmatpush.bf16.msra.mxu0 %v6281
    %9446 = vmatpush.bf16.msra.mxu0 %v6275
    %9447 = vmatpush.bf16.msra.mxu0 %v6269
    %9448 = vmatpush.bf16.msra.mxu0 %v6263
    %9449 = vmatpush.bf16.msra.mxu0 %v6257
    %9450 = vmatpush.bf16.msra.mxu0 %v6251
    %9451 = vmatpush.bf16.msra.mxu0 %v6245
    %9452 = vmatpush.bf16.msra.mxu0 %v6239
    %9453 = vmatmul.bf16.gmra.mxu0 %v1927
    %v9454 = vpop.f32.mrf.mxu0
    %v9455 = vadd.f32 %v9442, %v9454
    %v9456 = vpop.f32.mrf.mxu0
    %9457 = vdwg.mxu0
    %9458 = vmatpush.bf16.msra.mxu0 %v6329
    %9459 = vmatpush.bf16.msra.mxu0 %v6323
    %9460 = vmatpush.bf16.msra.mxu0 %v6317
    %9461 = vmatpush.bf16.msra.mxu0 %v6311
    %9462 = vmatpush.bf16.msra.mxu0 %v6305
    %9463 = vmatpush.bf16.msra.mxu0 %v6299
    %9464 = vmatpush.bf16.msra.mxu0 %v6293
    %9465 = vmatpush.bf16.msra.mxu0 %v6287
    %9466 = vmatmul.bf16.gmra.mxu0 %v1928
    %v9467 = vpop.f32.mrf.mxu0
    %v9468 = vadd.f32 %v9455, %v9467
    %v9469 = vpop.f32.mrf.mxu0
    %9470 = vdwg.mxu0
    %9471 = vmatpush.bf16.msra.mxu0 %v6377
    %9472 = vmatpush.bf16.msra.mxu0 %v6371
    %9473 = vmatpush.bf16.msra.mxu0 %v6365
    %9474 = vmatpush.bf16.msra.mxu0 %v6359
    %9475 = vmatpush.bf16.msra.mxu0 %v6353
    %9476 = vmatpush.bf16.msra.mxu0 %v6347
    %9477 = vmatpush.bf16.msra.mxu0 %v6341
    %9478 = vmatpush.bf16.msra.mxu0 %v6335
    %9479 = vmatmul.bf16.gmra.mxu0 %v1929
    %v9480 = vpop.f32.mrf.mxu0
    %v9481 = vadd.f32 %v9468, %v9480
    %v9482 = vpop.f32.mrf.mxu0
    %9483 = vdwg.mxu0
    %9484 = vmatpush.bf16.msra.mxu0 %v6425
    %9485 = vmatpush.bf16.msra.mxu0 %v6419
    %9486 = vmatpush.bf16.msra.mxu0 %v6413
    %9487 = vmatpush.bf16.msra.mxu0 %v6407
    %9488 = vmatpush.bf16.msra.mxu0 %v6401
    %9489 = vmatpush.bf16.msra.mxu0 %v6395
    %9490 = vmatpush.bf16.msra.mxu0 %v6389
    %9491 = vmatpush.bf16.msra.mxu0 %v6383
    %9492 = vmatmul.bf16.gmra.mxu0 %v1930
    %v9493 = vpop.f32.mrf.mxu0
    %v9494 = vadd.f32 %v9481, %v9493
    %v9495 = vpop.f32.mrf.mxu0
    %9496 = vdwg.mxu0
    %9497 = vmatpush.bf16.msra.mxu0 %v6473
    %9498 = vmatpush.bf16.msra.mxu0 %v6467
    %9499 = vmatpush.bf16.msra.mxu0 %v6461
    %9500 = vmatpush.bf16.msra.mxu0 %v6455
    %9501 = vmatpush.bf16.msra.mxu0 %v6449
    %9502 = vmatpush.bf16.msra.mxu0 %v6443
    %9503 = vmatpush.bf16.msra.mxu0 %v6437
    %9504 = vmatpush.bf16.msra.mxu0 %v6431
    %9505 = vmatmul.bf16.gmra.mxu0 %v1931
    %v9506 = vpop.f32.mrf.mxu0
    %v9507 = vadd.f32 %v9494, %v9506
    %v9508 = vpop.f32.mrf.mxu0
    %9509 = vdwg.mxu0
    %9510 = vmatpush.bf16.msra.mxu0 %v6521
    %9511 = vmatpush.bf16.msra.mxu0 %v6515
    %9512 = vmatpush.bf16.msra.mxu0 %v6509
    %9513 = vmatpush.bf16.msra.mxu0 %v6503
    %9514 = vmatpush.bf16.msra.mxu0 %v6497
    %9515 = vmatpush.bf16.msra.mxu0 %v6491
    %9516 = vmatpush.bf16.msra.mxu0 %v6485
    %9517 = vmatpush.bf16.msra.mxu0 %v6479
    %9518 = vmatmul.bf16.gmra.mxu0 %v1932
    %v9519 = vpop.f32.mrf.mxu0
    %v9520 = vadd.f32 %v9507, %v9519
    %v9521 = vpop.f32.mrf.mxu0
    %9522 = vdwg.mxu0
    %9523 = vmatpush.bf16.msra.mxu0 %v6569
    %9524 = vmatpush.bf16.msra.mxu0 %v6563
    %9525 = vmatpush.bf16.msra.mxu0 %v6557
    %9526 = vmatpush.bf16.msra.mxu0 %v6551
    %9527 = vmatpush.bf16.msra.mxu0 %v6545
    %9528 = vmatpush.bf16.msra.mxu0 %v6539
    %9529 = vmatpush.bf16.msra.mxu0 %v6533
    %9530 = vmatpush.bf16.msra.mxu0 %v6527
    %9531 = vmatmul.bf16.gmra.mxu0 %v1933
    %v9532 = vpop.f32.mrf.mxu0
    %v9533 = vadd.f32 %v9520, %v9532
    %v9534 = vpop.f32.mrf.mxu0
    %9535 = vdwg.mxu0
    %9536 = vmatpush.bf16.msra.mxu0 %v6617
    %9537 = vmatpush.bf16.msra.mxu0 %v6611
    %9538 = vmatpush.bf16.msra.mxu0 %v6605
    %9539 = vmatpush.bf16.msra.mxu0 %v6599
    %9540 = vmatpush.bf16.msra.mxu0 %v6593
    %9541 = vmatpush.bf16.msra.mxu0 %v6587
    %9542 = vmatpush.bf16.msra.mxu0 %v6581
    %9543 = vmatpush.bf16.msra.mxu0 %v6575
    %9544 = vmatmul.bf16.gmra.mxu0 %v1934
    %v9545 = vpop.f32.mrf.mxu0
    %v9546 = vadd.f32 %v9533, %v9545
    %v9547 = vpop.f32.mrf.mxu0
    %9548 = vdwg.mxu0
    %9549 = vmatpush.bf16.msra.mxu0 %v6665
    %9550 = vmatpush.bf16.msra.mxu0 %v6659
    %9551 = vmatpush.bf16.msra.mxu0 %v6653
    %9552 = vmatpush.bf16.msra.mxu0 %v6647
    %9553 = vmatpush.bf16.msra.mxu0 %v6641
    %9554 = vmatpush.bf16.msra.mxu0 %v6635
    %9555 = vmatpush.bf16.msra.mxu0 %v6629
    %9556 = vmatpush.bf16.msra.mxu0 %v6623
    %9557 = vmatmul.bf16.gmra.mxu0 %v1935
    %v9558 = vpop.f32.mrf.mxu0
    %v9559 = vadd.f32 %v9546, %v9558
    %v9560 = vpop.f32.mrf.mxu0
    %9561 = vdwg.mxu0
    %9562 = vmatpush.bf16.msra.mxu0 %v6713
    %9563 = vmatpush.bf16.msra.mxu0 %v6707
    %9564 = vmatpush.bf16.msra.mxu0 %v6701
    %9565 = vmatpush.bf16.msra.mxu0 %v6695
    %9566 = vmatpush.bf16.msra.mxu0 %v6689
    %9567 = vmatpush.bf16.msra.mxu0 %v6683
    %9568 = vmatpush.bf16.msra.mxu0 %v6677
    %9569 = vmatpush.bf16.msra.mxu0 %v6671
    %9570 = vmatmul.bf16.gmra.mxu0 %v1936
    %v9571 = vpop.f32.mrf.mxu0
    %v9572 = vadd.f32 %v9559, %v9571
    %v9573 = vpop.f32.mrf.mxu0
    %9574 = vdwg.mxu0
    %9575 = vmatpush.bf16.msra.mxu0 %v6761
    %9576 = vmatpush.bf16.msra.mxu0 %v6755
    %9577 = vmatpush.bf16.msra.mxu0 %v6749
    %9578 = vmatpush.bf16.msra.mxu0 %v6743
    %9579 = vmatpush.bf16.msra.mxu0 %v6737
    %9580 = vmatpush.bf16.msra.mxu0 %v6731
    %9581 = vmatpush.bf16.msra.mxu0 %v6725
    %9582 = vmatpush.bf16.msra.mxu0 %v6719
    %9583 = vmatmul.bf16.gmra.mxu0 %v1937
    %v9584 = vpop.f32.mrf.mxu0
    %v9585 = vadd.f32 %v9572, %v9584
    %v9586 = vpop.f32.mrf.mxu0
    %9587 = vdwg.mxu0
    %9588 = vmatpush.bf16.msra.mxu0 %v5610
    %9589 = vmatpush.bf16.msra.mxu0 %v5604
    %9590 = vmatpush.bf16.msra.mxu0 %v5598
    %9591 = vmatpush.bf16.msra.mxu0 %v5592
    %9592 = vmatpush.bf16.msra.mxu0 %v5586
    %9593 = vmatpush.bf16.msra.mxu0 %v5580
    %9594 = vmatpush.bf16.msra.mxu0 %v5574
    %9595 = vmatpush.bf16.msra.mxu0 %v5568
    %9596 = vmatmul.bf16.gmra.mxu0 %v1913
    %v9597 = vpop.f32.mrf.mxu0
    %v9598 = vadd.f32 %v1868, %v9597
    %v9599 = vpop.f32.mrf.mxu0
    %9600 = vdwg.mxu0
    %9601 = vmatpush.bf16.msra.mxu0 %v5658
    %9602 = vmatpush.bf16.msra.mxu0 %v5652
    %9603 = vmatpush.bf16.msra.mxu0 %v5646
    %9604 = vmatpush.bf16.msra.mxu0 %v5640
    %9605 = vmatpush.bf16.msra.mxu0 %v5634
    %9606 = vmatpush.bf16.msra.mxu0 %v5628
    %9607 = vmatpush.bf16.msra.mxu0 %v5622
    %9608 = vmatpush.bf16.msra.mxu0 %v5616
    %9609 = vmatmul.bf16.gmra.mxu0 %v1914
    %v9610 = vpop.f32.mrf.mxu0
    %v9611 = vadd.f32 %v9598, %v9610
    %v9612 = vpop.f32.mrf.mxu0
    %9613 = vdwg.mxu0
    %9614 = vmatpush.bf16.msra.mxu0 %v5706
    %9615 = vmatpush.bf16.msra.mxu0 %v5700
    %9616 = vmatpush.bf16.msra.mxu0 %v5694
    %9617 = vmatpush.bf16.msra.mxu0 %v5688
    %9618 = vmatpush.bf16.msra.mxu0 %v5682
    %9619 = vmatpush.bf16.msra.mxu0 %v5676
    %9620 = vmatpush.bf16.msra.mxu0 %v5670
    %9621 = vmatpush.bf16.msra.mxu0 %v5664
    %9622 = vmatmul.bf16.gmra.mxu0 %v1915
    %v9623 = vpop.f32.mrf.mxu0
    %v9624 = vadd.f32 %v9611, %v9623
    %v9625 = vpop.f32.mrf.mxu0
    %9626 = vdwg.mxu0
    %9627 = vmatpush.bf16.msra.mxu0 %v5754
    %9628 = vmatpush.bf16.msra.mxu0 %v5748
    %9629 = vmatpush.bf16.msra.mxu0 %v5742
    %9630 = vmatpush.bf16.msra.mxu0 %v5736
    %9631 = vmatpush.bf16.msra.mxu0 %v5730
    %9632 = vmatpush.bf16.msra.mxu0 %v5724
    %9633 = vmatpush.bf16.msra.mxu0 %v5718
    %9634 = vmatpush.bf16.msra.mxu0 %v5712
    %9635 = vmatmul.bf16.gmra.mxu0 %v1916
    %v9636 = vpop.f32.mrf.mxu0
    %v9637 = vadd.f32 %v9624, %v9636
    %v9638 = vpop.f32.mrf.mxu0
    %9639 = vdwg.mxu0
    %9640 = vmatpush.bf16.msra.mxu0 %v5802
    %9641 = vmatpush.bf16.msra.mxu0 %v5796
    %9642 = vmatpush.bf16.msra.mxu0 %v5790
    %9643 = vmatpush.bf16.msra.mxu0 %v5784
    %9644 = vmatpush.bf16.msra.mxu0 %v5778
    %9645 = vmatpush.bf16.msra.mxu0 %v5772
    %9646 = vmatpush.bf16.msra.mxu0 %v5766
    %9647 = vmatpush.bf16.msra.mxu0 %v5760
    %9648 = vmatmul.bf16.gmra.mxu0 %v1917
    %v9649 = vpop.f32.mrf.mxu0
    %v9650 = vadd.f32 %v9637, %v9649
    %v9651 = vpop.f32.mrf.mxu0
    %9652 = vdwg.mxu0
    %9653 = vmatpush.bf16.msra.mxu0 %v5850
    %9654 = vmatpush.bf16.msra.mxu0 %v5844
    %9655 = vmatpush.bf16.msra.mxu0 %v5838
    %9656 = vmatpush.bf16.msra.mxu0 %v5832
    %9657 = vmatpush.bf16.msra.mxu0 %v5826
    %9658 = vmatpush.bf16.msra.mxu0 %v5820
    %9659 = vmatpush.bf16.msra.mxu0 %v5814
    %9660 = vmatpush.bf16.msra.mxu0 %v5808
    %9661 = vmatmul.bf16.gmra.mxu0 %v1918
    %v9662 = vpop.f32.mrf.mxu0
    %v9663 = vadd.f32 %v9650, %v9662
    %v9664 = vpop.f32.mrf.mxu0
    %9665 = vdwg.mxu0
    %9666 = vmatpush.bf16.msra.mxu0 %v5898
    %9667 = vmatpush.bf16.msra.mxu0 %v5892
    %9668 = vmatpush.bf16.msra.mxu0 %v5886
    %9669 = vmatpush.bf16.msra.mxu0 %v5880
    %9670 = vmatpush.bf16.msra.mxu0 %v5874
    %9671 = vmatpush.bf16.msra.mxu0 %v5868
    %9672 = vmatpush.bf16.msra.mxu0 %v5862
    %9673 = vmatpush.bf16.msra.mxu0 %v5856
    %9674 = vmatmul.bf16.gmra.mxu0 %v1919
    %v9675 = vpop.f32.mrf.mxu0
    %v9676 = vadd.f32 %v9663, %v9675
    %v9677 = vpop.f32.mrf.mxu0
    %9678 = vdwg.mxu0
    %9679 = vmatpush.bf16.msra.mxu0 %v5946
    %9680 = vmatpush.bf16.msra.mxu0 %v5940
    %9681 = vmatpush.bf16.msra.mxu0 %v5934
    %9682 = vmatpush.bf16.msra.mxu0 %v5928
    %9683 = vmatpush.bf16.msra.mxu0 %v5922
    %9684 = vmatpush.bf16.msra.mxu0 %v5916
    %9685 = vmatpush.bf16.msra.mxu0 %v5910
    %9686 = vmatpush.bf16.msra.mxu0 %v5904
    %9687 = vmatmul.bf16.gmra.mxu0 %v1920
    %v9688 = vpop.f32.mrf.mxu0
    %v9689 = vadd.f32 %v9676, %v9688
    %v9690 = vpop.f32.mrf.mxu0
    %9691 = vdwg.mxu0
    %9692 = vmatpush.bf16.msra.mxu0 %v5994
    %9693 = vmatpush.bf16.msra.mxu0 %v5988
    %9694 = vmatpush.bf16.msra.mxu0 %v5982
    %9695 = vmatpush.bf16.msra.mxu0 %v5976
    %9696 = vmatpush.bf16.msra.mxu0 %v5970
    %9697 = vmatpush.bf16.msra.mxu0 %v5964
    %9698 = vmatpush.bf16.msra.mxu0 %v5958
    %9699 = vmatpush.bf16.msra.mxu0 %v5952
    %9700 = vmatmul.bf16.gmra.mxu0 %v1921
    %v9701 = vpop.f32.mrf.mxu0
    %v9702 = vadd.f32 %v9689, %v9701
    %v9703 = vpop.f32.mrf.mxu0
    %9704 = vdwg.mxu0
    %9705 = vmatpush.bf16.msra.mxu0 %v6042
    %9706 = vmatpush.bf16.msra.mxu0 %v6036
    %9707 = vmatpush.bf16.msra.mxu0 %v6030
    %9708 = vmatpush.bf16.msra.mxu0 %v6024
    %9709 = vmatpush.bf16.msra.mxu0 %v6018
    %9710 = vmatpush.bf16.msra.mxu0 %v6012
    %9711 = vmatpush.bf16.msra.mxu0 %v6006
    %9712 = vmatpush.bf16.msra.mxu0 %v6000
    %9713 = vmatmul.bf16.gmra.mxu0 %v1922
    %v9714 = vpop.f32.mrf.mxu0
    %v9715 = vadd.f32 %v9702, %v9714
    %v9716 = vpop.f32.mrf.mxu0
    %9717 = vdwg.mxu0
    %9718 = vmatpush.bf16.msra.mxu0 %v6090
    %9719 = vmatpush.bf16.msra.mxu0 %v6084
    %9720 = vmatpush.bf16.msra.mxu0 %v6078
    %9721 = vmatpush.bf16.msra.mxu0 %v6072
    %9722 = vmatpush.bf16.msra.mxu0 %v6066
    %9723 = vmatpush.bf16.msra.mxu0 %v6060
    %9724 = vmatpush.bf16.msra.mxu0 %v6054
    %9725 = vmatpush.bf16.msra.mxu0 %v6048
    %9726 = vmatmul.bf16.gmra.mxu0 %v1923
    %v9727 = vpop.f32.mrf.mxu0
    %v9728 = vadd.f32 %v9715, %v9727
    %v9729 = vpop.f32.mrf.mxu0
    %9730 = vdwg.mxu0
    %9731 = vmatpush.bf16.msra.mxu0 %v6138
    %9732 = vmatpush.bf16.msra.mxu0 %v6132
    %9733 = vmatpush.bf16.msra.mxu0 %v6126
    %9734 = vmatpush.bf16.msra.mxu0 %v6120
    %9735 = vmatpush.bf16.msra.mxu0 %v6114
    %9736 = vmatpush.bf16.msra.mxu0 %v6108
    %9737 = vmatpush.bf16.msra.mxu0 %v6102
    %9738 = vmatpush.bf16.msra.mxu0 %v6096
    %9739 = vmatmul.bf16.gmra.mxu0 %v1924
    %v9740 = vpop.f32.mrf.mxu0
    %v9741 = vadd.f32 %v9728, %v9740
    %v9742 = vpop.f32.mrf.mxu0
    %9743 = vdwg.mxu0
    %9744 = vmatpush.bf16.msra.mxu0 %v6186
    %9745 = vmatpush.bf16.msra.mxu0 %v6180
    %9746 = vmatpush.bf16.msra.mxu0 %v6174
    %9747 = vmatpush.bf16.msra.mxu0 %v6168
    %9748 = vmatpush.bf16.msra.mxu0 %v6162
    %9749 = vmatpush.bf16.msra.mxu0 %v6156
    %9750 = vmatpush.bf16.msra.mxu0 %v6150
    %9751 = vmatpush.bf16.msra.mxu0 %v6144
    %9752 = vmatmul.bf16.gmra.mxu0 %v1925
    %v9753 = vpop.f32.mrf.mxu0
    %v9754 = vadd.f32 %v9741, %v9753
    %v9755 = vpop.f32.mrf.mxu0
    %9756 = vdwg.mxu0
    %9757 = vmatpush.bf16.msra.mxu0 %v6234
    %9758 = vmatpush.bf16.msra.mxu0 %v6228
    %9759 = vmatpush.bf16.msra.mxu0 %v6222
    %9760 = vmatpush.bf16.msra.mxu0 %v6216
    %9761 = vmatpush.bf16.msra.mxu0 %v6210
    %9762 = vmatpush.bf16.msra.mxu0 %v6204
    %9763 = vmatpush.bf16.msra.mxu0 %v6198
    %9764 = vmatpush.bf16.msra.mxu0 %v6192
    %9765 = vmatmul.bf16.gmra.mxu0 %v1926
    %v9766 = vpop.f32.mrf.mxu0
    %v9767 = vadd.f32 %v9754, %v9766
    %v9768 = vpop.f32.mrf.mxu0
    %9769 = vdwg.mxu0
    %9770 = vmatpush.bf16.msra.mxu0 %v6282
    %9771 = vmatpush.bf16.msra.mxu0 %v6276
    %9772 = vmatpush.bf16.msra.mxu0 %v6270
    %9773 = vmatpush.bf16.msra.mxu0 %v6264
    %9774 = vmatpush.bf16.msra.mxu0 %v6258
    %9775 = vmatpush.bf16.msra.mxu0 %v6252
    %9776 = vmatpush.bf16.msra.mxu0 %v6246
    %9777 = vmatpush.bf16.msra.mxu0 %v6240
    %9778 = vmatmul.bf16.gmra.mxu0 %v1927
    %v9779 = vpop.f32.mrf.mxu0
    %v9780 = vadd.f32 %v9767, %v9779
    %v9781 = vpop.f32.mrf.mxu0
    %9782 = vdwg.mxu0
    %9783 = vmatpush.bf16.msra.mxu0 %v6330
    %9784 = vmatpush.bf16.msra.mxu0 %v6324
    %9785 = vmatpush.bf16.msra.mxu0 %v6318
    %9786 = vmatpush.bf16.msra.mxu0 %v6312
    %9787 = vmatpush.bf16.msra.mxu0 %v6306
    %9788 = vmatpush.bf16.msra.mxu0 %v6300
    %9789 = vmatpush.bf16.msra.mxu0 %v6294
    %9790 = vmatpush.bf16.msra.mxu0 %v6288
    %9791 = vmatmul.bf16.gmra.mxu0 %v1928
    %v9792 = vpop.f32.mrf.mxu0
    %v9793 = vadd.f32 %v9780, %v9792
    %v9794 = vpop.f32.mrf.mxu0
    %9795 = vdwg.mxu0
    %9796 = vmatpush.bf16.msra.mxu0 %v6378
    %9797 = vmatpush.bf16.msra.mxu0 %v6372
    %9798 = vmatpush.bf16.msra.mxu0 %v6366
    %9799 = vmatpush.bf16.msra.mxu0 %v6360
    %9800 = vmatpush.bf16.msra.mxu0 %v6354
    %9801 = vmatpush.bf16.msra.mxu0 %v6348
    %9802 = vmatpush.bf16.msra.mxu0 %v6342
    %9803 = vmatpush.bf16.msra.mxu0 %v6336
    %9804 = vmatmul.bf16.gmra.mxu0 %v1929
    %v9805 = vpop.f32.mrf.mxu0
    %v9806 = vadd.f32 %v9793, %v9805
    %v9807 = vpop.f32.mrf.mxu0
    %9808 = vdwg.mxu0
    %9809 = vmatpush.bf16.msra.mxu0 %v6426
    %9810 = vmatpush.bf16.msra.mxu0 %v6420
    %9811 = vmatpush.bf16.msra.mxu0 %v6414
    %9812 = vmatpush.bf16.msra.mxu0 %v6408
    %9813 = vmatpush.bf16.msra.mxu0 %v6402
    %9814 = vmatpush.bf16.msra.mxu0 %v6396
    %9815 = vmatpush.bf16.msra.mxu0 %v6390
    %9816 = vmatpush.bf16.msra.mxu0 %v6384
    %9817 = vmatmul.bf16.gmra.mxu0 %v1930
    %v9818 = vpop.f32.mrf.mxu0
    %v9819 = vadd.f32 %v9806, %v9818
    %v9820 = vpop.f32.mrf.mxu0
    %9821 = vdwg.mxu0
    %9822 = vmatpush.bf16.msra.mxu0 %v6474
    %9823 = vmatpush.bf16.msra.mxu0 %v6468
    %9824 = vmatpush.bf16.msra.mxu0 %v6462
    %9825 = vmatpush.bf16.msra.mxu0 %v6456
    %9826 = vmatpush.bf16.msra.mxu0 %v6450
    %9827 = vmatpush.bf16.msra.mxu0 %v6444
    %9828 = vmatpush.bf16.msra.mxu0 %v6438
    %9829 = vmatpush.bf16.msra.mxu0 %v6432
    %9830 = vmatmul.bf16.gmra.mxu0 %v1931
    %v9831 = vpop.f32.mrf.mxu0
    %v9832 = vadd.f32 %v9819, %v9831
    %v9833 = vpop.f32.mrf.mxu0
    %9834 = vdwg.mxu0
    %9835 = vmatpush.bf16.msra.mxu0 %v6522
    %9836 = vmatpush.bf16.msra.mxu0 %v6516
    %9837 = vmatpush.bf16.msra.mxu0 %v6510
    %9838 = vmatpush.bf16.msra.mxu0 %v6504
    %9839 = vmatpush.bf16.msra.mxu0 %v6498
    %9840 = vmatpush.bf16.msra.mxu0 %v6492
    %9841 = vmatpush.bf16.msra.mxu0 %v6486
    %9842 = vmatpush.bf16.msra.mxu0 %v6480
    %9843 = vmatmul.bf16.gmra.mxu0 %v1932
    %v9844 = vpop.f32.mrf.mxu0
    %v9845 = vadd.f32 %v9832, %v9844
    %v9846 = vpop.f32.mrf.mxu0
    %9847 = vdwg.mxu0
    %9848 = vmatpush.bf16.msra.mxu0 %v6570
    %9849 = vmatpush.bf16.msra.mxu0 %v6564
    %9850 = vmatpush.bf16.msra.mxu0 %v6558
    %9851 = vmatpush.bf16.msra.mxu0 %v6552
    %9852 = vmatpush.bf16.msra.mxu0 %v6546
    %9853 = vmatpush.bf16.msra.mxu0 %v6540
    %9854 = vmatpush.bf16.msra.mxu0 %v6534
    %9855 = vmatpush.bf16.msra.mxu0 %v6528
    %9856 = vmatmul.bf16.gmra.mxu0 %v1933
    %v9857 = vpop.f32.mrf.mxu0
    %v9858 = vadd.f32 %v9845, %v9857
    %v9859 = vpop.f32.mrf.mxu0
    %9860 = vdwg.mxu0
    %9861 = vmatpush.bf16.msra.mxu0 %v6618
    %9862 = vmatpush.bf16.msra.mxu0 %v6612
    %9863 = vmatpush.bf16.msra.mxu0 %v6606
    %9864 = vmatpush.bf16.msra.mxu0 %v6600
    %9865 = vmatpush.bf16.msra.mxu0 %v6594
    %9866 = vmatpush.bf16.msra.mxu0 %v6588
    %9867 = vmatpush.bf16.msra.mxu0 %v6582
    %9868 = vmatpush.bf16.msra.mxu0 %v6576
    %9869 = vmatmul.bf16.gmra.mxu0 %v1934
    %v9870 = vpop.f32.mrf.mxu0
    %v9871 = vadd.f32 %v9858, %v9870
    %v9872 = vpop.f32.mrf.mxu0
    %9873 = vdwg.mxu0
    %9874 = vmatpush.bf16.msra.mxu0 %v6666
    %9875 = vmatpush.bf16.msra.mxu0 %v6660
    %9876 = vmatpush.bf16.msra.mxu0 %v6654
    %9877 = vmatpush.bf16.msra.mxu0 %v6648
    %9878 = vmatpush.bf16.msra.mxu0 %v6642
    %9879 = vmatpush.bf16.msra.mxu0 %v6636
    %9880 = vmatpush.bf16.msra.mxu0 %v6630
    %9881 = vmatpush.bf16.msra.mxu0 %v6624
    %9882 = vmatmul.bf16.gmra.mxu0 %v1935
    %v9883 = vpop.f32.mrf.mxu0
    %v9884 = vadd.f32 %v9871, %v9883
    %v9885 = vpop.f32.mrf.mxu0
    %9886 = vdwg.mxu0
    %9887 = vmatpush.bf16.msra.mxu0 %v6714
    %9888 = vmatpush.bf16.msra.mxu0 %v6708
    %9889 = vmatpush.bf16.msra.mxu0 %v6702
    %9890 = vmatpush.bf16.msra.mxu0 %v6696
    %9891 = vmatpush.bf16.msra.mxu0 %v6690
    %9892 = vmatpush.bf16.msra.mxu0 %v6684
    %9893 = vmatpush.bf16.msra.mxu0 %v6678
    %9894 = vmatpush.bf16.msra.mxu0 %v6672
    %9895 = vmatmul.bf16.gmra.mxu0 %v1936
    %v9896 = vpop.f32.mrf.mxu0
    %v9897 = vadd.f32 %v9884, %v9896
    %v9898 = vpop.f32.mrf.mxu0
    %9899 = vdwg.mxu0
    %9900 = vmatpush.bf16.msra.mxu0 %v6762
    %9901 = vmatpush.bf16.msra.mxu0 %v6756
    %9902 = vmatpush.bf16.msra.mxu0 %v6750
    %9903 = vmatpush.bf16.msra.mxu0 %v6744
    %9904 = vmatpush.bf16.msra.mxu0 %v6738
    %9905 = vmatpush.bf16.msra.mxu0 %v6732
    %9906 = vmatpush.bf16.msra.mxu0 %v6726
    %9907 = vmatpush.bf16.msra.mxu0 %v6720
    %9908 = vmatmul.bf16.gmra.mxu0 %v1937
    %v9909 = vpop.f32.mrf.mxu0
    %v9910 = vadd.f32 %v9897, %v9909
    %v9911 = vpop.f32.mrf.mxu0
    %9912 = vdwg.mxu0
    %v9913 = vmax.f32 %v8285, 0.0
    %v9914 = vmax.f32 %v8610, 0.0
    %v9915 = vmax.f32 %v8935, 0.0
    %v9916 = vmax.f32 %v9260, 0.0
    %v9917 = vmax.f32 %v9585, 0.0
    %v9918 = vmax.f32 %v9910, 0.0
    %v9919 = vpack.c.bf16 %v9913, %v9913
    %v9920 = vpack.c.bf16 %v9914, %v9914
    %v9921 = vpack.c.bf16 %v9915, %v9915
    %v9922 = vpack.c.bf16 %v9916, %v9916
    %v9923 = vpack.c.bf16 %v9917, %v9917
    %v9924 = vpack.c.bf16 %v9918, %v9918
    %v9925 = vld [vmem:[#allocation11] sm:$0xf]
    %v9926 = vld [vmem:[#allocation11 + $0x4] sm:$0xf]
    %v9927 = vld [vmem:[#allocation11 + $0x8] sm:$0xf]
    %v9928 = vld [vmem:[#allocation11 + $0xc] sm:$0xf]
    %v9929 = vld [vmem:[#allocation11 + $0x10] sm:$0xf]
    %v9930 = vld [vmem:[#allocation11 + $0x14] sm:$0xf]
    %v9931 = vld [vmem:[#allocation11 + $0x18] sm:$0xf]
    %v9932 = vld [vmem:[#allocation11 + $0x1c] sm:$0xf]
    %v9933 = vld [vmem:[#allocation11 + $0x20] sm:$0xf]
    %v9934 = vld [vmem:[#allocation11 + $0x24] sm:$0xf]
    %v9935 = vld [vmem:[#allocation11 + $0x28] sm:$0xf]
    %v9936 = vld [vmem:[#allocation11 + $0x2c] sm:$0xf]
    %v9937 = vld [vmem:[#allocation11 + $0x30] sm:$0xf]
    %v9938 = vld [vmem:[#allocation11 + $0x34] sm:$0xf]
    %v9939 = vld [vmem:[#allocation11 + $0x38] sm:$0xf]
    %v9940 = vld [vmem:[#allocation11 + $0x3c] sm:$0xf]
    %v9941 = vld [vmem:[#allocation11 + $0x40] sm:$0xf]
    %v9942 = vld [vmem:[#allocation11 + $0x44] sm:$0xf]
    %v9943 = vld [vmem:[#allocation11 + $0x48] sm:$0xf]
    %v9944 = vld [vmem:[#allocation11 + $0x4c] sm:$0xf]
    %v9945 = vld [vmem:[#allocation11 + $0x50] sm:$0xf]
    %v9946 = vld [vmem:[#allocation11 + $0x54] sm:$0xf]
    %v9947 = vld [vmem:[#allocation11 + $0x58] sm:$0xf]
    %v9948 = vld [vmem:[#allocation11 + $0x5c] sm:$0xf]
    %v9949 = vld [vmem:[#allocation11 + $0x60] sm:$0xf]
    %v9950 = vld [vmem:[#allocation11 + $0x64] sm:$0xf]
    %v9951 = vld [vmem:[#allocation11 + $0x68] sm:$0xf]
    %v9952 = vld [vmem:[#allocation11 + $0x6c] sm:$0xf]
    %v9953 = vld [vmem:[#allocation11 + $0x70] sm:$0xf]
    %v9954 = vld [vmem:[#allocation11 + $0x74] sm:$0xf]
    %v9955 = vld [vmem:[#allocation11 + $0x78] sm:$0xf]
    %v9956 = vld [vmem:[#allocation11 + $0x7c] sm:$0xf]
    %v9957 = vld [vmem:[#allocation11 + $0x80] sm:$0xf]
    %v9958 = vld [vmem:[#allocation11 + $0x84] sm:$0xf]
    %v9959 = vld [vmem:[#allocation11 + $0x88] sm:$0xf]
    %v9960 = vld [vmem:[#allocation11 + $0x8c] sm:$0xf]
    %v9961 = vld [vmem:[#allocation11 + $0x90] sm:$0xf]
    %v9962 = vld [vmem:[#allocation11 + $0x94] sm:$0xf]
    %v9963 = vld [vmem:[#allocation11 + $0x98] sm:$0xf]
    %v9964 = vld [vmem:[#allocation11 + $0x9c] sm:$0xf]
    %v9965 = vld [vmem:[#allocation11 + $0xa0] sm:$0xf]
    %v9966 = vld [vmem:[#allocation11 + $0xa4] sm:$0xf]
    %v9967 = vld [vmem:[#allocation11 + $0xa8] sm:$0xf]
    %v9968 = vld [vmem:[#allocation11 + $0xac] sm:$0xf]
    %v9969 = vld [vmem:[#allocation11 + $0xb0] sm:$0xf]
    %v9970 = vld [vmem:[#allocation11 + $0xb4] sm:$0xf]
    %v9971 = vld [vmem:[#allocation11 + $0xb8] sm:$0xf]
    %v9972 = vld [vmem:[#allocation11 + $0xbc] sm:$0xf]
    %v9973 = vld [vmem:[#allocation11 + $0xc0] sm:$0xf]
    %v9974 = vld [vmem:[#allocation11 + $0xc4] sm:$0xf]
    %v9975 = vld [vmem:[#allocation11 + $0xc8] sm:$0xf]
    %v9976 = vld [vmem:[#allocation11 + $0xcc] sm:$0xf]
    %v9977 = vld [vmem:[#allocation11 + $0xd0] sm:$0xf]
    %v9978 = vld [vmem:[#allocation11 + $0xd4] sm:$0xf]
    %v9979 = vld [vmem:[#allocation11 + $0xd8] sm:$0xf]
    %v9980 = vld [vmem:[#allocation11 + $0xdc] sm:$0xf]
    %v9981 = vld [vmem:[#allocation11 + $0xe0] sm:$0xf]
    %v9982 = vld [vmem:[#allocation11 + $0xe4] sm:$0xf]
    %v9983 = vld [vmem:[#allocation11 + $0xe8] sm:$0xf]
    %v9984 = vld [vmem:[#allocation11 + $0xec] sm:$0xf]
    %v9985 = vld [vmem:[#allocation11 + $0xf0] sm:$0xf]
    %v9986 = vld [vmem:[#allocation11 + $0xf4] sm:$0xf]
    %v9987 = vld [vmem:[#allocation11 + $0xf8] sm:$0xf]
    %v9988 = vld [vmem:[#allocation11 + $0xfc] sm:$0xf]
    %v9989 = vld [vmem:[#allocation11 + $0x100] sm:$0xf]
    %v9990 = vld [vmem:[#allocation11 + $0x104] sm:$0xf]
    %v9991 = vld [vmem:[#allocation11 + $0x108] sm:$0xf]
    %v9992 = vld [vmem:[#allocation11 + $0x10c] sm:$0xf]
    %v9993 = vld [vmem:[#allocation11 + $0x110] sm:$0xf]
    %v9994 = vld [vmem:[#allocation11 + $0x114] sm:$0xf]
    %v9995 = vld [vmem:[#allocation11 + $0x118] sm:$0xf]
    %v9996 = vld [vmem:[#allocation11 + $0x11c] sm:$0xf]
    %v9997 = vld [vmem:[#allocation11 + $0x120] sm:$0xf]
    %v9998 = vld [vmem:[#allocation11 + $0x124] sm:$0xf]
    %v9999 = vld [vmem:[#allocation11 + $0x128] sm:$0xf]
    %v10000 = vld [vmem:[#allocation11 + $0x12c] sm:$0xf]
    %v10001 = vld [vmem:[#allocation11 + $0x130] sm:$0xf]
    %v10002 = vld [vmem:[#allocation11 + $0x134] sm:$0xf]
    %v10003 = vld [vmem:[#allocation11 + $0x138] sm:$0xf]
    %v10004 = vld [vmem:[#allocation11 + $0x13c] sm:$0xf]
    %v10005 = vld [vmem:[#allocation11 + $0x140] sm:$0xf]
    %v10006 = vld [vmem:[#allocation11 + $0x144] sm:$0xf]
    %v10007 = vld [vmem:[#allocation11 + $0x148] sm:$0xf]
    %v10008 = vld [vmem:[#allocation11 + $0x14c] sm:$0xf]
    %v10009 = vld [vmem:[#allocation11 + $0x150] sm:$0xf]
    %v10010 = vld [vmem:[#allocation11 + $0x154] sm:$0xf]
    %v10011 = vld [vmem:[#allocation11 + $0x158] sm:$0xf]
    %v10012 = vld [vmem:[#allocation11 + $0x15c] sm:$0xf]
    %v10013 = vld [vmem:[#allocation11 + $0x160] sm:$0xf]
    %v10014 = vld [vmem:[#allocation11 + $0x164] sm:$0xf]
    %v10015 = vld [vmem:[#allocation11 + $0x168] sm:$0xf]
    %v10016 = vld [vmem:[#allocation11 + $0x16c] sm:$0xf]
    %v10017 = vld [vmem:[#allocation11 + $0x170] sm:$0xf]
    %v10018 = vld [vmem:[#allocation11 + $0x174] sm:$0xf]
    %v10019 = vld [vmem:[#allocation11 + $0x178] sm:$0xf]
    %v10020 = vld [vmem:[#allocation11 + $0x17c] sm:$0xf]
    %v10021 = vld [vmem:[#allocation12] sm:$0x1]
    %v10023 = vperm.slane %v10021, 0
    %v10121 = vunpack.c.l.b16 %v9925
    %v10122 = vunpack.c.l.b16 %v9926
    %v10123 = vunpack.c.l.b16 %v9927
    %v10124 = vunpack.c.l.b16 %v9928
    %v10125 = vunpack.c.l.b16 %v9929
    %v10126 = vunpack.c.l.b16 %v9930
    %v10127 = vunpack.c.l.b16 %v9931
    %v10128 = vunpack.c.l.b16 %v9932
    %v10129 = vunpack.c.l.b16 %v9933
    %v10130 = vunpack.c.l.b16 %v9934
    %v10131 = vunpack.c.l.b16 %v9935
    %v10132 = vunpack.c.l.b16 %v9936
    %v10133 = vunpack.c.l.b16 %v9937
    %v10134 = vunpack.c.l.b16 %v9938
    %v10135 = vunpack.c.l.b16 %v9939
    %v10136 = vunpack.c.l.b16 %v9940
    %v10137 = vunpack.c.l.b16 %v9941
    %v10138 = vunpack.c.l.b16 %v9942
    %v10139 = vunpack.c.l.b16 %v9943
    %v10140 = vunpack.c.l.b16 %v9944
    %v10141 = vunpack.c.l.b16 %v9945
    %v10142 = vunpack.c.l.b16 %v9946
    %v10143 = vunpack.c.l.b16 %v9947
    %v10144 = vunpack.c.l.b16 %v9948
    %v10145 = vunpack.c.l.b16 %v9949
    %v10146 = vunpack.c.l.b16 %v9950
    %v10147 = vunpack.c.l.b16 %v9951
    %v10148 = vunpack.c.l.b16 %v9952
    %v10149 = vunpack.c.l.b16 %v9953
    %v10150 = vunpack.c.l.b16 %v9954
    %v10151 = vunpack.c.l.b16 %v9955
    %v10152 = vunpack.c.l.b16 %v9956
    %v10153 = vunpack.c.l.b16 %v9957
    %v10154 = vunpack.c.l.b16 %v9958
    %v10155 = vunpack.c.l.b16 %v9959
    %v10156 = vunpack.c.l.b16 %v9960
    %v10157 = vunpack.c.l.b16 %v9961
    %v10158 = vunpack.c.l.b16 %v9962
    %v10159 = vunpack.c.l.b16 %v9963
    %v10160 = vunpack.c.l.b16 %v9964
    %v10161 = vunpack.c.l.b16 %v9965
    %v10162 = vunpack.c.l.b16 %v9966
    %v10163 = vunpack.c.l.b16 %v9967
    %v10164 = vunpack.c.l.b16 %v9968
    %v10165 = vunpack.c.l.b16 %v9969
    %v10166 = vunpack.c.l.b16 %v9970
    %v10167 = vunpack.c.l.b16 %v9971
    %v10168 = vunpack.c.l.b16 %v9972
    %v10169 = vunpack.c.l.b16 %v9973
    %v10170 = vunpack.c.l.b16 %v9974
    %v10171 = vunpack.c.l.b16 %v9975
    %v10172 = vunpack.c.l.b16 %v9976
    %v10173 = vunpack.c.l.b16 %v9977
    %v10174 = vunpack.c.l.b16 %v9978
    %v10175 = vunpack.c.l.b16 %v9979
    %v10176 = vunpack.c.l.b16 %v9980
    %v10177 = vunpack.c.l.b16 %v9981
    %v10178 = vunpack.c.l.b16 %v9982
    %v10179 = vunpack.c.l.b16 %v9983
    %v10180 = vunpack.c.l.b16 %v9984
    %v10181 = vunpack.c.l.b16 %v9985
    %v10182 = vunpack.c.l.b16 %v9986
    %v10183 = vunpack.c.l.b16 %v9987
    %v10184 = vunpack.c.l.b16 %v9988
    %v10185 = vunpack.c.l.b16 %v9989
    %v10186 = vunpack.c.l.b16 %v9990
    %v10187 = vunpack.c.l.b16 %v9991
    %v10188 = vunpack.c.l.b16 %v9992
    %v10189 = vunpack.c.l.b16 %v9993
    %v10190 = vunpack.c.l.b16 %v9994
    %v10191 = vunpack.c.l.b16 %v9995
    %v10192 = vunpack.c.l.b16 %v9996
    %v10193 = vunpack.c.l.b16 %v9997
    %v10194 = vunpack.c.l.b16 %v9998
    %v10195 = vunpack.c.l.b16 %v9999
    %v10196 = vunpack.c.l.b16 %v10000
    %v10197 = vunpack.c.l.b16 %v10001
    %v10198 = vunpack.c.l.b16 %v10002
    %v10199 = vunpack.c.l.b16 %v10003
    %v10200 = vunpack.c.l.b16 %v10004
    %v10201 = vunpack.c.l.b16 %v10005
    %v10202 = vunpack.c.l.b16 %v10006
    %v10203 = vunpack.c.l.b16 %v10007
    %v10204 = vunpack.c.l.b16 %v10008
    %v10205 = vunpack.c.l.b16 %v10009
    %v10206 = vunpack.c.l.b16 %v10010
    %v10207 = vunpack.c.l.b16 %v10011
    %v10208 = vunpack.c.l.b16 %v10012
    %v10209 = vunpack.c.l.b16 %v10013
    %v10210 = vunpack.c.l.b16 %v10014
    %v10211 = vunpack.c.l.b16 %v10015
    %v10212 = vunpack.c.l.b16 %v10016
    %v10213 = vunpack.c.l.b16 %v10017
    %v10214 = vunpack.c.l.b16 %v10018
    %v10215 = vunpack.c.l.b16 %v10019
    %v10216 = vunpack.c.l.b16 %v10020
    %v10217 = vpack.c.b16 %v10122, %v10121
    %v10218 = vpack.c.b16 %v10124, %v10123
    %v10219 = vpack.c.b16 %v10126, %v10125
    %v10220 = vpack.c.b16 %v10128, %v10127
    %v10221 = vpack.c.b16 %v10130, %v10129
    %v10222 = vpack.c.b16 %v10132, %v10131
    %v10223 = vpack.c.b16 %v10134, %v10133
    %v10224 = vpack.c.b16 %v10136, %v10135
    %v10225 = vpack.c.b16 %v10138, %v10137
    %v10226 = vpack.c.b16 %v10140, %v10139
    %v10227 = vpack.c.b16 %v10142, %v10141
    %v10228 = vpack.c.b16 %v10144, %v10143
    %v10229 = vpack.c.b16 %v10146, %v10145
    %v10230 = vpack.c.b16 %v10148, %v10147
    %v10231 = vpack.c.b16 %v10150, %v10149
    %v10232 = vpack.c.b16 %v10152, %v10151
    %v10233 = vpack.c.b16 %v10154, %v10153
    %v10234 = vpack.c.b16 %v10156, %v10155
    %v10235 = vpack.c.b16 %v10158, %v10157
    %v10236 = vpack.c.b16 %v10160, %v10159
    %v10237 = vpack.c.b16 %v10162, %v10161
    %v10238 = vpack.c.b16 %v10164, %v10163
    %v10239 = vpack.c.b16 %v10166, %v10165
    %v10240 = vpack.c.b16 %v10168, %v10167
    %v10241 = vpack.c.b16 %v10170, %v10169
    %v10242 = vpack.c.b16 %v10172, %v10171
    %v10243 = vpack.c.b16 %v10174, %v10173
    %v10244 = vpack.c.b16 %v10176, %v10175
    %v10245 = vpack.c.b16 %v10178, %v10177
    %v10246 = vpack.c.b16 %v10180, %v10179
    %v10247 = vpack.c.b16 %v10182, %v10181
    %v10248 = vpack.c.b16 %v10184, %v10183
    %v10249 = vpack.c.b16 %v10186, %v10185
    %v10250 = vpack.c.b16 %v10188, %v10187
    %v10251 = vpack.c.b16 %v10190, %v10189
    %v10252 = vpack.c.b16 %v10192, %v10191
    %v10253 = vpack.c.b16 %v10194, %v10193
    %v10254 = vpack.c.b16 %v10196, %v10195
    %v10255 = vpack.c.b16 %v10198, %v10197
    %v10256 = vpack.c.b16 %v10200, %v10199
    %v10257 = vpack.c.b16 %v10202, %v10201
    %v10258 = vpack.c.b16 %v10204, %v10203
    %v10259 = vpack.c.b16 %v10206, %v10205
    %v10260 = vpack.c.b16 %v10208, %v10207
    %v10261 = vpack.c.b16 %v10210, %v10209
    %v10262 = vpack.c.b16 %v10212, %v10211
    %v10263 = vpack.c.b16 %v10214, %v10213
    %v10264 = vpack.c.b16 %v10216, %v10215
    %10313 = vmatpush.bf16.msra.mxu0 %v10224
    %10314 = vmatpush.bf16.msra.mxu0 %v10223
    %10315 = vmatpush.bf16.msra.mxu0 %v10222
    %10316 = vmatpush.bf16.msra.mxu0 %v10221
    %10317 = vmatpush.bf16.msra.mxu0 %v10220
    %10318 = vmatpush.bf16.msra.mxu0 %v10219
    %10319 = vmatpush.bf16.msra.mxu0 %v10218
    %10320 = vmatpush.bf16.msra.mxu0 %v10217
    %10321 = vmatmul.bf16.gmra.mxu0 %v9919
    %v10322 = vpop.f32.mrf.mxu0
    %v10323 = vadd.f32 %v10023, %v10322
    %v10324 = vpop.f32.mrf.mxu0
    %10325 = vdwg.mxu0
    %10326 = vmatpush.bf16.msra.mxu0 %v10232
    %10327 = vmatpush.bf16.msra.mxu0 %v10231
    %10328 = vmatpush.bf16.msra.mxu0 %v10230
    %10329 = vmatpush.bf16.msra.mxu0 %v10229
    %10330 = vmatpush.bf16.msra.mxu0 %v10228
    %10331 = vmatpush.bf16.msra.mxu0 %v10227
    %10332 = vmatpush.bf16.msra.mxu0 %v10226
    %10333 = vmatpush.bf16.msra.mxu0 %v10225
    %10334 = vmatmul.bf16.gmra.mxu0 %v9920
    %v10335 = vpop.f32.mrf.mxu0
    %v10336 = vadd.f32 %v10323, %v10335
    %v10337 = vpop.f32.mrf.mxu0
    %10338 = vdwg.mxu0
    %10339 = vmatpush.bf16.msra.mxu0 %v10240
    %10340 = vmatpush.bf16.msra.mxu0 %v10239
    %10341 = vmatpush.bf16.msra.mxu0 %v10238
    %10342 = vmatpush.bf16.msra.mxu0 %v10237
    %10343 = vmatpush.bf16.msra.mxu0 %v10236
    %10344 = vmatpush.bf16.msra.mxu0 %v10235
    %10345 = vmatpush.bf16.msra.mxu0 %v10234
    %10346 = vmatpush.bf16.msra.mxu0 %v10233
    %10347 = vmatmul.bf16.gmra.mxu0 %v9921
    %v10348 = vpop.f32.mrf.mxu0
    %v10349 = vadd.f32 %v10336, %v10348
    %v10350 = vpop.f32.mrf.mxu0
    %10351 = vdwg.mxu0
    %10352 = vmatpush.bf16.msra.mxu0 %v10248
    %10353 = vmatpush.bf16.msra.mxu0 %v10247
    %10354 = vmatpush.bf16.msra.mxu0 %v10246
    %10355 = vmatpush.bf16.msra.mxu0 %v10245
    %10356 = vmatpush.bf16.msra.mxu0 %v10244
    %10357 = vmatpush.bf16.msra.mxu0 %v10243
    %10358 = vmatpush.bf16.msra.mxu0 %v10242
    %10359 = vmatpush.bf16.msra.mxu0 %v10241
    %10360 = vmatmul.bf16.gmra.mxu0 %v9922
    %v10361 = vpop.f32.mrf.mxu0
    %v10362 = vadd.f32 %v10349, %v10361
    %v10363 = vpop.f32.mrf.mxu0
    %10364 = vdwg.mxu0
    %10365 = vmatpush.bf16.msra.mxu0 %v10256
    %10366 = vmatpush.bf16.msra.mxu0 %v10255
    %10367 = vmatpush.bf16.msra.mxu0 %v10254
    %10368 = vmatpush.bf16.msra.mxu0 %v10253
    %10369 = vmatpush.bf16.msra.mxu0 %v10252
    %10370 = vmatpush.bf16.msra.mxu0 %v10251
    %10371 = vmatpush.bf16.msra.mxu0 %v10250
    %10372 = vmatpush.bf16.msra.mxu0 %v10249
    %10373 = vmatmul.bf16.gmra.mxu0 %v9923
    %v10374 = vpop.f32.mrf.mxu0
    %v10375 = vadd.f32 %v10362, %v10374
    %v10376 = vpop.f32.mrf.mxu0
    %10377 = vdwg.mxu0
    %10378 = vmatpush.bf16.msra.mxu0 %v10264
    %10379 = vmatpush.bf16.msra.mxu0 %v10263
    %10380 = vmatpush.bf16.msra.mxu0 %v10262
    %10381 = vmatpush.bf16.msra.mxu0 %v10261
    %10382 = vmatpush.bf16.msra.mxu0 %v10260
    %10383 = vmatpush.bf16.msra.mxu0 %v10259
    %10384 = vmatpush.bf16.msra.mxu0 %v10258
    %10385 = vmatpush.bf16.msra.mxu0 %v10257
    %10386 = vmatmul.bf16.gmra.mxu0 %v9924
    %v10387 = vpop.f32.mrf.mxu0
    %v10388 = vadd.f32 %v10375, %v10387
    %v10389 = vpop.f32.mrf.mxu0
    %10390 = vdwg.mxu0
    %10391 = vst [vmem:[#allocation14] sm:$0xff] %v10388
    // Predicated region
    $region54: #{tpu_custom_call.1} parent=1 // pred_check
      _
    $region55: #{tpu_custom_call.1} parent=1 // pred_check_branch
      %10393 = sbr.rel (0) target = $region57
    $region56: #{tpu_custom_call.1} parent=1 // pred_region
      %10395 = vsyncadd [#allocation5], 0
      %s10397 = sshll.u32 [#allocation14], 4
      %s10398 = int_to_ptr.vmem [resolvable:$true] %s10397
      %s10399 = sshll.u32 %s7, 4
      %s10400 = int_to_ptr.hbm [resolvable:$true] %s10399
      %10402 = dma.vmem_to_hbm [thread:$0]  %s10398, 128, %s10400, [#allocation5]
    $region57: #{tpu_custom_call.1} parent=1 // pred_fallthru
      _
    // Predicated region
    $region58: #{tpu_custom_call.1} parent=1 // pred_check
      _
    $region59: #{tpu_custom_call.1} parent=1 // pred_check_branch
      %10404 = sbr.rel (0) target = $region61
    $region60: #{tpu_custom_call.1} parent=1 // pred_region
      %10406 = dma.done [#allocation5], 128
    $region61: #{tpu_custom_call.1} parent=1 // pred_fallthru
      _
    %10407 = vsyncpa [#allocation4], 1
    %10408 = vsyncpa [#allocation7], 1
    %10409 = vsyncpa [#allocation10], 1
    %10410 = vsyncpa [#allocation13], 1
    %10411 = vsyncpa [#allocation5], 1

</llo_original>
